<compile_context>
chip_gen: v7x
topology: tpu7x:2x2x1
jax: 0.10.0
libtpu: 0.0.40
codegen_flags: <defaults>
</compile_context>

<pallas_src>
import functools

import jax
import jax.numpy as jnp
from jax.experimental import pallas as pl
from jax.experimental.pallas import tpu as pltpu

EPS = 1e-5
SLOPE = 0.2            # LeakyReLU negative slope
MLP_TILE = 512         # rows per grid step for the small (B, 1024) MLP kernel
EDGE_TILE = 256        # points per grid step for the EdgeConv kernels
GMAX_TILE = 512        # points per grid step for the conv+global-max kernel
TAIL_TILE = 512        # points per grid step for the segmentation head
VMEM_LIMIT = 48 * 1024 * 1024   # explicit scoped-VMEM cap (<= v7x physical)


def _leaky(y, slope):
    if slope == 1.0:
        return y
    return jnp.where(y >= 0, y, slope * y)


def _cost(flops, nbytes):
    return pl.CostEstimate(flops=int(flops), transcendentals=0,
                           bytes_accessed=int(nbytes))


def _nbytes(a):
    return a.size * a.dtype.itemsize


def _cparams(sem):
    return pltpu.CompilerParams(dimension_semantics=sem,
                                vmem_limit_bytes=VMEM_LIMIT)


# ----------------------------------------------------------------------------
# Kernel 1: fused chain of pointwise layers (matmul -> +shift -> LeakyReLU)
#           (only used for the tiny transform-net head on (B, 1024) rows)
# ----------------------------------------------------------------------------
def _mlp_kernel(*refs, n_layers, slopes):
    x_ref = refs[0]
    o_ref = refs[-1]
    lrefs = refs[1:-1]                      # w0, b0, w1, b1, ...
    y = x_ref[...]
    for j in range(n_layers):
        w_ref = lrefs[2 * j]
        b_ref = lrefs[2 * j + 1]
        y = jnp.dot(y.astype(w_ref.dtype), w_ref[...],
                    preferred_element_type=jnp.float32) + b_ref[...]
        y = _leaky(y, slopes[j])
    o_ref[...] = y.astype(o_ref.dtype)


def fused_mlp(x2d, layers, slopes, *, tile=MLP_TILE):
    """Chain of pointwise (w, shift) layers on a (M, Cin) activation."""
    M, cin = x2d.shape
    cout = layers[-1][0].shape[1]
    tm = M if M <= tile else tile
    grid = (pl.cdiv(M, tm),)

    in_specs = [pl.BlockSpec((tm, cin), lambda i: (i, 0))]
    args = [x2d]
    flops = 0
    nbytes = _nbytes(x2d) + M * cout * 4
    for (w, b) in layers:
        ci, co = w.shape
        in_specs.append(pl.BlockSpec((ci, co), lambda i: (0, 0)))
        in_specs.append(pl.BlockSpec((1, co), lambda i: (0, 0)))
        args += [w, b.reshape(1, co)]
        flops += 2 * M * ci * co
        nbytes += _nbytes(w) + co * 4

    return pl.pallas_call(
        functools.partial(_mlp_kernel, n_layers=len(layers),
                          slopes=tuple(slopes)),
        out_shape=jax.ShapeDtypeStruct((M, cout), jnp.float32),
        grid=grid,
        in_specs=in_specs,
        out_specs=pl.BlockSpec((tm, cout), lambda i: (i, 0)),
        compiler_params=_cparams(("parallel",)),
        cost_estimate=_cost(flops, nbytes),
    )(*args)


# ----------------------------------------------------------------------------
# Kernel 2: fused EdgeConv block  (conv [+ conv] + max over k, all in VMEM)
#   * no per-k subtract:  (n - c) @ W1a + c @ W1b == n @ W1a + c @ (W1b - W1a)
#   * one batched (K*tm, C) matmul instead of K tiny matmuls (fills the MXU)
# ----------------------------------------------------------------------------
def _edgeconv_kernel(*refs, slope, two_layers):
    if two_layers:
        nb_ref, c_ref, w1a_ref, w1d_ref, b1_ref, w2_ref, b2_ref, o_ref = refs
    else:
        nb_ref, c_ref, w1a_ref, w1d_ref, b1_ref, o_ref = refs
    K, tm, C = nb_ref.shape
    c1 = w1a_ref.shape[1]

    # center @ (W1b - W1a) + shift is shared by every neighbor k.
    base = jnp.dot(c_ref[...].astype(w1d_ref.dtype), w1d_ref[...],
                   preferred_element_type=jnp.float32) + b1_ref[...]

    # Batched-K matmul: one (K*tm, C) LHS.
    nb = nb_ref[...].reshape(K * tm, C)
    y = jnp.dot(nb.astype(w1a_ref.dtype), w1a_ref[...],
                preferred_element_type=jnp.float32)
    y = y.reshape(K, tm, c1) + base[None]
    y = _leaky(y, slope)

    if two_layers:
        cout = w2_ref.shape[1]
        y = jnp.dot(y.reshape(K * tm, c1).astype(w2_ref.dtype), w2_ref[...],
                    preferred_element_type=jnp.float32) + b2_ref[...]
        y = _leaky(y, slope).reshape(K, tm, cout)

    o_ref[...] = jnp.max(y, axis=0).astype(o_ref.dtype)


def edgeconv_block(neigh, center, layer1, layer2=None, *,
                   tile=EDGE_TILE, slope=SLOPE, out_dtype=jnp.bfloat16):
    """Fused EdgeConv.

    neigh:  (K, M, C)  neighbor point features, k-major layout
    center: (M, C)     center point features
    layer1: (W1a, W1d, shift1)  with W1d = W1b - W1a (precombined, f32 math)
    layer2: optional (W2, shift2)
    returns (M, Cout)  (already max-reduced over k), stored bf16 by default.
    """
    K, M, C = neigh.shape
    w1a, w1d, b1 = layer1
    c1 = w1a.shape[1]
    tm = M if M <= tile else tile
    grid = (pl.cdiv(M, tm),)

    in_specs = [
        pl.BlockSpec((K, tm, C), lambda i: (0, i, 0)),
        pl.BlockSpec((tm, C), lambda i: (i, 0)),
        pl.BlockSpec(w1a.shape, lambda i: (0, 0)),
        pl.BlockSpec(w1d.shape, lambda i: (0, 0)),
        pl.BlockSpec((1, c1), lambda i: (0, 0)),
    ]
    args = [neigh, center, w1a, w1d, b1.reshape(1, c1)]
    flops = 2 * M * C * c1 * (K + 1)
    cout = c1
    if layer2 is not None:
        w2, b2 = layer2
        cout = w2.shape[1]
        in_specs += [pl.BlockSpec(w2.shape, lambda i: (0, 0)),
                     pl.BlockSpec((1, cout), lambda i: (0, 0))]
        args += [w2, b2.reshape(1, cout)]
        flops += 2 * M * K * c1 * cout
    nbytes = _nbytes(neigh) + _nbytes(center) + M * cout * 2

    return pl.pallas_call(
        functools.partial(_edgeconv_kernel, slope=slope,
                          two_layers=layer2 is not None),
        out_shape=jax.ShapeDtypeStruct((M, cout), out_dtype),
        grid=grid,
        in_specs=in_specs,
        out_specs=pl.BlockSpec((tm, cout), lambda i: (i, 0)),
        compiler_params=_cparams(("parallel",)),
        cost_estimate=_cost(flops, nbytes),
    )(*args)


# ----------------------------------------------------------------------------
# Kernel 3: multi-input pointwise conv + global max over the point axis.
#   y = LeakyReLU(sum_i x_i @ W_i + shift); out[b] = max_n y[b, n, :]
#   (avoids materializing concat([x1, x2, x3]) for conv6)
# ----------------------------------------------------------------------------
def _conv_gmax_kernel(*refs, slope, n_parts, mask_rows, tn, n_total):
    b_ref = refs[-2]
    o_ref = refs[-1]
    i = pl.program_id(1)
    y = None
    for j in range(n_parts):
        x_ref = refs[2 * j]
        w_ref = refs[2 * j + 1]
        part = jnp.dot(x_ref[0].astype(w_ref.dtype), w_ref[...],
                       preferred_element_type=jnp.float32)
        y = part if y is None else y + part
    y = _leaky(y + b_ref[...], slope)
    if mask_rows:
        # only compiled in when N % tn != 0 (ragged last tile)
        row = i * tn + jax.lax.broadcasted_iota(jnp.int32, (tn, 1), 0)
        y = jnp.where(row < n_total, y, -jnp.inf)
    m = jnp.max(y, axis=0, keepdims=True)[None]      # (1, 1, Cout)

    @pl.when(i == 0)
    def _():
        o_ref[...] = m

    @pl.when(i != 0)
    def _():
        o_ref[...] = jnp.maximum(o_ref[...], m)


def conv_gmax(parts, shift, *, tile=GMAX_TILE, slope=SLOPE):
    """parts: list of (x_bnc, w).  Fused sum_i x_i @ W_i + BN shift + LReLU,
    then max over the point axis.  Returns (B, Cout) float32."""
    B, N, _ = parts[0][0].shape
    cout = parts[0][1].shape[1]
    tn = N if N <= tile else tile
    grid = (B, pl.cdiv(N, tn))
    mask_rows = (N % tn) != 0

    in_specs, args = [], []
    flops, nbytes = 0, B * cout * 4
    for (x, w) in parts:
        ci = w.shape[0]
        in_specs.append(pl.BlockSpec((1, tn, ci), lambda bi, ni: (bi, ni, 0)))
        in_specs.append(pl.BlockSpec(w.shape, lambda bi, ni: (0, 0)))
        args += [x, w]
        flops += 2 * B * N * ci * cout
        nbytes += _nbytes(x) + _nbytes(w)
    in_specs.append(pl.BlockSpec((1, cout), lambda bi, ni: (0, 0)))
    args.append(shift.reshape(1, cout))

    out = pl.pallas_call(
        functools.partial(_conv_gmax_kernel, slope=slope, n_parts=len(parts),
                          mask_rows=mask_rows, tn=tn, n_total=N),
        out_shape=jax.ShapeDtypeStruct((B, 1, cout), jnp.float32),
        grid=grid,
        in_specs=in_specs,
        out_specs=pl.BlockSpec((1, 1, cout), lambda bi, ni: (bi, 0, 0)),
        compiler_params=_cparams(("parallel", "arbitrary")),
        cost_estimate=_cost(flops, nbytes),
    )(*args)
    # TODO(synk): on v7x with tiny B, a two-stage reduce (per-tile partial max
    # on a parallel grid + small second-stage max) would use both TensorCores.
    return out.reshape(B, cout)


# ----------------------------------------------------------------------------
# Kernel 4: segmentation head conv8..conv11, fused.
#   conv8's input concat([glob, x1, x2, x3]) is never materialized: the weight
#   is row-split and the per-batch global feature row is fetched via index_map.
# ----------------------------------------------------------------------------
def _tail_kernel(g_ref, x1_ref, x2_ref, x3_ref,
                 w8g_ref, w8x1_ref, w8x2_ref, w8x3_ref, b8_ref,
                 w9_ref, b9_ref, w10_ref, b10_ref, w11_ref, b11_ref,
                 o_ref, *, slope):
    # per-batch global-feature contribution (1, 256), computed once per tile
    g = g_ref[0]                                                      # (1, 1088)
    gpart = jnp.dot(g.astype(w8g_ref.dtype), w8g_ref[...],
                    preferred_element_type=jnp.float32) + b8_ref[...]
    y = (jnp.dot(x1_ref[0].astype(w8x1_ref.dtype), w8x1_ref[...],
                 preferred_element_type=jnp.float32)
         + jnp.dot(x2_ref[0].astype(w8x2_ref.dtype), w8x2_ref[...],
                   preferred_element_type=jnp.float32)
         + jnp.dot(x3_ref[0].astype(w8x3_ref.dtype), w8x3_ref[...],
                   preferred_element_type=jnp.float32)
         + gpart)
    y = _leaky(y, slope)
    # TODO(synk): dp1/dp2 (Dropout p=0.5) are identity in inference mode.
    y = _leaky(jnp.dot(y.astype(w9_ref.dtype), w9_ref[...],
                       preferred_element_type=jnp.float32) + b9_ref[...], slope)
    y = _leaky(jnp.dot(y.astype(w10_ref.dtype), w10_ref[...],
                       preferred_element_type=jnp.float32) + b10_ref[...], slope)
    y = jnp.dot(y.astype(w11_ref.dtype), w11_ref[...],
                preferred_element_type=jnp.float32) + b11_ref[...]
    o_ref[0] = y.astype(o_ref.dtype)


def seg_head(glob, x1, x2, x3, p, *, tile=TAIL_TILE, slope=SLOPE):
    """glob: (B, 1088) f32; x1/x2/x3: (B, N, 64) bf16 -> (B, N, 128) f32
    (conv11 output padded to 128 lanes; sliced to num_part in the wrapper)."""
    B, N, _ = x1.shape
    w8g, w8x1, w8x2, w8x3, b8 = p["conv8"]
    w9, b9 = p["conv9"]
    w10, b10 = p["conv10"]
    w11, b11 = p["conv11"]
    cpad = w11.shape[1]
    tn = N if N <= tile else tile
    grid = (B, pl.cdiv(N, tn))
    glob3 = glob.reshape(B, 1, glob.shape[-1])

    def full(a):
        return pl.BlockSpec(a.shape, lambda bi, ni: (0,) * a.ndim)

    in_specs = [
        pl.BlockSpec((1, 1, glob.shape[-1]), lambda bi, ni: (bi, 0, 0)),
        pl.BlockSpec((1, tn, x1.shape[-1]), lambda bi, ni: (bi, ni, 0)),
        pl.BlockSpec((1, tn, x2.shape[-1]), lambda bi, ni: (bi, ni, 0)),
        pl.BlockSpec((1, tn, x3.shape[-1]), lambda bi, ni: (bi, ni, 0)),
        full(w8g), full(w8x1), full(w8x2), full(w8x3),
        pl.BlockSpec((1, 256), lambda bi, ni: (0, 0)),
        full(w9), pl.BlockSpec((1, 256), lambda bi, ni: (0, 0)),
        full(w10), pl.BlockSpec((1, 128), lambda bi, ni: (0, 0)),
        full(w11), pl.BlockSpec((1, cpad), lambda bi, ni: (0, 0)),
    ]
    args = [glob3, x1, x2, x3,
            w8g, w8x1, w8x2, w8x3, b8.reshape(1, 256),
            w9, b9.reshape(1, 256), w10, b10.reshape(1, 128),
            w11, b11.reshape(1, cpad)]

    M = B * N
    flops = 2 * M * (3 * 64 * 256 + 256 * 256 + 256 * 128 + 128 * cpad) \
        + 2 * B * 1088 * 256
    nbytes = (_nbytes(x1) + _nbytes(x2) + _nbytes(x3) + _nbytes(glob)
              + sum(_nbytes(w) for w in (w8g, w8x1, w8x2, w8x3, w9, w10, w11))
              + M * cpad * 4)

    return pl.pallas_call(
        functools.partial(_tail_kernel, slope=slope),
        out_shape=jax.ShapeDtypeStruct((B, N, cpad), jnp.float32),
        grid=grid,
        in_specs=in_specs,
        out_specs=pl.BlockSpec((1, tn, cpad), lambda bi, ni: (bi, ni, 0)),
        compiler_params=_cparams(("parallel", "parallel")),
        cost_estimate=_cost(flops, nbytes),
    )(*args)


# ----------------------------------------------------------------------------
# knn + neighbor gather (data-dependent indexing, kept as XLA glue)
# ----------------------------------------------------------------------------
def knn_idx(x_bnc, k):
    # distances in f32 even when features are stored bf16 (ordering stability)
    xf = x_bnc.astype(jnp.float32)
    sq = jnp.sum(xf * xf, axis=-1)                            # (B, N)
    inner = jnp.einsum("bnc,bmc->bnm", xf, xf)                # (B, N, N)
    neg_dist = 2.0 * inner - sq[:, :, None] - sq[:, None, :]
    return jax.lax.top_k(neg_dist, k)[1]                      # (B, N, K)


# TODO(synk): the knn gather is still XLA glue; a fully in-kernel row gather
# (per-batch (N, C) block resident in VMEM + jnp.take on prefetched indices)
# would remove the (K, B*N, C) HBM round trip entirely, but its Mosaic gather
# lowering is not guaranteed for arbitrary shapes.  The neighbor stream is
# gathered/stored in bf16 instead, halving its HBM cost vs the f32 baseline.
def build_edge_inputs(x_bnc, k):
    """Neighbor features in k-major layout + center features (dtype preserved)."""
    B, N, C = x_bnc.shape
    idx = knn_idx(x_bnc, k)                                   # (B, N, K)
    idx_kbn = jnp.transpose(idx, (2, 0, 1))                   # (K, B, N)
    gather_b = jax.vmap(lambda xb, ib: xb[ib])                # per-batch gather
    neigh = jax.vmap(lambda ikb: gather_b(x_bnc, ikb))(idx_kbn)  # (K, B, N, C)
    return neigh.reshape(k, B * N, C), x_bnc.reshape(B * N, C)


# ----------------------------------------------------------------------------
# Parameter construction (deterministic, synthetic; BN folded into weights)
# ----------------------------------------------------------------------------
def _fold_bn(gamma, beta, mean, var):
    scale = gamma / jnp.sqrt(var + EPS)
    return scale, beta - mean * scale


def _wdtype(cin):
    # bf16 on the MXU only pays off with a non-trivial contraction dim.
    return jnp.bfloat16 if cin >= 16 else jnp.float32


def make_conv_bn_f32(key, cin, cout):
    """Pointwise conv/linear weight with inference-mode BN folded in (f32)."""
    kw, kg, kb = jax.random.split(key, 3)
    w = 0.05 * jax.random.normal(kw, (cin, cout), jnp.float32)
    gamma = 1.0 + 0.02 * jax.random.normal(kg, (cout,), jnp.float32)
    beta = 0.02 * jax.random.normal(kb, (cout,), jnp.float32)
    scale, shift = _fold_bn(gamma, beta, jnp.zeros(cout), jnp.ones(cout))
    return w * scale[None, :], shift


def make_conv_bn(key, cin, cout):
    w, shift = make_conv_bn_f32(key, cin, cout)
    return w.astype(_wdtype(cin)), shift.astype(jnp.float32)


def make_edge_first(key, c_point, cout):
    """First layer of an EdgeConv block; W = [W_diff; W_center] is precombined:
    returns (W_diff, W_center - W_diff, shift), subtraction done in f32."""
    w, shift = make_conv_bn_f32(key, 2 * c_point, cout)
    wa = w[:c_point, :]
    wd = w[c_point:, :] - wa
    dt = _wdtype(c_point)
    return wa.astype(dt), wd.astype(dt), shift.astype(jnp.float32)


def make_conv6(key):
    """conv6 (192 -> 1024), weight split into three 64-row slabs."""
    w, shift = make_conv_bn_f32(key, 192, 1024)
    dt = _wdtype(192)
    return ((w[:64].astype(dt), w[64:128].astype(dt), w[128:].astype(dt)),
            shift.astype(jnp.float32))


def make_conv8(key, num_categories=16):
    """conv8 (1280 -> 256), weight row-split over [glob(1088); x1; x2; x3]."""
    cin = 1024 + 64 + 3 * 64
    w, shift = make_conv_bn_f32(key, cin, 256)
    dt = _wdtype(cin)
    return (w[:1088].astype(dt), w[1088:1152].astype(dt),
            w[1152:1216].astype(dt), w[1216:1280].astype(dt),
            shift.astype(jnp.float32))


def make_final(key, cin, num_part, pad_to=128):
    """conv11: plain conv, no BN / bias / activation; output lane-padded."""
    w = 0.05 * jax.random.normal(key, (cin, num_part), jnp.float32)
    w = jnp.pad(w, ((0, 0), (0, pad_to - num_part)))
    return (w.astype(_wdtype(cin)), jnp.zeros((pad_to,), jnp.float32))


def init_params(key, num_part=50, num_categories=16):
    keys = iter(jax.random.split(key, 24))
    p = {}
    # Transform_Net
    p["t_conv1"] = make_edge_first(next(keys), 3, 64)
    p["t_conv2"] = make_conv_bn(next(keys), 64, 128)
    p["t_conv3"] = make_conv_bn(next(keys), 128, 1024)
    p["t_lin1"] = make_conv_bn(next(keys), 1024, 512)
    p["t_lin2"] = make_conv_bn(next(keys), 512, 256)
    # transform: weight = 0, bias = eye(3) (exact module init), no BN / act.
    p["t_transform"] = (jnp.zeros((256, 9), jnp.bfloat16),
                        jnp.eye(3, dtype=jnp.float32).reshape(9))
    # DGCNN_PSEG trunk
    p["conv1"] = make_edge_first(next(keys), 3, 64)
    p["conv2"] = make_conv_bn(next(keys), 64, 64)
    p["conv3"] = make_edge_first(next(keys), 64, 64)
    p["conv4"] = make_conv_bn(next(keys), 64, 64)
    p["conv5"] = make_edge_first(next(keys), 64, 64)
    p["conv6"] = make_conv6(next(keys))
    p["conv7"] = make_conv_bn_f32(next(keys), num_categories, 64)  # XLA glue
    p["conv8"] = make_conv8(next(keys), num_categories)
    p["conv9"] = make_conv_bn(next(keys), 256, 256)
    p["conv10"] = make_conv_bn(next(keys), 256, 128)
    p["conv11"] = make_final(next(keys), 128, num_part)
    return p


# ----------------------------------------------------------------------------
# Forward pass
# ----------------------------------------------------------------------------
def transform_net_forward(p, neigh, center, B, N):
    h = edgeconv_block(neigh, center, p["t_conv1"], p["t_conv2"])   # (M, 128)
    g = conv_gmax([(h.reshape(B, N, 128), p["t_conv3"][0])],
                  p["t_conv3"][1])                                  # (B, 1024)
    t = fused_mlp(g, [p["t_lin1"], p["t_lin2"], p["t_transform"]],
                  slopes=(SLOPE, SLOPE, 1.0))                       # (B, 9)
    return t.reshape(B, 3, 3)


def dgcnn_pseg_forward(p, x, l, *, k, num_part):
    # x: (B, 3, N) points;  l: (B, 16) one-hot category label
    B, _, N = x.shape

    # ---- spatial transform ----
    x_bnc = jnp.transpose(x, (0, 2, 1))                    # (B, N, 3) f32
    neigh, center = build_edge_inputs(x_bnc, k)
    t = transform_net_forward(p, neigh, center, B, N)      # (B, 3, 3)
    xt_bnc = jnp.einsum("bnc,bcd->bnd", x_bnc, t)          # == x^T @ t

    # ---- EdgeConv blocks (conv[+conv]+max fused per block; bf16 outputs) ----
    neigh, center = build_edge_inputs(xt_bnc, k)
    x1 = edgeconv_block(neigh, center, p["conv1"], p["conv2"])   # (M, 64) bf16

    neigh, center = build_edge_inputs(x1.reshape(B, N, 64), k)
    x2 = edgeconv_block(neigh, center, p["conv3"], p["conv4"])   # (M, 64) bf16

    neigh, center = build_edge_inputs(x2.reshape(B, N, 64), k)
    x3 = edgeconv_block(neigh, center, p["conv5"])               # (M, 64) bf16

    x1b = x1.reshape(B, N, 64)
    x2b = x2.reshape(B, N, 64)
    x3b = x3.reshape(B, N, 64)

    # ---- global feature (conv6 without materializing concat([x1,x2,x3])) ----
    (w6a, w6b, w6c), b6 = p["conv6"]
    gmax = conv_gmax([(x1b, w6a), (x2b, w6b), (x3b, w6c)], b6)   # (B, 1024)

    # conv7 on the one-hot label: a (B,16)@(16,64) matmul -> plain XLA.
    w7, b7 = p["conv7"]
    lfeat = _leaky(l @ w7 + b7, SLOPE)                           # (B, 64)
    glob = jnp.concatenate([gmax, lfeat], axis=-1)               # (B, 1088)

    # ---- per-point segmentation head (conv8..conv11, one fused kernel) ----
    out = seg_head(glob, x1b, x2b, x3b, p)                       # (B, N, 128)
    out = out[..., :num_part]                                    # (B, N, P)
    return jnp.transpose(out, (0, 2, 1))                         # (B, P, N)


# ----------------------------------------------------------------------------
if __name__ == "__main__":
    B, N, K = 2, 16, 4
    NUM_PART, NUM_CAT = 50, 16

    key = jax.random.PRNGKey(0)
    kx, kl, kp = jax.random.split(key, 3)

    x = jax.random.normal(kx, (B, 3, N), jnp.float32)            # point cloud
    lab = jax.random.randint(kl, (B,), 0, NUM_CAT)
    l = jax.nn.one_hot(lab, NUM_CAT, dtype=jnp.float32)          # (B, 16)

    params = init_params(kp, num_part=NUM_PART, num_categories=NUM_CAT)

    fwd = jax.jit(functools.partial(dgcnn_pseg_forward, k=K, num_part=NUM_PART))
    out = fwd(params, x, l)
    jax.block_until_ready(out)

    assert out.shape == (B, NUM_PART, N), out.shape
    assert bool(jnp.all(jnp.isfinite(out)))
    print("KERNEL_OK")
</pallas_src>

<mosaic_0001>
module attributes {stable_mosaic.version = 11 : i64} {
  func.func @_edgeconv_kernel(%arg0: i32, %arg1: memref<4x32x3xf32, #tpu.memory_space<vmem>>, %arg2: memref<32x3xf32, #tpu.memory_space<vmem>>, %arg3: memref<3x64xf32, #tpu.memory_space<vmem>>, %arg4: memref<3x64xf32, #tpu.memory_space<vmem>>, %arg5: memref<1x64xf32, #tpu.memory_space<vmem>>, %arg6: memref<64x128xbf16, #tpu.memory_space<vmem>>, %arg7: memref<1x128xf32, #tpu.memory_space<vmem>>, %arg8: memref<32x128xbf16, #tpu.memory_space<vmem>>) attributes {dimension_semantics = [#tpu.dimension_semantics<parallel>], iteration_bounds = array<i64: 1>, scalar_prefetch = 0 : i64, scratch_operands = 0 : i64, tpu.core_type = #tpu.core_type<tc>, window_params = [{transform_indices = @transform_0, window_bounds = array<i64: 4, 32, 3>}, {transform_indices = @transform_1, window_bounds = array<i64: 32, 3>}, {pipeline_mode = #tpu.pipeline_mode<synchronous>, transform_indices = @transform_2, window_bounds = array<i64: 3, 64>}, {pipeline_mode = #tpu.pipeline_mode<synchronous>, transform_indices = @transform_3, window_bounds = array<i64: 3, 64>}, {pipeline_mode = #tpu.pipeline_mode<synchronous>, transform_indices = @transform_4, window_bounds = array<i64: 1, 64>}, {pipeline_mode = #tpu.pipeline_mode<synchronous>, transform_indices = @transform_5, window_bounds = array<i64: 64, 128>}, {pipeline_mode = #tpu.pipeline_mode<synchronous>, transform_indices = @transform_6, window_bounds = array<i64: 1, 128>}, {transform_indices = @transform_7, window_bounds = array<i64: 32, 128>}]} {
    %c0 = arith.constant 0 : index
    %c0_0 = arith.constant 0 : index
    %0 = vector.load %arg2[%c0, %c0_0] : memref<32x3xf32, #tpu.memory_space<vmem>>, vector<32x3xf32>
    %c0_1 = arith.constant 0 : index
    %c0_2 = arith.constant 0 : index
    %1 = vector.load %arg4[%c0_1, %c0_2] : memref<3x64xf32, #tpu.memory_space<vmem>>, vector<3x64xf32>
    %cst = arith.constant dense<0.000000e+00> : vector<32x64xf32>
    %2 = tpu.matmul %0, %1, %cst {dimension_numbers = #tpu.dot_dimension_numbers<[1], [0], [0], [1], [0, 0, 1, 1], [], []>} : vector<32x3xf32>, vector<3x64xf32>, vector<32x64xf32> -> vector<32x64xf32>
    %c0_3 = arith.constant 0 : index
    %c0_4 = arith.constant 0 : index
    %3 = vector.load %arg5[%c0_3, %c0_4] : memref<1x64xf32, #tpu.memory_space<vmem>>, vector<1x64xf32>
    %4 = vector.broadcast %3 : vector<1x64xf32> to vector<32x64xf32>
    %5 = arith.addf %2, %4 : vector<32x64xf32>
    %c0_5 = arith.constant 0 : index
    %c0_6 = arith.constant 0 : index
    %c0_7 = arith.constant 0 : index
    %6 = vector.load %arg1[%c0_5, %c0_6, %c0_7] : memref<4x32x3xf32, #tpu.memory_space<vmem>>, vector<4x32x3xf32>
    %7 = vector.shape_cast %6 : vector<4x32x3xf32> to vector<128x3xf32>
    %c0_8 = arith.constant 0 : index
    %c0_9 = arith.constant 0 : index
    %8 = vector.load %arg3[%c0_8, %c0_9] : memref<3x64xf32, #tpu.memory_space<vmem>>, vector<3x64xf32>
    %cst_10 = arith.constant dense<0.000000e+00> : vector<128x64xf32>
    %9 = tpu.matmul %7, %8, %cst_10 {dimension_numbers = #tpu.dot_dimension_numbers<[1], [0], [0], [1], [0, 0, 1, 1], [], []>} : vector<128x3xf32>, vector<3x64xf32>, vector<128x64xf32> -> vector<128x64xf32>
    %10 = vector.shape_cast %9 : vector<128x64xf32> to vector<4x32x64xf32>
    %11 = vector.shape_cast %5 : vector<32x64xf32> to vector<1x32x64xf32>
    %12 = vector.broadcast %11 : vector<1x32x64xf32> to vector<4x32x64xf32>
    %13 = arith.addf %10, %12 : vector<4x32x64xf32>
    %cst_11 = arith.constant 0.000000e+00 : f32
    %14 = vector.broadcast %cst_11 : f32 to vector<4x32x64xf32>
    %15 = arith.cmpf oge, %13, %14 : vector<4x32x64xf32>
    %cst_12 = arith.constant 2.000000e-01 : f32
    %16 = vector.broadcast %cst_12 : f32 to vector<4x32x64xf32>
    %17 = arith.mulf %16, %13 : vector<4x32x64xf32>
    %18 = arith.select %15, %13, %17 : vector<4x32x64xi1>, vector<4x32x64xf32>
    %19 = vector.shape_cast %18 : vector<4x32x64xf32> to vector<128x64xf32>
    %20 = arith.truncf %19 : vector<128x64xf32> to vector<128x64xbf16>
    %c0_13 = arith.constant 0 : index
    %c0_14 = arith.constant 0 : index
    %21 = vector.load %arg6[%c0_13, %c0_14] : memref<64x128xbf16, #tpu.memory_space<vmem>>, vector<64x128xbf16>
    %cst_15 = arith.constant dense<0.000000e+00> : vector<128x128xf32>
    %22 = tpu.matmul %20, %21, %cst_15 {dimension_numbers = #tpu.dot_dimension_numbers<[1], [0], [0], [1], [0, 0, 1, 1], [], []>} : vector<128x64xbf16>, vector<64x128xbf16>, vector<128x128xf32> -> vector<128x128xf32>
    %c0_16 = arith.constant 0 : index
    %c0_17 = arith.constant 0 : index
    %23 = vector.load %arg7[%c0_16, %c0_17] : memref<1x128xf32, #tpu.memory_space<vmem>>, vector<1x128xf32>
    %24 = vector.broadcast %23 : vector<1x128xf32> to vector<128x128xf32>
    %25 = arith.addf %22, %24 : vector<128x128xf32>
    %cst_18 = arith.constant 0.000000e+00 : f32
    %26 = vector.broadcast %cst_18 : f32 to vector<128x128xf32>
    %27 = arith.cmpf oge, %25, %26 : vector<128x128xf32>
    %cst_19 = arith.constant 2.000000e-01 : f32
    %28 = vector.broadcast %cst_19 : f32 to vector<128x128xf32>
    %29 = arith.mulf %28, %25 : vector<128x128xf32>
    %30 = arith.select %27, %25, %29 : vector<128x128xi1>, vector<128x128xf32>
    %31 = vector.shape_cast %30 : vector<128x128xf32> to vector<4x32x128xf32>
    %cst_20 = arith.constant dense<0xFF800000> : vector<32x128xf32>
    %32 = vector.multi_reduction <maximumf>, %31, %cst_20 [0] : vector<4x32x128xf32> to vector<32x128xf32>
    %33 = arith.truncf %32 : vector<32x128xf32> to vector<32x128xbf16>
    %c0_21 = arith.constant 0 : index
    %c0_22 = arith.constant 0 : index
    %34 = vector.load %arg8[%c0_21, %c0_22] : memref<32x128xbf16, #tpu.memory_space<vmem>>, vector<32x128xbf16>
    tpu.vector_store %arg8[%c0_21, %c0_22], %33 {strides = array<i32>} : memref<32x128xbf16, #tpu.memory_space<vmem>>, vector<32x128xbf16>,
    return
  }
  func.func @transform_0(%arg0: i32) -> (i32, i32, i32) {
    %c0_i32 = arith.constant 0 : i32
    %c0_i32_0 = arith.constant 0 : i32
    %c0_i32_1 = arith.constant 0 : i32
    return %c0_i32, %arg0, %c0_i32_0 : i32, i32, i32
  }
  func.func @transform_1(%arg0: i32) -> (i32, i32) {
    %c0_i32 = arith.constant 0 : i32
    %c0_i32_0 = arith.constant 0 : i32
    return %arg0, %c0_i32 : i32, i32
  }
  func.func @transform_2(%arg0: i32) -> (i32, i32) {
    %c0_i32 = arith.constant 0 : i32
    %c0_i32_0 = arith.constant 0 : i32
    %c0_i32_1 = arith.constant 0 : i32
    return %c0_i32, %c0_i32_0 : i32, i32
  }
  func.func @transform_3(%arg0: i32) -> (i32, i32) {
    %c0_i32 = arith.constant 0 : i32
    %c0_i32_0 = arith.constant 0 : i32
    %c0_i32_1 = arith.constant 0 : i32
    return %c0_i32, %c0_i32_0 : i32, i32
  }
  func.func @transform_4(%arg0: i32) -> (i32, i32) {
    %c0_i32 = arith.constant 0 : i32
    %c0_i32_0 = arith.constant 0 : i32
    %c0_i32_1 = arith.constant 0 : i32
    return %c0_i32, %c0_i32_0 : i32, i32
  }
  func.func @transform_5(%arg0: i32) -> (i32, i32) {
    %c0_i32 = arith.constant 0 : i32
    %c0_i32_0 = arith.constant 0 : i32
    %c0_i32_1 = arith.constant 0 : i32
    return %c0_i32, %c0_i32_0 : i32, i32
  }
  func.func @transform_6(%arg0: i32) -> (i32, i32) {
    %c0_i32 = arith.constant 0 : i32
    %c0_i32_0 = arith.constant 0 : i32
    %c0_i32_1 = arith.constant 0 : i32
    return %c0_i32, %c0_i32_0 : i32, i32
  }
  func.func @transform_7(%arg0: i32) -> (i32, i32) {
    %c0_i32 = arith.constant 0 : i32
    %c0_i32_0 = arith.constant 0 : i32
    return %arg0, %c0_i32 : i32, i32
  }
}

module attributes {stable_mosaic.version = 11 : i64} {
  func.func @_conv_gmax_kernel(%arg0: i32, %arg1: i32, %arg2: memref<1x16x128xbf16, #tpu.memory_space<vmem>>, %arg3: memref<128x1024xbf16, #tpu.memory_space<vmem>>, %arg4: memref<1x1024xf32, #tpu.memory_space<vmem>>, %arg5: memref<1x1x1024xf32, #tpu.memory_space<vmem>>) attributes {dimension_semantics = [#tpu.dimension_semantics<parallel>, #tpu.dimension_semantics<arbitrary>], iteration_bounds = array<i64: 2, 1>, scalar_prefetch = 0 : i64, scratch_operands = 0 : i64, tpu.core_type = #tpu.core_type<tc>, window_params = [{transform_indices = @transform_0, window_bounds = array<i64: 1, 16, 128>}, {pipeline_mode = #tpu.pipeline_mode<synchronous>, transform_indices = @transform_1, window_bounds = array<i64: 128, 1024>}, {pipeline_mode = #tpu.pipeline_mode<synchronous>, transform_indices = @transform_2, window_bounds = array<i64: 1, 1024>}, {transform_indices = @transform_3, window_bounds = array<i64: 1, 1, 1024>}]} {
    %c0 = arith.constant 0 : index
    %c0_0 = arith.constant 0 : index
    %c0_1 = arith.constant 0 : index
    %0 = vector.load %arg2[%c0, %c0_0, %c0_1] : memref<1x16x128xbf16, #tpu.memory_space<vmem>>, vector<1x16x128xbf16>
    %1 = vector.shape_cast %0 : vector<1x16x128xbf16> to vector<16x128xbf16>
    %c0_2 = arith.constant 0 : index
    %c0_3 = arith.constant 0 : index
    %2 = vector.load %arg3[%c0_2, %c0_3] : memref<128x1024xbf16, #tpu.memory_space<vmem>>, vector<128x1024xbf16>
    %cst = arith.constant dense<0.000000e+00> : vector<16x1024xf32>
    %3 = tpu.matmul %1, %2, %cst {dimension_numbers = #tpu.dot_dimension_numbers<[1], [0], [0], [1], [0, 0, 1, 1], [], []>} : vector<16x128xbf16>, vector<128x1024xbf16>, vector<16x1024xf32> -> vector<16x1024xf32>
    %c0_4 = arith.constant 0 : index
    %c0_5 = arith.constant 0 : index
    %4 = vector.load %arg4[%c0_4, %c0_5] : memref<1x1024xf32, #tpu.memory_space<vmem>>, vector<1x1024xf32>
    %5 = vector.broadcast %4 : vector<1x1024xf32> to vector<16x1024xf32>
    %6 = arith.addf %3, %5 : vector<16x1024xf32>
    %cst_6 = arith.constant 0.000000e+00 : f32
    %7 = vector.broadcast %cst_6 : f32 to vector<16x1024xf32>
    %8 = arith.cmpf oge, %6, %7 : vector<16x1024xf32>
    %cst_7 = arith.constant 2.000000e-01 : f32
    %9 = vector.broadcast %cst_7 : f32 to vector<16x1024xf32>
    %10 = arith.mulf %9, %6 : vector<16x1024xf32>
    %11 = arith.select %8, %6, %10 : vector<16x1024xi1>, vector<16x1024xf32>
    %cst_8 = arith.constant dense<0xFF800000> : vector<1024xf32>
    %12 = vector.multi_reduction <maximumf>, %11, %cst_8 [0] : vector<16x1024xf32> to vector<1024xf32>
    %13 = vector.shape_cast %12 : vector<1024xf32> to vector<1x1024xf32>
    %14 = vector.shape_cast %13 : vector<1x1024xf32> to vector<1x1x1024xf32>
    %c0_i32 = arith.constant 0 : i32
    %15 = arith.cmpi eq, %arg1, %c0_i32 : i32
    %16 = arith.extui %15 : i1 to i32
    %c0_i32_9 = arith.constant 0 : i32
    %17 = arith.cmpi ne, %16, %c0_i32_9 : i32
    scf.if %17 {
      %c0_12 = arith.constant 0 : index
      %c0_13 = arith.constant 0 : index
      %c0_14 = arith.constant 0 : index
      %21 = vector.load %arg5[%c0_12, %c0_13, %c0_14] : memref<1x1x1024xf32, #tpu.memory_space<vmem>>, vector<1x1x1024xf32>
      tpu.vector_store %arg5[%c0_12, %c0_13, %c0_14], %14 {strides = array<i32>} : memref<1x1x1024xf32, #tpu.memory_space<vmem>>, vector<1x1x1024xf32>,
    } else {
    }
    %c0_i32_10 = arith.constant 0 : i32
    %18 = arith.cmpi ne, %arg1, %c0_i32_10 : i32
    %19 = arith.extui %18 : i1 to i32
    %c0_i32_11 = arith.constant 0 : i32
    %20 = arith.cmpi ne, %19, %c0_i32_11 : i32
    scf.if %20 {
      %c0_12 = arith.constant 0 : index
      %c0_13 = arith.constant 0 : index
      %c0_14 = arith.constant 0 : index
      %21 = vector.load %arg5[%c0_12, %c0_13, %c0_14] : memref<1x1x1024xf32, #tpu.memory_space<vmem>>, vector<1x1x1024xf32>
      %22 = arith.maximumf %21, %14 : vector<1x1x1024xf32>
      %c0_15 = arith.constant 0 : index
      %c0_16 = arith.constant 0 : index
      %c0_17 = arith.constant 0 : index
      %23 = vector.load %arg5[%c0_15, %c0_16, %c0_17] : memref<1x1x1024xf32, #tpu.memory_space<vmem>>, vector<1x1x1024xf32>
      tpu.vector_store %arg5[%c0_15, %c0_16, %c0_17], %22 {strides = array<i32>} : memref<1x1x1024xf32, #tpu.memory_space<vmem>>, vector<1x1x1024xf32>,
    } else {
    }
    return
  }
  func.func @transform_0(%arg0: i32, %arg1: i32) -> (i32, i32, i32) {
    %c0_i32 = arith.constant 0 : i32
    %c0_i32_0 = arith.constant 0 : i32
    return %arg0, %arg1, %c0_i32 : i32, i32, i32
  }
  func.func @transform_1(%arg0: i32, %arg1: i32) -> (i32, i32) {
    %c0_i32 = arith.constant 0 : i32
    %c0_i32_0 = arith.constant 0 : i32
    %c0_i32_1 = arith.constant 0 : i32
    return %c0_i32, %c0_i32_0 : i32, i32
  }
  func.func @transform_2(%arg0: i32, %arg1: i32) -> (i32, i32) {
    %c0_i32 = arith.constant 0 : i32
    %c0_i32_0 = arith.constant 0 : i32
    %c0_i32_1 = arith.constant 0 : i32
    return %c0_i32, %c0_i32_0 : i32, i32
  }
  func.func @transform_3(%arg0: i32, %arg1: i32) -> (i32, i32, i32) {
    %c0_i32 = arith.constant 0 : i32
    %c0_i32_0 = arith.constant 0 : i32
    %c0_i32_1 = arith.constant 0 : i32
    return %arg0, %c0_i32, %c0_i32_0 : i32, i32, i32
  }
}

module attributes {stable_mosaic.version = 11 : i64} {
  func.func @_mlp_kernel(%arg0: i32, %arg1: memref<2x1024xf32, #tpu.memory_space<vmem>>, %arg2: memref<1024x512xbf16, #tpu.memory_space<vmem>>, %arg3: memref<1x512xf32, #tpu.memory_space<vmem>>, %arg4: memref<512x256xbf16, #tpu.memory_space<vmem>>, %arg5: memref<1x256xf32, #tpu.memory_space<vmem>>, %arg6: memref<256x9xbf16, #tpu.memory_space<vmem>>, %arg7: memref<1x9xf32, #tpu.memory_space<vmem>>, %arg8: memref<2x9xf32, #tpu.memory_space<vmem>>) attributes {dimension_semantics = [#tpu.dimension_semantics<parallel>], iteration_bounds = array<i64: 1>, scalar_prefetch = 0 : i64, scratch_operands = 0 : i64, tpu.core_type = #tpu.core_type<tc>, window_params = [{transform_indices = @transform_0, window_bounds = array<i64: 2, 1024>}, {pipeline_mode = #tpu.pipeline_mode<synchronous>, transform_indices = @transform_1, window_bounds = array<i64: 1024, 512>}, {pipeline_mode = #tpu.pipeline_mode<synchronous>, transform_indices = @transform_2, window_bounds = array<i64: 1, 512>}, {pipeline_mode = #tpu.pipeline_mode<synchronous>, transform_indices = @transform_3, window_bounds = array<i64: 512, 256>}, {pipeline_mode = #tpu.pipeline_mode<synchronous>, transform_indices = @transform_4, window_bounds = array<i64: 1, 256>}, {pipeline_mode = #tpu.pipeline_mode<synchronous>, transform_indices = @transform_5, window_bounds = array<i64: 256, 9>}, {pipeline_mode = #tpu.pipeline_mode<synchronous>, transform_indices = @transform_6, window_bounds = array<i64: 1, 9>}, {transform_indices = @transform_7, window_bounds = array<i64: 2, 9>}]} {
    %c0 = arith.constant 0 : index
    %c0_0 = arith.constant 0 : index
    %0 = vector.load %arg1[%c0, %c0_0] : memref<2x1024xf32, #tpu.memory_space<vmem>>, vector<2x1024xf32>
    %1 = arith.truncf %0 : vector<2x1024xf32> to vector<2x1024xbf16>
    %c0_1 = arith.constant 0 : index
    %c0_2 = arith.constant 0 : index
    %2 = vector.load %arg2[%c0_1, %c0_2] : memref<1024x512xbf16, #tpu.memory_space<vmem>>, vector<1024x512xbf16>
    %cst = arith.constant dense<0.000000e+00> : vector<2x512xf32>
    %3 = tpu.matmul %1, %2, %cst {dimension_numbers = #tpu.dot_dimension_numbers<[1], [0], [0], [1], [0, 0, 1, 1], [], []>} : vector<2x1024xbf16>, vector<1024x512xbf16>, vector<2x512xf32> -> vector<2x512xf32>
    %c0_3 = arith.constant 0 : index
    %c0_4 = arith.constant 0 : index
    %4 = vector.load %arg3[%c0_3, %c0_4] : memref<1x512xf32, #tpu.memory_space<vmem>>, vector<1x512xf32>
    %5 = vector.broadcast %4 : vector<1x512xf32> to vector<2x512xf32>
    %6 = arith.addf %3, %5 : vector<2x512xf32>
    %cst_5 = arith.constant 0.000000e+00 : f32
    %7 = vector.broadcast %cst_5 : f32 to vector<2x512xf32>
    %8 = arith.cmpf oge, %6, %7 : vector<2x512xf32>
    %cst_6 = arith.constant 2.000000e-01 : f32
    %9 = vector.broadcast %cst_6 : f32 to vector<2x512xf32>
    %10 = arith.mulf %9, %6 : vector<2x512xf32>
    %11 = arith.select %8, %6, %10 : vector<2x512xi1>, vector<2x512xf32>
    %12 = arith.truncf %11 : vector<2x512xf32> to vector<2x512xbf16>
    %c0_7 = arith.constant 0 : index
    %c0_8 = arith.constant 0 : index
    %13 = vector.load %arg4[%c0_7, %c0_8] : memref<512x256xbf16, #tpu.memory_space<vmem>>, vector<512x256xbf16>
    %cst_9 = arith.constant dense<0.000000e+00> : vector<2x256xf32>
    %14 = tpu.matmul %12, %13, %cst_9 {dimension_numbers = #tpu.dot_dimension_numbers<[1], [0], [0], [1], [0, 0, 1, 1], [], []>} : vector<2x512xbf16>, vector<512x256xbf16>, vector<2x256xf32> -> vector<2x256xf32>
    %c0_10 = arith.constant 0 : index
    %c0_11 = arith.constant 0 : index
    %15 = vector.load %arg5[%c0_10, %c0_11] : memref<1x256xf32, #tpu.memory_space<vmem>>, vector<1x256xf32>
    %16 = vector.broadcast %15 : vector<1x256xf32> to vector<2x256xf32>
    %17 = arith.addf %14, %16 : vector<2x256xf32>
    %cst_12 = arith.constant 0.000000e+00 : f32
    %18 = vector.broadcast %cst_12 : f32 to vector<2x256xf32>
    %19 = arith.cmpf oge, %17, %18 : vector<2x256xf32>
    %cst_13 = arith.constant 2.000000e-01 : f32
    %20 = vector.broadcast %cst_13 : f32 to vector<2x256xf32>
    %21 = arith.mulf %20, %17 : vector<2x256xf32>
    %22 = arith.select %19, %17, %21 : vector<2x256xi1>, vector<2x256xf32>
    %23 = arith.truncf %22 : vector<2x256xf32> to vector<2x256xbf16>
    %c0_14 = arith.constant 0 : index
    %c0_15 = arith.constant 0 : index
    %24 = vector.load %arg6[%c0_14, %c0_15] : memref<256x9xbf16, #tpu.memory_space<vmem>>, vector<256x9xbf16>
    %cst_16 = arith.constant dense<0.000000e+00> : vector<2x9xf32>
    %25 = tpu.matmul %23, %24, %cst_16 {dimension_numbers = #tpu.dot_dimension_numbers<[1], [0], [0], [1], [0, 0, 1, 1], [], []>} : vector<2x256xbf16>, vector<256x9xbf16>, vector<2x9xf32> -> vector<2x9xf32>
    %c0_17 = arith.constant 0 : index
    %c0_18 = arith.constant 0 : index
    %26 = vector.load %arg7[%c0_17, %c0_18] : memref<1x9xf32, #tpu.memory_space<vmem>>, vector<1x9xf32>
    %27 = vector.broadcast %26 : vector<1x9xf32> to vector<2x9xf32>
    %28 = arith.addf %25, %27 : vector<2x9xf32>
    %c0_19 = arith.constant 0 : index
    %c0_20 = arith.constant 0 : index
    %29 = vector.load %arg8[%c0_19, %c0_20] : memref<2x9xf32, #tpu.memory_space<vmem>>, vector<2x9xf32>
    tpu.vector_store %arg8[%c0_19, %c0_20], %28 {strides = array<i32>} : memref<2x9xf32, #tpu.memory_space<vmem>>, vector<2x9xf32>,
    return
  }
  func.func @transform_0(%arg0: i32) -> (i32, i32) {
    %c0_i32 = arith.constant 0 : i32
    %c0_i32_0 = arith.constant 0 : i32
    return %arg0, %c0_i32 : i32, i32
  }
  func.func @transform_1(%arg0: i32) -> (i32, i32) {
    %c0_i32 = arith.constant 0 : i32
    %c0_i32_0 = arith.constant 0 : i32
    %c0_i32_1 = arith.constant 0 : i32
    return %c0_i32, %c0_i32_0 : i32, i32
  }
  func.func @transform_2(%arg0: i32) -> (i32, i32) {
    %c0_i32 = arith.constant 0 : i32
    %c0_i32_0 = arith.constant 0 : i32
    %c0_i32_1 = arith.constant 0 : i32
    return %c0_i32, %c0_i32_0 : i32, i32
  }
  func.func @transform_3(%arg0: i32) -> (i32, i32) {
    %c0_i32 = arith.constant 0 : i32
    %c0_i32_0 = arith.constant 0 : i32
    %c0_i32_1 = arith.constant 0 : i32
    return %c0_i32, %c0_i32_0 : i32, i32
  }
  func.func @transform_4(%arg0: i32) -> (i32, i32) {
    %c0_i32 = arith.constant 0 : i32
    %c0_i32_0 = arith.constant 0 : i32
    %c0_i32_1 = arith.constant 0 : i32
    return %c0_i32, %c0_i32_0 : i32, i32
  }
  func.func @transform_5(%arg0: i32) -> (i32, i32) {
    %c0_i32 = arith.constant 0 : i32
    %c0_i32_0 = arith.constant 0 : i32
    %c0_i32_1 = arith.constant 0 : i32
    return %c0_i32, %c0_i32_0 : i32, i32
  }
  func.func @transform_6(%arg0: i32) -> (i32, i32) {
    %c0_i32 = arith.constant 0 : i32
    %c0_i32_0 = arith.constant 0 : i32
    %c0_i32_1 = arith.constant 0 : i32
    return %c0_i32, %c0_i32_0 : i32, i32
  }
  func.func @transform_7(%arg0: i32) -> (i32, i32) {
    %c0_i32 = arith.constant 0 : i32
    %c0_i32_0 = arith.constant 0 : i32
    return %arg0, %c0_i32 : i32, i32
  }
}

module attributes {stable_mosaic.version = 11 : i64} {
  func.func @_edgeconv_kernel(%arg0: i32, %arg1: memref<4x32x64xbf16, #tpu.memory_space<vmem>>, %arg2: memref<32x64xbf16, #tpu.memory_space<vmem>>, %arg3: memref<64x64xbf16, #tpu.memory_space<vmem>>, %arg4: memref<64x64xbf16, #tpu.memory_space<vmem>>, %arg5: memref<1x64xf32, #tpu.memory_space<vmem>>, %arg6: memref<64x64xbf16, #tpu.memory_space<vmem>>, %arg7: memref<1x64xf32, #tpu.memory_space<vmem>>, %arg8: memref<32x64xbf16, #tpu.memory_space<vmem>>) attributes {dimension_semantics = [#tpu.dimension_semantics<parallel>], iteration_bounds = array<i64: 1>, scalar_prefetch = 0 : i64, scratch_operands = 0 : i64, tpu.core_type = #tpu.core_type<tc>, window_params = [{transform_indices = @transform_0, window_bounds = array<i64: 4, 32, 64>}, {transform_indices = @transform_1, window_bounds = array<i64: 32, 64>}, {pipeline_mode = #tpu.pipeline_mode<synchronous>, transform_indices = @transform_2, window_bounds = array<i64: 64, 64>}, {pipeline_mode = #tpu.pipeline_mode<synchronous>, transform_indices = @transform_3, window_bounds = array<i64: 64, 64>}, {pipeline_mode = #tpu.pipeline_mode<synchronous>, transform_indices = @transform_4, window_bounds = array<i64: 1, 64>}, {pipeline_mode = #tpu.pipeline_mode<synchronous>, transform_indices = @transform_5, window_bounds = array<i64: 64, 64>}, {pipeline_mode = #tpu.pipeline_mode<synchronous>, transform_indices = @transform_6, window_bounds = array<i64: 1, 64>}, {transform_indices = @transform_7, window_bounds = array<i64: 32, 64>}]} {
    %c0 = arith.constant 0 : index
    %c0_0 = arith.constant 0 : index
    %0 = vector.load %arg2[%c0, %c0_0] : memref<32x64xbf16, #tpu.memory_space<vmem>>, vector<32x64xbf16>
    %c0_1 = arith.constant 0 : index
    %c0_2 = arith.constant 0 : index
    %1 = vector.load %arg4[%c0_1, %c0_2] : memref<64x64xbf16, #tpu.memory_space<vmem>>, vector<64x64xbf16>
    %cst = arith.constant dense<0.000000e+00> : vector<32x64xf32>
    %2 = tpu.matmul %0, %1, %cst {dimension_numbers = #tpu.dot_dimension_numbers<[1], [0], [0], [1], [0, 0, 1, 1], [], []>} : vector<32x64xbf16>, vector<64x64xbf16>, vector<32x64xf32> -> vector<32x64xf32>
    %c0_3 = arith.constant 0 : index
    %c0_4 = arith.constant 0 : index
    %3 = vector.load %arg5[%c0_3, %c0_4] : memref<1x64xf32, #tpu.memory_space<vmem>>, vector<1x64xf32>
    %4 = vector.broadcast %3 : vector<1x64xf32> to vector<32x64xf32>
    %5 = arith.addf %2, %4 : vector<32x64xf32>
    %c0_5 = arith.constant 0 : index
    %c0_6 = arith.constant 0 : index
    %c0_7 = arith.constant 0 : index
    %6 = vector.load %arg1[%c0_5, %c0_6, %c0_7] : memref<4x32x64xbf16, #tpu.memory_space<vmem>>, vector<4x32x64xbf16>
    %7 = vector.shape_cast %6 : vector<4x32x64xbf16> to vector<128x64xbf16>
    %c0_8 = arith.constant 0 : index
    %c0_9 = arith.constant 0 : index
    %8 = vector.load %arg3[%c0_8, %c0_9] : memref<64x64xbf16, #tpu.memory_space<vmem>>, vector<64x64xbf16>
    %cst_10 = arith.constant dense<0.000000e+00> : vector<128x64xf32>
    %9 = tpu.matmul %7, %8, %cst_10 {dimension_numbers = #tpu.dot_dimension_numbers<[1], [0], [0], [1], [0, 0, 1, 1], [], []>} : vector<128x64xbf16>, vector<64x64xbf16>, vector<128x64xf32> -> vector<128x64xf32>
    %10 = vector.shape_cast %9 : vector<128x64xf32> to vector<4x32x64xf32>
    %11 = vector.shape_cast %5 : vector<32x64xf32> to vector<1x32x64xf32>
    %12 = vector.broadcast %11 : vector<1x32x64xf32> to vector<4x32x64xf32>
    %13 = arith.addf %10, %12 : vector<4x32x64xf32>
    %cst_11 = arith.constant 0.000000e+00 : f32
    %14 = vector.broadcast %cst_11 : f32 to vector<4x32x64xf32>
    %15 = arith.cmpf oge, %13, %14 : vector<4x32x64xf32>
    %cst_12 = arith.constant 2.000000e-01 : f32
    %16 = vector.broadcast %cst_12 : f32 to vector<4x32x64xf32>
    %17 = arith.mulf %16, %13 : vector<4x32x64xf32>
    %18 = arith.select %15, %13, %17 : vector<4x32x64xi1>, vector<4x32x64xf32>
    %19 = vector.shape_cast %18 : vector<4x32x64xf32> to vector<128x64xf32>
    %20 = arith.truncf %19 : vector<128x64xf32> to vector<128x64xbf16>
    %c0_13 = arith.constant 0 : index
    %c0_14 = arith.constant 0 : index
    %21 = vector.load %arg6[%c0_13, %c0_14] : memref<64x64xbf16, #tpu.memory_space<vmem>>, vector<64x64xbf16>
    %cst_15 = arith.constant dense<0.000000e+00> : vector<128x64xf32>
    %22 = tpu.matmul %20, %21, %cst_15 {dimension_numbers = #tpu.dot_dimension_numbers<[1], [0], [0], [1], [0, 0, 1, 1], [], []>} : vector<128x64xbf16>, vector<64x64xbf16>, vector<128x64xf32> -> vector<128x64xf32>
    %c0_16 = arith.constant 0 : index
    %c0_17 = arith.constant 0 : index
    %23 = vector.load %arg7[%c0_16, %c0_17] : memref<1x64xf32, #tpu.memory_space<vmem>>, vector<1x64xf32>
    %24 = vector.broadcast %23 : vector<1x64xf32> to vector<128x64xf32>
    %25 = arith.addf %22, %24 : vector<128x64xf32>
    %cst_18 = arith.constant 0.000000e+00 : f32
    %26 = vector.broadcast %cst_18 : f32 to vector<128x64xf32>
    %27 = arith.cmpf oge, %25, %26 : vector<128x64xf32>
    %cst_19 = arith.constant 2.000000e-01 : f32
    %28 = vector.broadcast %cst_19 : f32 to vector<128x64xf32>
    %29 = arith.mulf %28, %25 : vector<128x64xf32>
    %30 = arith.select %27, %25, %29 : vector<128x64xi1>, vector<128x64xf32>
    %31 = vector.shape_cast %30 : vector<128x64xf32> to vector<4x32x64xf32>
    %cst_20 = arith.constant dense<0xFF800000> : vector<32x64xf32>
    %32 = vector.multi_reduction <maximumf>, %31, %cst_20 [0] : vector<4x32x64xf32> to vector<32x64xf32>
    %33 = arith.truncf %32 : vector<32x64xf32> to vector<32x64xbf16>
    %c0_21 = arith.constant 0 : index
    %c0_22 = arith.constant 0 : index
    %34 = vector.load %arg8[%c0_21, %c0_22] : memref<32x64xbf16, #tpu.memory_space<vmem>>, vector<32x64xbf16>
    tpu.vector_store %arg8[%c0_21, %c0_22], %33 {strides = array<i32>} : memref<32x64xbf16, #tpu.memory_space<vmem>>, vector<32x64xbf16>,
    return
  }
  func.func @transform_0(%arg0: i32) -> (i32, i32, i32) {
    %c0_i32 = arith.constant 0 : i32
    %c0_i32_0 = arith.constant 0 : i32
    %c0_i32_1 = arith.constant 0 : i32
    return %c0_i32, %arg0, %c0_i32_0 : i32, i32, i32
  }
  func.func @transform_1(%arg0: i32) -> (i32, i32) {
    %c0_i32 = arith.constant 0 : i32
    %c0_i32_0 = arith.constant 0 : i32
    return %arg0, %c0_i32 : i32, i32
  }
  func.func @transform_2(%arg0: i32) -> (i32, i32) {
    %c0_i32 = arith.constant 0 : i32
    %c0_i32_0 = arith.constant 0 : i32
    %c0_i32_1 = arith.constant 0 : i32
    return %c0_i32, %c0_i32_0 : i32, i32
  }
  func.func @transform_3(%arg0: i32) -> (i32, i32) {
    %c0_i32 = arith.constant 0 : i32
    %c0_i32_0 = arith.constant 0 : i32
    %c0_i32_1 = arith.constant 0 : i32
    return %c0_i32, %c0_i32_0 : i32, i32
  }
  func.func @transform_4(%arg0: i32) -> (i32, i32) {
    %c0_i32 = arith.constant 0 : i32
    %c0_i32_0 = arith.constant 0 : i32
    %c0_i32_1 = arith.constant 0 : i32
    return %c0_i32, %c0_i32_0 : i32, i32
  }
  func.func @transform_5(%arg0: i32) -> (i32, i32) {
    %c0_i32 = arith.constant 0 : i32
    %c0_i32_0 = arith.constant 0 : i32
    %c0_i32_1 = arith.constant 0 : i32
    return %c0_i32, %c0_i32_0 : i32, i32
  }
  func.func @transform_6(%arg0: i32) -> (i32, i32) {
    %c0_i32 = arith.constant 0 : i32
    %c0_i32_0 = arith.constant 0 : i32
    %c0_i32_1 = arith.constant 0 : i32
    return %c0_i32, %c0_i32_0 : i32, i32
  }
  func.func @transform_7(%arg0: i32) -> (i32, i32) {
    %c0_i32 = arith.constant 0 : i32
    %c0_i32_0 = arith.constant 0 : i32
    return %arg0, %c0_i32 : i32, i32
  }
}

module attributes {stable_mosaic.version = 11 : i64} {
  func.func @_edgeconv_kernel(%arg0: i32, %arg1: memref<4x32x3xf32, #tpu.memory_space<vmem>>, %arg2: memref<32x3xf32, #tpu.memory_space<vmem>>, %arg3: memref<3x64xf32, #tpu.memory_space<vmem>>, %arg4: memref<3x64xf32, #tpu.memory_space<vmem>>, %arg5: memref<1x64xf32, #tpu.memory_space<vmem>>, %arg6: memref<64x64xbf16, #tpu.memory_space<vmem>>, %arg7: memref<1x64xf32, #tpu.memory_space<vmem>>, %arg8: memref<32x64xbf16, #tpu.memory_space<vmem>>) attributes {dimension_semantics = [#tpu.dimension_semantics<parallel>], iteration_bounds = array<i64: 1>, scalar_prefetch = 0 : i64, scratch_operands = 0 : i64, tpu.core_type = #tpu.core_type<tc>, window_params = [{transform_indices = @transform_0, window_bounds = array<i64: 4, 32, 3>}, {transform_indices = @transform_1, window_bounds = array<i64: 32, 3>}, {pipeline_mode = #tpu.pipeline_mode<synchronous>, transform_indices = @transform_2, window_bounds = array<i64: 3, 64>}, {pipeline_mode = #tpu.pipeline_mode<synchronous>, transform_indices = @transform_3, window_bounds = array<i64: 3, 64>}, {pipeline_mode = #tpu.pipeline_mode<synchronous>, transform_indices = @transform_4, window_bounds = array<i64: 1, 64>}, {pipeline_mode = #tpu.pipeline_mode<synchronous>, transform_indices = @transform_5, window_bounds = array<i64: 64, 64>}, {pipeline_mode = #tpu.pipeline_mode<synchronous>, transform_indices = @transform_6, window_bounds = array<i64: 1, 64>}, {transform_indices = @transform_7, window_bounds = array<i64: 32, 64>}]} {
    %c0 = arith.constant 0 : index
    %c0_0 = arith.constant 0 : index
    %0 = vector.load %arg2[%c0, %c0_0] : memref<32x3xf32, #tpu.memory_space<vmem>>, vector<32x3xf32>
    %c0_1 = arith.constant 0 : index
    %c0_2 = arith.constant 0 : index
    %1 = vector.load %arg4[%c0_1, %c0_2] : memref<3x64xf32, #tpu.memory_space<vmem>>, vector<3x64xf32>
    %cst = arith.constant dense<0.000000e+00> : vector<32x64xf32>
    %2 = tpu.matmul %0, %1, %cst {dimension_numbers = #tpu.dot_dimension_numbers<[1], [0], [0], [1], [0, 0, 1, 1], [], []>} : vector<32x3xf32>, vector<3x64xf32>, vector<32x64xf32> -> vector<32x64xf32>
    %c0_3 = arith.constant 0 : index
    %c0_4 = arith.constant 0 : index
    %3 = vector.load %arg5[%c0_3, %c0_4] : memref<1x64xf32, #tpu.memory_space<vmem>>, vector<1x64xf32>
    %4 = vector.broadcast %3 : vector<1x64xf32> to vector<32x64xf32>
    %5 = arith.addf %2, %4 : vector<32x64xf32>
    %c0_5 = arith.constant 0 : index
    %c0_6 = arith.constant 0 : index
    %c0_7 = arith.constant 0 : index
    %6 = vector.load %arg1[%c0_5, %c0_6, %c0_7] : memref<4x32x3xf32, #tpu.memory_space<vmem>>, vector<4x32x3xf32>
    %7 = vector.shape_cast %6 : vector<4x32x3xf32> to vector<128x3xf32>
    %c0_8 = arith.constant 0 : index
    %c0_9 = arith.constant 0 : index
    %8 = vector.load %arg3[%c0_8, %c0_9] : memref<3x64xf32, #tpu.memory_space<vmem>>, vector<3x64xf32>
    %cst_10 = arith.constant dense<0.000000e+00> : vector<128x64xf32>
    %9 = tpu.matmul %7, %8, %cst_10 {dimension_numbers = #tpu.dot_dimension_numbers<[1], [0], [0], [1], [0, 0, 1, 1], [], []>} : vector<128x3xf32>, vector<3x64xf32>, vector<128x64xf32> -> vector<128x64xf32>
    %10 = vector.shape_cast %9 : vector<128x64xf32> to vector<4x32x64xf32>
    %11 = vector.shape_cast %5 : vector<32x64xf32> to vector<1x32x64xf32>
    %12 = vector.broadcast %11 : vector<1x32x64xf32> to vector<4x32x64xf32>
    %13 = arith.addf %10, %12 : vector<4x32x64xf32>
    %cst_11 = arith.constant 0.000000e+00 : f32
    %14 = vector.broadcast %cst_11 : f32 to vector<4x32x64xf32>
    %15 = arith.cmpf oge, %13, %14 : vector<4x32x64xf32>
    %cst_12 = arith.constant 2.000000e-01 : f32
    %16 = vector.broadcast %cst_12 : f32 to vector<4x32x64xf32>
    %17 = arith.mulf %16, %13 : vector<4x32x64xf32>
    %18 = arith.select %15, %13, %17 : vector<4x32x64xi1>, vector<4x32x64xf32>
    %19 = vector.shape_cast %18 : vector<4x32x64xf32> to vector<128x64xf32>
    %20 = arith.truncf %19 : vector<128x64xf32> to vector<128x64xbf16>
    %c0_13 = arith.constant 0 : index
    %c0_14 = arith.constant 0 : index
    %21 = vector.load %arg6[%c0_13, %c0_14] : memref<64x64xbf16, #tpu.memory_space<vmem>>, vector<64x64xbf16>
    %cst_15 = arith.constant dense<0.000000e+00> : vector<128x64xf32>
    %22 = tpu.matmul %20, %21, %cst_15 {dimension_numbers = #tpu.dot_dimension_numbers<[1], [0], [0], [1], [0, 0, 1, 1], [], []>} : vector<128x64xbf16>, vector<64x64xbf16>, vector<128x64xf32> -> vector<128x64xf32>
    %c0_16 = arith.constant 0 : index
    %c0_17 = arith.constant 0 : index
    %23 = vector.load %arg7[%c0_16, %c0_17] : memref<1x64xf32, #tpu.memory_space<vmem>>, vector<1x64xf32>
    %24 = vector.broadcast %23 : vector<1x64xf32> to vector<128x64xf32>
    %25 = arith.addf %22, %24 : vector<128x64xf32>
    %cst_18 = arith.constant 0.000000e+00 : f32
    %26 = vector.broadcast %cst_18 : f32 to vector<128x64xf32>
    %27 = arith.cmpf oge, %25, %26 : vector<128x64xf32>
    %cst_19 = arith.constant 2.000000e-01 : f32
    %28 = vector.broadcast %cst_19 : f32 to vector<128x64xf32>
    %29 = arith.mulf %28, %25 : vector<128x64xf32>
    %30 = arith.select %27, %25, %29 : vector<128x64xi1>, vector<128x64xf32>
    %31 = vector.shape_cast %30 : vector<128x64xf32> to vector<4x32x64xf32>
    %cst_20 = arith.constant dense<0xFF800000> : vector<32x64xf32>
    %32 = vector.multi_reduction <maximumf>, %31, %cst_20 [0] : vector<4x32x64xf32> to vector<32x64xf32>
    %33 = arith.truncf %32 : vector<32x64xf32> to vector<32x64xbf16>
    %c0_21 = arith.constant 0 : index
    %c0_22 = arith.constant 0 : index
    %34 = vector.load %arg8[%c0_21, %c0_22] : memref<32x64xbf16, #tpu.memory_space<vmem>>, vector<32x64xbf16>
    tpu.vector_store %arg8[%c0_21, %c0_22], %33 {strides = array<i32>} : memref<32x64xbf16, #tpu.memory_space<vmem>>, vector<32x64xbf16>,
    return
  }
  func.func @transform_0(%arg0: i32) -> (i32, i32, i32) {
    %c0_i32 = arith.constant 0 : i32
    %c0_i32_0 = arith.constant 0 : i32
    %c0_i32_1 = arith.constant 0 : i32
    return %c0_i32, %arg0, %c0_i32_0 : i32, i32, i32
  }
  func.func @transform_1(%arg0: i32) -> (i32, i32) {
    %c0_i32 = arith.constant 0 : i32
    %c0_i32_0 = arith.constant 0 : i32
    return %arg0, %c0_i32 : i32, i32
  }
  func.func @transform_2(%arg0: i32) -> (i32, i32) {
    %c0_i32 = arith.constant 0 : i32
    %c0_i32_0 = arith.constant 0 : i32
    %c0_i32_1 = arith.constant 0 : i32
    return %c0_i32, %c0_i32_0 : i32, i32
  }
  func.func @transform_3(%arg0: i32) -> (i32, i32) {
    %c0_i32 = arith.constant 0 : i32
    %c0_i32_0 = arith.constant 0 : i32
    %c0_i32_1 = arith.constant 0 : i32
    return %c0_i32, %c0_i32_0 : i32, i32
  }
  func.func @transform_4(%arg0: i32) -> (i32, i32) {
    %c0_i32 = arith.constant 0 : i32
    %c0_i32_0 = arith.constant 0 : i32
    %c0_i32_1 = arith.constant 0 : i32
    return %c0_i32, %c0_i32_0 : i32, i32
  }
  func.func @transform_5(%arg0: i32) -> (i32, i32) {
    %c0_i32 = arith.constant 0 : i32
    %c0_i32_0 = arith.constant 0 : i32
    %c0_i32_1 = arith.constant 0 : i32
    return %c0_i32, %c0_i32_0 : i32, i32
  }
  func.func @transform_6(%arg0: i32) -> (i32, i32) {
    %c0_i32 = arith.constant 0 : i32
    %c0_i32_0 = arith.constant 0 : i32
    %c0_i32_1 = arith.constant 0 : i32
    return %c0_i32, %c0_i32_0 : i32, i32
  }
  func.func @transform_7(%arg0: i32) -> (i32, i32) {
    %c0_i32 = arith.constant 0 : i32
    %c0_i32_0 = arith.constant 0 : i32
    return %arg0, %c0_i32 : i32, i32
  }
}

module attributes {stable_mosaic.version = 11 : i64} {
  func.func @_edgeconv_kernel(%arg0: i32, %arg1: memref<4x32x64xbf16, #tpu.memory_space<vmem>>, %arg2: memref<32x64xbf16, #tpu.memory_space<vmem>>, %arg3: memref<64x64xbf16, #tpu.memory_space<vmem>>, %arg4: memref<64x64xbf16, #tpu.memory_space<vmem>>, %arg5: memref<1x64xf32, #tpu.memory_space<vmem>>, %arg6: memref<32x64xbf16, #tpu.memory_space<vmem>>) attributes {dimension_semantics = [#tpu.dimension_semantics<parallel>], iteration_bounds = array<i64: 1>, scalar_prefetch = 0 : i64, scratch_operands = 0 : i64, tpu.core_type = #tpu.core_type<tc>, window_params = [{transform_indices = @transform_0, window_bounds = array<i64: 4, 32, 64>}, {transform_indices = @transform_1, window_bounds = array<i64: 32, 64>}, {pipeline_mode = #tpu.pipeline_mode<synchronous>, transform_indices = @transform_2, window_bounds = array<i64: 64, 64>}, {pipeline_mode = #tpu.pipeline_mode<synchronous>, transform_indices = @transform_3, window_bounds = array<i64: 64, 64>}, {pipeline_mode = #tpu.pipeline_mode<synchronous>, transform_indices = @transform_4, window_bounds = array<i64: 1, 64>}, {transform_indices = @transform_5, window_bounds = array<i64: 32, 64>}]} {
    %c0 = arith.constant 0 : index
    %c0_0 = arith.constant 0 : index
    %0 = vector.load %arg2[%c0, %c0_0] : memref<32x64xbf16, #tpu.memory_space<vmem>>, vector<32x64xbf16>
    %c0_1 = arith.constant 0 : index
    %c0_2 = arith.constant 0 : index
    %1 = vector.load %arg4[%c0_1, %c0_2] : memref<64x64xbf16, #tpu.memory_space<vmem>>, vector<64x64xbf16>
    %cst = arith.constant dense<0.000000e+00> : vector<32x64xf32>
    %2 = tpu.matmul %0, %1, %cst {dimension_numbers = #tpu.dot_dimension_numbers<[1], [0], [0], [1], [0, 0, 1, 1], [], []>} : vector<32x64xbf16>, vector<64x64xbf16>, vector<32x64xf32> -> vector<32x64xf32>
    %c0_3 = arith.constant 0 : index
    %c0_4 = arith.constant 0 : index
    %3 = vector.load %arg5[%c0_3, %c0_4] : memref<1x64xf32, #tpu.memory_space<vmem>>, vector<1x64xf32>
    %4 = vector.broadcast %3 : vector<1x64xf32> to vector<32x64xf32>
    %5 = arith.addf %2, %4 : vector<32x64xf32>
    %c0_5 = arith.constant 0 : index
    %c0_6 = arith.constant 0 : index
    %c0_7 = arith.constant 0 : index
    %6 = vector.load %arg1[%c0_5, %c0_6, %c0_7] : memref<4x32x64xbf16, #tpu.memory_space<vmem>>, vector<4x32x64xbf16>
    %7 = vector.shape_cast %6 : vector<4x32x64xbf16> to vector<128x64xbf16>
    %c0_8 = arith.constant 0 : index
    %c0_9 = arith.constant 0 : index
    %8 = vector.load %arg3[%c0_8, %c0_9] : memref<64x64xbf16, #tpu.memory_space<vmem>>, vector<64x64xbf16>
    %cst_10 = arith.constant dense<0.000000e+00> : vector<128x64xf32>
    %9 = tpu.matmul %7, %8, %cst_10 {dimension_numbers = #tpu.dot_dimension_numbers<[1], [0], [0], [1], [0, 0, 1, 1], [], []>} : vector<128x64xbf16>, vector<64x64xbf16>, vector<128x64xf32> -> vector<128x64xf32>
    %10 = vector.shape_cast %9 : vector<128x64xf32> to vector<4x32x64xf32>
    %11 = vector.shape_cast %5 : vector<32x64xf32> to vector<1x32x64xf32>
    %12 = vector.broadcast %11 : vector<1x32x64xf32> to vector<4x32x64xf32>
    %13 = arith.addf %10, %12 : vector<4x32x64xf32>
    %cst_11 = arith.constant 0.000000e+00 : f32
    %14 = vector.broadcast %cst_11 : f32 to vector<4x32x64xf32>
    %15 = arith.cmpf oge, %13, %14 : vector<4x32x64xf32>
    %cst_12 = arith.constant 2.000000e-01 : f32
    %16 = vector.broadcast %cst_12 : f32 to vector<4x32x64xf32>
    %17 = arith.mulf %16, %13 : vector<4x32x64xf32>
    %18 = arith.select %15, %13, %17 : vector<4x32x64xi1>, vector<4x32x64xf32>
    %cst_13 = arith.constant dense<0xFF800000> : vector<32x64xf32>
    %19 = vector.multi_reduction <maximumf>, %18, %cst_13 [0] : vector<4x32x64xf32> to vector<32x64xf32>
    %20 = arith.truncf %19 : vector<32x64xf32> to vector<32x64xbf16>
    %c0_14 = arith.constant 0 : index
    %c0_15 = arith.constant 0 : index
    %21 = vector.load %arg6[%c0_14, %c0_15] : memref<32x64xbf16, #tpu.memory_space<vmem>>, vector<32x64xbf16>
    tpu.vector_store %arg6[%c0_14, %c0_15], %20 {strides = array<i32>} : memref<32x64xbf16, #tpu.memory_space<vmem>>, vector<32x64xbf16>,
    return
  }
  func.func @transform_0(%arg0: i32) -> (i32, i32, i32) {
    %c0_i32 = arith.constant 0 : i32
    %c0_i32_0 = arith.constant 0 : i32
    %c0_i32_1 = arith.constant 0 : i32
    return %c0_i32, %arg0, %c0_i32_0 : i32, i32, i32
  }
  func.func @transform_1(%arg0: i32) -> (i32, i32) {
    %c0_i32 = arith.constant 0 : i32
    %c0_i32_0 = arith.constant 0 : i32
    return %arg0, %c0_i32 : i32, i32
  }
  func.func @transform_2(%arg0: i32) -> (i32, i32) {
    %c0_i32 = arith.constant 0 : i32
    %c0_i32_0 = arith.constant 0 : i32
    %c0_i32_1 = arith.constant 0 : i32
    return %c0_i32, %c0_i32_0 : i32, i32
  }
  func.func @transform_3(%arg0: i32) -> (i32, i32) {
    %c0_i32 = arith.constant 0 : i32
    %c0_i32_0 = arith.constant 0 : i32
    %c0_i32_1 = arith.constant 0 : i32
    return %c0_i32, %c0_i32_0 : i32, i32
  }
  func.func @transform_4(%arg0: i32) -> (i32, i32) {
    %c0_i32 = arith.constant 0 : i32
    %c0_i32_0 = arith.constant 0 : i32
    %c0_i32_1 = arith.constant 0 : i32
    return %c0_i32, %c0_i32_0 : i32, i32
  }
  func.func @transform_5(%arg0: i32) -> (i32, i32) {
    %c0_i32 = arith.constant 0 : i32
    %c0_i32_0 = arith.constant 0 : i32
    return %arg0, %c0_i32 : i32, i32
  }
}

module attributes {stable_mosaic.version = 11 : i64} {
  func.func @_conv_gmax_kernel(%arg0: i32, %arg1: i32, %arg2: memref<1x16x64xbf16, #tpu.memory_space<vmem>>, %arg3: memref<64x1024xbf16, #tpu.memory_space<vmem>>, %arg4: memref<1x16x64xbf16, #tpu.memory_space<vmem>>, %arg5: memref<64x1024xbf16, #tpu.memory_space<vmem>>, %arg6: memref<1x16x64xbf16, #tpu.memory_space<vmem>>, %arg7: memref<64x1024xbf16, #tpu.memory_space<vmem>>, %arg8: memref<1x1024xf32, #tpu.memory_space<vmem>>, %arg9: memref<1x1x1024xf32, #tpu.memory_space<vmem>>) attributes {dimension_semantics = [#tpu.dimension_semantics<parallel>, #tpu.dimension_semantics<arbitrary>], iteration_bounds = array<i64: 2, 1>, scalar_prefetch = 0 : i64, scratch_operands = 0 : i64, tpu.core_type = #tpu.core_type<tc>, window_params = [{transform_indices = @transform_0, window_bounds = array<i64: 1, 16, 64>}, {pipeline_mode = #tpu.pipeline_mode<synchronous>, transform_indices = @transform_1, window_bounds = array<i64: 64, 1024>}, {transform_indices = @transform_2, window_bounds = array<i64: 1, 16, 64>}, {pipeline_mode = #tpu.pipeline_mode<synchronous>, transform_indices = @transform_3, window_bounds = array<i64: 64, 1024>}, {transform_indices = @transform_4, window_bounds = array<i64: 1, 16, 64>}, {pipeline_mode = #tpu.pipeline_mode<synchronous>, transform_indices = @transform_5, window_bounds = array<i64: 64, 1024>}, {pipeline_mode = #tpu.pipeline_mode<synchronous>, transform_indices = @transform_6, window_bounds = array<i64: 1, 1024>}, {transform_indices = @transform_7, window_bounds = array<i64: 1, 1, 1024>}]} {
    %c0 = arith.constant 0 : index
    %c0_0 = arith.constant 0 : index
    %c0_1 = arith.constant 0 : index
    %0 = vector.load %arg2[%c0, %c0_0, %c0_1] : memref<1x16x64xbf16, #tpu.memory_space<vmem>>, vector<1x16x64xbf16>
    %1 = vector.shape_cast %0 : vector<1x16x64xbf16> to vector<16x64xbf16>
    %c0_2 = arith.constant 0 : index
    %c0_3 = arith.constant 0 : index
    %2 = vector.load %arg3[%c0_2, %c0_3] : memref<64x1024xbf16, #tpu.memory_space<vmem>>, vector<64x1024xbf16>
    %cst = arith.constant dense<0.000000e+00> : vector<16x1024xf32>
    %3 = tpu.matmul %1, %2, %cst {dimension_numbers = #tpu.dot_dimension_numbers<[1], [0], [0], [1], [0, 0, 1, 1], [], []>} : vector<16x64xbf16>, vector<64x1024xbf16>, vector<16x1024xf32> -> vector<16x1024xf32>
    %c0_4 = arith.constant 0 : index
    %c0_5 = arith.constant 0 : index
    %c0_6 = arith.constant 0 : index
    %4 = vector.load %arg4[%c0_4, %c0_5, %c0_6] : memref<1x16x64xbf16, #tpu.memory_space<vmem>>, vector<1x16x64xbf16>
    %5 = vector.shape_cast %4 : vector<1x16x64xbf16> to vector<16x64xbf16>
    %c0_7 = arith.constant 0 : index
    %c0_8 = arith.constant 0 : index
    %6 = vector.load %arg5[%c0_7, %c0_8] : memref<64x1024xbf16, #tpu.memory_space<vmem>>, vector<64x1024xbf16>
    %cst_9 = arith.constant dense<0.000000e+00> : vector<16x1024xf32>
    %7 = tpu.matmul %5, %6, %cst_9 {dimension_numbers = #tpu.dot_dimension_numbers<[1], [0], [0], [1], [0, 0, 1, 1], [], []>} : vector<16x64xbf16>, vector<64x1024xbf16>, vector<16x1024xf32> -> vector<16x1024xf32>
    %8 = arith.addf %3, %7 : vector<16x1024xf32>
    %c0_10 = arith.constant 0 : index
    %c0_11 = arith.constant 0 : index
    %c0_12 = arith.constant 0 : index
    %9 = vector.load %arg6[%c0_10, %c0_11, %c0_12] : memref<1x16x64xbf16, #tpu.memory_space<vmem>>, vector<1x16x64xbf16>
    %10 = vector.shape_cast %9 : vector<1x16x64xbf16> to vector<16x64xbf16>
    %c0_13 = arith.constant 0 : index
    %c0_14 = arith.constant 0 : index
    %11 = vector.load %arg7[%c0_13, %c0_14] : memref<64x1024xbf16, #tpu.memory_space<vmem>>, vector<64x1024xbf16>
    %cst_15 = arith.constant dense<0.000000e+00> : vector<16x1024xf32>
    %12 = tpu.matmul %10, %11, %cst_15 {dimension_numbers = #tpu.dot_dimension_numbers<[1], [0], [0], [1], [0, 0, 1, 1], [], []>} : vector<16x64xbf16>, vector<64x1024xbf16>, vector<16x1024xf32> -> vector<16x1024xf32>
    %13 = arith.addf %8, %12 : vector<16x1024xf32>
    %c0_16 = arith.constant 0 : index
    %c0_17 = arith.constant 0 : index
    %14 = vector.load %arg8[%c0_16, %c0_17] : memref<1x1024xf32, #tpu.memory_space<vmem>>, vector<1x1024xf32>
    %15 = vector.broadcast %14 : vector<1x1024xf32> to vector<16x1024xf32>
    %16 = arith.addf %13, %15 : vector<16x1024xf32>
    %cst_18 = arith.constant 0.000000e+00 : f32
    %17 = vector.broadcast %cst_18 : f32 to vector<16x1024xf32>
    %18 = arith.cmpf oge, %16, %17 : vector<16x1024xf32>
    %cst_19 = arith.constant 2.000000e-01 : f32
    %19 = vector.broadcast %cst_19 : f32 to vector<16x1024xf32>
    %20 = arith.mulf %19, %16 : vector<16x1024xf32>
    %21 = arith.select %18, %16, %20 : vector<16x1024xi1>, vector<16x1024xf32>
    %cst_20 = arith.constant dense<0xFF800000> : vector<1024xf32>
    %22 = vector.multi_reduction <maximumf>, %21, %cst_20 [0] : vector<16x1024xf32> to vector<1024xf32>
    %23 = vector.shape_cast %22 : vector<1024xf32> to vector<1x1024xf32>
    %24 = vector.shape_cast %23 : vector<1x1024xf32> to vector<1x1x1024xf32>
    %c0_i32 = arith.constant 0 : i32
    %25 = arith.cmpi eq, %arg1, %c0_i32 : i32
    %26 = arith.extui %25 : i1 to i32
    %c0_i32_21 = arith.constant 0 : i32
    %27 = arith.cmpi ne, %26, %c0_i32_21 : i32
    scf.if %27 {
      %c0_24 = arith.constant 0 : index
      %c0_25 = arith.constant 0 : index
      %c0_26 = arith.constant 0 : index
      %31 = vector.load %arg9[%c0_24, %c0_25, %c0_26] : memref<1x1x1024xf32, #tpu.memory_space<vmem>>, vector<1x1x1024xf32>
      tpu.vector_store %arg9[%c0_24, %c0_25, %c0_26], %24 {strides = array<i32>} : memref<1x1x1024xf32, #tpu.memory_space<vmem>>, vector<1x1x1024xf32>,
    } else {
    }
    %c0_i32_22 = arith.constant 0 : i32
    %28 = arith.cmpi ne, %arg1, %c0_i32_22 : i32
    %29 = arith.extui %28 : i1 to i32
    %c0_i32_23 = arith.constant 0 : i32
    %30 = arith.cmpi ne, %29, %c0_i32_23 : i32
    scf.if %30 {
      %c0_24 = arith.constant 0 : index
      %c0_25 = arith.constant 0 : index
      %c0_26 = arith.constant 0 : index
      %31 = vector.load %arg9[%c0_24, %c0_25, %c0_26] : memref<1x1x1024xf32, #tpu.memory_space<vmem>>, vector<1x1x1024xf32>
      %32 = arith.maximumf %31, %24 : vector<1x1x1024xf32>
      %c0_27 = arith.constant 0 : index
      %c0_28 = arith.constant 0 : index
      %c0_29 = arith.constant 0 : index
      %33 = vector.load %arg9[%c0_27, %c0_28, %c0_29] : memref<1x1x1024xf32, #tpu.memory_space<vmem>>, vector<1x1x1024xf32>
      tpu.vector_store %arg9[%c0_27, %c0_28, %c0_29], %32 {strides = array<i32>} : memref<1x1x1024xf32, #tpu.memory_space<vmem>>, vector<1x1x1024xf32>,
    } else {
    }
    return
  }
  func.func @transform_0(%arg0: i32, %arg1: i32) -> (i32, i32, i32) {
    %c0_i32 = arith.constant 0 : i32
    %c0_i32_0 = arith.constant 0 : i32
    return %arg0, %arg1, %c0_i32 : i32, i32, i32
  }
  func.func @transform_1(%arg0: i32, %arg1: i32) -> (i32, i32) {
    %c0_i32 = arith.constant 0 : i32
    %c0_i32_0 = arith.constant 0 : i32
    %c0_i32_1 = arith.constant 0 : i32
    return %c0_i32, %c0_i32_0 : i32, i32
  }
  func.func @transform_2(%arg0: i32, %arg1: i32) -> (i32, i32, i32) {
    %c0_i32 = arith.constant 0 : i32
    %c0_i32_0 = arith.constant 0 : i32
    return %arg0, %arg1, %c0_i32 : i32, i32, i32
  }
  func.func @transform_3(%arg0: i32, %arg1: i32) -> (i32, i32) {
    %c0_i32 = arith.constant 0 : i32
    %c0_i32_0 = arith.constant 0 : i32
    %c0_i32_1 = arith.constant 0 : i32
    return %c0_i32, %c0_i32_0 : i32, i32
  }
  func.func @transform_4(%arg0: i32, %arg1: i32) -> (i32, i32, i32) {
    %c0_i32 = arith.constant 0 : i32
    %c0_i32_0 = arith.constant 0 : i32
    return %arg0, %arg1, %c0_i32 : i32, i32, i32
  }
  func.func @transform_5(%arg0: i32, %arg1: i32) -> (i32, i32) {
    %c0_i32 = arith.constant 0 : i32
    %c0_i32_0 = arith.constant 0 : i32
    %c0_i32_1 = arith.constant 0 : i32
    return %c0_i32, %c0_i32_0 : i32, i32
  }
  func.func @transform_6(%arg0: i32, %arg1: i32) -> (i32, i32) {
    %c0_i32 = arith.constant 0 : i32
    %c0_i32_0 = arith.constant 0 : i32
    %c0_i32_1 = arith.constant 0 : i32
    return %c0_i32, %c0_i32_0 : i32, i32
  }
  func.func @transform_7(%arg0: i32, %arg1: i32) -> (i32, i32, i32) {
    %c0_i32 = arith.constant 0 : i32
    %c0_i32_0 = arith.constant 0 : i32
    %c0_i32_1 = arith.constant 0 : i32
    return %arg0, %c0_i32, %c0_i32_0 : i32, i32, i32
  }
}

module attributes {stable_mosaic.version = 11 : i64} {
  func.func @_tail_kernel(%arg0: i32, %arg1: i32, %arg2: memref<1x1x1088xf32, #tpu.memory_space<vmem>>, %arg3: memref<1x16x64xbf16, #tpu.memory_space<vmem>>, %arg4: memref<1x16x64xbf16, #tpu.memory_space<vmem>>, %arg5: memref<1x16x64xbf16, #tpu.memory_space<vmem>>, %arg6: memref<1088x256xbf16, #tpu.memory_space<vmem>>, %arg7: memref<64x256xbf16, #tpu.memory_space<vmem>>, %arg8: memref<64x256xbf16, #tpu.memory_space<vmem>>, %arg9: memref<64x256xbf16, #tpu.memory_space<vmem>>, %arg10: memref<1x256xf32, #tpu.memory_space<vmem>>, %arg11: memref<256x256xbf16, #tpu.memory_space<vmem>>, %arg12: memref<1x256xf32, #tpu.memory_space<vmem>>, %arg13: memref<256x128xbf16, #tpu.memory_space<vmem>>, %arg14: memref<1x128xf32, #tpu.memory_space<vmem>>, %arg15: memref<128x128xbf16, #tpu.memory_space<vmem>>, %arg16: memref<1x128xf32, #tpu.memory_space<vmem>>, %arg17: memref<1x16x128xf32, #tpu.memory_space<vmem>>) attributes {dimension_semantics = [#tpu.dimension_semantics<parallel>, #tpu.dimension_semantics<parallel>], iteration_bounds = array<i64: 2, 1>, scalar_prefetch = 0 : i64, scratch_operands = 0 : i64, tpu.core_type = #tpu.core_type<tc>, window_params = [{transform_indices = @transform_0, window_bounds = array<i64: 1, 1, 1088>}, {transform_indices = @transform_1, window_bounds = array<i64: 1, 16, 64>}, {transform_indices = @transform_2, window_bounds = array<i64: 1, 16, 64>}, {transform_indices = @transform_3, window_bounds = array<i64: 1, 16, 64>}, {pipeline_mode = #tpu.pipeline_mode<synchronous>, transform_indices = @transform_4, window_bounds = array<i64: 1088, 256>}, {pipeline_mode = #tpu.pipeline_mode<synchronous>, transform_indices = @transform_5, window_bounds = array<i64: 64, 256>}, {pipeline_mode = #tpu.pipeline_mode<synchronous>, transform_indices = @transform_6, window_bounds = array<i64: 64, 256>}, {pipeline_mode = #tpu.pipeline_mode<synchronous>, transform_indices = @transform_7, window_bounds = array<i64: 64, 256>}, {pipeline_mode = #tpu.pipeline_mode<synchronous>, transform_indices = @transform_8, window_bounds = array<i64: 1, 256>}, {pipeline_mode = #tpu.pipeline_mode<synchronous>, transform_indices = @transform_9, window_bounds = array<i64: 256, 256>}, {pipeline_mode = #tpu.pipeline_mode<synchronous>, transform_indices = @transform_10, window_bounds = array<i64: 1, 256>}, {pipeline_mode = #tpu.pipeline_mode<synchronous>, transform_indices = @transform_11, window_bounds = array<i64: 256, 128>}, {pipeline_mode = #tpu.pipeline_mode<synchronous>, transform_indices = @transform_12, window_bounds = array<i64: 1, 128>}, {pipeline_mode = #tpu.pipeline_mode<synchronous>, transform_indices = @transform_13, window_bounds = array<i64: 128, 128>}, {pipeline_mode = #tpu.pipeline_mode<synchronous>, transform_indices = @transform_14, window_bounds = array<i64: 1, 128>}, {transform_indices = @transform_15, window_bounds = array<i64: 1, 16, 128>}]} {
    %c0 = arith.constant 0 : index
    %c0_0 = arith.constant 0 : index
    %c0_1 = arith.constant 0 : index
    %0 = vector.load %arg2[%c0, %c0_0, %c0_1] : memref<1x1x1088xf32, #tpu.memory_space<vmem>>, vector<1x1x1088xf32>
    %1 = vector.shape_cast %0 : vector<1x1x1088xf32> to vector<1x1088xf32>
    %2 = arith.truncf %1 : vector<1x1088xf32> to vector<1x1088xbf16>
    %c0_2 = arith.constant 0 : index
    %c0_3 = arith.constant 0 : index
    %3 = vector.load %arg6[%c0_2, %c0_3] : memref<1088x256xbf16, #tpu.memory_space<vmem>>, vector<1088x256xbf16>
    %cst = arith.constant dense<0.000000e+00> : vector<1x256xf32>
    %4 = tpu.matmul %2, %3, %cst {dimension_numbers = #tpu.dot_dimension_numbers<[1], [0], [0], [1], [0, 0, 1, 1], [], []>} : vector<1x1088xbf16>, vector<1088x256xbf16>, vector<1x256xf32> -> vector<1x256xf32>
    %c0_4 = arith.constant 0 : index
    %c0_5 = arith.constant 0 : index
    %5 = vector.load %arg10[%c0_4, %c0_5] : memref<1x256xf32, #tpu.memory_space<vmem>>, vector<1x256xf32>
    %6 = arith.addf %4, %5 : vector<1x256xf32>
    %c0_6 = arith.constant 0 : index
    %c0_7 = arith.constant 0 : index
    %c0_8 = arith.constant 0 : index
    %7 = vector.load %arg3[%c0_6, %c0_7, %c0_8] : memref<1x16x64xbf16, #tpu.memory_space<vmem>>, vector<1x16x64xbf16>
    %8 = vector.shape_cast %7 : vector<1x16x64xbf16> to vector<16x64xbf16>
    %c0_9 = arith.constant 0 : index
    %c0_10 = arith.constant 0 : index
    %9 = vector.load %arg7[%c0_9, %c0_10] : memref<64x256xbf16, #tpu.memory_space<vmem>>, vector<64x256xbf16>
    %cst_11 = arith.constant dense<0.000000e+00> : vector<16x256xf32>
    %10 = tpu.matmul %8, %9, %cst_11 {dimension_numbers = #tpu.dot_dimension_numbers<[1], [0], [0], [1], [0, 0, 1, 1], [], []>} : vector<16x64xbf16>, vector<64x256xbf16>, vector<16x256xf32> -> vector<16x256xf32>
    %c0_12 = arith.constant 0 : index
    %c0_13 = arith.constant 0 : index
    %c0_14 = arith.constant 0 : index
    %11 = vector.load %arg4[%c0_12, %c0_13, %c0_14] : memref<1x16x64xbf16, #tpu.memory_space<vmem>>, vector<1x16x64xbf16>
    %12 = vector.shape_cast %11 : vector<1x16x64xbf16> to vector<16x64xbf16>
    %c0_15 = arith.constant 0 : index
    %c0_16 = arith.constant 0 : index
    %13 = vector.load %arg8[%c0_15, %c0_16] : memref<64x256xbf16, #tpu.memory_space<vmem>>, vector<64x256xbf16>
    %cst_17 = arith.constant dense<0.000000e+00> : vector<16x256xf32>
    %14 = tpu.matmul %12, %13, %cst_17 {dimension_numbers = #tpu.dot_dimension_numbers<[1], [0], [0], [1], [0, 0, 1, 1], [], []>} : vector<16x64xbf16>, vector<64x256xbf16>, vector<16x256xf32> -> vector<16x256xf32>
    %15 = arith.addf %10, %14 : vector<16x256xf32>
    %c0_18 = arith.constant 0 : index
    %c0_19 = arith.constant 0 : index
    %c0_20 = arith.constant 0 : index
    %16 = vector.load %arg5[%c0_18, %c0_19, %c0_20] : memref<1x16x64xbf16, #tpu.memory_space<vmem>>, vector<1x16x64xbf16>
    %17 = vector.shape_cast %16 : vector<1x16x64xbf16> to vector<16x64xbf16>
    %c0_21 = arith.constant 0 : index
    %c0_22 = arith.constant 0 : index
    %18 = vector.load %arg9[%c0_21, %c0_22] : memref<64x256xbf16, #tpu.memory_space<vmem>>, vector<64x256xbf16>
    %cst_23 = arith.constant dense<0.000000e+00> : vector<16x256xf32>
    %19 = tpu.matmul %17, %18, %cst_23 {dimension_numbers = #tpu.dot_dimension_numbers<[1], [0], [0], [1], [0, 0, 1, 1], [], []>} : vector<16x64xbf16>, vector<64x256xbf16>, vector<16x256xf32> -> vector<16x256xf32>
    %20 = arith.addf %15, %19 : vector<16x256xf32>
    %21 = vector.broadcast %6 : vector<1x256xf32> to vector<16x256xf32>
    %22 = arith.addf %20, %21 : vector<16x256xf32>
    %cst_24 = arith.constant 0.000000e+00 : f32
    %23 = vector.broadcast %cst_24 : f32 to vector<16x256xf32>
    %24 = arith.cmpf oge, %22, %23 : vector<16x256xf32>
    %cst_25 = arith.constant 2.000000e-01 : f32
    %25 = vector.broadcast %cst_25 : f32 to vector<16x256xf32>
    %26 = arith.mulf %25, %22 : vector<16x256xf32>
    %27 = arith.select %24, %22, %26 : vector<16x256xi1>, vector<16x256xf32>
    %28 = arith.truncf %27 : vector<16x256xf32> to vector<16x256xbf16>
    %c0_26 = arith.constant 0 : index
    %c0_27 = arith.constant 0 : index
    %29 = vector.load %arg11[%c0_26, %c0_27] : memref<256x256xbf16, #tpu.memory_space<vmem>>, vector<256x256xbf16>
    %cst_28 = arith.constant dense<0.000000e+00> : vector<16x256xf32>
    %30 = tpu.matmul %28, %29, %cst_28 {dimension_numbers = #tpu.dot_dimension_numbers<[1], [0], [0], [1], [0, 0, 1, 1], [], []>} : vector<16x256xbf16>, vector<256x256xbf16>, vector<16x256xf32> -> vector<16x256xf32>
    %c0_29 = arith.constant 0 : index
    %c0_30 = arith.constant 0 : index
    %31 = vector.load %arg12[%c0_29, %c0_30] : memref<1x256xf32, #tpu.memory_space<vmem>>, vector<1x256xf32>
    %32 = vector.broadcast %31 : vector<1x256xf32> to vector<16x256xf32>
    %33 = arith.addf %30, %32 : vector<16x256xf32>
    %cst_31 = arith.constant 0.000000e+00 : f32
    %34 = vector.broadcast %cst_31 : f32 to vector<16x256xf32>
    %35 = arith.cmpf oge, %33, %34 : vector<16x256xf32>
    %cst_32 = arith.constant 2.000000e-01 : f32
    %36 = vector.broadcast %cst_32 : f32 to vector<16x256xf32>
    %37 = arith.mulf %36, %33 : vector<16x256xf32>
    %38 = arith.select %35, %33, %37 : vector<16x256xi1>, vector<16x256xf32>
    %39 = arith.truncf %38 : vector<16x256xf32> to vector<16x256xbf16>
    %c0_33 = arith.constant 0 : index
    %c0_34 = arith.constant 0 : index
    %40 = vector.load %arg13[%c0_33, %c0_34] : memref<256x128xbf16, #tpu.memory_space<vmem>>, vector<256x128xbf16>
    %cst_35 = arith.constant dense<0.000000e+00> : vector<16x128xf32>
    %41 = tpu.matmul %39, %40, %cst_35 {dimension_numbers = #tpu.dot_dimension_numbers<[1], [0], [0], [1], [0, 0, 1, 1], [], []>} : vector<16x256xbf16>, vector<256x128xbf16>, vector<16x128xf32> -> vector<16x128xf32>
    %c0_36 = arith.constant 0 : index
    %c0_37 = arith.constant 0 : index
    %42 = vector.load %arg14[%c0_36, %c0_37] : memref<1x128xf32, #tpu.memory_space<vmem>>, vector<1x128xf32>
    %43 = vector.broadcast %42 : vector<1x128xf32> to vector<16x128xf32>
    %44 = arith.addf %41, %43 : vector<16x128xf32>
    %cst_38 = arith.constant 0.000000e+00 : f32
    %45 = vector.broadcast %cst_38 : f32 to vector<16x128xf32>
    %46 = arith.cmpf oge, %44, %45 : vector<16x128xf32>
    %cst_39 = arith.constant 2.000000e-01 : f32
    %47 = vector.broadcast %cst_39 : f32 to vector<16x128xf32>
    %48 = arith.mulf %47, %44 : vector<16x128xf32>
    %49 = arith.select %46, %44, %48 : vector<16x128xi1>, vector<16x128xf32>
    %50 = arith.truncf %49 : vector<16x128xf32> to vector<16x128xbf16>
    %c0_40 = arith.constant 0 : index
    %c0_41 = arith.constant 0 : index
    %51 = vector.load %arg15[%c0_40, %c0_41] : memref<128x128xbf16, #tpu.memory_space<vmem>>, vector<128x128xbf16>
    %cst_42 = arith.constant dense<0.000000e+00> : vector<16x128xf32>
    %52 = tpu.matmul %50, %51, %cst_42 {dimension_numbers = #tpu.dot_dimension_numbers<[1], [0], [0], [1], [0, 0, 1, 1], [], []>} : vector<16x128xbf16>, vector<128x128xbf16>, vector<16x128xf32> -> vector<16x128xf32>
    %c0_43 = arith.constant 0 : index
    %c0_44 = arith.constant 0 : index
    %53 = vector.load %arg16[%c0_43, %c0_44] : memref<1x128xf32, #tpu.memory_space<vmem>>, vector<1x128xf32>
    %54 = vector.broadcast %53 : vector<1x128xf32> to vector<16x128xf32>
    %55 = arith.addf %52, %54 : vector<16x128xf32>
    %c0_45 = arith.constant 0 : index
    %c0_46 = arith.constant 0 : index
    %c0_47 = arith.constant 0 : index
    %56 = vector.load %arg17[%c0_45, %c0_46, %c0_47] : memref<1x16x128xf32, #tpu.memory_space<vmem>>, vector<1x16x128xf32>
    %57 = vector.shape_cast %56 : vector<1x16x128xf32> to vector<16x128xf32>
    %58 = vector.shape_cast %55 : vector<16x128xf32> to vector<1x16x128xf32>
    tpu.vector_store %arg17[%c0_45, %c0_46, %c0_47], %58 {strides = array<i32>} : memref<1x16x128xf32, #tpu.memory_space<vmem>>, vector<1x16x128xf32>,
    return
  }
  func.func @transform_0(%arg0: i32, %arg1: i32) -> (i32, i32, i32) {
    %c0_i32 = arith.constant 0 : i32
    %c0_i32_0 = arith.constant 0 : i32
    %c0_i32_1 = arith.constant 0 : i32
    return %arg0, %c0_i32, %c0_i32_0 : i32, i32, i32
  }
  func.func @transform_1(%arg0: i32, %arg1: i32) -> (i32, i32, i32) {
    %c0_i32 = arith.constant 0 : i32
    %c0_i32_0 = arith.constant 0 : i32
    return %arg0, %arg1, %c0_i32 : i32, i32, i32
  }
  func.func @transform_2(%arg0: i32, %arg1: i32) -> (i32, i32, i32) {
    %c0_i32 = arith.constant 0 : i32
    %c0_i32_0 = arith.constant 0 : i32
    return %arg0, %arg1, %c0_i32 : i32, i32, i32
  }
  func.func @transform_3(%arg0: i32, %arg1: i32) -> (i32, i32, i32) {
    %c0_i32 = arith.constant 0 : i32
    %c0_i32_0 = arith.constant 0 : i32
    return %arg0, %arg1, %c0_i32 : i32, i32, i32
  }
  func.func @transform_4(%arg0: i32, %arg1: i32) -> (i32, i32) {
    %c0_i32 = arith.constant 0 : i32
    %c0_i32_0 = arith.constant 0 : i32
    %c0_i32_1 = arith.constant 0 : i32
    return %c0_i32, %c0_i32_0 : i32, i32
  }
  func.func @transform_5(%arg0: i32, %arg1: i32) -> (i32, i32) {
    %c0_i32 = arith.constant 0 : i32
    %c0_i32_0 = arith.constant 0 : i32
    %c0_i32_1 = arith.constant 0 : i32
    return %c0_i32, %c0_i32_0 : i32, i32
  }
  func.func @transform_6(%arg0: i32, %arg1: i32) -> (i32, i32) {
    %c0_i32 = arith.constant 0 : i32
    %c0_i32_0 = arith.constant 0 : i32
    %c0_i32_1 = arith.constant 0 : i32
    return %c0_i32, %c0_i32_0 : i32, i32
  }
  func.func @transform_7(%arg0: i32, %arg1: i32) -> (i32, i32) {
    %c0_i32 = arith.constant 0 : i32
    %c0_i32_0 = arith.constant 0 : i32
    %c0_i32_1 = arith.constant 0 : i32
    return %c0_i32, %c0_i32_0 : i32, i32
  }
  func.func @transform_8(%arg0: i32, %arg1: i32) -> (i32, i32) {
    %c0_i32 = arith.constant 0 : i32
    %c0_i32_0 = arith.constant 0 : i32
    %c0_i32_1 = arith.constant 0 : i32
    return %c0_i32, %c0_i32_0 : i32, i32
  }
  func.func @transform_9(%arg0: i32, %arg1: i32) -> (i32, i32) {
    %c0_i32 = arith.constant 0 : i32
    %c0_i32_0 = arith.constant 0 : i32
    %c0_i32_1 = arith.constant 0 : i32
    return %c0_i32, %c0_i32_0 : i32, i32
  }
  func.func @transform_10(%arg0: i32, %arg1: i32) -> (i32, i32) {
    %c0_i32 = arith.constant 0 : i32
    %c0_i32_0 = arith.constant 0 : i32
    %c0_i32_1 = arith.constant 0 : i32
    return %c0_i32, %c0_i32_0 : i32, i32
  }
  func.func @transform_11(%arg0: i32, %arg1: i32) -> (i32, i32) {
    %c0_i32 = arith.constant 0 : i32
    %c0_i32_0 = arith.constant 0 : i32
    %c0_i32_1 = arith.constant 0 : i32
    return %c0_i32, %c0_i32_0 : i32, i32
  }
  func.func @transform_12(%arg0: i32, %arg1: i32) -> (i32, i32) {
    %c0_i32 = arith.constant 0 : i32
    %c0_i32_0 = arith.constant 0 : i32
    %c0_i32_1 = arith.constant 0 : i32
    return %c0_i32, %c0_i32_0 : i32, i32
  }
  func.func @transform_13(%arg0: i32, %arg1: i32) -> (i32, i32) {
    %c0_i32 = arith.constant 0 : i32
    %c0_i32_0 = arith.constant 0 : i32
    %c0_i32_1 = arith.constant 0 : i32
    return %c0_i32, %c0_i32_0 : i32, i32
  }
  func.func @transform_14(%arg0: i32, %arg1: i32) -> (i32, i32) {
    %c0_i32 = arith.constant 0 : i32
    %c0_i32_0 = arith.constant 0 : i32
    %c0_i32_1 = arith.constant 0 : i32
    return %c0_i32, %c0_i32_0 : i32, i32
  }
  func.func @transform_15(%arg0: i32, %arg1: i32) -> (i32, i32, i32) {
    %c0_i32 = arith.constant 0 : i32
    %c0_i32_0 = arith.constant 0 : i32
    return %arg0, %arg1, %c0_i32 : i32, i32, i32
  }
}

</mosaic_0001>

<llo_original>
// kernel: dgcnn_pseg_forward.8
$region0: #{dgcnn_pseg_forward.8}
  #allocation0 [shape = 'u32[]', space=smem, size = 0x4, offset = 0x4, fixed_abs, tag = 'smem constant byte address 0x4 - core index']
  #allocation1 [shape = 'u32[144,128]{1,0:T(1,128)}', space=vmem, size = 0x12000, scoped, tag = 'internal scratch']
  %s0 = inlined_call_operand.vmem [shape: f32[4,32,3], index: 0, kind: input, shape index: {}]
  %s1 = inlined_call_operand.vmem [shape: f32[32,3], index: 1, kind: input, shape index: {}]
  %s2 = inlined_call_operand.vmem [shape: f32[3,64], index: 2, kind: input, shape index: {}]
  %s3 = inlined_call_operand.vmem [shape: f32[3,64], index: 3, kind: input, shape index: {}]
  %s4 = inlined_call_operand.vmem [shape: f32[1,64], index: 4, kind: input, shape index: {}]
  %s5 = inlined_call_operand.vmem [shape: bf16[64,128], index: 5, kind: input, shape index: {}]
  %s6 = inlined_call_operand.vmem [shape: f32[1,128], index: 6, kind: input, shape index: {}]
  %s7 = inlined_call_operand.vmem [shape: bf16[32,128], index: 7, kind: output, shape index: {}]
  %s8 = sld [smem:[#allocation0]]
  $region38: #{dgcnn_pseg_forward.8} parent=0
    _
  %s10 = ssub.s32 1, %s8
  %s11 = scalar_select 0, %s10, %s8
  // Predicated region
  $region2: #{dgcnn_pseg_forward.8} parent=0 // pred_check
    _
  $region3: #{dgcnn_pseg_forward.8} parent=0 // pred_check_branch
    %13 = sbr.rel (0) target = $region5
  $region4: #{dgcnn_pseg_forward.8} parent=0 // pred_region
    _
  $region5: #{dgcnn_pseg_forward.8} parent=0 // pred_fallthru
    _
  // Predicated region
  $region6: #{dgcnn_pseg_forward.8} parent=0 // pred_check
    _
  $region7: #{dgcnn_pseg_forward.8} parent=0 // pred_check_branch
    %15 = sbr.rel (0) target = $region9
  $region8: #{dgcnn_pseg_forward.8} parent=0 // pred_region
    _
  $region9: #{dgcnn_pseg_forward.8} parent=0 // pred_fallthru
    _
  // Predicated region
  $region10: #{dgcnn_pseg_forward.8} parent=0 // pred_check
    _
  $region11: #{dgcnn_pseg_forward.8} parent=0 // pred_check_branch
    %17 = sbr.rel (0) target = $region13
  $region12: #{dgcnn_pseg_forward.8} parent=0 // pred_region
    _
  $region13: #{dgcnn_pseg_forward.8} parent=0 // pred_fallthru
    _
  // Predicated region
  $region14: #{dgcnn_pseg_forward.8} parent=0 // pred_check
    _
  $region15: #{dgcnn_pseg_forward.8} parent=0 // pred_check_branch
    %19 = sbr.rel (0) target = $region17
  $region16: #{dgcnn_pseg_forward.8} parent=0 // pred_region
    _
  $region17: #{dgcnn_pseg_forward.8} parent=0 // pred_fallthru
    _
  // Predicated region
  $region18: #{dgcnn_pseg_forward.8} parent=0 // pred_check
    _
  $region19: #{dgcnn_pseg_forward.8} parent=0 // pred_check_branch
    %21 = sbr.rel (0) target = $region21
  $region20: #{dgcnn_pseg_forward.8} parent=0 // pred_region
    _
  $region21: #{dgcnn_pseg_forward.8} parent=0 // pred_fallthru
    _
  // Predicated region
  $region22: #{dgcnn_pseg_forward.8} parent=0 // pred_check
    _
  $region23: #{dgcnn_pseg_forward.8} parent=0 // pred_check_branch
    %23 = sbr.rel (0) target = $region25
  $region24: #{dgcnn_pseg_forward.8} parent=0 // pred_region
    _
  $region25: #{dgcnn_pseg_forward.8} parent=0 // pred_fallthru
    _
  // Predicated region
  $region26: #{dgcnn_pseg_forward.8} parent=0 // pred_check
    _
  $region27: #{dgcnn_pseg_forward.8} parent=0 // pred_check_branch
    %25 = sbr.rel (0) target = $region29
  $region28: #{dgcnn_pseg_forward.8} parent=0 // pred_region
    _
  $region29: #{dgcnn_pseg_forward.8} parent=0 // pred_fallthru
    _
  %v27 = vld [vmem:[%s1] sm:$0xff]
  %v28 = vld [vmem:[%s1 + $0x8] sm:$0xff]
  %v29 = vld [vmem:[%s1 + $0x10] sm:$0xff]
  %v30 = vld [vmem:[%s1 + $0x18] sm:$0xff]
  %v31 = vld [vmem:[%s3] sm:$0x7]
  %v32 = vld [vmem:[%s4] sm:$0x1]
  %v34 = vlaneseq
  %v35 = vshrl.u32 %v34, 7
  %v36 = vsub.s32 0, %v35
  %v37 = vrot.slane %v32, %v36
  %vm39 = vcmask 23552
  %v41 = vsel %vm39, %v27, 0
  %v44 = vsel %vm39, %v28, 0
  %v47 = vsel %vm39, %v29, 0
  %v50 = vsel %vm39, %v30, 0
  %vm52 = vcmask 1042432
  %v54 = vsel %vm52, %v31, 0
  %56 = vmatprep.subr.mxu0 0.0
  %57 = vmatpush1.msra.mxu0 %v54
  %58 = vmatprep.subr.mxu0 0.0
  %59 = vmatpush1.msra.mxu0 0.0
  %60 = vmatprep.subr.mxu0 0.0
  %61 = vmatpush1.msra.mxu0 0.0
  %62 = vmatprep.subr.mxu0 0.0
  %63 = vmatpush1.msra.mxu0 0.0
  %64 = vmatprep.subr.mxu0 0.0
  %65 = vmatpush1.msra.mxu0 0.0
  %66 = vmatprep.subr.mxu0 0.0
  %67 = vmatpush1.msra.mxu0 0.0
  %68 = vmatprep.subr.mxu0 0.0
  %69 = vmatpush1.msra.mxu0 0.0
  %70 = vmatprep.subr.mxu0 0.0
  %71 = vmatpush1.msra.mxu0 0.0
  %72 = vmatprep.subr.mxu0 0.0
  %73 = vmatpush1.msra.mxu0 0.0
  %74 = vmatprep.subr.mxu0 0.0
  %75 = vmatpush1.msra.mxu0 0.0
  %76 = vmatprep.subr.mxu0 0.0
  %77 = vmatpush1.msra.mxu0 0.0
  %78 = vmatprep.subr.mxu0 0.0
  %79 = vmatpush1.msra.mxu0 0.0
  %80 = vmatprep.subr.mxu0 0.0
  %81 = vmatpush1.msra.mxu0 0.0
  %82 = vmatprep.subr.mxu0 0.0
  %83 = vmatpush1.msra.mxu0 0.0
  %84 = vmatprep.subr.mxu0 0.0
  %85 = vmatpush1.msra.mxu0 0.0
  %86 = vmatprep.subr.mxu0 0.0
  %87 = vmatpush1.msra.mxu0 0.0
  %88 = vmatprep.subr.mxu0 0.0
  %89 = vmatpush1.msra.mxu0 0.0
  %90 = vmatprep.subr.mxu0 0.0
  %91 = vmatpush1.msra.mxu0 0.0
  %92 = vmatprep.subr.mxu0 0.0
  %93 = vmatpush1.msra.mxu0 0.0
  %94 = vmatprep.subr.mxu0 0.0
  %95 = vmatpush1.msra.mxu0 0.0
  %96 = vmatprep.subr.mxu0 0.0
  %97 = vmatpush1.msra.mxu0 0.0
  %98 = vmatprep.subr.mxu0 0.0
  %99 = vmatpush1.msra.mxu0 0.0
  %100 = vmatprep.subr.mxu0 0.0
  %101 = vmatpush1.msra.mxu0 0.0
  %102 = vmatprep.subr.mxu0 0.0
  %103 = vmatpush1.msra.mxu0 0.0
  %104 = vmatprep.subr.mxu0 0.0
  %105 = vmatpush1.msra.mxu0 0.0
  %106 = vmatprep.subr.mxu0 0.0
  %107 = vmatpush1.msra.mxu0 0.0
  %108 = vmatprep.subr.mxu0 0.0
  %109 = vmatpush1.msra.mxu0 0.0
  %110 = vmatprep.subr.mxu0 0.0
  %111 = vmatpush1.msra.mxu0 0.0
  %112 = vmatprep.subr.mxu0 0.0
  %113 = vmatpush1.msra.mxu0 0.0
  %114 = vmatprep.subr.mxu0 0.0
  %115 = vmatpush1.msra.mxu0 0.0
  %116 = vmatprep.subr.mxu0 0.0
  %117 = vmatpush1.msra.mxu0 0.0
  %118 = vmatprep.subr.mxu0 0.0
  %119 = vmatpush1.msra.mxu0 0.0
  %120 = vmatprep.mubr.f32.mxu0 0.0
  %121 = vmatmul.mubr.f32.gmra.mrb[0].mxu0 %v41
  %v122 = vpop.f32.mrb[0].mxu0
  %v123 = vadd.f32 %v37, %v122
  %v124 = vpop.f32.mrb[0].mxu0
  %125 = vmatprep.mubr.f32.mxu0 0.0
  %126 = vmatmul.mubr.f32.gmra.mrb[0].mxu0 %v44
  %v127 = vpop.f32.mrb[0].mxu0
  %v128 = vadd.f32 %v37, %v127
  %v129 = vpop.f32.mrb[0].mxu0
  %130 = vmatprep.mubr.f32.mxu0 0.0
  %131 = vmatmul.mubr.f32.gmra.mrb[0].mxu0 %v47
  %v132 = vpop.f32.mrb[0].mxu0
  %v133 = vadd.f32 %v37, %v132
  %v134 = vpop.f32.mrb[0].mxu0
  %135 = vmatprep.mubr.f32.mxu0 0.0
  %136 = vmatmul.mubr.f32.gmra.mrb[0].mxu0 %v50
  %v137 = vpop.f32.mrb[0].mxu0
  %v138 = vadd.f32 %v37, %v137
  %v139 = vpop.f32.mrb[0].mxu0
  %140 = vdwg.mxu0
  %v141 = vld [vmem:[%s0] sm:$0xff]
  %v142 = vld [vmem:[%s0 + $0x8] sm:$0xff]
  %v143 = vld [vmem:[%s0 + $0x10] sm:$0xff]
  %v144 = vld [vmem:[%s0 + $0x18] sm:$0xff]
  %v145 = vld [vmem:[%s0 + $0x20] sm:$0xff]
  %v146 = vld [vmem:[%s0 + $0x28] sm:$0xff]
  %v147 = vld [vmem:[%s0 + $0x30] sm:$0xff]
  %v148 = vld [vmem:[%s0 + $0x38] sm:$0xff]
  %v149 = vld [vmem:[%s0 + $0x40] sm:$0xff]
  %v150 = vld [vmem:[%s0 + $0x48] sm:$0xff]
  %v151 = vld [vmem:[%s0 + $0x50] sm:$0xff]
  %v152 = vld [vmem:[%s0 + $0x58] sm:$0xff]
  %v153 = vld [vmem:[%s0 + $0x60] sm:$0xff]
  %v154 = vld [vmem:[%s0 + $0x68] sm:$0xff]
  %v155 = vld [vmem:[%s0 + $0x70] sm:$0xff]
  %v156 = vld [vmem:[%s0 + $0x78] sm:$0xff]
  %v157 = vld [vmem:[%s2] sm:$0x7]
  %v159 = vsel %vm39, %v141, 0
  %v162 = vsel %vm39, %v142, 0
  %v165 = vsel %vm39, %v143, 0
  %v168 = vsel %vm39, %v144, 0
  %v171 = vsel %vm39, %v145, 0
  %v174 = vsel %vm39, %v146, 0
  %v177 = vsel %vm39, %v147, 0
  %v180 = vsel %vm39, %v148, 0
  %v183 = vsel %vm39, %v149, 0
  %v186 = vsel %vm39, %v150, 0
  %v189 = vsel %vm39, %v151, 0
  %v192 = vsel %vm39, %v152, 0
  %v195 = vsel %vm39, %v153, 0
  %v198 = vsel %vm39, %v154, 0
  %v201 = vsel %vm39, %v155, 0
  %v204 = vsel %vm39, %v156, 0
  %v207 = vsel %vm52, %v157, 0
  %209 = vmatprep.subr.mxu0 0.0
  %210 = vmatpush1.msra.mxu0 %v207
  %211 = vmatprep.subr.mxu0 0.0
  %212 = vmatpush1.msra.mxu0 0.0
  %213 = vmatprep.subr.mxu0 0.0
  %214 = vmatpush1.msra.mxu0 0.0
  %215 = vmatprep.subr.mxu0 0.0
  %216 = vmatpush1.msra.mxu0 0.0
  %217 = vmatprep.subr.mxu0 0.0
  %218 = vmatpush1.msra.mxu0 0.0
  %219 = vmatprep.subr.mxu0 0.0
  %220 = vmatpush1.msra.mxu0 0.0
  %221 = vmatprep.subr.mxu0 0.0
  %222 = vmatpush1.msra.mxu0 0.0
  %223 = vmatprep.subr.mxu0 0.0
  %224 = vmatpush1.msra.mxu0 0.0
  %225 = vmatprep.subr.mxu0 0.0
  %226 = vmatpush1.msra.mxu0 0.0
  %227 = vmatprep.subr.mxu0 0.0
  %228 = vmatpush1.msra.mxu0 0.0
  %229 = vmatprep.subr.mxu0 0.0
  %230 = vmatpush1.msra.mxu0 0.0
  %231 = vmatprep.subr.mxu0 0.0
  %232 = vmatpush1.msra.mxu0 0.0
  %233 = vmatprep.subr.mxu0 0.0
  %234 = vmatpush1.msra.mxu0 0.0
  %235 = vmatprep.subr.mxu0 0.0
  %236 = vmatpush1.msra.mxu0 0.0
  %237 = vmatprep.subr.mxu0 0.0
  %238 = vmatpush1.msra.mxu0 0.0
  %239 = vmatprep.subr.mxu0 0.0
  %240 = vmatpush1.msra.mxu0 0.0
  %241 = vmatprep.subr.mxu0 0.0
  %242 = vmatpush1.msra.mxu0 0.0
  %243 = vmatprep.subr.mxu0 0.0
  %244 = vmatpush1.msra.mxu0 0.0
  %245 = vmatprep.subr.mxu0 0.0
  %246 = vmatpush1.msra.mxu0 0.0
  %247 = vmatprep.subr.mxu0 0.0
  %248 = vmatpush1.msra.mxu0 0.0
  %249 = vmatprep.subr.mxu0 0.0
  %250 = vmatpush1.msra.mxu0 0.0
  %251 = vmatprep.subr.mxu0 0.0
  %252 = vmatpush1.msra.mxu0 0.0
  %253 = vmatprep.subr.mxu0 0.0
  %254 = vmatpush1.msra.mxu0 0.0
  %255 = vmatprep.subr.mxu0 0.0
  %256 = vmatpush1.msra.mxu0 0.0
  %257 = vmatprep.subr.mxu0 0.0
  %258 = vmatpush1.msra.mxu0 0.0
  %259 = vmatprep.subr.mxu0 0.0
  %260 = vmatpush1.msra.mxu0 0.0
  %261 = vmatprep.subr.mxu0 0.0
  %262 = vmatpush1.msra.mxu0 0.0
  %263 = vmatprep.subr.mxu0 0.0
  %264 = vmatpush1.msra.mxu0 0.0
  %265 = vmatprep.subr.mxu0 0.0
  %266 = vmatpush1.msra.mxu0 0.0
  %267 = vmatprep.subr.mxu0 0.0
  %268 = vmatpush1.msra.mxu0 0.0
  %269 = vmatprep.subr.mxu0 0.0
  %270 = vmatpush1.msra.mxu0 0.0
  %271 = vmatprep.subr.mxu0 0.0
  %272 = vmatpush1.msra.mxu0 0.0
  %273 = vmatprep.mubr.f32.mxu0 0.0
  %274 = vmatmul.mubr.f32.gmra.mrb[0].mxu0 %v159
  %v275 = vpop.f32.mrb[0].mxu0
  %v276 = vadd.f32 0.0, %v275
  %v277 = vpop.f32.mrb[0].mxu0
  %278 = vmatprep.mubr.f32.mxu0 0.0
  %279 = vmatmul.mubr.f32.gmra.mrb[0].mxu0 %v162
  %v280 = vpop.f32.mrb[0].mxu0
  %v281 = vadd.f32 0.0, %v280
  %v282 = vpop.f32.mrb[0].mxu0
  %283 = vmatprep.mubr.f32.mxu0 0.0
  %284 = vmatmul.mubr.f32.gmra.mrb[0].mxu0 %v165
  %v285 = vpop.f32.mrb[0].mxu0
  %v286 = vadd.f32 0.0, %v285
  %v287 = vpop.f32.mrb[0].mxu0
  %288 = vmatprep.mubr.f32.mxu0 0.0
  %289 = vmatmul.mubr.f32.gmra.mrb[0].mxu0 %v168
  %v290 = vpop.f32.mrb[0].mxu0
  %v291 = vadd.f32 0.0, %v290
  %v292 = vpop.f32.mrb[0].mxu0
  %293 = vmatprep.mubr.f32.mxu0 0.0
  %294 = vmatmul.mubr.f32.gmra.mrb[0].mxu0 %v171
  %v295 = vpop.f32.mrb[0].mxu0
  %v296 = vadd.f32 0.0, %v295
  %v297 = vpop.f32.mrb[0].mxu0
  %298 = vmatprep.mubr.f32.mxu0 0.0
  %299 = vmatmul.mubr.f32.gmra.mrb[0].mxu0 %v174
  %v300 = vpop.f32.mrb[0].mxu0
  %v301 = vadd.f32 0.0, %v300
  %v302 = vpop.f32.mrb[0].mxu0
  %303 = vmatprep.mubr.f32.mxu0 0.0
  %304 = vmatmul.mubr.f32.gmra.mrb[0].mxu0 %v177
  %v305 = vpop.f32.mrb[0].mxu0
  %v306 = vadd.f32 0.0, %v305
  %v307 = vpop.f32.mrb[0].mxu0
  %308 = vmatprep.mubr.f32.mxu0 0.0
  %309 = vmatmul.mubr.f32.gmra.mrb[0].mxu0 %v180
  %v310 = vpop.f32.mrb[0].mxu0
  %v311 = vadd.f32 0.0, %v310
  %v312 = vpop.f32.mrb[0].mxu0
  %313 = vmatprep.mubr.f32.mxu0 0.0
  %314 = vmatmul.mubr.f32.gmra.mrb[0].mxu0 %v183
  %v315 = vpop.f32.mrb[0].mxu0
  %v316 = vadd.f32 0.0, %v315
  %v317 = vpop.f32.mrb[0].mxu0
  %318 = vmatprep.mubr.f32.mxu0 0.0
  %319 = vmatmul.mubr.f32.gmra.mrb[0].mxu0 %v186
  %v320 = vpop.f32.mrb[0].mxu0
  %v321 = vadd.f32 0.0, %v320
  %v322 = vpop.f32.mrb[0].mxu0
  %323 = vmatprep.mubr.f32.mxu0 0.0
  %324 = vmatmul.mubr.f32.gmra.mrb[0].mxu0 %v189
  %v325 = vpop.f32.mrb[0].mxu0
  %v326 = vadd.f32 0.0, %v325
  %v327 = vpop.f32.mrb[0].mxu0
  %328 = vmatprep.mubr.f32.mxu0 0.0
  %329 = vmatmul.mubr.f32.gmra.mrb[0].mxu0 %v192
  %v330 = vpop.f32.mrb[0].mxu0
  %v331 = vadd.f32 0.0, %v330
  %v332 = vpop.f32.mrb[0].mxu0
  %333 = vmatprep.mubr.f32.mxu0 0.0
  %334 = vmatmul.mubr.f32.gmra.mrb[0].mxu0 %v195
  %v335 = vpop.f32.mrb[0].mxu0
  %v336 = vadd.f32 0.0, %v335
  %v337 = vpop.f32.mrb[0].mxu0
  %338 = vmatprep.mubr.f32.mxu0 0.0
  %339 = vmatmul.mubr.f32.gmra.mrb[0].mxu0 %v198
  %v340 = vpop.f32.mrb[0].mxu0
  %v341 = vadd.f32 0.0, %v340
  %v342 = vpop.f32.mrb[0].mxu0
  %343 = vmatprep.mubr.f32.mxu0 0.0
  %344 = vmatmul.mubr.f32.gmra.mrb[0].mxu0 %v201
  %v345 = vpop.f32.mrb[0].mxu0
  %v346 = vadd.f32 0.0, %v345
  %v347 = vpop.f32.mrb[0].mxu0
  %348 = vmatprep.mubr.f32.mxu0 0.0
  %349 = vmatmul.mubr.f32.gmra.mrb[0].mxu0 %v204
  %v350 = vpop.f32.mrb[0].mxu0
  %v351 = vadd.f32 0.0, %v350
  %v352 = vpop.f32.mrb[0].mxu0
  %353 = vdwg.mxu0
  %v354 = vadd.f32 %v276, %v123
  %v355 = vadd.f32 %v281, %v128
  %v356 = vadd.f32 %v286, %v133
  %v357 = vadd.f32 %v291, %v138
  %v358 = vadd.f32 %v296, %v123
  %v359 = vadd.f32 %v301, %v128
  %v360 = vadd.f32 %v306, %v133
  %v361 = vadd.f32 %v311, %v138
  %v362 = vadd.f32 %v316, %v123
  %v363 = vadd.f32 %v321, %v128
  %v364 = vadd.f32 %v326, %v133
  %v365 = vadd.f32 %v331, %v138
  %v366 = vadd.f32 %v336, %v123
  %v367 = vadd.f32 %v341, %v128
  %v368 = vadd.f32 %v346, %v133
  %v369 = vadd.f32 %v351, %v138
  %vm370 = vcmp.ge.f32.partialorder %v354, 0.0
  %vm371 = vcmp.ge.f32.partialorder %v355, 0.0
  %vm372 = vcmp.ge.f32.partialorder %v356, 0.0
  %vm373 = vcmp.ge.f32.partialorder %v357, 0.0
  %vm374 = vcmp.ge.f32.partialorder %v358, 0.0
  %vm375 = vcmp.ge.f32.partialorder %v359, 0.0
  %vm376 = vcmp.ge.f32.partialorder %v360, 0.0
  %vm377 = vcmp.ge.f32.partialorder %v361, 0.0
  %vm378 = vcmp.ge.f32.partialorder %v362, 0.0
  %vm379 = vcmp.ge.f32.partialorder %v363, 0.0
  %vm380 = vcmp.ge.f32.partialorder %v364, 0.0
  %vm381 = vcmp.ge.f32.partialorder %v365, 0.0
  %vm382 = vcmp.ge.f32.partialorder %v366, 0.0
  %vm383 = vcmp.ge.f32.partialorder %v367, 0.0
  %vm384 = vcmp.ge.f32.partialorder %v368, 0.0
  %vm385 = vcmp.ge.f32.partialorder %v369, 0.0
  %v386 = vmul.f32 %v354, 0.2
  %v387 = vmul.f32 %v355, 0.2
  %v388 = vmul.f32 %v356, 0.2
  %v389 = vmul.f32 %v357, 0.2
  %v390 = vmul.f32 %v358, 0.2
  %v391 = vmul.f32 %v359, 0.2
  %v392 = vmul.f32 %v360, 0.2
  %v393 = vmul.f32 %v361, 0.2
  %v394 = vmul.f32 %v362, 0.2
  %v395 = vmul.f32 %v363, 0.2
  %v396 = vmul.f32 %v364, 0.2
  %v397 = vmul.f32 %v365, 0.2
  %v398 = vmul.f32 %v366, 0.2
  %v399 = vmul.f32 %v367, 0.2
  %v400 = vmul.f32 %v368, 0.2
  %v401 = vmul.f32 %v369, 0.2
  %v402 = vsel %vm370, %v354, %v386
  %v403 = vsel %vm371, %v355, %v387
  %v404 = vsel %vm372, %v356, %v388
  %v405 = vsel %vm373, %v357, %v389
  %v406 = vsel %vm374, %v358, %v390
  %v407 = vsel %vm375, %v359, %v391
  %v408 = vsel %vm376, %v360, %v392
  %v409 = vsel %vm377, %v361, %v393
  %v410 = vsel %vm378, %v362, %v394
  %v411 = vsel %vm379, %v363, %v395
  %v412 = vsel %vm380, %v364, %v396
  %v413 = vsel %vm381, %v365, %v397
  %v414 = vsel %vm382, %v366, %v398
  %v415 = vsel %vm383, %v367, %v399
  %v416 = vsel %vm384, %v368, %v400
  %v417 = vsel %vm385, %v369, %v401
  %v418 = vpack.c.bf16 %v403, %v402
  %v419 = vpack.c.bf16 %v405, %v404
  %v420 = vpack.c.bf16 %v407, %v406
  %v421 = vpack.c.bf16 %v409, %v408
  %v422 = vpack.c.bf16 %v411, %v410
  %v423 = vpack.c.bf16 %v413, %v412
  %v424 = vpack.c.bf16 %v415, %v414
  %v425 = vpack.c.bf16 %v417, %v416
  %v426 = vld [vmem:[%s5] sm:$0xf]
  %v427 = vld [vmem:[%s5 + $0x4] sm:$0xf]
  %v428 = vld [vmem:[%s5 + $0x8] sm:$0xf]
  %v429 = vld [vmem:[%s5 + $0xc] sm:$0xf]
  %v430 = vld [vmem:[%s5 + $0x10] sm:$0xf]
  %v431 = vld [vmem:[%s5 + $0x14] sm:$0xf]
  %v432 = vld [vmem:[%s5 + $0x18] sm:$0xf]
  %v433 = vld [vmem:[%s5 + $0x1c] sm:$0xf]
  %v434 = vld [vmem:[%s6] sm:$0x1]
  %v436 = vlaneseq
  %v437 = vshrl.u32 %v436, 7
  %v438 = vsub.s32 0, %v437
  %v439 = vrot.slane %v434, %v438
  %v449 = vunpack.c.l.b16 %v426
  %v450 = vunpack.c.l.b16 %v427
  %v451 = vunpack.c.l.b16 %v428
  %v452 = vunpack.c.l.b16 %v429
  %v453 = vunpack.c.l.b16 %v430
  %v454 = vunpack.c.l.b16 %v431
  %v455 = vunpack.c.l.b16 %v432
  %v456 = vunpack.c.l.b16 %v433
  %v457 = vpack.c.b16 %v450, %v449
  %v458 = vpack.c.b16 %v452, %v451
  %v459 = vpack.c.b16 %v454, %v453
  %v460 = vpack.c.b16 %v456, %v455
  %vm465 = vcmask 523264
  %v467 = vsel %vm465, %v418, 0
  %v470 = vsel %vm465, %v419, 0
  %v473 = vsel %vm465, %v420, 0
  %v476 = vsel %vm465, %v421, 0
  %v479 = vsel %vm465, %v422, 0
  %v482 = vsel %vm465, %v423, 0
  %v485 = vsel %vm465, %v424, 0
  %v488 = vsel %vm465, %v425, 0
  %490 = vmatprep.subr.bf16.mxu0 0
  %491 = vmatpush1.bf16.msra.mxu0 %v457
  %492 = vmatprep.subr.bf16.mxu0 0
  %493 = vmatpush1.bf16.msra.mxu0 %v458
  %494 = vmatprep.subr.bf16.mxu0 0
  %495 = vmatpush1.bf16.msra.mxu0 %v459
  %496 = vmatprep.subr.bf16.mxu0 0
  %497 = vmatpush1.bf16.msra.mxu0 %v460
  %498 = vmatprep.subr.bf16.mxu0 0
  %499 = vmatpush1.bf16.msra.mxu0 0
  %500 = vmatprep.subr.bf16.mxu0 0
  %501 = vmatpush1.bf16.msra.mxu0 0
  %502 = vmatprep.subr.bf16.mxu0 0
  %503 = vmatpush1.bf16.msra.mxu0 0
  %504 = vmatprep.subr.bf16.mxu0 0
  %505 = vmatpush1.bf16.msra.mxu0 0
  %506 = vmatprep.subr.bf16.mxu0 0
  %507 = vmatpush1.bf16.msra.mxu0 0
  %508 = vmatprep.subr.bf16.mxu0 0
  %509 = vmatpush1.bf16.msra.mxu0 0
  %510 = vmatprep.subr.bf16.mxu0 0
  %511 = vmatpush1.bf16.msra.mxu0 0
  %512 = vmatprep.subr.bf16.mxu0 0
  %513 = vmatpush1.bf16.msra.mxu0 0
  %514 = vmatprep.subr.bf16.mxu0 0
  %515 = vmatpush1.bf16.msra.mxu0 0
  %516 = vmatprep.subr.bf16.mxu0 0
  %517 = vmatpush1.bf16.msra.mxu0 0
  %518 = vmatprep.subr.bf16.mxu0 0
  %519 = vmatpush1.bf16.msra.mxu0 0
  %520 = vmatprep.subr.bf16.mxu0 0
  %521 = vmatpush1.bf16.msra.mxu0 0
  %522 = vmatprep.mubr.bf16.mxu0 0
  %523 = vmatmul.mubr.bf16.gmra.mrb[0].mxu0 %v467
  %v524 = vpop.f32.mrb[0].mxu0
  %v525 = vadd.f32 %v439, %v524
  %v526 = vpop.f32.mrb[0].mxu0
  %v527 = vpop.f32.mrb[0].mxu0
  %v528 = vadd.f32 %v439, %v527
  %v529 = vpop.f32.mrb[0].mxu0
  %530 = vmatprep.mubr.bf16.mxu0 0
  %531 = vmatmul.mubr.bf16.gmra.mrb[0].mxu0 %v470
  %v532 = vpop.f32.mrb[0].mxu0
  %v533 = vadd.f32 %v439, %v532
  %v534 = vpop.f32.mrb[0].mxu0
  %v535 = vpop.f32.mrb[0].mxu0
  %v536 = vadd.f32 %v439, %v535
  %v537 = vpop.f32.mrb[0].mxu0
  %538 = vmatprep.mubr.bf16.mxu0 0
  %539 = vmatmul.mubr.bf16.gmra.mrb[0].mxu0 %v473
  %v540 = vpop.f32.mrb[0].mxu0
  %v541 = vadd.f32 %v439, %v540
  %v542 = vpop.f32.mrb[0].mxu0
  %v543 = vpop.f32.mrb[0].mxu0
  %v544 = vadd.f32 %v439, %v543
  %v545 = vpop.f32.mrb[0].mxu0
  %546 = vmatprep.mubr.bf16.mxu0 0
  %547 = vmatmul.mubr.bf16.gmra.mrb[0].mxu0 %v476
  %v548 = vpop.f32.mrb[0].mxu0
  %v549 = vadd.f32 %v439, %v548
  %v550 = vpop.f32.mrb[0].mxu0
  %v551 = vpop.f32.mrb[0].mxu0
  %v552 = vadd.f32 %v439, %v551
  %v553 = vpop.f32.mrb[0].mxu0
  %554 = vmatprep.mubr.bf16.mxu0 0
  %555 = vmatmul.mubr.bf16.gmra.mrb[0].mxu0 %v479
  %v556 = vpop.f32.mrb[0].mxu0
  %v557 = vadd.f32 %v439, %v556
  %v558 = vpop.f32.mrb[0].mxu0
  %v559 = vpop.f32.mrb[0].mxu0
  %v560 = vadd.f32 %v439, %v559
  %v561 = vpop.f32.mrb[0].mxu0
  %562 = vmatprep.mubr.bf16.mxu0 0
  %563 = vmatmul.mubr.bf16.gmra.mrb[0].mxu0 %v482
  %v564 = vpop.f32.mrb[0].mxu0
  %v565 = vadd.f32 %v439, %v564
  %v566 = vpop.f32.mrb[0].mxu0
  %v567 = vpop.f32.mrb[0].mxu0
  %v568 = vadd.f32 %v439, %v567
  %v569 = vpop.f32.mrb[0].mxu0
  %570 = vmatprep.mubr.bf16.mxu0 0
  %571 = vmatmul.mubr.bf16.gmra.mrb[0].mxu0 %v485
  %v572 = vpop.f32.mrb[0].mxu0
  %v573 = vadd.f32 %v439, %v572
  %v574 = vpop.f32.mrb[0].mxu0
  %v575 = vpop.f32.mrb[0].mxu0
  %v576 = vadd.f32 %v439, %v575
  %v577 = vpop.f32.mrb[0].mxu0
  %578 = vmatprep.mubr.bf16.mxu0 0
  %579 = vmatmul.mubr.bf16.gmra.mrb[0].mxu0 %v488
  %v580 = vpop.f32.mrb[0].mxu0
  %v581 = vadd.f32 %v439, %v580
  %v582 = vpop.f32.mrb[0].mxu0
  %v583 = vpop.f32.mrb[0].mxu0
  %v584 = vadd.f32 %v439, %v583
  %v585 = vpop.f32.mrb[0].mxu0
  %586 = vdwg.mxu0
  %vm587 = vcmp.ge.f32.partialorder %v525, 0.0
  %vm588 = vcmp.ge.f32.partialorder %v528, 0.0
  %vm589 = vcmp.ge.f32.partialorder %v533, 0.0
  %vm590 = vcmp.ge.f32.partialorder %v536, 0.0
  %vm591 = vcmp.ge.f32.partialorder %v541, 0.0
  %vm592 = vcmp.ge.f32.partialorder %v544, 0.0
  %vm593 = vcmp.ge.f32.partialorder %v549, 0.0
  %vm594 = vcmp.ge.f32.partialorder %v552, 0.0
  %vm595 = vcmp.ge.f32.partialorder %v557, 0.0
  %vm596 = vcmp.ge.f32.partialorder %v560, 0.0
  %vm597 = vcmp.ge.f32.partialorder %v565, 0.0
  %vm598 = vcmp.ge.f32.partialorder %v568, 0.0
  %vm599 = vcmp.ge.f32.partialorder %v573, 0.0
  %vm600 = vcmp.ge.f32.partialorder %v576, 0.0
  %vm601 = vcmp.ge.f32.partialorder %v581, 0.0
  %vm602 = vcmp.ge.f32.partialorder %v584, 0.0
  %v603 = vmul.f32 %v525, 0.2
  %v604 = vmul.f32 %v528, 0.2
  %v605 = vmul.f32 %v533, 0.2
  %v606 = vmul.f32 %v536, 0.2
  %v607 = vmul.f32 %v541, 0.2
  %v608 = vmul.f32 %v544, 0.2
  %v609 = vmul.f32 %v549, 0.2
  %v610 = vmul.f32 %v552, 0.2
  %v611 = vmul.f32 %v557, 0.2
  %v612 = vmul.f32 %v560, 0.2
  %v613 = vmul.f32 %v565, 0.2
  %v614 = vmul.f32 %v568, 0.2
  %v615 = vmul.f32 %v573, 0.2
  %v616 = vmul.f32 %v576, 0.2
  %v617 = vmul.f32 %v581, 0.2
  %v618 = vmul.f32 %v584, 0.2
  %v619 = vsel %vm587, %v525, %v603
  %v620 = vsel %vm588, %v528, %v604
  %v621 = vsel %vm589, %v533, %v605
  %v622 = vsel %vm590, %v536, %v606
  %v623 = vsel %vm591, %v541, %v607
  %v624 = vsel %vm592, %v544, %v608
  %v625 = vsel %vm593, %v549, %v609
  %v626 = vsel %vm594, %v552, %v610
  %v627 = vsel %vm595, %v557, %v611
  %v628 = vsel %vm596, %v560, %v612
  %v629 = vsel %vm597, %v565, %v613
  %v630 = vsel %vm598, %v568, %v614
  %v631 = vsel %vm599, %v573, %v615
  %v632 = vsel %vm600, %v576, %v616
  %v633 = vsel %vm601, %v581, %v617
  %v634 = vsel %vm602, %v584, %v618
  %v635 = vmax.f32 %v619, %v623
  %v636 = vmax.f32 %v635, %v627
  %v637 = vmax.f32 %v636, %v631
  %v638 = vmax.f32 %v620, %v624
  %v639 = vmax.f32 %v638, %v628
  %v640 = vmax.f32 %v639, %v632
  %v641 = vmax.f32 %v621, %v625
  %v642 = vmax.f32 %v641, %v629
  %v643 = vmax.f32 %v642, %v633
  %v644 = vmax.f32 %v622, %v626
  %v645 = vmax.f32 %v644, %v630
  %v646 = vmax.f32 %v645, %v634
  %v647 = vpack.c.bf16 %v640, %v637
  %v648 = vpack.c.bf16 %v646, %v643
  %v651 = vunpack.c.l.b16 %v647
  %v652 = vunpack.c.h.b16 %v647
  %v653 = vunpack.c.l.b16 %v648
  %v654 = vunpack.c.h.b16 %v648
  %v655 = vpack.c.b16 %v651, %v651
  %v656 = vpack.c.b16 %v652, %v652
  %v657 = vpack.c.b16 %v653, %v653
  %v658 = vpack.c.b16 %v654, %v654
  %663 = vst [vmem:[%s7] sm:$0xf] %v655
  %664 = vst [vmem:[%s7 + $0x4] sm:$0xf] %v656
  %665 = vst [vmem:[%s7 + $0x8] sm:$0xf] %v657
  %666 = vst [vmem:[%s7 + $0xc] sm:$0xf] %v658
  // Predicated region
  $region30: #{dgcnn_pseg_forward.8} parent=0 // pred_check
    _
  $region31: #{dgcnn_pseg_forward.8} parent=0 // pred_check_branch
    %668 = sbr.rel (0) target = $region33
  $region32: #{dgcnn_pseg_forward.8} parent=0 // pred_region
    _
  $region33: #{dgcnn_pseg_forward.8} parent=0 // pred_fallthru
    _
  // Predicated region
  $region34: #{dgcnn_pseg_forward.8} parent=0 // pred_check
    _
  $region35: #{dgcnn_pseg_forward.8} parent=0 // pred_check_branch
    %670 = sbr.rel (0) target = $region37
  $region36: #{dgcnn_pseg_forward.8} parent=0 // pred_region
    _
  $region37: #{dgcnn_pseg_forward.8} parent=0 // pred_fallthru
    _

// kernel: dgcnn_pseg_forward.9
$region0: #{dgcnn_pseg_forward.9}
  #allocation0 [shape = 'u32[]', space=smem, size = 0x4, offset = 0x4, fixed_abs, tag = 'smem constant byte address 0x4 - core index']
  #allocation1 [shape = 'u32[144,128]{1,0:T(1,128)}', space=vmem, size = 0x12000, scoped, tag = 'internal scratch']
  %s0 = inlined_call_operand.vmem [shape: bf16[2,16,128], index: 0, kind: input, shape index: {}]
  %s1 = inlined_call_operand.hbm [shape: bf16[128,1024], index: 1, kind: input, shape index: {}]
  %s2 = inlined_call_operand.vmem [shape: f32[1,1024], index: 2, kind: input, shape index: {}]
  %s3 = inlined_call_operand.vmem [shape: f32[2,1,1024], index: 3, kind: output, shape index: {}]
  %s4 = sld [smem:[#allocation0]]
  $region57: #{dgcnn_pseg_forward.9} parent=0
    _
  %s6 = ssub.s32 1, %s4
  %s7 = scalar_select 0, %s6, %s4
  $region1: #{dgcnn_pseg_forward.9} parent=0
    #allocation2 [shape = 'u8[262144]{0}', space=vmem, size = 0x40000, scoped, tag = 'input window, operand 1, single buffered']
    #allocation3 [shape = 's32[2]{0}', space=sflag, size = 0x8, scoped, tag = 'scoped memory for dgcnn_pseg_forward.9']
    %8 = vsyncpa [#allocation3], 0
    loop: start=0, step=1, limit=4
    $region2: #{dgcnn_pseg_forward.9} parent=1 // loop_pre_header
      _
    $region3: #{dgcnn_pseg_forward.9} parent=1 // loop_header
      %s10 = sphi 0, %s14
      %p11 = scmp.ge.s32.totalorder %s10, 4
      %s17 = sphi 0, %s29
      %s18 = sphi 0, %s25
      %s19 = sphi 0, %s17
      %s20 = sphi 0, %s18
      %s21 = sphi 0, %s19
      %s22 = sphi 0, %s20
      %s34 = sphi 0, %s36
      %s37 = sphi 0, %s34
      %s38 = sphi 0, %s37
      %s54 = sphi 0, %s38
      %s58 = sphi 0, %s58
      %s60 = sphi 0, %s58
      %s61 = sphi 0, %s60
      %s75 = sphi 0, %s61
      %s79 = sphi 0, %s79
      %s81 = sphi 0, %s79
      %s82 = sphi 0, %s81
      %s96 = sphi 0, %s82
      %s102 = sphi 0, %s104
      %s105 = sphi 0, %s102
      %s106 = sphi 0, %s105
      %s122 = sphi 0, %s106
    $region4: #{dgcnn_pseg_forward.9} parent=1 // loop_header_branch
      %13 = sbr.rel (%p11) target = $region8
    $region5: #{dgcnn_pseg_forward.9} parent=1 // loop_body
      %s15 = ssub.s32 %s10, 1
      %s16 = ssub.s32 %s10, 2
      %s23 = sadd.s32 1, %s18
      %p24 = scmp.ge.s32.totalorder %s23, 1
      %s25 = scalar_select %p24, 0, %s23
      %s26 = sadd.s32 1, %s17
      %s27 = scalar_select %p24, %s26, %s17
      %p28 = scmp.ge.s32.totalorder %s27, 2
      %s29 = scalar_select %p28, 0, %s27
      %s30 = ssub.s32 %s17, %s29
      %s31 = ssub.s32 %s18, %s25
      %s32 = sor.u32 %s30, %s31
      %p33 = scmp.eq.s32.totalorder %s32, 0
      %s35 = sadd.s32 %s34, 1
      %s36 = scalar_select %p33, %s34, %s35
      %p39 = pneg %p33
      %p40 = scmp.eq.s32.totalorder %s10, 1
      %p41 = por %p39, %p40
      %p42 = scmp.ne.s32.totalorder %s34, %s37
      %p43 = scmp.eq.s32.totalorder %s10, 0
      %p44 = por %p42, %p43
      %p45 = scmp.ne.s32.totalorder %s34, %s37
      %p46 = scmp.eq.s32.totalorder %s15, 1
      %p47 = por %p45, %p46
      %p48 = scmp.ne.s32.totalorder %s37, %s38
      %p49 = scmp.eq.s32.totalorder %s15, 0
      %p50 = por %p48, %p49
      %p51 = scmp.ne.s32.totalorder %s37, %s38
      %p52 = scmp.eq.s32.totalorder %s16, 1
      %p53 = por %p51, %p52
      %p55 = scmp.ne.s32.totalorder %s38, %s54
      %p56 = scmp.eq.s32.totalorder %s16, 0
      %p57 = por %p55, %p56
      %s59 = sadd.s32 %s58, 1
      %p62 = scmp.eq.s32.totalorder %s10, 1
      %p63 = scmp.ne.s32.totalorder %s58, %s60
      %p64 = scmp.eq.s32.totalorder %s10, 0
      %p65 = por %p63, %p64
      %p66 = scmp.ne.s32.totalorder %s58, %s60
      %p67 = scmp.eq.s32.totalorder %s15, 1
      %p68 = por %p66, %p67
      %p69 = scmp.ne.s32.totalorder %s60, %s61
      %p70 = scmp.eq.s32.totalorder %s15, 0
      %p71 = por %p69, %p70
      %p72 = scmp.ne.s32.totalorder %s60, %s61
      %p73 = scmp.eq.s32.totalorder %s16, 1
      %p74 = por %p72, %p73
      %p76 = scmp.ne.s32.totalorder %s61, %s75
      %p77 = scmp.eq.s32.totalorder %s16, 0
      %p78 = por %p76, %p77
      %s80 = sadd.s32 %s79, 1
      %p83 = scmp.eq.s32.totalorder %s10, 1
      %p84 = scmp.ne.s32.totalorder %s79, %s81
      %p85 = scmp.eq.s32.totalorder %s10, 0
      %p86 = por %p84, %p85
      %p87 = scmp.ne.s32.totalorder %s79, %s81
      %p88 = scmp.eq.s32.totalorder %s15, 1
      %p89 = por %p87, %p88
      %p90 = scmp.ne.s32.totalorder %s81, %s82
      %p91 = scmp.eq.s32.totalorder %s15, 0
      %p92 = por %p90, %p91
      %p93 = scmp.ne.s32.totalorder %s81, %s82
      %p94 = scmp.eq.s32.totalorder %s16, 1
      %p95 = por %p93, %p94
      %p97 = scmp.ne.s32.totalorder %s82, %s96
      %p98 = scmp.eq.s32.totalorder %s16, 0
      %p99 = por %p97, %p98
      %s100 = ssub.s32 %s17, %s29
      %p101 = scmp.eq.s32.totalorder %s100, 0
      %s103 = sadd.s32 %s102, 1
      %s104 = scalar_select %p101, %s102, %s103
      %p107 = pneg %p101
      %p108 = scmp.eq.s32.totalorder %s10, 1
      %p109 = por %p107, %p108
      %p110 = scmp.ne.s32.totalorder %s102, %s105
      %p111 = scmp.eq.s32.totalorder %s10, 0
      %p112 = por %p110, %p111
      %p113 = scmp.ne.s32.totalorder %s102, %s105
      %p114 = scmp.eq.s32.totalorder %s15, 1
      %p115 = por %p113, %p114
      %p116 = scmp.ne.s32.totalorder %s105, %s106
      %p117 = scmp.eq.s32.totalorder %s15, 0
      %p118 = por %p116, %p117
      %p119 = scmp.ne.s32.totalorder %s105, %s106
      %p120 = scmp.eq.s32.totalorder %s16, 1
      %p121 = por %p119, %p120
      %p123 = scmp.ne.s32.totalorder %s106, %s122
      %p124 = scmp.eq.s32.totalorder %s16, 0
      %p125 = por %p123, %p124
      %p126 = scmp.le.s32.totalorder 1, %s10
      %p127 = scmp.lt.s32.totalorder %s10, 3
      %p128 = pnand %p126, %p127
      %p129 = pneg %p128
      // Predicated region
      $region9: #{dgcnn_pseg_forward.9} parent=5 // pred_check
        _
      $region10: #{dgcnn_pseg_forward.9} parent=5 // pred_check_branch
        %131 = sbr.rel (%p128) target = $region12
      $region11: #{dgcnn_pseg_forward.9} parent=5 // pred_region
        %s132 = ssub.s32 %s10, 1
        // Predicated region
        $region13: #{dgcnn_pseg_forward.9} parent=11 // pred_check
          %p133 = pneg %p71
        $region14: #{dgcnn_pseg_forward.9} parent=11 // pred_check_branch
          %135 = sbr.rel (%p133) target = $region16
        $region15: #{dgcnn_pseg_forward.9} parent=11 // pred_region
          %s137 = ssub.s32 8192, 8192
          %138 = vsyncadd [#allocation3], %s137
          %s139 = sshll.u32 [#allocation2], 4
          %s140 = int_to_ptr.vmem [resolvable:$true] %s139
          %145 = dma.hbm_to_vmem [thread:$0]  %s1, 8192, %s140, [#allocation3], 512, 512, 32
        $region16: #{dgcnn_pseg_forward.9} parent=11 // pred_fallthru
          _
        // Predicated region
        $region17: #{dgcnn_pseg_forward.9} parent=11 // pred_check
          %p146 = pneg %p92
        $region18: #{dgcnn_pseg_forward.9} parent=11 // pred_check_branch
          %148 = sbr.rel (%p146) target = $region20
        $region19: #{dgcnn_pseg_forward.9} parent=11 // pred_region
          _
        $region20: #{dgcnn_pseg_forward.9} parent=11 // pred_fallthru
          _
      $region12: #{dgcnn_pseg_forward.9} parent=5 // pred_fallthru
        _
      %p149 = scmp.lt.s32.totalorder %s10, 2
      // Predicated region
      $region21: #{dgcnn_pseg_forward.9} parent=5 // pred_check
        %p150 = pneg %p149
      $region22: #{dgcnn_pseg_forward.9} parent=5 // pred_check_branch
        %152 = sbr.rel (%p150) target = $region24
      $region23: #{dgcnn_pseg_forward.9} parent=5 // pred_region
        // Predicated region
        $region25: #{dgcnn_pseg_forward.9} parent=23 // pred_check
          %p153 = pneg %p44
        $region26: #{dgcnn_pseg_forward.9} parent=23 // pred_check_branch
          %155 = sbr.rel (%p153) target = $region28
        $region27: #{dgcnn_pseg_forward.9} parent=23 // pred_region
          %s156 = smul.u32 2, %s18
          %p157 = scmp.lt.s32.totalorder %s17, 1
          %s158 = scalar_select %p157, %s17, 1
          %p159 = scmp.lt.s32.totalorder %s156, 1
          %s160 = scalar_select %p159, %s156, 1
          %s161 = smul.addr %s158, 2
          %s162 = sadd.s32 %s160, %s161
          %s163 = smul.addr %s162, 4
          %s164 = scalar_lea.vmem %s0, %s163
          %s165 = smul.u32 2, %s18
        $region28: #{dgcnn_pseg_forward.9} parent=23 // pred_fallthru
          _
      $region24: #{dgcnn_pseg_forward.9} parent=5 // pred_fallthru
        _
      %p166 = scmp.le.s32.totalorder 1, %s10
      %p167 = scmp.lt.s32.totalorder %s10, 3
      %p168 = pnand %p166, %p167
      %p169 = pneg %p168
      // Predicated region
      $region29: #{dgcnn_pseg_forward.9} parent=5 // pred_check
        _
      $region30: #{dgcnn_pseg_forward.9} parent=5 // pred_check_branch
        %171 = sbr.rel (%p168) target = $region32
      $region31: #{dgcnn_pseg_forward.9} parent=5 // pred_region
        %s172 = ssub.s32 %s10, 1
        // Predicated region
        $region33: #{dgcnn_pseg_forward.9} parent=31 // pred_check
          %p173 = pneg %p71
        $region34: #{dgcnn_pseg_forward.9} parent=31 // pred_check_branch
          %175 = sbr.rel (%p173) target = $region36
        $region35: #{dgcnn_pseg_forward.9} parent=31 // pred_region
          %176 = dma.done [#allocation3], 8192
        $region36: #{dgcnn_pseg_forward.9} parent=31 // pred_fallthru
          _
        %s177 = smul.u32 2, %s20
        %p178 = scmp.lt.s32.totalorder %s19, 1
        %s179 = scalar_select %p178, %s19, 1
        %p180 = scmp.lt.s32.totalorder %s177, 1
        %s181 = scalar_select %p180, %s177, 1
        %s182 = smul.addr %s179, 2
        %s183 = sadd.s32 %s181, %s182
        %s184 = smul.addr %s183, 4
        %s185 = scalar_lea.vmem %s0, %s184
        %p186 = pneg %p50
        %p187 = pneg %p47
        %p188 = pneg %p71
        %p189 = pneg %p68
        %p190 = pneg %p92
        %p191 = pneg %p89
        %p192 = pneg %p118
        %p193 = pneg %p115
        %p194 = scmp.lt.s32.totalorder %s19, 1
        %s195 = scalar_select %p194, %s19, 1
        %s196 = smul.addr %s195, 8
        %s197 = scalar_lea.vmem %s3, %s196
        %s198 = smul.u32 2, %s20
        %p199 = scmp.lt.s32.totalorder %s19, 1
        %s200 = scalar_select %p199, %s19, 1
        %p201 = scmp.lt.s32.totalorder %s198, 1
        %s202 = scalar_select %p201, %s198, 1
        %s203 = smul.addr %s200, 2
        %s204 = sadd.s32 %s202, %s203
        %s205 = smul.addr %s204, 4
        %s206 = scalar_lea.vmem %s0, %s205
        %s207 = smul.u32 2, %s20
        %p208 = scmp.lt.s32.totalorder %s19, 1
        %s209 = scalar_select %p208, %s19, 1
        %s210 = smul.addr %s209, 8
        %s211 = scalar_lea.vmem %s3, %s210
        %v213 = vld [vmem:[%s206] sm:$0xf]
        %v214 = vld [vmem:[%s206 + $0x4] sm:$0xf]
        %v215 = vld [vmem:[#allocation2] sm:$0xff]
        %v216 = vld [vmem:[#allocation2 + $0x8] sm:$0xff]
        %v217 = vld [vmem:[#allocation2 + $0x10] sm:$0xff]
        %v218 = vld [vmem:[#allocation2 + $0x18] sm:$0xff]
        %v219 = vld [vmem:[#allocation2 + $0x20] sm:$0xff]
        %v220 = vld [vmem:[#allocation2 + $0x28] sm:$0xff]
        %v221 = vld [vmem:[#allocation2 + $0x30] sm:$0xff]
        %v222 = vld [vmem:[#allocation2 + $0x38] sm:$0xff]
        %v223 = vld [vmem:[#allocation2 + $0x40] sm:$0xff]
        %v224 = vld [vmem:[#allocation2 + $0x48] sm:$0xff]
        %v225 = vld [vmem:[#allocation2 + $0x50] sm:$0xff]
        %v226 = vld [vmem:[#allocation2 + $0x58] sm:$0xff]
        %v227 = vld [vmem:[#allocation2 + $0x60] sm:$0xff]
        %v228 = vld [vmem:[#allocation2 + $0x68] sm:$0xff]
        %v229 = vld [vmem:[#allocation2 + $0x70] sm:$0xff]
        %v230 = vld [vmem:[#allocation2 + $0x78] sm:$0xff]
        %v231 = vld [vmem:[#allocation2 + $0x80] sm:$0xff]
        %v232 = vld [vmem:[#allocation2 + $0x88] sm:$0xff]
        %v233 = vld [vmem:[#allocation2 + $0x90] sm:$0xff]
        %v234 = vld [vmem:[#allocation2 + $0x98] sm:$0xff]
        %v235 = vld [vmem:[#allocation2 + $0xa0] sm:$0xff]
        %v236 = vld [vmem:[#allocation2 + $0xa8] sm:$0xff]
        %v237 = vld [vmem:[#allocation2 + $0xb0] sm:$0xff]
        %v238 = vld [vmem:[#allocation2 + $0xb8] sm:$0xff]
        %v239 = vld [vmem:[#allocation2 + $0xc0] sm:$0xff]
        %v240 = vld [vmem:[#allocation2 + $0xc8] sm:$0xff]
        %v241 = vld [vmem:[#allocation2 + $0xd0] sm:$0xff]
        %v242 = vld [vmem:[#allocation2 + $0xd8] sm:$0xff]
        %v243 = vld [vmem:[#allocation2 + $0xe0] sm:$0xff]
        %v244 = vld [vmem:[#allocation2 + $0xe8] sm:$0xff]
        %v245 = vld [vmem:[#allocation2 + $0xf0] sm:$0xff]
        %v246 = vld [vmem:[#allocation2 + $0xf8] sm:$0xff]
        %v247 = vld [vmem:[#allocation2 + $0x100] sm:$0xff]
        %v248 = vld [vmem:[#allocation2 + $0x108] sm:$0xff]
        %v249 = vld [vmem:[#allocation2 + $0x110] sm:$0xff]
        %v250 = vld [vmem:[#allocation2 + $0x118] sm:$0xff]
        %v251 = vld [vmem:[#allocation2 + $0x120] sm:$0xff]
        %v252 = vld [vmem:[#allocation2 + $0x128] sm:$0xff]
        %v253 = vld [vmem:[#allocation2 + $0x130] sm:$0xff]
        %v254 = vld [vmem:[#allocation2 + $0x138] sm:$0xff]
        %v255 = vld [vmem:[#allocation2 + $0x140] sm:$0xff]
        %v256 = vld [vmem:[#allocation2 + $0x148] sm:$0xff]
        %v257 = vld [vmem:[#allocation2 + $0x150] sm:$0xff]
        %v258 = vld [vmem:[#allocation2 + $0x158] sm:$0xff]
        %v259 = vld [vmem:[#allocation2 + $0x160] sm:$0xff]
        %v260 = vld [vmem:[#allocation2 + $0x168] sm:$0xff]
        %v261 = vld [vmem:[#allocation2 + $0x170] sm:$0xff]
        %v262 = vld [vmem:[#allocation2 + $0x178] sm:$0xff]
        %v263 = vld [vmem:[#allocation2 + $0x180] sm:$0xff]
        %v264 = vld [vmem:[#allocation2 + $0x188] sm:$0xff]
        %v265 = vld [vmem:[#allocation2 + $0x190] sm:$0xff]
        %v266 = vld [vmem:[#allocation2 + $0x198] sm:$0xff]
        %v267 = vld [vmem:[#allocation2 + $0x1a0] sm:$0xff]
        %v268 = vld [vmem:[#allocation2 + $0x1a8] sm:$0xff]
        %v269 = vld [vmem:[#allocation2 + $0x1b0] sm:$0xff]
        %v270 = vld [vmem:[#allocation2 + $0x1b8] sm:$0xff]
        %v271 = vld [vmem:[#allocation2 + $0x1c0] sm:$0xff]
        %v272 = vld [vmem:[#allocation2 + $0x1c8] sm:$0xff]
        %v273 = vld [vmem:[#allocation2 + $0x1d0] sm:$0xff]
        %v274 = vld [vmem:[#allocation2 + $0x1d8] sm:$0xff]
        %v275 = vld [vmem:[#allocation2 + $0x1e0] sm:$0xff]
        %v276 = vld [vmem:[#allocation2 + $0x1e8] sm:$0xff]
        %v277 = vld [vmem:[#allocation2 + $0x1f0] sm:$0xff]
        %v278 = vld [vmem:[#allocation2 + $0x1f8] sm:$0xff]
        %v279 = vld [vmem:[%s2] sm:$0xff]
        %v281 = vlaneseq
        %v282 = vshrl.u32 %v281, 7
        %v283 = vsub.s32 0, %v282
        %v284 = vrot.slane %v279, %v283
        %v285 = vlaneseq
        %v286 = vshrl.u32 %v285, 7
        %v287 = vsub.s32 1, %v286
        %v288 = vrot.slane %v279, %v287
        %v289 = vlaneseq
        %v290 = vshrl.u32 %v289, 7
        %v291 = vsub.s32 2, %v290
        %v292 = vrot.slane %v279, %v291
        %v293 = vlaneseq
        %v294 = vshrl.u32 %v293, 7
        %v295 = vsub.s32 3, %v294
        %v296 = vrot.slane %v279, %v295
        %v297 = vlaneseq
        %v298 = vshrl.u32 %v297, 7
        %v299 = vsub.s32 4, %v298
        %v300 = vrot.slane %v279, %v299
        %v301 = vlaneseq
        %v302 = vshrl.u32 %v301, 7
        %v303 = vsub.s32 5, %v302
        %v304 = vrot.slane %v279, %v303
        %v305 = vlaneseq
        %v306 = vshrl.u32 %v305, 7
        %v307 = vsub.s32 6, %v306
        %v308 = vrot.slane %v279, %v307
        %v309 = vlaneseq
        %v310 = vshrl.u32 %v309, 7
        %v311 = vsub.s32 7, %v310
        %v312 = vrot.slane %v279, %v311
        %v323 = vunpack.c.l.b16 %v213
        %v324 = vunpack.c.l.b16 %v214
        %v325 = vpack.c.b16 %v324, %v323
        %v391 = vunpack.c.l.b16 %v215
        %v392 = vunpack.c.h.b16 %v215
        %v393 = vunpack.c.l.b16 %v216
        %v394 = vunpack.c.h.b16 %v216
        %v395 = vunpack.c.l.b16 %v217
        %v396 = vunpack.c.h.b16 %v217
        %v397 = vunpack.c.l.b16 %v218
        %v398 = vunpack.c.h.b16 %v218
        %v399 = vunpack.c.l.b16 %v219
        %v400 = vunpack.c.h.b16 %v219
        %v401 = vunpack.c.l.b16 %v220
        %v402 = vunpack.c.h.b16 %v220
        %v403 = vunpack.c.l.b16 %v221
        %v404 = vunpack.c.h.b16 %v221
        %v405 = vunpack.c.l.b16 %v222
        %v406 = vunpack.c.h.b16 %v222
        %v407 = vunpack.c.l.b16 %v223
        %v408 = vunpack.c.h.b16 %v223
        %v409 = vunpack.c.l.b16 %v224
        %v410 = vunpack.c.h.b16 %v224
        %v411 = vunpack.c.l.b16 %v225
        %v412 = vunpack.c.h.b16 %v225
        %v413 = vunpack.c.l.b16 %v226
        %v414 = vunpack.c.h.b16 %v226
        %v415 = vunpack.c.l.b16 %v227
        %v416 = vunpack.c.h.b16 %v227
        %v417 = vunpack.c.l.b16 %v228
        %v418 = vunpack.c.h.b16 %v228
        %v419 = vunpack.c.l.b16 %v229
        %v420 = vunpack.c.h.b16 %v229
        %v421 = vunpack.c.l.b16 %v230
        %v422 = vunpack.c.h.b16 %v230
        %v423 = vunpack.c.l.b16 %v231
        %v424 = vunpack.c.h.b16 %v231
        %v425 = vunpack.c.l.b16 %v232
        %v426 = vunpack.c.h.b16 %v232
        %v427 = vunpack.c.l.b16 %v233
        %v428 = vunpack.c.h.b16 %v233
        %v429 = vunpack.c.l.b16 %v234
        %v430 = vunpack.c.h.b16 %v234
        %v431 = vunpack.c.l.b16 %v235
        %v432 = vunpack.c.h.b16 %v235
        %v433 = vunpack.c.l.b16 %v236
        %v434 = vunpack.c.h.b16 %v236
        %v435 = vunpack.c.l.b16 %v237
        %v436 = vunpack.c.h.b16 %v237
        %v437 = vunpack.c.l.b16 %v238
        %v438 = vunpack.c.h.b16 %v238
        %v439 = vunpack.c.l.b16 %v239
        %v440 = vunpack.c.h.b16 %v239
        %v441 = vunpack.c.l.b16 %v240
        %v442 = vunpack.c.h.b16 %v240
        %v443 = vunpack.c.l.b16 %v241
        %v444 = vunpack.c.h.b16 %v241
        %v445 = vunpack.c.l.b16 %v242
        %v446 = vunpack.c.h.b16 %v242
        %v447 = vunpack.c.l.b16 %v243
        %v448 = vunpack.c.h.b16 %v243
        %v449 = vunpack.c.l.b16 %v244
        %v450 = vunpack.c.h.b16 %v244
        %v451 = vunpack.c.l.b16 %v245
        %v452 = vunpack.c.h.b16 %v245
        %v453 = vunpack.c.l.b16 %v246
        %v454 = vunpack.c.h.b16 %v246
        %v455 = vunpack.c.l.b16 %v247
        %v456 = vunpack.c.h.b16 %v247
        %v457 = vunpack.c.l.b16 %v248
        %v458 = vunpack.c.h.b16 %v248
        %v459 = vunpack.c.l.b16 %v249
        %v460 = vunpack.c.h.b16 %v249
        %v461 = vunpack.c.l.b16 %v250
        %v462 = vunpack.c.h.b16 %v250
        %v463 = vunpack.c.l.b16 %v251
        %v464 = vunpack.c.h.b16 %v251
        %v465 = vunpack.c.l.b16 %v252
        %v466 = vunpack.c.h.b16 %v252
        %v467 = vunpack.c.l.b16 %v253
        %v468 = vunpack.c.h.b16 %v253
        %v469 = vunpack.c.l.b16 %v254
        %v470 = vunpack.c.h.b16 %v254
        %v471 = vunpack.c.l.b16 %v255
        %v472 = vunpack.c.h.b16 %v255
        %v473 = vunpack.c.l.b16 %v256
        %v474 = vunpack.c.h.b16 %v256
        %v475 = vunpack.c.l.b16 %v257
        %v476 = vunpack.c.h.b16 %v257
        %v477 = vunpack.c.l.b16 %v258
        %v478 = vunpack.c.h.b16 %v258
        %v479 = vunpack.c.l.b16 %v259
        %v480 = vunpack.c.h.b16 %v259
        %v481 = vunpack.c.l.b16 %v260
        %v482 = vunpack.c.h.b16 %v260
        %v483 = vunpack.c.l.b16 %v261
        %v484 = vunpack.c.h.b16 %v261
        %v485 = vunpack.c.l.b16 %v262
        %v486 = vunpack.c.h.b16 %v262
        %v487 = vunpack.c.l.b16 %v263
        %v488 = vunpack.c.h.b16 %v263
        %v489 = vunpack.c.l.b16 %v264
        %v490 = vunpack.c.h.b16 %v264
        %v491 = vunpack.c.l.b16 %v265
        %v492 = vunpack.c.h.b16 %v265
        %v493 = vunpack.c.l.b16 %v266
        %v494 = vunpack.c.h.b16 %v266
        %v495 = vunpack.c.l.b16 %v267
        %v496 = vunpack.c.h.b16 %v267
        %v497 = vunpack.c.l.b16 %v268
        %v498 = vunpack.c.h.b16 %v268
        %v499 = vunpack.c.l.b16 %v269
        %v500 = vunpack.c.h.b16 %v269
        %v501 = vunpack.c.l.b16 %v270
        %v502 = vunpack.c.h.b16 %v270
        %v503 = vunpack.c.l.b16 %v271
        %v504 = vunpack.c.h.b16 %v271
        %v505 = vunpack.c.l.b16 %v272
        %v506 = vunpack.c.h.b16 %v272
        %v507 = vunpack.c.l.b16 %v273
        %v508 = vunpack.c.h.b16 %v273
        %v509 = vunpack.c.l.b16 %v274
        %v510 = vunpack.c.h.b16 %v274
        %v511 = vunpack.c.l.b16 %v275
        %v512 = vunpack.c.h.b16 %v275
        %v513 = vunpack.c.l.b16 %v276
        %v514 = vunpack.c.h.b16 %v276
        %v515 = vunpack.c.l.b16 %v277
        %v516 = vunpack.c.h.b16 %v277
        %v517 = vunpack.c.l.b16 %v278
        %v518 = vunpack.c.h.b16 %v278
        %v519 = vpack.c.b16 %v399, %v391
        %v520 = vpack.c.b16 %v400, %v392
        %v521 = vpack.c.b16 %v401, %v393
        %v522 = vpack.c.b16 %v402, %v394
        %v523 = vpack.c.b16 %v403, %v395
        %v524 = vpack.c.b16 %v404, %v396
        %v525 = vpack.c.b16 %v405, %v397
        %v526 = vpack.c.b16 %v406, %v398
        %v527 = vpack.c.b16 %v415, %v407
        %v528 = vpack.c.b16 %v416, %v408
        %v529 = vpack.c.b16 %v417, %v409
        %v530 = vpack.c.b16 %v418, %v410
        %v531 = vpack.c.b16 %v419, %v411
        %v532 = vpack.c.b16 %v420, %v412
        %v533 = vpack.c.b16 %v421, %v413
        %v534 = vpack.c.b16 %v422, %v414
        %v535 = vpack.c.b16 %v431, %v423
        %v536 = vpack.c.b16 %v432, %v424
        %v537 = vpack.c.b16 %v433, %v425
        %v538 = vpack.c.b16 %v434, %v426
        %v539 = vpack.c.b16 %v435, %v427
        %v540 = vpack.c.b16 %v436, %v428
        %v541 = vpack.c.b16 %v437, %v429
        %v542 = vpack.c.b16 %v438, %v430
        %v543 = vpack.c.b16 %v447, %v439
        %v544 = vpack.c.b16 %v448, %v440
        %v545 = vpack.c.b16 %v449, %v441
        %v546 = vpack.c.b16 %v450, %v442
        %v547 = vpack.c.b16 %v451, %v443
        %v548 = vpack.c.b16 %v452, %v444
        %v549 = vpack.c.b16 %v453, %v445
        %v550 = vpack.c.b16 %v454, %v446
        %v551 = vpack.c.b16 %v463, %v455
        %v552 = vpack.c.b16 %v464, %v456
        %v553 = vpack.c.b16 %v465, %v457
        %v554 = vpack.c.b16 %v466, %v458
        %v555 = vpack.c.b16 %v467, %v459
        %v556 = vpack.c.b16 %v468, %v460
        %v557 = vpack.c.b16 %v469, %v461
        %v558 = vpack.c.b16 %v470, %v462
        %v559 = vpack.c.b16 %v479, %v471
        %v560 = vpack.c.b16 %v480, %v472
        %v561 = vpack.c.b16 %v481, %v473
        %v562 = vpack.c.b16 %v482, %v474
        %v563 = vpack.c.b16 %v483, %v475
        %v564 = vpack.c.b16 %v484, %v476
        %v565 = vpack.c.b16 %v485, %v477
        %v566 = vpack.c.b16 %v486, %v478
        %v567 = vpack.c.b16 %v495, %v487
        %v568 = vpack.c.b16 %v496, %v488
        %v569 = vpack.c.b16 %v497, %v489
        %v570 = vpack.c.b16 %v498, %v490
        %v571 = vpack.c.b16 %v499, %v491
        %v572 = vpack.c.b16 %v500, %v492
        %v573 = vpack.c.b16 %v501, %v493
        %v574 = vpack.c.b16 %v502, %v494
        %v575 = vpack.c.b16 %v511, %v503
        %v576 = vpack.c.b16 %v512, %v504
        %v577 = vpack.c.b16 %v513, %v505
        %v578 = vpack.c.b16 %v514, %v506
        %v579 = vpack.c.b16 %v515, %v507
        %v580 = vpack.c.b16 %v516, %v508
        %v581 = vpack.c.b16 %v517, %v509
        %v582 = vpack.c.b16 %v518, %v510
        %647 = vmatprep.subr.bf16.mxu0 %v520
        %648 = vmatpush1.bf16.msra.mxu0 %v519
        %649 = vmatprep.subr.bf16.mxu0 %v528
        %650 = vmatpush1.bf16.msra.mxu0 %v527
        %651 = vmatprep.subr.bf16.mxu0 %v536
        %652 = vmatpush1.bf16.msra.mxu0 %v535
        %653 = vmatprep.subr.bf16.mxu0 %v544
        %654 = vmatpush1.bf16.msra.mxu0 %v543
        %655 = vmatprep.subr.bf16.mxu0 %v552
        %656 = vmatpush1.bf16.msra.mxu0 %v551
        %657 = vmatprep.subr.bf16.mxu0 %v560
        %658 = vmatpush1.bf16.msra.mxu0 %v559
        %659 = vmatprep.subr.bf16.mxu0 %v568
        %660 = vmatpush1.bf16.msra.mxu0 %v567
        %661 = vmatprep.subr.bf16.mxu0 %v576
        %662 = vmatpush1.bf16.msra.mxu0 %v575
        %663 = vmatprep.subr.bf16.mxu0 0
        %664 = vmatpush1.bf16.msra.mxu0 0
        %665 = vmatprep.subr.bf16.mxu0 0
        %666 = vmatpush1.bf16.msra.mxu0 0
        %667 = vmatprep.subr.bf16.mxu0 0
        %668 = vmatpush1.bf16.msra.mxu0 0
        %669 = vmatprep.subr.bf16.mxu0 0
        %670 = vmatpush1.bf16.msra.mxu0 0
        %671 = vmatprep.subr.bf16.mxu0 0
        %672 = vmatpush1.bf16.msra.mxu0 0
        %673 = vmatprep.subr.bf16.mxu0 0
        %674 = vmatpush1.bf16.msra.mxu0 0
        %675 = vmatprep.subr.bf16.mxu0 0
        %676 = vmatpush1.bf16.msra.mxu0 0
        %677 = vmatprep.subr.bf16.mxu0 0
        %678 = vmatpush1.bf16.msra.mxu0 0
        %679 = vmatprep.mubr.bf16.mxu0 0
        %680 = vmatmul.mubr.bf16.gmra.mrb[0].mxu0 %v325
        %v681 = vpop.f32.mrb[0].mxu0
        %v682 = vadd.f32 %v284, %v681
        %v683 = vpop.f32.mrb[0].mxu0
        %v684 = vadd.f32 %v288, %v683
        %v685 = vpop.f32.mrb[0].mxu0
        %v686 = vadd.f32 %v284, %v685
        %v687 = vpop.f32.mrb[0].mxu0
        %v688 = vadd.f32 %v288, %v687
        %689 = vdwg.mxu0
        %690 = vmatprep.subr.bf16.mxu0 %v522
        %691 = vmatpush1.bf16.msra.mxu0 %v521
        %692 = vmatprep.subr.bf16.mxu0 %v530
        %693 = vmatpush1.bf16.msra.mxu0 %v529
        %694 = vmatprep.subr.bf16.mxu0 %v538
        %695 = vmatpush1.bf16.msra.mxu0 %v537
        %696 = vmatprep.subr.bf16.mxu0 %v546
        %697 = vmatpush1.bf16.msra.mxu0 %v545
        %698 = vmatprep.subr.bf16.mxu0 %v554
        %699 = vmatpush1.bf16.msra.mxu0 %v553
        %700 = vmatprep.subr.bf16.mxu0 %v562
        %701 = vmatpush1.bf16.msra.mxu0 %v561
        %702 = vmatprep.subr.bf16.mxu0 %v570
        %703 = vmatpush1.bf16.msra.mxu0 %v569
        %704 = vmatprep.subr.bf16.mxu0 %v578
        %705 = vmatpush1.bf16.msra.mxu0 %v577
        %706 = vmatprep.subr.bf16.mxu0 0
        %707 = vmatpush1.bf16.msra.mxu0 0
        %708 = vmatprep.subr.bf16.mxu0 0
        %709 = vmatpush1.bf16.msra.mxu0 0
        %710 = vmatprep.subr.bf16.mxu0 0
        %711 = vmatpush1.bf16.msra.mxu0 0
        %712 = vmatprep.subr.bf16.mxu0 0
        %713 = vmatpush1.bf16.msra.mxu0 0
        %714 = vmatprep.subr.bf16.mxu0 0
        %715 = vmatpush1.bf16.msra.mxu0 0
        %716 = vmatprep.subr.bf16.mxu0 0
        %717 = vmatpush1.bf16.msra.mxu0 0
        %718 = vmatprep.subr.bf16.mxu0 0
        %719 = vmatpush1.bf16.msra.mxu0 0
        %720 = vmatprep.subr.bf16.mxu0 0
        %721 = vmatpush1.bf16.msra.mxu0 0
        %722 = vmatprep.mubr.bf16.mxu0 0
        %723 = vmatmul.mubr.bf16.gmra.mrb[0].mxu0 %v325
        %v724 = vpop.f32.mrb[0].mxu0
        %v725 = vadd.f32 %v292, %v724
        %v726 = vpop.f32.mrb[0].mxu0
        %v727 = vadd.f32 %v296, %v726
        %v728 = vpop.f32.mrb[0].mxu0
        %v729 = vadd.f32 %v292, %v728
        %v730 = vpop.f32.mrb[0].mxu0
        %v731 = vadd.f32 %v296, %v730
        %732 = vdwg.mxu0
        %733 = vmatprep.subr.bf16.mxu0 %v524
        %734 = vmatpush1.bf16.msra.mxu0 %v523
        %735 = vmatprep.subr.bf16.mxu0 %v532
        %736 = vmatpush1.bf16.msra.mxu0 %v531
        %737 = vmatprep.subr.bf16.mxu0 %v540
        %738 = vmatpush1.bf16.msra.mxu0 %v539
        %739 = vmatprep.subr.bf16.mxu0 %v548
        %740 = vmatpush1.bf16.msra.mxu0 %v547
        %741 = vmatprep.subr.bf16.mxu0 %v556
        %742 = vmatpush1.bf16.msra.mxu0 %v555
        %743 = vmatprep.subr.bf16.mxu0 %v564
        %744 = vmatpush1.bf16.msra.mxu0 %v563
        %745 = vmatprep.subr.bf16.mxu0 %v572
        %746 = vmatpush1.bf16.msra.mxu0 %v571
        %747 = vmatprep.subr.bf16.mxu0 %v580
        %748 = vmatpush1.bf16.msra.mxu0 %v579
        %749 = vmatprep.subr.bf16.mxu0 0
        %750 = vmatpush1.bf16.msra.mxu0 0
        %751 = vmatprep.subr.bf16.mxu0 0
        %752 = vmatpush1.bf16.msra.mxu0 0
        %753 = vmatprep.subr.bf16.mxu0 0
        %754 = vmatpush1.bf16.msra.mxu0 0
        %755 = vmatprep.subr.bf16.mxu0 0
        %756 = vmatpush1.bf16.msra.mxu0 0
        %757 = vmatprep.subr.bf16.mxu0 0
        %758 = vmatpush1.bf16.msra.mxu0 0
        %759 = vmatprep.subr.bf16.mxu0 0
        %760 = vmatpush1.bf16.msra.mxu0 0
        %761 = vmatprep.subr.bf16.mxu0 0
        %762 = vmatpush1.bf16.msra.mxu0 0
        %763 = vmatprep.subr.bf16.mxu0 0
        %764 = vmatpush1.bf16.msra.mxu0 0
        %765 = vmatprep.mubr.bf16.mxu0 0
        %766 = vmatmul.mubr.bf16.gmra.mrb[0].mxu0 %v325
        %v767 = vpop.f32.mrb[0].mxu0
        %v768 = vadd.f32 %v300, %v767
        %v769 = vpop.f32.mrb[0].mxu0
        %v770 = vadd.f32 %v304, %v769
        %v771 = vpop.f32.mrb[0].mxu0
        %v772 = vadd.f32 %v300, %v771
        %v773 = vpop.f32.mrb[0].mxu0
        %v774 = vadd.f32 %v304, %v773
        %775 = vdwg.mxu0
        %776 = vmatprep.subr.bf16.mxu0 %v526
        %777 = vmatpush1.bf16.msra.mxu0 %v525
        %778 = vmatprep.subr.bf16.mxu0 %v534
        %779 = vmatpush1.bf16.msra.mxu0 %v533
        %780 = vmatprep.subr.bf16.mxu0 %v542
        %781 = vmatpush1.bf16.msra.mxu0 %v541
        %782 = vmatprep.subr.bf16.mxu0 %v550
        %783 = vmatpush1.bf16.msra.mxu0 %v549
        %784 = vmatprep.subr.bf16.mxu0 %v558
        %785 = vmatpush1.bf16.msra.mxu0 %v557
        %786 = vmatprep.subr.bf16.mxu0 %v566
        %787 = vmatpush1.bf16.msra.mxu0 %v565
        %788 = vmatprep.subr.bf16.mxu0 %v574
        %789 = vmatpush1.bf16.msra.mxu0 %v573
        %790 = vmatprep.subr.bf16.mxu0 %v582
        %791 = vmatpush1.bf16.msra.mxu0 %v581
        %792 = vmatprep.subr.bf16.mxu0 0
        %793 = vmatpush1.bf16.msra.mxu0 0
        %794 = vmatprep.subr.bf16.mxu0 0
        %795 = vmatpush1.bf16.msra.mxu0 0
        %796 = vmatprep.subr.bf16.mxu0 0
        %797 = vmatpush1.bf16.msra.mxu0 0
        %798 = vmatprep.subr.bf16.mxu0 0
        %799 = vmatpush1.bf16.msra.mxu0 0
        %800 = vmatprep.subr.bf16.mxu0 0
        %801 = vmatpush1.bf16.msra.mxu0 0
        %802 = vmatprep.subr.bf16.mxu0 0
        %803 = vmatpush1.bf16.msra.mxu0 0
        %804 = vmatprep.subr.bf16.mxu0 0
        %805 = vmatpush1.bf16.msra.mxu0 0
        %806 = vmatprep.subr.bf16.mxu0 0
        %807 = vmatpush1.bf16.msra.mxu0 0
        %808 = vmatprep.mubr.bf16.mxu0 0
        %809 = vmatmul.mubr.bf16.gmra.mrb[0].mxu0 %v325
        %v810 = vpop.f32.mrb[0].mxu0
        %v811 = vadd.f32 %v308, %v810
        %v812 = vpop.f32.mrb[0].mxu0
        %v813 = vadd.f32 %v312, %v812
        %v814 = vpop.f32.mrb[0].mxu0
        %v815 = vadd.f32 %v308, %v814
        %v816 = vpop.f32.mrb[0].mxu0
        %v817 = vadd.f32 %v312, %v816
        %818 = vdwg.mxu0
        %vm819 = vcmp.ge.f32.partialorder %v682, 0.0
        %vm820 = vcmp.ge.f32.partialorder %v684, 0.0
        %vm821 = vcmp.ge.f32.partialorder %v725, 0.0
        %vm822 = vcmp.ge.f32.partialorder %v727, 0.0
        %vm823 = vcmp.ge.f32.partialorder %v768, 0.0
        %vm824 = vcmp.ge.f32.partialorder %v770, 0.0
        %vm825 = vcmp.ge.f32.partialorder %v811, 0.0
        %vm826 = vcmp.ge.f32.partialorder %v813, 0.0
        %vm827 = vcmp.ge.f32.partialorder %v686, 0.0
        %vm828 = vcmp.ge.f32.partialorder %v688, 0.0
        %vm829 = vcmp.ge.f32.partialorder %v729, 0.0
        %vm830 = vcmp.ge.f32.partialorder %v731, 0.0
        %vm831 = vcmp.ge.f32.partialorder %v772, 0.0
        %vm832 = vcmp.ge.f32.partialorder %v774, 0.0
        %vm833 = vcmp.ge.f32.partialorder %v815, 0.0
        %vm834 = vcmp.ge.f32.partialorder %v817, 0.0
        %v835 = vmul.f32 %v682, 0.2
        %v836 = vmul.f32 %v684, 0.2
        %v837 = vmul.f32 %v725, 0.2
        %v838 = vmul.f32 %v727, 0.2
        %v839 = vmul.f32 %v768, 0.2
        %v840 = vmul.f32 %v770, 0.2
        %v841 = vmul.f32 %v811, 0.2
        %v842 = vmul.f32 %v813, 0.2
        %v843 = vmul.f32 %v686, 0.2
        %v844 = vmul.f32 %v688, 0.2
        %v845 = vmul.f32 %v729, 0.2
        %v846 = vmul.f32 %v731, 0.2
        %v847 = vmul.f32 %v772, 0.2
        %v848 = vmul.f32 %v774, 0.2
        %v849 = vmul.f32 %v815, 0.2
        %v850 = vmul.f32 %v817, 0.2
        %v851 = vsel %vm819, %v682, %v835
        %v852 = vsel %vm820, %v684, %v836
        %v853 = vsel %vm821, %v725, %v837
        %v854 = vsel %vm822, %v727, %v838
        %v855 = vsel %vm823, %v768, %v839
        %v856 = vsel %vm824, %v770, %v840
        %v857 = vsel %vm825, %v811, %v841
        %v858 = vsel %vm826, %v813, %v842
        %v859 = vsel %vm827, %v686, %v843
        %v860 = vsel %vm828, %v688, %v844
        %v861 = vsel %vm829, %v729, %v845
        %v862 = vsel %vm830, %v731, %v846
        %v863 = vsel %vm831, %v772, %v847
        %v864 = vsel %vm832, %v774, %v848
        %v865 = vsel %vm833, %v815, %v849
        %v866 = vsel %vm834, %v817, %v850
        %v867 = vmax.f32 %v851, %v859
        %v868 = vrot.slane %v867, 4
        %v869 = vmax.f32 %v867, %v868
        %v870 = vrot.slane %v869, 2
        %v871 = vmax.f32 %v869, %v870
        %v872 = vrot.slane %v871, 1
        %v873 = vmax.f32 %v871, %v872
        %v874 = vmax.f32 %v852, %v860
        %v875 = vrot.slane %v874, 4
        %v876 = vmax.f32 %v874, %v875
        %v877 = vrot.slane %v876, 2
        %v878 = vmax.f32 %v876, %v877
        %v879 = vrot.slane %v878, 1
        %v880 = vmax.f32 %v878, %v879
        %v881 = vmax.f32 %v853, %v861
        %v882 = vrot.slane %v881, 4
        %v883 = vmax.f32 %v881, %v882
        %v884 = vrot.slane %v883, 2
        %v885 = vmax.f32 %v883, %v884
        %v886 = vrot.slane %v885, 1
        %v887 = vmax.f32 %v885, %v886
        %v888 = vmax.f32 %v854, %v862
        %v889 = vrot.slane %v888, 4
        %v890 = vmax.f32 %v888, %v889
        %v891 = vrot.slane %v890, 2
        %v892 = vmax.f32 %v890, %v891
        %v893 = vrot.slane %v892, 1
        %v894 = vmax.f32 %v892, %v893
        %v895 = vmax.f32 %v855, %v863
        %v896 = vrot.slane %v895, 4
        %v897 = vmax.f32 %v895, %v896
        %v898 = vrot.slane %v897, 2
        %v899 = vmax.f32 %v897, %v898
        %v900 = vrot.slane %v899, 1
        %v901 = vmax.f32 %v899, %v900
        %v902 = vmax.f32 %v856, %v864
        %v903 = vrot.slane %v902, 4
        %v904 = vmax.f32 %v902, %v903
        %v905 = vrot.slane %v904, 2
        %v906 = vmax.f32 %v904, %v905
        %v907 = vrot.slane %v906, 1
        %v908 = vmax.f32 %v906, %v907
        %v909 = vmax.f32 %v857, %v865
        %v910 = vrot.slane %v909, 4
        %v911 = vmax.f32 %v909, %v910
        %v912 = vrot.slane %v911, 2
        %v913 = vmax.f32 %v911, %v912
        %v914 = vrot.slane %v913, 1
        %v915 = vmax.f32 %v913, %v914
        %v916 = vmax.f32 %v858, %v866
        %v917 = vrot.slane %v916, 4
        %v918 = vmax.f32 %v916, %v917
        %v919 = vrot.slane %v918, 2
        %v920 = vmax.f32 %v918, %v919
        %v921 = vrot.slane %v920, 1
        %v922 = vmax.f32 %v920, %v921
        %p923 = scmp.eq.s32.totalorder %s20, 0
        // Predicated region
        $region37: #{dgcnn_pseg_forward.9} parent=31 // pred_check
          %p924 = pneg %p923
        $region38: #{dgcnn_pseg_forward.9} parent=31 // pred_check_branch
          %926 = sbr.rel (%p924) target = $region40
        $region39: #{dgcnn_pseg_forward.9} parent=31 // pred_region
          %v935 = vcombine.low %v873, %v880
          %v936 = vcombine.low %v887, %v894
          %v937 = vcombine.low %v901, %v908
          %v938 = vcombine.low %v915, %v922
          %v940 = vunpack.c.l.s4 1966171168
          %v941 = vunpack.c.0.s8 %v940
          %v942 = vlaneseq
          %v943 = vshrl.u32 %v942, 7
          %v944 = vsub.s32 %v941, %v943
          %v945 = vrot.slane %v935, %v944
          %v947 = vunpack.c.l.s4 1966171168
          %v948 = vunpack.c.0.s8 %v947
          %v949 = vlaneseq
          %v950 = vshrl.u32 %v949, 7
          %v951 = vsub.s32 %v948, %v950
          %v952 = vrot.slane %v936, %v951
          %v954 = vunpack.c.l.s4 1966171168
          %v955 = vunpack.c.0.s8 %v954
          %v956 = vlaneseq
          %v957 = vshrl.u32 %v956, 7
          %v958 = vsub.s32 %v955, %v957
          %v959 = vrot.slane %v937, %v958
          %v961 = vunpack.c.l.s4 1966171168
          %v962 = vunpack.c.0.s8 %v961
          %v963 = vlaneseq
          %v964 = vshrl.u32 %v963, 7
          %v965 = vsub.s32 %v962, %v964
          %v966 = vrot.slane %v938, %v965
          %v967 = vcombine.low %v945, %v952
          %v968 = vcombine.low %v959, %v966
          %v970 = vunpack.c.l.s4 1966171168
          %v971 = vunpack.c.0.s8 %v970
          %v972 = vlaneseq
          %v973 = vshrl.u32 %v972, 7
          %v974 = vsub.s32 %v971, %v973
          %v975 = vrot.slane %v967, %v974
          %v977 = vunpack.c.l.s4 1966171168
          %v978 = vunpack.c.0.s8 %v977
          %v979 = vlaneseq
          %v980 = vshrl.u32 %v979, 7
          %v981 = vsub.s32 %v978, %v980
          %v982 = vrot.slane %v968, %v981
          %v983 = vcombine.low %v975, %v982
          %985 = vst [vmem:[%s211] sm:$0xff] %v983
        $region40: #{dgcnn_pseg_forward.9} parent=31 // pred_fallthru
          _
        %p986 = scmp.ne.s32.totalorder %s20, 0
        // Predicated region
        $region41: #{dgcnn_pseg_forward.9} parent=31 // pred_check
          %p987 = pneg %p986
        $region42: #{dgcnn_pseg_forward.9} parent=31 // pred_check_branch
          %989 = sbr.rel (%p987) target = $region44
        $region43: #{dgcnn_pseg_forward.9} parent=31 // pred_region
          %v990 = vld [vmem:[%s211] sm:$0xff]
          %v999 = vcombine.low %v873, %v880
          %v1000 = vcombine.low %v887, %v894
          %v1001 = vcombine.low %v901, %v908
          %v1002 = vcombine.low %v915, %v922
          %v1004 = vunpack.c.l.s4 1966171168
          %v1005 = vunpack.c.0.s8 %v1004
          %v1006 = vlaneseq
          %v1007 = vshrl.u32 %v1006, 7
          %v1008 = vsub.s32 %v1005, %v1007
          %v1009 = vrot.slane %v999, %v1008
          %v1011 = vunpack.c.l.s4 1966171168
          %v1012 = vunpack.c.0.s8 %v1011
          %v1013 = vlaneseq
          %v1014 = vshrl.u32 %v1013, 7
          %v1015 = vsub.s32 %v1012, %v1014
          %v1016 = vrot.slane %v1000, %v1015
          %v1018 = vunpack.c.l.s4 1966171168
          %v1019 = vunpack.c.0.s8 %v1018
          %v1020 = vlaneseq
          %v1021 = vshrl.u32 %v1020, 7
          %v1022 = vsub.s32 %v1019, %v1021
          %v1023 = vrot.slane %v1001, %v1022
          %v1025 = vunpack.c.l.s4 1966171168
          %v1026 = vunpack.c.0.s8 %v1025
          %v1027 = vlaneseq
          %v1028 = vshrl.u32 %v1027, 7
          %v1029 = vsub.s32 %v1026, %v1028
          %v1030 = vrot.slane %v1002, %v1029
          %v1031 = vcombine.low %v1009, %v1016
          %v1032 = vcombine.low %v1023, %v1030
          %v1034 = vunpack.c.l.s4 1966171168
          %v1035 = vunpack.c.0.s8 %v1034
          %v1036 = vlaneseq
          %v1037 = vshrl.u32 %v1036, 7
          %v1038 = vsub.s32 %v1035, %v1037
          %v1039 = vrot.slane %v1031, %v1038
          %v1041 = vunpack.c.l.s4 1966171168
          %v1042 = vunpack.c.0.s8 %v1041
          %v1043 = vlaneseq
          %v1044 = vshrl.u32 %v1043, 7
          %v1045 = vsub.s32 %v1042, %v1044
          %v1046 = vrot.slane %v1032, %v1045
          %v1047 = vcombine.low %v1039, %v1046
          %v1049 = vmax.f32 %v990, %v1047
          %1050 = vst [vmem:[%s211] sm:$0xff] %v1049
        $region44: #{dgcnn_pseg_forward.9} parent=31 // pred_fallthru
          _
        %p1051 = scmp.lt.s32.totalorder %s19, 1
        %s1052 = scalar_select %p1051, %s19, 1
        %s1053 = smul.addr %s1052, 8
        %s1054 = scalar_lea.vmem %s3, %s1053
        // Predicated region
        $region45: #{dgcnn_pseg_forward.9} parent=31 // pred_check
          %p1055 = pneg %p115
        $region46: #{dgcnn_pseg_forward.9} parent=31 // pred_check_branch
          %1057 = sbr.rel (%p1055) target = $region48
        $region47: #{dgcnn_pseg_forward.9} parent=31 // pred_region
          _
        $region48: #{dgcnn_pseg_forward.9} parent=31 // pred_fallthru
          _
      $region32: #{dgcnn_pseg_forward.9} parent=5 // pred_fallthru
        _
      %p1058 = scmp.le.s32.totalorder 2, %s10
      // Predicated region
      $region49: #{dgcnn_pseg_forward.9} parent=5 // pred_check
        %p1059 = pneg %p1058
      $region50: #{dgcnn_pseg_forward.9} parent=5 // pred_check_branch
        %1061 = sbr.rel (%p1059) target = $region52
      $region51: #{dgcnn_pseg_forward.9} parent=5 // pred_region
        %s1062 = ssub.s32 %s10, 2
        // Predicated region
        $region53: #{dgcnn_pseg_forward.9} parent=51 // pred_check
          %p1063 = pneg %p121
        $region54: #{dgcnn_pseg_forward.9} parent=51 // pred_check_branch
          %1065 = sbr.rel (%p1063) target = $region56
        $region55: #{dgcnn_pseg_forward.9} parent=51 // pred_region
          %p1066 = scmp.lt.s32.totalorder %s21, 1
          %s1067 = scalar_select %p1066, %s21, 1
          %s1068 = smul.addr %s1067, 8
          %s1069 = scalar_lea.vmem %s3, %s1068
        $region56: #{dgcnn_pseg_forward.9} parent=51 // pred_fallthru
          _
      $region52: #{dgcnn_pseg_forward.9} parent=5 // pred_fallthru
        _
    $region6: #{dgcnn_pseg_forward.9} parent=1 // loop_footer
      %s14 = sadd.s32 1, %s10
    $region7: #{dgcnn_pseg_forward.9} parent=1 // loop_footer_branch
      %9 = sbr.rel target = $region3
    $region8: #{dgcnn_pseg_forward.9} parent=1 // loop_exit
      _
    %1070 = vsyncpa [#allocation3], 1
    %s1071 = scalar_lea.sflag [#allocation3], 1
    %1072 = vsyncpa %s1071, 1

// kernel: sub.49
$region0: #{sub.49}
  %s0 = inlined_call_operand.vmem [shape: f32[32], index: 0, kind: input, shape index: {}]
  %s1 = inlined_call_operand.vmem [shape: f32[2,16], index: 1, kind: output, shape index: {}]
  $region1: #{sub.49} parent=0
    #allocation0 [shape = 'u8[4096]{0}', space=vmem, size = 0x1000, scoped, tag = 'scoped mem for output reshape']
    #allocation1 [shape = 'u8[4096]{0}', space=vmem, size = 0x1000, scoped, tag = 'scoped mem for input reshape']
    %s3 = sshllo.u32 0, 1
    %v4 = vld [vmem:[%s0] sm:%s3]
    %5 = vst [vmem:[#allocation1] sm:%s3] %v4
    %v6 = vld [vmem:[#allocation1] sm:$0x1]
    %vm7 = vcmask 130048
    %8 = vst.msk [vmem:[#allocation0] sm:$0x1] %vm7, %v6
    %v9 = vld [vmem:[#allocation1] sm:$0x1]
    %10 = vrot.lane.b32.xlu0 %v9, 112
    %v11 = vpop.permute.xlu0 %10
    %vm12 = vcmask 130048
    %s13 = scalar_lea.vmem [#allocation0], 1
    %14 = vst.msk [vmem:[%s13] sm:$0x1] %vm12, %v11
    %s16 = sshllo.u32 0, 2
    %v18 = vld [vmem:[#allocation0] sm:%s16]
    %s19 = sshllo.u32 0, 2
    %20 = vst [vmem:[%s1] sm:%s19] %v18

// kernel: dgcnn_pseg_forward.12
$region0: #{dgcnn_pseg_forward.12}
  #allocation0 [shape = 'u32[]', space=smem, size = 0x4, offset = 0x4, fixed_abs, tag = 'smem constant byte address 0x4 - core index']
  #allocation1 [shape = 'u32[144,128]{1,0:T(1,128)}', space=vmem, size = 0x12000, scoped, tag = 'internal scratch']
  %s0 = inlined_call_operand.vmem [shape: bf16[4,32,64], index: 0, kind: input, shape index: {}]
  %s1 = inlined_call_operand.vmem [shape: bf16[32,64], index: 1, kind: input, shape index: {}]
  %s2 = inlined_call_operand.vmem [shape: bf16[64,64], index: 2, kind: input, shape index: {}]
  %s3 = inlined_call_operand.vmem [shape: bf16[64,64], index: 3, kind: input, shape index: {}]
  %s4 = inlined_call_operand.vmem [shape: f32[1,64], index: 4, kind: input, shape index: {}]
  %s5 = inlined_call_operand.vmem [shape: bf16[64,64], index: 5, kind: input, shape index: {}]
  %s6 = inlined_call_operand.vmem [shape: f32[1,64], index: 6, kind: input, shape index: {}]
  %s7 = inlined_call_operand.vmem [shape: bf16[32,64], index: 7, kind: output, shape index: {}]
  %s8 = sld [smem:[#allocation0]]
  $region38: #{dgcnn_pseg_forward.12} parent=0
    _
  %s10 = ssub.s32 1, %s8
  %s11 = scalar_select 0, %s10, %s8
  // Predicated region
  $region2: #{dgcnn_pseg_forward.12} parent=0 // pred_check
    _
  $region3: #{dgcnn_pseg_forward.12} parent=0 // pred_check_branch
    %13 = sbr.rel (0) target = $region5
  $region4: #{dgcnn_pseg_forward.12} parent=0 // pred_region
    _
  $region5: #{dgcnn_pseg_forward.12} parent=0 // pred_fallthru
    _
  // Predicated region
  $region6: #{dgcnn_pseg_forward.12} parent=0 // pred_check
    _
  $region7: #{dgcnn_pseg_forward.12} parent=0 // pred_check_branch
    %15 = sbr.rel (0) target = $region9
  $region8: #{dgcnn_pseg_forward.12} parent=0 // pred_region
    _
  $region9: #{dgcnn_pseg_forward.12} parent=0 // pred_fallthru
    _
  // Predicated region
  $region10: #{dgcnn_pseg_forward.12} parent=0 // pred_check
    _
  $region11: #{dgcnn_pseg_forward.12} parent=0 // pred_check_branch
    %17 = sbr.rel (0) target = $region13
  $region12: #{dgcnn_pseg_forward.12} parent=0 // pred_region
    _
  $region13: #{dgcnn_pseg_forward.12} parent=0 // pred_fallthru
    _
  // Predicated region
  $region14: #{dgcnn_pseg_forward.12} parent=0 // pred_check
    _
  $region15: #{dgcnn_pseg_forward.12} parent=0 // pred_check_branch
    %19 = sbr.rel (0) target = $region17
  $region16: #{dgcnn_pseg_forward.12} parent=0 // pred_region
    _
  $region17: #{dgcnn_pseg_forward.12} parent=0 // pred_fallthru
    _
  // Predicated region
  $region18: #{dgcnn_pseg_forward.12} parent=0 // pred_check
    _
  $region19: #{dgcnn_pseg_forward.12} parent=0 // pred_check_branch
    %21 = sbr.rel (0) target = $region21
  $region20: #{dgcnn_pseg_forward.12} parent=0 // pred_region
    _
  $region21: #{dgcnn_pseg_forward.12} parent=0 // pred_fallthru
    _
  // Predicated region
  $region22: #{dgcnn_pseg_forward.12} parent=0 // pred_check
    _
  $region23: #{dgcnn_pseg_forward.12} parent=0 // pred_check_branch
    %23 = sbr.rel (0) target = $region25
  $region24: #{dgcnn_pseg_forward.12} parent=0 // pred_region
    _
  $region25: #{dgcnn_pseg_forward.12} parent=0 // pred_fallthru
    _
  // Predicated region
  $region26: #{dgcnn_pseg_forward.12} parent=0 // pred_check
    _
  $region27: #{dgcnn_pseg_forward.12} parent=0 // pred_check_branch
    %25 = sbr.rel (0) target = $region29
  $region28: #{dgcnn_pseg_forward.12} parent=0 // pred_region
    _
  $region29: #{dgcnn_pseg_forward.12} parent=0 // pred_fallthru
    _
  %v27 = vld [vmem:[%s1] sm:$0xf]
  %v28 = vld [vmem:[%s1 + $0x4] sm:$0xf]
  %v29 = vld [vmem:[%s1 + $0x8] sm:$0xf]
  %v30 = vld [vmem:[%s1 + $0xc] sm:$0xf]
  %v31 = vld [vmem:[%s3] sm:$0xf]
  %v32 = vld [vmem:[%s3 + $0x4] sm:$0xf]
  %v33 = vld [vmem:[%s3 + $0x8] sm:$0xf]
  %v34 = vld [vmem:[%s3 + $0xc] sm:$0xf]
  %v35 = vld [vmem:[%s3 + $0x10] sm:$0xf]
  %v36 = vld [vmem:[%s3 + $0x14] sm:$0xf]
  %v37 = vld [vmem:[%s3 + $0x18] sm:$0xf]
  %v38 = vld [vmem:[%s3 + $0x1c] sm:$0xf]
  %v39 = vld [vmem:[%s4] sm:$0x1]
  %v41 = vlaneseq
  %v42 = vshrl.u32 %v41, 7
  %v43 = vsub.s32 0, %v42
  %v44 = vrot.slane %v39, %v43
  %v50 = vunpack.c.l.b16 %v27
  %v51 = vunpack.c.l.b16 %v28
  %v52 = vunpack.c.l.b16 %v29
  %v53 = vunpack.c.l.b16 %v30
  %v54 = vpack.c.b16 %v51, %v50
  %v55 = vpack.c.b16 %v53, %v52
  %v64 = vunpack.c.l.b16 %v31
  %v65 = vunpack.c.l.b16 %v32
  %v66 = vunpack.c.l.b16 %v33
  %v67 = vunpack.c.l.b16 %v34
  %v68 = vunpack.c.l.b16 %v35
  %v69 = vunpack.c.l.b16 %v36
  %v70 = vunpack.c.l.b16 %v37
  %v71 = vunpack.c.l.b16 %v38
  %v72 = vpack.c.b16 %v65, %v64
  %v73 = vpack.c.b16 %v67, %v66
  %v74 = vpack.c.b16 %v69, %v68
  %v75 = vpack.c.b16 %v71, %v70
  %vm80 = vcmask 523264
  %v82 = vsel %vm80, %v54, 0
  %v85 = vsel %vm80, %v55, 0
  %87 = vmatprep.subr.bf16.mxu0 0
  %88 = vmatpush1.bf16.msra.mxu0 %v72
  %89 = vmatprep.subr.bf16.mxu0 0
  %90 = vmatpush1.bf16.msra.mxu0 %v73
  %91 = vmatprep.subr.bf16.mxu0 0
  %92 = vmatpush1.bf16.msra.mxu0 %v74
  %93 = vmatprep.subr.bf16.mxu0 0
  %94 = vmatpush1.bf16.msra.mxu0 %v75
  %95 = vmatprep.subr.bf16.mxu0 0
  %96 = vmatpush1.bf16.msra.mxu0 0
  %97 = vmatprep.subr.bf16.mxu0 0
  %98 = vmatpush1.bf16.msra.mxu0 0
  %99 = vmatprep.subr.bf16.mxu0 0
  %100 = vmatpush1.bf16.msra.mxu0 0
  %101 = vmatprep.subr.bf16.mxu0 0
  %102 = vmatpush1.bf16.msra.mxu0 0
  %103 = vmatprep.subr.bf16.mxu0 0
  %104 = vmatpush1.bf16.msra.mxu0 0
  %105 = vmatprep.subr.bf16.mxu0 0
  %106 = vmatpush1.bf16.msra.mxu0 0
  %107 = vmatprep.subr.bf16.mxu0 0
  %108 = vmatpush1.bf16.msra.mxu0 0
  %109 = vmatprep.subr.bf16.mxu0 0
  %110 = vmatpush1.bf16.msra.mxu0 0
  %111 = vmatprep.subr.bf16.mxu0 0
  %112 = vmatpush1.bf16.msra.mxu0 0
  %113 = vmatprep.subr.bf16.mxu0 0
  %114 = vmatpush1.bf16.msra.mxu0 0
  %115 = vmatprep.subr.bf16.mxu0 0
  %116 = vmatpush1.bf16.msra.mxu0 0
  %117 = vmatprep.subr.bf16.mxu0 0
  %118 = vmatpush1.bf16.msra.mxu0 0
  %119 = vmatprep.mubr.bf16.mxu0 0
  %120 = vmatmul.mubr.bf16.gmra.mrb[0].mxu0 %v82
  %v121 = vpop.f32.mrb[0].mxu0
  %v122 = vadd.f32 %v44, %v121
  %v123 = vpop.f32.mrb[0].mxu0
  %v124 = vpop.f32.mrb[0].mxu0
  %v125 = vadd.f32 %v44, %v124
  %v126 = vpop.f32.mrb[0].mxu0
  %127 = vmatprep.mubr.bf16.mxu0 0
  %128 = vmatmul.mubr.bf16.gmra.mrb[0].mxu0 %v85
  %v129 = vpop.f32.mrb[0].mxu0
  %v130 = vadd.f32 %v44, %v129
  %v131 = vpop.f32.mrb[0].mxu0
  %v132 = vpop.f32.mrb[0].mxu0
  %v133 = vadd.f32 %v44, %v132
  %v134 = vpop.f32.mrb[0].mxu0
  %135 = vdwg.mxu0
  %v136 = vld [vmem:[%s0] sm:$0xf]
  %v137 = vld [vmem:[%s0 + $0x4] sm:$0xf]
  %v138 = vld [vmem:[%s0 + $0x8] sm:$0xf]
  %v139 = vld [vmem:[%s0 + $0xc] sm:$0xf]
  %v140 = vld [vmem:[%s0 + $0x10] sm:$0xf]
  %v141 = vld [vmem:[%s0 + $0x14] sm:$0xf]
  %v142 = vld [vmem:[%s0 + $0x18] sm:$0xf]
  %v143 = vld [vmem:[%s0 + $0x1c] sm:$0xf]
  %v144 = vld [vmem:[%s0 + $0x20] sm:$0xf]
  %v145 = vld [vmem:[%s0 + $0x24] sm:$0xf]
  %v146 = vld [vmem:[%s0 + $0x28] sm:$0xf]
  %v147 = vld [vmem:[%s0 + $0x2c] sm:$0xf]
  %v148 = vld [vmem:[%s0 + $0x30] sm:$0xf]
  %v149 = vld [vmem:[%s0 + $0x34] sm:$0xf]
  %v150 = vld [vmem:[%s0 + $0x38] sm:$0xf]
  %v151 = vld [vmem:[%s0 + $0x3c] sm:$0xf]
  %v152 = vld [vmem:[%s2] sm:$0xf]
  %v153 = vld [vmem:[%s2 + $0x4] sm:$0xf]
  %v154 = vld [vmem:[%s2 + $0x8] sm:$0xf]
  %v155 = vld [vmem:[%s2 + $0xc] sm:$0xf]
  %v156 = vld [vmem:[%s2 + $0x10] sm:$0xf]
  %v157 = vld [vmem:[%s2 + $0x14] sm:$0xf]
  %v158 = vld [vmem:[%s2 + $0x18] sm:$0xf]
  %v159 = vld [vmem:[%s2 + $0x1c] sm:$0xf]
  %v176 = vunpack.c.l.b16 %v136
  %v177 = vunpack.c.l.b16 %v137
  %v178 = vunpack.c.l.b16 %v138
  %v179 = vunpack.c.l.b16 %v139
  %v180 = vunpack.c.l.b16 %v140
  %v181 = vunpack.c.l.b16 %v141
  %v182 = vunpack.c.l.b16 %v142
  %v183 = vunpack.c.l.b16 %v143
  %v184 = vunpack.c.l.b16 %v144
  %v185 = vunpack.c.l.b16 %v145
  %v186 = vunpack.c.l.b16 %v146
  %v187 = vunpack.c.l.b16 %v147
  %v188 = vunpack.c.l.b16 %v148
  %v189 = vunpack.c.l.b16 %v149
  %v190 = vunpack.c.l.b16 %v150
  %v191 = vunpack.c.l.b16 %v151
  %v192 = vpack.c.b16 %v177, %v176
  %v193 = vpack.c.b16 %v179, %v178
  %v194 = vpack.c.b16 %v181, %v180
  %v195 = vpack.c.b16 %v183, %v182
  %v196 = vpack.c.b16 %v185, %v184
  %v197 = vpack.c.b16 %v187, %v186
  %v198 = vpack.c.b16 %v189, %v188
  %v199 = vpack.c.b16 %v191, %v190
  %v208 = vunpack.c.l.b16 %v152
  %v209 = vunpack.c.l.b16 %v153
  %v210 = vunpack.c.l.b16 %v154
  %v211 = vunpack.c.l.b16 %v155
  %v212 = vunpack.c.l.b16 %v156
  %v213 = vunpack.c.l.b16 %v157
  %v214 = vunpack.c.l.b16 %v158
  %v215 = vunpack.c.l.b16 %v159
  %v216 = vpack.c.b16 %v209, %v208
  %v217 = vpack.c.b16 %v211, %v210
  %v218 = vpack.c.b16 %v213, %v212
  %v219 = vpack.c.b16 %v215, %v214
  %v225 = vsel %vm80, %v192, 0
  %v228 = vsel %vm80, %v193, 0
  %v231 = vsel %vm80, %v194, 0
  %v234 = vsel %vm80, %v195, 0
  %v237 = vsel %vm80, %v196, 0
  %v240 = vsel %vm80, %v197, 0
  %v243 = vsel %vm80, %v198, 0
  %v246 = vsel %vm80, %v199, 0
  %248 = vmatprep.subr.bf16.mxu0 0
  %249 = vmatpush1.bf16.msra.mxu0 %v216
  %250 = vmatprep.subr.bf16.mxu0 0
  %251 = vmatpush1.bf16.msra.mxu0 %v217
  %252 = vmatprep.subr.bf16.mxu0 0
  %253 = vmatpush1.bf16.msra.mxu0 %v218
  %254 = vmatprep.subr.bf16.mxu0 0
  %255 = vmatpush1.bf16.msra.mxu0 %v219
  %256 = vmatprep.subr.bf16.mxu0 0
  %257 = vmatpush1.bf16.msra.mxu0 0
  %258 = vmatprep.subr.bf16.mxu0 0
  %259 = vmatpush1.bf16.msra.mxu0 0
  %260 = vmatprep.subr.bf16.mxu0 0
  %261 = vmatpush1.bf16.msra.mxu0 0
  %262 = vmatprep.subr.bf16.mxu0 0
  %263 = vmatpush1.bf16.msra.mxu0 0
  %264 = vmatprep.subr.bf16.mxu0 0
  %265 = vmatpush1.bf16.msra.mxu0 0
  %266 = vmatprep.subr.bf16.mxu0 0
  %267 = vmatpush1.bf16.msra.mxu0 0
  %268 = vmatprep.subr.bf16.mxu0 0
  %269 = vmatpush1.bf16.msra.mxu0 0
  %270 = vmatprep.subr.bf16.mxu0 0
  %271 = vmatpush1.bf16.msra.mxu0 0
  %272 = vmatprep.subr.bf16.mxu0 0
  %273 = vmatpush1.bf16.msra.mxu0 0
  %274 = vmatprep.subr.bf16.mxu0 0
  %275 = vmatpush1.bf16.msra.mxu0 0
  %276 = vmatprep.subr.bf16.mxu0 0
  %277 = vmatpush1.bf16.msra.mxu0 0
  %278 = vmatprep.subr.bf16.mxu0 0
  %279 = vmatpush1.bf16.msra.mxu0 0
  %280 = vmatprep.mubr.bf16.mxu0 0
  %281 = vmatmul.mubr.bf16.gmra.mrb[0].mxu0 %v225
  %v282 = vpop.f32.mrb[0].mxu0
  %v283 = vadd.f32 0.0, %v282
  %v284 = vpop.f32.mrb[0].mxu0
  %v285 = vpop.f32.mrb[0].mxu0
  %v286 = vadd.f32 0.0, %v285
  %v287 = vpop.f32.mrb[0].mxu0
  %288 = vmatprep.mubr.bf16.mxu0 0
  %289 = vmatmul.mubr.bf16.gmra.mrb[0].mxu0 %v228
  %v290 = vpop.f32.mrb[0].mxu0
  %v291 = vadd.f32 0.0, %v290
  %v292 = vpop.f32.mrb[0].mxu0
  %v293 = vpop.f32.mrb[0].mxu0
  %v294 = vadd.f32 0.0, %v293
  %v295 = vpop.f32.mrb[0].mxu0
  %296 = vmatprep.mubr.bf16.mxu0 0
  %297 = vmatmul.mubr.bf16.gmra.mrb[0].mxu0 %v231
  %v298 = vpop.f32.mrb[0].mxu0
  %v299 = vadd.f32 0.0, %v298
  %v300 = vpop.f32.mrb[0].mxu0
  %v301 = vpop.f32.mrb[0].mxu0
  %v302 = vadd.f32 0.0, %v301
  %v303 = vpop.f32.mrb[0].mxu0
  %304 = vmatprep.mubr.bf16.mxu0 0
  %305 = vmatmul.mubr.bf16.gmra.mrb[0].mxu0 %v234
  %v306 = vpop.f32.mrb[0].mxu0
  %v307 = vadd.f32 0.0, %v306
  %v308 = vpop.f32.mrb[0].mxu0
  %v309 = vpop.f32.mrb[0].mxu0
  %v310 = vadd.f32 0.0, %v309
  %v311 = vpop.f32.mrb[0].mxu0
  %312 = vmatprep.mubr.bf16.mxu0 0
  %313 = vmatmul.mubr.bf16.gmra.mrb[0].mxu0 %v237
  %v314 = vpop.f32.mrb[0].mxu0
  %v315 = vadd.f32 0.0, %v314
  %v316 = vpop.f32.mrb[0].mxu0
  %v317 = vpop.f32.mrb[0].mxu0
  %v318 = vadd.f32 0.0, %v317
  %v319 = vpop.f32.mrb[0].mxu0
  %320 = vmatprep.mubr.bf16.mxu0 0
  %321 = vmatmul.mubr.bf16.gmra.mrb[0].mxu0 %v240
  %v322 = vpop.f32.mrb[0].mxu0
  %v323 = vadd.f32 0.0, %v322
  %v324 = vpop.f32.mrb[0].mxu0
  %v325 = vpop.f32.mrb[0].mxu0
  %v326 = vadd.f32 0.0, %v325
  %v327 = vpop.f32.mrb[0].mxu0
  %328 = vmatprep.mubr.bf16.mxu0 0
  %329 = vmatmul.mubr.bf16.gmra.mrb[0].mxu0 %v243
  %v330 = vpop.f32.mrb[0].mxu0
  %v331 = vadd.f32 0.0, %v330
  %v332 = vpop.f32.mrb[0].mxu0
  %v333 = vpop.f32.mrb[0].mxu0
  %v334 = vadd.f32 0.0, %v333
  %v335 = vpop.f32.mrb[0].mxu0
  %336 = vmatprep.mubr.bf16.mxu0 0
  %337 = vmatmul.mubr.bf16.gmra.mrb[0].mxu0 %v246
  %v338 = vpop.f32.mrb[0].mxu0
  %v339 = vadd.f32 0.0, %v338
  %v340 = vpop.f32.mrb[0].mxu0
  %v341 = vpop.f32.mrb[0].mxu0
  %v342 = vadd.f32 0.0, %v341
  %v343 = vpop.f32.mrb[0].mxu0
  %344 = vdwg.mxu0
  %v345 = vadd.f32 %v283, %v122
  %v346 = vadd.f32 %v286, %v125
  %v347 = vadd.f32 %v291, %v130
  %v348 = vadd.f32 %v294, %v133
  %v349 = vadd.f32 %v299, %v122
  %v350 = vadd.f32 %v302, %v125
  %v351 = vadd.f32 %v307, %v130
  %v352 = vadd.f32 %v310, %v133
  %v353 = vadd.f32 %v315, %v122
  %v354 = vadd.f32 %v318, %v125
  %v355 = vadd.f32 %v323, %v130
  %v356 = vadd.f32 %v326, %v133
  %v357 = vadd.f32 %v331, %v122
  %v358 = vadd.f32 %v334, %v125
  %v359 = vadd.f32 %v339, %v130
  %v360 = vadd.f32 %v342, %v133
  %vm361 = vcmp.ge.f32.partialorder %v345, 0.0
  %vm362 = vcmp.ge.f32.partialorder %v346, 0.0
  %vm363 = vcmp.ge.f32.partialorder %v347, 0.0
  %vm364 = vcmp.ge.f32.partialorder %v348, 0.0
  %vm365 = vcmp.ge.f32.partialorder %v349, 0.0
  %vm366 = vcmp.ge.f32.partialorder %v350, 0.0
  %vm367 = vcmp.ge.f32.partialorder %v351, 0.0
  %vm368 = vcmp.ge.f32.partialorder %v352, 0.0
  %vm369 = vcmp.ge.f32.partialorder %v353, 0.0
  %vm370 = vcmp.ge.f32.partialorder %v354, 0.0
  %vm371 = vcmp.ge.f32.partialorder %v355, 0.0
  %vm372 = vcmp.ge.f32.partialorder %v356, 0.0
  %vm373 = vcmp.ge.f32.partialorder %v357, 0.0
  %vm374 = vcmp.ge.f32.partialorder %v358, 0.0
  %vm375 = vcmp.ge.f32.partialorder %v359, 0.0
  %vm376 = vcmp.ge.f32.partialorder %v360, 0.0
  %v377 = vmul.f32 %v345, 0.2
  %v378 = vmul.f32 %v346, 0.2
  %v379 = vmul.f32 %v347, 0.2
  %v380 = vmul.f32 %v348, 0.2
  %v381 = vmul.f32 %v349, 0.2
  %v382 = vmul.f32 %v350, 0.2
  %v383 = vmul.f32 %v351, 0.2
  %v384 = vmul.f32 %v352, 0.2
  %v385 = vmul.f32 %v353, 0.2
  %v386 = vmul.f32 %v354, 0.2
  %v387 = vmul.f32 %v355, 0.2
  %v388 = vmul.f32 %v356, 0.2
  %v389 = vmul.f32 %v357, 0.2
  %v390 = vmul.f32 %v358, 0.2
  %v391 = vmul.f32 %v359, 0.2
  %v392 = vmul.f32 %v360, 0.2
  %v393 = vsel %vm361, %v345, %v377
  %v394 = vsel %vm362, %v346, %v378
  %v395 = vsel %vm363, %v347, %v379
  %v396 = vsel %vm364, %v348, %v380
  %v397 = vsel %vm365, %v349, %v381
  %v398 = vsel %vm366, %v350, %v382
  %v399 = vsel %vm367, %v351, %v383
  %v400 = vsel %vm368, %v352, %v384
  %v401 = vsel %vm369, %v353, %v385
  %v402 = vsel %vm370, %v354, %v386
  %v403 = vsel %vm371, %v355, %v387
  %v404 = vsel %vm372, %v356, %v388
  %v405 = vsel %vm373, %v357, %v389
  %v406 = vsel %vm374, %v358, %v390
  %v407 = vsel %vm375, %v359, %v391
  %v408 = vsel %vm376, %v360, %v392
  %v409 = vpack.c.bf16 %v394, %v393
  %v410 = vpack.c.bf16 %v396, %v395
  %v411 = vpack.c.bf16 %v398, %v397
  %v412 = vpack.c.bf16 %v400, %v399
  %v413 = vpack.c.bf16 %v402, %v401
  %v414 = vpack.c.bf16 %v404, %v403
  %v415 = vpack.c.bf16 %v406, %v405
  %v416 = vpack.c.bf16 %v408, %v407
  %v417 = vld [vmem:[%s5] sm:$0xf]
  %v418 = vld [vmem:[%s5 + $0x4] sm:$0xf]
  %v419 = vld [vmem:[%s5 + $0x8] sm:$0xf]
  %v420 = vld [vmem:[%s5 + $0xc] sm:$0xf]
  %v421 = vld [vmem:[%s5 + $0x10] sm:$0xf]
  %v422 = vld [vmem:[%s5 + $0x14] sm:$0xf]
  %v423 = vld [vmem:[%s5 + $0x18] sm:$0xf]
  %v424 = vld [vmem:[%s5 + $0x1c] sm:$0xf]
  %v425 = vld [vmem:[%s6] sm:$0x1]
  %v427 = vlaneseq
  %v428 = vshrl.u32 %v427, 7
  %v429 = vsub.s32 0, %v428
  %v430 = vrot.slane %v425, %v429
  %v440 = vunpack.c.l.b16 %v417
  %v441 = vunpack.c.l.b16 %v418
  %v442 = vunpack.c.l.b16 %v419
  %v443 = vunpack.c.l.b16 %v420
  %v444 = vunpack.c.l.b16 %v421
  %v445 = vunpack.c.l.b16 %v422
  %v446 = vunpack.c.l.b16 %v423
  %v447 = vunpack.c.l.b16 %v424
  %v448 = vpack.c.b16 %v441, %v440
  %v449 = vpack.c.b16 %v443, %v442
  %v450 = vpack.c.b16 %v445, %v444
  %v451 = vpack.c.b16 %v447, %v446
  %v457 = vsel %vm80, %v409, 0
  %v460 = vsel %vm80, %v410, 0
  %v463 = vsel %vm80, %v411, 0
  %v466 = vsel %vm80, %v412, 0
  %v469 = vsel %vm80, %v413, 0
  %v472 = vsel %vm80, %v414, 0
  %v475 = vsel %vm80, %v415, 0
  %v478 = vsel %vm80, %v416, 0
  %480 = vmatprep.subr.bf16.mxu0 0
  %481 = vmatpush1.bf16.msra.mxu0 %v448
  %482 = vmatprep.subr.bf16.mxu0 0
  %483 = vmatpush1.bf16.msra.mxu0 %v449
  %484 = vmatprep.subr.bf16.mxu0 0
  %485 = vmatpush1.bf16.msra.mxu0 %v450
  %486 = vmatprep.subr.bf16.mxu0 0
  %487 = vmatpush1.bf16.msra.mxu0 %v451
  %488 = vmatprep.subr.bf16.mxu0 0
  %489 = vmatpush1.bf16.msra.mxu0 0
  %490 = vmatprep.subr.bf16.mxu0 0
  %491 = vmatpush1.bf16.msra.mxu0 0
  %492 = vmatprep.subr.bf16.mxu0 0
  %493 = vmatpush1.bf16.msra.mxu0 0
  %494 = vmatprep.subr.bf16.mxu0 0
  %495 = vmatpush1.bf16.msra.mxu0 0
  %496 = vmatprep.subr.bf16.mxu0 0
  %497 = vmatpush1.bf16.msra.mxu0 0
  %498 = vmatprep.subr.bf16.mxu0 0
  %499 = vmatpush1.bf16.msra.mxu0 0
  %500 = vmatprep.subr.bf16.mxu0 0
  %501 = vmatpush1.bf16.msra.mxu0 0
  %502 = vmatprep.subr.bf16.mxu0 0
  %503 = vmatpush1.bf16.msra.mxu0 0
  %504 = vmatprep.subr.bf16.mxu0 0
  %505 = vmatpush1.bf16.msra.mxu0 0
  %506 = vmatprep.subr.bf16.mxu0 0
  %507 = vmatpush1.bf16.msra.mxu0 0
  %508 = vmatprep.subr.bf16.mxu0 0
  %509 = vmatpush1.bf16.msra.mxu0 0
  %510 = vmatprep.subr.bf16.mxu0 0
  %511 = vmatpush1.bf16.msra.mxu0 0
  %512 = vmatprep.mubr.bf16.mxu0 0
  %513 = vmatmul.mubr.bf16.gmra.mrb[0].mxu0 %v457
  %v514 = vpop.f32.mrb[0].mxu0
  %v515 = vadd.f32 %v430, %v514
  %v516 = vpop.f32.mrb[0].mxu0
  %v517 = vpop.f32.mrb[0].mxu0
  %v518 = vadd.f32 %v430, %v517
  %v519 = vpop.f32.mrb[0].mxu0
  %520 = vmatprep.mubr.bf16.mxu0 0
  %521 = vmatmul.mubr.bf16.gmra.mrb[0].mxu0 %v460
  %v522 = vpop.f32.mrb[0].mxu0
  %v523 = vadd.f32 %v430, %v522
  %v524 = vpop.f32.mrb[0].mxu0
  %v525 = vpop.f32.mrb[0].mxu0
  %v526 = vadd.f32 %v430, %v525
  %v527 = vpop.f32.mrb[0].mxu0
  %528 = vmatprep.mubr.bf16.mxu0 0
  %529 = vmatmul.mubr.bf16.gmra.mrb[0].mxu0 %v463
  %v530 = vpop.f32.mrb[0].mxu0
  %v531 = vadd.f32 %v430, %v530
  %v532 = vpop.f32.mrb[0].mxu0
  %v533 = vpop.f32.mrb[0].mxu0
  %v534 = vadd.f32 %v430, %v533
  %v535 = vpop.f32.mrb[0].mxu0
  %536 = vmatprep.mubr.bf16.mxu0 0
  %537 = vmatmul.mubr.bf16.gmra.mrb[0].mxu0 %v466
  %v538 = vpop.f32.mrb[0].mxu0
  %v539 = vadd.f32 %v430, %v538
  %v540 = vpop.f32.mrb[0].mxu0
  %v541 = vpop.f32.mrb[0].mxu0
  %v542 = vadd.f32 %v430, %v541
  %v543 = vpop.f32.mrb[0].mxu0
  %544 = vmatprep.mubr.bf16.mxu0 0
  %545 = vmatmul.mubr.bf16.gmra.mrb[0].mxu0 %v469
  %v546 = vpop.f32.mrb[0].mxu0
  %v547 = vadd.f32 %v430, %v546
  %v548 = vpop.f32.mrb[0].mxu0
  %v549 = vpop.f32.mrb[0].mxu0
  %v550 = vadd.f32 %v430, %v549
  %v551 = vpop.f32.mrb[0].mxu0
  %552 = vmatprep.mubr.bf16.mxu0 0
  %553 = vmatmul.mubr.bf16.gmra.mrb[0].mxu0 %v472
  %v554 = vpop.f32.mrb[0].mxu0
  %v555 = vadd.f32 %v430, %v554
  %v556 = vpop.f32.mrb[0].mxu0
  %v557 = vpop.f32.mrb[0].mxu0
  %v558 = vadd.f32 %v430, %v557
  %v559 = vpop.f32.mrb[0].mxu0
  %560 = vmatprep.mubr.bf16.mxu0 0
  %561 = vmatmul.mubr.bf16.gmra.mrb[0].mxu0 %v475
  %v562 = vpop.f32.mrb[0].mxu0
  %v563 = vadd.f32 %v430, %v562
  %v564 = vpop.f32.mrb[0].mxu0
  %v565 = vpop.f32.mrb[0].mxu0
  %v566 = vadd.f32 %v430, %v565
  %v567 = vpop.f32.mrb[0].mxu0
  %568 = vmatprep.mubr.bf16.mxu0 0
  %569 = vmatmul.mubr.bf16.gmra.mrb[0].mxu0 %v478
  %v570 = vpop.f32.mrb[0].mxu0
  %v571 = vadd.f32 %v430, %v570
  %v572 = vpop.f32.mrb[0].mxu0
  %v573 = vpop.f32.mrb[0].mxu0
  %v574 = vadd.f32 %v430, %v573
  %v575 = vpop.f32.mrb[0].mxu0
  %576 = vdwg.mxu0
  %vm577 = vcmp.ge.f32.partialorder %v515, 0.0
  %vm578 = vcmp.ge.f32.partialorder %v518, 0.0
  %vm579 = vcmp.ge.f32.partialorder %v523, 0.0
  %vm580 = vcmp.ge.f32.partialorder %v526, 0.0
  %vm581 = vcmp.ge.f32.partialorder %v531, 0.0
  %vm582 = vcmp.ge.f32.partialorder %v534, 0.0
  %vm583 = vcmp.ge.f32.partialorder %v539, 0.0
  %vm584 = vcmp.ge.f32.partialorder %v542, 0.0
  %vm585 = vcmp.ge.f32.partialorder %v547, 0.0
  %vm586 = vcmp.ge.f32.partialorder %v550, 0.0
  %vm587 = vcmp.ge.f32.partialorder %v555, 0.0
  %vm588 = vcmp.ge.f32.partialorder %v558, 0.0
  %vm589 = vcmp.ge.f32.partialorder %v563, 0.0
  %vm590 = vcmp.ge.f32.partialorder %v566, 0.0
  %vm591 = vcmp.ge.f32.partialorder %v571, 0.0
  %vm592 = vcmp.ge.f32.partialorder %v574, 0.0
  %v593 = vmul.f32 %v515, 0.2
  %v594 = vmul.f32 %v518, 0.2
  %v595 = vmul.f32 %v523, 0.2
  %v596 = vmul.f32 %v526, 0.2
  %v597 = vmul.f32 %v531, 0.2
  %v598 = vmul.f32 %v534, 0.2
  %v599 = vmul.f32 %v539, 0.2
  %v600 = vmul.f32 %v542, 0.2
  %v601 = vmul.f32 %v547, 0.2
  %v602 = vmul.f32 %v550, 0.2
  %v603 = vmul.f32 %v555, 0.2
  %v604 = vmul.f32 %v558, 0.2
  %v605 = vmul.f32 %v563, 0.2
  %v606 = vmul.f32 %v566, 0.2
  %v607 = vmul.f32 %v571, 0.2
  %v608 = vmul.f32 %v574, 0.2
  %v609 = vsel %vm577, %v515, %v593
  %v610 = vsel %vm578, %v518, %v594
  %v611 = vsel %vm579, %v523, %v595
  %v612 = vsel %vm580, %v526, %v596
  %v613 = vsel %vm581, %v531, %v597
  %v614 = vsel %vm582, %v534, %v598
  %v615 = vsel %vm583, %v539, %v599
  %v616 = vsel %vm584, %v542, %v600
  %v617 = vsel %vm585, %v547, %v601
  %v618 = vsel %vm586, %v550, %v602
  %v619 = vsel %vm587, %v555, %v603
  %v620 = vsel %vm588, %v558, %v604
  %v621 = vsel %vm589, %v563, %v605
  %v622 = vsel %vm590, %v566, %v606
  %v623 = vsel %vm591, %v571, %v607
  %v624 = vsel %vm592, %v574, %v608
  %v625 = vsel %vm80, %v609, -inf
  %v626 = vsel %vm80, %v613, -inf
  %v627 = vmax.f32 %v625, %v626
  %v628 = vsel %vm80, %v617, -inf
  %v629 = vmax.f32 %v627, %v628
  %v630 = vsel %vm80, %v621, -inf
  %v631 = vmax.f32 %v629, %v630
  %v632 = vsel %vm80, %v610, -inf
  %v633 = vsel %vm80, %v614, -inf
  %v634 = vmax.f32 %v632, %v633
  %v635 = vsel %vm80, %v618, -inf
  %v636 = vmax.f32 %v634, %v635
  %v637 = vsel %vm80, %v622, -inf
  %v638 = vmax.f32 %v636, %v637
  %v639 = vsel %vm80, %v611, -inf
  %v640 = vsel %vm80, %v615, -inf
  %v641 = vmax.f32 %v639, %v640
  %v642 = vsel %vm80, %v619, -inf
  %v643 = vmax.f32 %v641, %v642
  %v644 = vsel %vm80, %v623, -inf
  %v645 = vmax.f32 %v643, %v644
  %v646 = vsel %vm80, %v612, -inf
  %v647 = vsel %vm80, %v616, -inf
  %v648 = vmax.f32 %v646, %v647
  %v649 = vsel %vm80, %v620, -inf
  %v650 = vmax.f32 %v648, %v649
  %v651 = vsel %vm80, %v624, -inf
  %v652 = vmax.f32 %v650, %v651
  %v653 = vpack.c.bf16 %v638, %v631
  %v654 = vpack.c.bf16 %v652, %v645
  %v657 = vunpack.c.l.b16 %v653
  %v658 = vunpack.c.h.b16 %v653
  %v659 = vunpack.c.l.b16 %v654
  %v660 = vunpack.c.h.b16 %v654
  %v661 = vpack.c.b16 %v657, %v657
  %v662 = vpack.c.b16 %v658, %v658
  %v663 = vpack.c.b16 %v659, %v659
  %v664 = vpack.c.b16 %v660, %v660
  %vm669 = vcmask 519168
  %670 = vst.msk [vmem:[%s7] sm:$0xf] %vm669, %v661
  %671 = vst.msk [vmem:[%s7 + $0x4] sm:$0xf] %vm669, %v662
  %672 = vst.msk [vmem:[%s7 + $0x8] sm:$0xf] %vm669, %v663
  %673 = vst.msk [vmem:[%s7 + $0xc] sm:$0xf] %vm669, %v664
  // Predicated region
  $region30: #{dgcnn_pseg_forward.12} parent=0 // pred_check
    _
  $region31: #{dgcnn_pseg_forward.12} parent=0 // pred_check_branch
    %675 = sbr.rel (0) target = $region33
  $region32: #{dgcnn_pseg_forward.12} parent=0 // pred_region
    _
  $region33: #{dgcnn_pseg_forward.12} parent=0 // pred_fallthru
    _
  // Predicated region
  $region34: #{dgcnn_pseg_forward.12} parent=0 // pred_check
    _
  $region35: #{dgcnn_pseg_forward.12} parent=0 // pred_check_branch
    %677 = sbr.rel (0) target = $region37
  $region36: #{dgcnn_pseg_forward.12} parent=0 // pred_region
    _
  $region37: #{dgcnn_pseg_forward.12} parent=0 // pred_fallthru
    _

// kernel: dgcnn_pseg_forward.11
$region0: #{dgcnn_pseg_forward.11}
  #allocation0 [shape = 'u32[]', space=smem, size = 0x4, offset = 0x4, fixed_abs, tag = 'smem constant byte address 0x4 - core index']
  #allocation1 [shape = 'u32[144,128]{1,0:T(1,128)}', space=vmem, size = 0x12000, scoped, tag = 'internal scratch']
  %s0 = inlined_call_operand.vmem [shape: f32[4,32,3], index: 0, kind: input, shape index: {}]
  %s1 = inlined_call_operand.vmem [shape: f32[32,3], index: 1, kind: input, shape index: {}]
  %s2 = inlined_call_operand.vmem [shape: f32[3,64], index: 2, kind: input, shape index: {}]
  %s3 = inlined_call_operand.vmem [shape: f32[3,64], index: 3, kind: input, shape index: {}]
  %s4 = inlined_call_operand.vmem [shape: f32[1,64], index: 4, kind: input, shape index: {}]
  %s5 = inlined_call_operand.vmem [shape: bf16[64,64], index: 5, kind: input, shape index: {}]
  %s6 = inlined_call_operand.vmem [shape: f32[1,64], index: 6, kind: input, shape index: {}]
  %s7 = inlined_call_operand.vmem [shape: bf16[32,64], index: 7, kind: output, shape index: {}]
  %s8 = sld [smem:[#allocation0]]
  $region38: #{dgcnn_pseg_forward.11} parent=0
    _
  %s10 = ssub.s32 1, %s8
  %s11 = scalar_select 0, %s10, %s8
  // Predicated region
  $region2: #{dgcnn_pseg_forward.11} parent=0 // pred_check
    _
  $region3: #{dgcnn_pseg_forward.11} parent=0 // pred_check_branch
    %13 = sbr.rel (0) target = $region5
  $region4: #{dgcnn_pseg_forward.11} parent=0 // pred_region
    _
  $region5: #{dgcnn_pseg_forward.11} parent=0 // pred_fallthru
    _
  // Predicated region
  $region6: #{dgcnn_pseg_forward.11} parent=0 // pred_check
    _
  $region7: #{dgcnn_pseg_forward.11} parent=0 // pred_check_branch
    %15 = sbr.rel (0) target = $region9
  $region8: #{dgcnn_pseg_forward.11} parent=0 // pred_region
    _
  $region9: #{dgcnn_pseg_forward.11} parent=0 // pred_fallthru
    _
  // Predicated region
  $region10: #{dgcnn_pseg_forward.11} parent=0 // pred_check
    _
  $region11: #{dgcnn_pseg_forward.11} parent=0 // pred_check_branch
    %17 = sbr.rel (0) target = $region13
  $region12: #{dgcnn_pseg_forward.11} parent=0 // pred_region
    _
  $region13: #{dgcnn_pseg_forward.11} parent=0 // pred_fallthru
    _
  // Predicated region
  $region14: #{dgcnn_pseg_forward.11} parent=0 // pred_check
    _
  $region15: #{dgcnn_pseg_forward.11} parent=0 // pred_check_branch
    %19 = sbr.rel (0) target = $region17
  $region16: #{dgcnn_pseg_forward.11} parent=0 // pred_region
    _
  $region17: #{dgcnn_pseg_forward.11} parent=0 // pred_fallthru
    _
  // Predicated region
  $region18: #{dgcnn_pseg_forward.11} parent=0 // pred_check
    _
  $region19: #{dgcnn_pseg_forward.11} parent=0 // pred_check_branch
    %21 = sbr.rel (0) target = $region21
  $region20: #{dgcnn_pseg_forward.11} parent=0 // pred_region
    _
  $region21: #{dgcnn_pseg_forward.11} parent=0 // pred_fallthru
    _
  // Predicated region
  $region22: #{dgcnn_pseg_forward.11} parent=0 // pred_check
    _
  $region23: #{dgcnn_pseg_forward.11} parent=0 // pred_check_branch
    %23 = sbr.rel (0) target = $region25
  $region24: #{dgcnn_pseg_forward.11} parent=0 // pred_region
    _
  $region25: #{dgcnn_pseg_forward.11} parent=0 // pred_fallthru
    _
  // Predicated region
  $region26: #{dgcnn_pseg_forward.11} parent=0 // pred_check
    _
  $region27: #{dgcnn_pseg_forward.11} parent=0 // pred_check_branch
    %25 = sbr.rel (0) target = $region29
  $region28: #{dgcnn_pseg_forward.11} parent=0 // pred_region
    _
  $region29: #{dgcnn_pseg_forward.11} parent=0 // pred_fallthru
    _
  %v27 = vld [vmem:[%s1] sm:$0xff]
  %v28 = vld [vmem:[%s1 + $0x8] sm:$0xff]
  %v29 = vld [vmem:[%s1 + $0x10] sm:$0xff]
  %v30 = vld [vmem:[%s1 + $0x18] sm:$0xff]
  %v31 = vld [vmem:[%s3] sm:$0x7]
  %v32 = vld [vmem:[%s4] sm:$0x1]
  %v34 = vlaneseq
  %v35 = vshrl.u32 %v34, 7
  %v36 = vsub.s32 0, %v35
  %v37 = vrot.slane %v32, %v36
  %vm39 = vcmask 23552
  %v41 = vsel %vm39, %v27, 0
  %v44 = vsel %vm39, %v28, 0
  %v47 = vsel %vm39, %v29, 0
  %v50 = vsel %vm39, %v30, 0
  %vm52 = vcmask 1042432
  %v54 = vsel %vm52, %v31, 0
  %56 = vmatprep.subr.mxu0 0.0
  %57 = vmatpush1.msra.mxu0 %v54
  %58 = vmatprep.subr.mxu0 0.0
  %59 = vmatpush1.msra.mxu0 0.0
  %60 = vmatprep.subr.mxu0 0.0
  %61 = vmatpush1.msra.mxu0 0.0
  %62 = vmatprep.subr.mxu0 0.0
  %63 = vmatpush1.msra.mxu0 0.0
  %64 = vmatprep.subr.mxu0 0.0
  %65 = vmatpush1.msra.mxu0 0.0
  %66 = vmatprep.subr.mxu0 0.0
  %67 = vmatpush1.msra.mxu0 0.0
  %68 = vmatprep.subr.mxu0 0.0
  %69 = vmatpush1.msra.mxu0 0.0
  %70 = vmatprep.subr.mxu0 0.0
  %71 = vmatpush1.msra.mxu0 0.0
  %72 = vmatprep.subr.mxu0 0.0
  %73 = vmatpush1.msra.mxu0 0.0
  %74 = vmatprep.subr.mxu0 0.0
  %75 = vmatpush1.msra.mxu0 0.0
  %76 = vmatprep.subr.mxu0 0.0
  %77 = vmatpush1.msra.mxu0 0.0
  %78 = vmatprep.subr.mxu0 0.0
  %79 = vmatpush1.msra.mxu0 0.0
  %80 = vmatprep.subr.mxu0 0.0
  %81 = vmatpush1.msra.mxu0 0.0
  %82 = vmatprep.subr.mxu0 0.0
  %83 = vmatpush1.msra.mxu0 0.0
  %84 = vmatprep.subr.mxu0 0.0
  %85 = vmatpush1.msra.mxu0 0.0
  %86 = vmatprep.subr.mxu0 0.0
  %87 = vmatpush1.msra.mxu0 0.0
  %88 = vmatprep.subr.mxu0 0.0
  %89 = vmatpush1.msra.mxu0 0.0
  %90 = vmatprep.subr.mxu0 0.0
  %91 = vmatpush1.msra.mxu0 0.0
  %92 = vmatprep.subr.mxu0 0.0
  %93 = vmatpush1.msra.mxu0 0.0
  %94 = vmatprep.subr.mxu0 0.0
  %95 = vmatpush1.msra.mxu0 0.0
  %96 = vmatprep.subr.mxu0 0.0
  %97 = vmatpush1.msra.mxu0 0.0
  %98 = vmatprep.subr.mxu0 0.0
  %99 = vmatpush1.msra.mxu0 0.0
  %100 = vmatprep.subr.mxu0 0.0
  %101 = vmatpush1.msra.mxu0 0.0
  %102 = vmatprep.subr.mxu0 0.0
  %103 = vmatpush1.msra.mxu0 0.0
  %104 = vmatprep.subr.mxu0 0.0
  %105 = vmatpush1.msra.mxu0 0.0
  %106 = vmatprep.subr.mxu0 0.0
  %107 = vmatpush1.msra.mxu0 0.0
  %108 = vmatprep.subr.mxu0 0.0
  %109 = vmatpush1.msra.mxu0 0.0
  %110 = vmatprep.subr.mxu0 0.0
  %111 = vmatpush1.msra.mxu0 0.0
  %112 = vmatprep.subr.mxu0 0.0
  %113 = vmatpush1.msra.mxu0 0.0
  %114 = vmatprep.subr.mxu0 0.0
  %115 = vmatpush1.msra.mxu0 0.0
  %116 = vmatprep.subr.mxu0 0.0
  %117 = vmatpush1.msra.mxu0 0.0
  %118 = vmatprep.subr.mxu0 0.0
  %119 = vmatpush1.msra.mxu0 0.0
  %120 = vmatprep.mubr.f32.mxu0 0.0
  %121 = vmatmul.mubr.f32.gmra.mrb[0].mxu0 %v41
  %v122 = vpop.f32.mrb[0].mxu0
  %v123 = vadd.f32 %v37, %v122
  %v124 = vpop.f32.mrb[0].mxu0
  %125 = vmatprep.mubr.f32.mxu0 0.0
  %126 = vmatmul.mubr.f32.gmra.mrb[0].mxu0 %v44
  %v127 = vpop.f32.mrb[0].mxu0
  %v128 = vadd.f32 %v37, %v127
  %v129 = vpop.f32.mrb[0].mxu0
  %130 = vmatprep.mubr.f32.mxu0 0.0
  %131 = vmatmul.mubr.f32.gmra.mrb[0].mxu0 %v47
  %v132 = vpop.f32.mrb[0].mxu0
  %v133 = vadd.f32 %v37, %v132
  %v134 = vpop.f32.mrb[0].mxu0
  %135 = vmatprep.mubr.f32.mxu0 0.0
  %136 = vmatmul.mubr.f32.gmra.mrb[0].mxu0 %v50
  %v137 = vpop.f32.mrb[0].mxu0
  %v138 = vadd.f32 %v37, %v137
  %v139 = vpop.f32.mrb[0].mxu0
  %140 = vdwg.mxu0
  %v141 = vld [vmem:[%s0] sm:$0xff]
  %v142 = vld [vmem:[%s0 + $0x8] sm:$0xff]
  %v143 = vld [vmem:[%s0 + $0x10] sm:$0xff]
  %v144 = vld [vmem:[%s0 + $0x18] sm:$0xff]
  %v145 = vld [vmem:[%s0 + $0x20] sm:$0xff]
  %v146 = vld [vmem:[%s0 + $0x28] sm:$0xff]
  %v147 = vld [vmem:[%s0 + $0x30] sm:$0xff]
  %v148 = vld [vmem:[%s0 + $0x38] sm:$0xff]
  %v149 = vld [vmem:[%s0 + $0x40] sm:$0xff]
  %v150 = vld [vmem:[%s0 + $0x48] sm:$0xff]
  %v151 = vld [vmem:[%s0 + $0x50] sm:$0xff]
  %v152 = vld [vmem:[%s0 + $0x58] sm:$0xff]
  %v153 = vld [vmem:[%s0 + $0x60] sm:$0xff]
  %v154 = vld [vmem:[%s0 + $0x68] sm:$0xff]
  %v155 = vld [vmem:[%s0 + $0x70] sm:$0xff]
  %v156 = vld [vmem:[%s0 + $0x78] sm:$0xff]
  %v157 = vld [vmem:[%s2] sm:$0x7]
  %v159 = vsel %vm39, %v141, 0
  %v162 = vsel %vm39, %v142, 0
  %v165 = vsel %vm39, %v143, 0
  %v168 = vsel %vm39, %v144, 0
  %v171 = vsel %vm39, %v145, 0
  %v174 = vsel %vm39, %v146, 0
  %v177 = vsel %vm39, %v147, 0
  %v180 = vsel %vm39, %v148, 0
  %v183 = vsel %vm39, %v149, 0
  %v186 = vsel %vm39, %v150, 0
  %v189 = vsel %vm39, %v151, 0
  %v192 = vsel %vm39, %v152, 0
  %v195 = vsel %vm39, %v153, 0
  %v198 = vsel %vm39, %v154, 0
  %v201 = vsel %vm39, %v155, 0
  %v204 = vsel %vm39, %v156, 0
  %v207 = vsel %vm52, %v157, 0
  %209 = vmatprep.subr.mxu0 0.0
  %210 = vmatpush1.msra.mxu0 %v207
  %211 = vmatprep.subr.mxu0 0.0
  %212 = vmatpush1.msra.mxu0 0.0
  %213 = vmatprep.subr.mxu0 0.0
  %214 = vmatpush1.msra.mxu0 0.0
  %215 = vmatprep.subr.mxu0 0.0
  %216 = vmatpush1.msra.mxu0 0.0
  %217 = vmatprep.subr.mxu0 0.0
  %218 = vmatpush1.msra.mxu0 0.0
  %219 = vmatprep.subr.mxu0 0.0
  %220 = vmatpush1.msra.mxu0 0.0
  %221 = vmatprep.subr.mxu0 0.0
  %222 = vmatpush1.msra.mxu0 0.0
  %223 = vmatprep.subr.mxu0 0.0
  %224 = vmatpush1.msra.mxu0 0.0
  %225 = vmatprep.subr.mxu0 0.0
  %226 = vmatpush1.msra.mxu0 0.0
  %227 = vmatprep.subr.mxu0 0.0
  %228 = vmatpush1.msra.mxu0 0.0
  %229 = vmatprep.subr.mxu0 0.0
  %230 = vmatpush1.msra.mxu0 0.0
  %231 = vmatprep.subr.mxu0 0.0
  %232 = vmatpush1.msra.mxu0 0.0
  %233 = vmatprep.subr.mxu0 0.0
  %234 = vmatpush1.msra.mxu0 0.0
  %235 = vmatprep.subr.mxu0 0.0
  %236 = vmatpush1.msra.mxu0 0.0
  %237 = vmatprep.subr.mxu0 0.0
  %238 = vmatpush1.msra.mxu0 0.0
  %239 = vmatprep.subr.mxu0 0.0
  %240 = vmatpush1.msra.mxu0 0.0
  %241 = vmatprep.subr.mxu0 0.0
  %242 = vmatpush1.msra.mxu0 0.0
  %243 = vmatprep.subr.mxu0 0.0
  %244 = vmatpush1.msra.mxu0 0.0
  %245 = vmatprep.subr.mxu0 0.0
  %246 = vmatpush1.msra.mxu0 0.0
  %247 = vmatprep.subr.mxu0 0.0
  %248 = vmatpush1.msra.mxu0 0.0
  %249 = vmatprep.subr.mxu0 0.0
  %250 = vmatpush1.msra.mxu0 0.0
  %251 = vmatprep.subr.mxu0 0.0
  %252 = vmatpush1.msra.mxu0 0.0
  %253 = vmatprep.subr.mxu0 0.0
  %254 = vmatpush1.msra.mxu0 0.0
  %255 = vmatprep.subr.mxu0 0.0
  %256 = vmatpush1.msra.mxu0 0.0
  %257 = vmatprep.subr.mxu0 0.0
  %258 = vmatpush1.msra.mxu0 0.0
  %259 = vmatprep.subr.mxu0 0.0
  %260 = vmatpush1.msra.mxu0 0.0
  %261 = vmatprep.subr.mxu0 0.0
  %262 = vmatpush1.msra.mxu0 0.0
  %263 = vmatprep.subr.mxu0 0.0
  %264 = vmatpush1.msra.mxu0 0.0
  %265 = vmatprep.subr.mxu0 0.0
  %266 = vmatpush1.msra.mxu0 0.0
  %267 = vmatprep.subr.mxu0 0.0
  %268 = vmatpush1.msra.mxu0 0.0
  %269 = vmatprep.subr.mxu0 0.0
  %270 = vmatpush1.msra.mxu0 0.0
  %271 = vmatprep.subr.mxu0 0.0
  %272 = vmatpush1.msra.mxu0 0.0
  %273 = vmatprep.mubr.f32.mxu0 0.0
  %274 = vmatmul.mubr.f32.gmra.mrb[0].mxu0 %v159
  %v275 = vpop.f32.mrb[0].mxu0
  %v276 = vadd.f32 0.0, %v275
  %v277 = vpop.f32.mrb[0].mxu0
  %278 = vmatprep.mubr.f32.mxu0 0.0
  %279 = vmatmul.mubr.f32.gmra.mrb[0].mxu0 %v162
  %v280 = vpop.f32.mrb[0].mxu0
  %v281 = vadd.f32 0.0, %v280
  %v282 = vpop.f32.mrb[0].mxu0
  %283 = vmatprep.mubr.f32.mxu0 0.0
  %284 = vmatmul.mubr.f32.gmra.mrb[0].mxu0 %v165
  %v285 = vpop.f32.mrb[0].mxu0
  %v286 = vadd.f32 0.0, %v285
  %v287 = vpop.f32.mrb[0].mxu0
  %288 = vmatprep.mubr.f32.mxu0 0.0
  %289 = vmatmul.mubr.f32.gmra.mrb[0].mxu0 %v168
  %v290 = vpop.f32.mrb[0].mxu0
  %v291 = vadd.f32 0.0, %v290
  %v292 = vpop.f32.mrb[0].mxu0
  %293 = vmatprep.mubr.f32.mxu0 0.0
  %294 = vmatmul.mubr.f32.gmra.mrb[0].mxu0 %v171
  %v295 = vpop.f32.mrb[0].mxu0
  %v296 = vadd.f32 0.0, %v295
  %v297 = vpop.f32.mrb[0].mxu0
  %298 = vmatprep.mubr.f32.mxu0 0.0
  %299 = vmatmul.mubr.f32.gmra.mrb[0].mxu0 %v174
  %v300 = vpop.f32.mrb[0].mxu0
  %v301 = vadd.f32 0.0, %v300
  %v302 = vpop.f32.mrb[0].mxu0
  %303 = vmatprep.mubr.f32.mxu0 0.0
  %304 = vmatmul.mubr.f32.gmra.mrb[0].mxu0 %v177
  %v305 = vpop.f32.mrb[0].mxu0
  %v306 = vadd.f32 0.0, %v305
  %v307 = vpop.f32.mrb[0].mxu0
  %308 = vmatprep.mubr.f32.mxu0 0.0
  %309 = vmatmul.mubr.f32.gmra.mrb[0].mxu0 %v180
  %v310 = vpop.f32.mrb[0].mxu0
  %v311 = vadd.f32 0.0, %v310
  %v312 = vpop.f32.mrb[0].mxu0
  %313 = vmatprep.mubr.f32.mxu0 0.0
  %314 = vmatmul.mubr.f32.gmra.mrb[0].mxu0 %v183
  %v315 = vpop.f32.mrb[0].mxu0
  %v316 = vadd.f32 0.0, %v315
  %v317 = vpop.f32.mrb[0].mxu0
  %318 = vmatprep.mubr.f32.mxu0 0.0
  %319 = vmatmul.mubr.f32.gmra.mrb[0].mxu0 %v186
  %v320 = vpop.f32.mrb[0].mxu0
  %v321 = vadd.f32 0.0, %v320
  %v322 = vpop.f32.mrb[0].mxu0
  %323 = vmatprep.mubr.f32.mxu0 0.0
  %324 = vmatmul.mubr.f32.gmra.mrb[0].mxu0 %v189
  %v325 = vpop.f32.mrb[0].mxu0
  %v326 = vadd.f32 0.0, %v325
  %v327 = vpop.f32.mrb[0].mxu0
  %328 = vmatprep.mubr.f32.mxu0 0.0
  %329 = vmatmul.mubr.f32.gmra.mrb[0].mxu0 %v192
  %v330 = vpop.f32.mrb[0].mxu0
  %v331 = vadd.f32 0.0, %v330
  %v332 = vpop.f32.mrb[0].mxu0
  %333 = vmatprep.mubr.f32.mxu0 0.0
  %334 = vmatmul.mubr.f32.gmra.mrb[0].mxu0 %v195
  %v335 = vpop.f32.mrb[0].mxu0
  %v336 = vadd.f32 0.0, %v335
  %v337 = vpop.f32.mrb[0].mxu0
  %338 = vmatprep.mubr.f32.mxu0 0.0
  %339 = vmatmul.mubr.f32.gmra.mrb[0].mxu0 %v198
  %v340 = vpop.f32.mrb[0].mxu0
  %v341 = vadd.f32 0.0, %v340
  %v342 = vpop.f32.mrb[0].mxu0
  %343 = vmatprep.mubr.f32.mxu0 0.0
  %344 = vmatmul.mubr.f32.gmra.mrb[0].mxu0 %v201
  %v345 = vpop.f32.mrb[0].mxu0
  %v346 = vadd.f32 0.0, %v345
  %v347 = vpop.f32.mrb[0].mxu0
  %348 = vmatprep.mubr.f32.mxu0 0.0
  %349 = vmatmul.mubr.f32.gmra.mrb[0].mxu0 %v204
  %v350 = vpop.f32.mrb[0].mxu0
  %v351 = vadd.f32 0.0, %v350
  %v352 = vpop.f32.mrb[0].mxu0
  %353 = vdwg.mxu0
  %v354 = vadd.f32 %v276, %v123
  %v355 = vadd.f32 %v281, %v128
  %v356 = vadd.f32 %v286, %v133
  %v357 = vadd.f32 %v291, %v138
  %v358 = vadd.f32 %v296, %v123
  %v359 = vadd.f32 %v301, %v128
  %v360 = vadd.f32 %v306, %v133
  %v361 = vadd.f32 %v311, %v138
  %v362 = vadd.f32 %v316, %v123
  %v363 = vadd.f32 %v321, %v128
  %v364 = vadd.f32 %v326, %v133
  %v365 = vadd.f32 %v331, %v138
  %v366 = vadd.f32 %v336, %v123
  %v367 = vadd.f32 %v341, %v128
  %v368 = vadd.f32 %v346, %v133
  %v369 = vadd.f32 %v351, %v138
  %vm370 = vcmp.ge.f32.partialorder %v354, 0.0
  %vm371 = vcmp.ge.f32.partialorder %v355, 0.0
  %vm372 = vcmp.ge.f32.partialorder %v356, 0.0
  %vm373 = vcmp.ge.f32.partialorder %v357, 0.0
  %vm374 = vcmp.ge.f32.partialorder %v358, 0.0
  %vm375 = vcmp.ge.f32.partialorder %v359, 0.0
  %vm376 = vcmp.ge.f32.partialorder %v360, 0.0
  %vm377 = vcmp.ge.f32.partialorder %v361, 0.0
  %vm378 = vcmp.ge.f32.partialorder %v362, 0.0
  %vm379 = vcmp.ge.f32.partialorder %v363, 0.0
  %vm380 = vcmp.ge.f32.partialorder %v364, 0.0
  %vm381 = vcmp.ge.f32.partialorder %v365, 0.0
  %vm382 = vcmp.ge.f32.partialorder %v366, 0.0
  %vm383 = vcmp.ge.f32.partialorder %v367, 0.0
  %vm384 = vcmp.ge.f32.partialorder %v368, 0.0
  %vm385 = vcmp.ge.f32.partialorder %v369, 0.0
  %v386 = vmul.f32 %v354, 0.2
  %v387 = vmul.f32 %v355, 0.2
  %v388 = vmul.f32 %v356, 0.2
  %v389 = vmul.f32 %v357, 0.2
  %v390 = vmul.f32 %v358, 0.2
  %v391 = vmul.f32 %v359, 0.2
  %v392 = vmul.f32 %v360, 0.2
  %v393 = vmul.f32 %v361, 0.2
  %v394 = vmul.f32 %v362, 0.2
  %v395 = vmul.f32 %v363, 0.2
  %v396 = vmul.f32 %v364, 0.2
  %v397 = vmul.f32 %v365, 0.2
  %v398 = vmul.f32 %v366, 0.2
  %v399 = vmul.f32 %v367, 0.2
  %v400 = vmul.f32 %v368, 0.2
  %v401 = vmul.f32 %v369, 0.2
  %v402 = vsel %vm370, %v354, %v386
  %v403 = vsel %vm371, %v355, %v387
  %v404 = vsel %vm372, %v356, %v388
  %v405 = vsel %vm373, %v357, %v389
  %v406 = vsel %vm374, %v358, %v390
  %v407 = vsel %vm375, %v359, %v391
  %v408 = vsel %vm376, %v360, %v392
  %v409 = vsel %vm377, %v361, %v393
  %v410 = vsel %vm378, %v362, %v394
  %v411 = vsel %vm379, %v363, %v395
  %v412 = vsel %vm380, %v364, %v396
  %v413 = vsel %vm381, %v365, %v397
  %v414 = vsel %vm382, %v366, %v398
  %v415 = vsel %vm383, %v367, %v399
  %v416 = vsel %vm384, %v368, %v400
  %v417 = vsel %vm385, %v369, %v401
  %v418 = vpack.c.bf16 %v403, %v402
  %v419 = vpack.c.bf16 %v405, %v404
  %v420 = vpack.c.bf16 %v407, %v406
  %v421 = vpack.c.bf16 %v409, %v408
  %v422 = vpack.c.bf16 %v411, %v410
  %v423 = vpack.c.bf16 %v413, %v412
  %v424 = vpack.c.bf16 %v415, %v414
  %v425 = vpack.c.bf16 %v417, %v416
  %v426 = vld [vmem:[%s5] sm:$0xf]
  %v427 = vld [vmem:[%s5 + $0x4] sm:$0xf]
  %v428 = vld [vmem:[%s5 + $0x8] sm:$0xf]
  %v429 = vld [vmem:[%s5 + $0xc] sm:$0xf]
  %v430 = vld [vmem:[%s5 + $0x10] sm:$0xf]
  %v431 = vld [vmem:[%s5 + $0x14] sm:$0xf]
  %v432 = vld [vmem:[%s5 + $0x18] sm:$0xf]
  %v433 = vld [vmem:[%s5 + $0x1c] sm:$0xf]
  %v434 = vld [vmem:[%s6] sm:$0x1]
  %v436 = vlaneseq
  %v437 = vshrl.u32 %v436, 7
  %v438 = vsub.s32 0, %v437
  %v439 = vrot.slane %v434, %v438
  %v449 = vunpack.c.l.b16 %v426
  %v450 = vunpack.c.l.b16 %v427
  %v451 = vunpack.c.l.b16 %v428
  %v452 = vunpack.c.l.b16 %v429
  %v453 = vunpack.c.l.b16 %v430
  %v454 = vunpack.c.l.b16 %v431
  %v455 = vunpack.c.l.b16 %v432
  %v456 = vunpack.c.l.b16 %v433
  %v457 = vpack.c.b16 %v450, %v449
  %v458 = vpack.c.b16 %v452, %v451
  %v459 = vpack.c.b16 %v454, %v453
  %v460 = vpack.c.b16 %v456, %v455
  %vm465 = vcmask 523264
  %v467 = vsel %vm465, %v418, 0
  %v470 = vsel %vm465, %v419, 0
  %v473 = vsel %vm465, %v420, 0
  %v476 = vsel %vm465, %v421, 0
  %v479 = vsel %vm465, %v422, 0
  %v482 = vsel %vm465, %v423, 0
  %v485 = vsel %vm465, %v424, 0
  %v488 = vsel %vm465, %v425, 0
  %490 = vmatprep.subr.bf16.mxu0 0
  %491 = vmatpush1.bf16.msra.mxu0 %v457
  %492 = vmatprep.subr.bf16.mxu0 0
  %493 = vmatpush1.bf16.msra.mxu0 %v458
  %494 = vmatprep.subr.bf16.mxu0 0
  %495 = vmatpush1.bf16.msra.mxu0 %v459
  %496 = vmatprep.subr.bf16.mxu0 0
  %497 = vmatpush1.bf16.msra.mxu0 %v460
  %498 = vmatprep.subr.bf16.mxu0 0
  %499 = vmatpush1.bf16.msra.mxu0 0
  %500 = vmatprep.subr.bf16.mxu0 0
  %501 = vmatpush1.bf16.msra.mxu0 0
  %502 = vmatprep.subr.bf16.mxu0 0
  %503 = vmatpush1.bf16.msra.mxu0 0
  %504 = vmatprep.subr.bf16.mxu0 0
  %505 = vmatpush1.bf16.msra.mxu0 0
  %506 = vmatprep.subr.bf16.mxu0 0
  %507 = vmatpush1.bf16.msra.mxu0 0
  %508 = vmatprep.subr.bf16.mxu0 0
  %509 = vmatpush1.bf16.msra.mxu0 0
  %510 = vmatprep.subr.bf16.mxu0 0
  %511 = vmatpush1.bf16.msra.mxu0 0
  %512 = vmatprep.subr.bf16.mxu0 0
  %513 = vmatpush1.bf16.msra.mxu0 0
  %514 = vmatprep.subr.bf16.mxu0 0
  %515 = vmatpush1.bf16.msra.mxu0 0
  %516 = vmatprep.subr.bf16.mxu0 0
  %517 = vmatpush1.bf16.msra.mxu0 0
  %518 = vmatprep.subr.bf16.mxu0 0
  %519 = vmatpush1.bf16.msra.mxu0 0
  %520 = vmatprep.subr.bf16.mxu0 0
  %521 = vmatpush1.bf16.msra.mxu0 0
  %522 = vmatprep.mubr.bf16.mxu0 0
  %523 = vmatmul.mubr.bf16.gmra.mrb[0].mxu0 %v467
  %v524 = vpop.f32.mrb[0].mxu0
  %v525 = vadd.f32 %v439, %v524
  %v526 = vpop.f32.mrb[0].mxu0
  %v527 = vpop.f32.mrb[0].mxu0
  %v528 = vadd.f32 %v439, %v527
  %v529 = vpop.f32.mrb[0].mxu0
  %530 = vmatprep.mubr.bf16.mxu0 0
  %531 = vmatmul.mubr.bf16.gmra.mrb[0].mxu0 %v470
  %v532 = vpop.f32.mrb[0].mxu0
  %v533 = vadd.f32 %v439, %v532
  %v534 = vpop.f32.mrb[0].mxu0
  %v535 = vpop.f32.mrb[0].mxu0
  %v536 = vadd.f32 %v439, %v535
  %v537 = vpop.f32.mrb[0].mxu0
  %538 = vmatprep.mubr.bf16.mxu0 0
  %539 = vmatmul.mubr.bf16.gmra.mrb[0].mxu0 %v473
  %v540 = vpop.f32.mrb[0].mxu0
  %v541 = vadd.f32 %v439, %v540
  %v542 = vpop.f32.mrb[0].mxu0
  %v543 = vpop.f32.mrb[0].mxu0
  %v544 = vadd.f32 %v439, %v543
  %v545 = vpop.f32.mrb[0].mxu0
  %546 = vmatprep.mubr.bf16.mxu0 0
  %547 = vmatmul.mubr.bf16.gmra.mrb[0].mxu0 %v476
  %v548 = vpop.f32.mrb[0].mxu0
  %v549 = vadd.f32 %v439, %v548
  %v550 = vpop.f32.mrb[0].mxu0
  %v551 = vpop.f32.mrb[0].mxu0
  %v552 = vadd.f32 %v439, %v551
  %v553 = vpop.f32.mrb[0].mxu0
  %554 = vmatprep.mubr.bf16.mxu0 0
  %555 = vmatmul.mubr.bf16.gmra.mrb[0].mxu0 %v479
  %v556 = vpop.f32.mrb[0].mxu0
  %v557 = vadd.f32 %v439, %v556
  %v558 = vpop.f32.mrb[0].mxu0
  %v559 = vpop.f32.mrb[0].mxu0
  %v560 = vadd.f32 %v439, %v559
  %v561 = vpop.f32.mrb[0].mxu0
  %562 = vmatprep.mubr.bf16.mxu0 0
  %563 = vmatmul.mubr.bf16.gmra.mrb[0].mxu0 %v482
  %v564 = vpop.f32.mrb[0].mxu0
  %v565 = vadd.f32 %v439, %v564
  %v566 = vpop.f32.mrb[0].mxu0
  %v567 = vpop.f32.mrb[0].mxu0
  %v568 = vadd.f32 %v439, %v567
  %v569 = vpop.f32.mrb[0].mxu0
  %570 = vmatprep.mubr.bf16.mxu0 0
  %571 = vmatmul.mubr.bf16.gmra.mrb[0].mxu0 %v485
  %v572 = vpop.f32.mrb[0].mxu0
  %v573 = vadd.f32 %v439, %v572
  %v574 = vpop.f32.mrb[0].mxu0
  %v575 = vpop.f32.mrb[0].mxu0
  %v576 = vadd.f32 %v439, %v575
  %v577 = vpop.f32.mrb[0].mxu0
  %578 = vmatprep.mubr.bf16.mxu0 0
  %579 = vmatmul.mubr.bf16.gmra.mrb[0].mxu0 %v488
  %v580 = vpop.f32.mrb[0].mxu0
  %v581 = vadd.f32 %v439, %v580
  %v582 = vpop.f32.mrb[0].mxu0
  %v583 = vpop.f32.mrb[0].mxu0
  %v584 = vadd.f32 %v439, %v583
  %v585 = vpop.f32.mrb[0].mxu0
  %586 = vdwg.mxu0
  %vm587 = vcmp.ge.f32.partialorder %v525, 0.0
  %vm588 = vcmp.ge.f32.partialorder %v528, 0.0
  %vm589 = vcmp.ge.f32.partialorder %v533, 0.0
  %vm590 = vcmp.ge.f32.partialorder %v536, 0.0
  %vm591 = vcmp.ge.f32.partialorder %v541, 0.0
  %vm592 = vcmp.ge.f32.partialorder %v544, 0.0
  %vm593 = vcmp.ge.f32.partialorder %v549, 0.0
  %vm594 = vcmp.ge.f32.partialorder %v552, 0.0
  %vm595 = vcmp.ge.f32.partialorder %v557, 0.0
  %vm596 = vcmp.ge.f32.partialorder %v560, 0.0
  %vm597 = vcmp.ge.f32.partialorder %v565, 0.0
  %vm598 = vcmp.ge.f32.partialorder %v568, 0.0
  %vm599 = vcmp.ge.f32.partialorder %v573, 0.0
  %vm600 = vcmp.ge.f32.partialorder %v576, 0.0
  %vm601 = vcmp.ge.f32.partialorder %v581, 0.0
  %vm602 = vcmp.ge.f32.partialorder %v584, 0.0
  %v603 = vmul.f32 %v525, 0.2
  %v604 = vmul.f32 %v528, 0.2
  %v605 = vmul.f32 %v533, 0.2
  %v606 = vmul.f32 %v536, 0.2
  %v607 = vmul.f32 %v541, 0.2
  %v608 = vmul.f32 %v544, 0.2
  %v609 = vmul.f32 %v549, 0.2
  %v610 = vmul.f32 %v552, 0.2
  %v611 = vmul.f32 %v557, 0.2
  %v612 = vmul.f32 %v560, 0.2
  %v613 = vmul.f32 %v565, 0.2
  %v614 = vmul.f32 %v568, 0.2
  %v615 = vmul.f32 %v573, 0.2
  %v616 = vmul.f32 %v576, 0.2
  %v617 = vmul.f32 %v581, 0.2
  %v618 = vmul.f32 %v584, 0.2
  %v619 = vsel %vm587, %v525, %v603
  %v620 = vsel %vm588, %v528, %v604
  %v621 = vsel %vm589, %v533, %v605
  %v622 = vsel %vm590, %v536, %v606
  %v623 = vsel %vm591, %v541, %v607
  %v624 = vsel %vm592, %v544, %v608
  %v625 = vsel %vm593, %v549, %v609
  %v626 = vsel %vm594, %v552, %v610
  %v627 = vsel %vm595, %v557, %v611
  %v628 = vsel %vm596, %v560, %v612
  %v629 = vsel %vm597, %v565, %v613
  %v630 = vsel %vm598, %v568, %v614
  %v631 = vsel %vm599, %v573, %v615
  %v632 = vsel %vm600, %v576, %v616
  %v633 = vsel %vm601, %v581, %v617
  %v634 = vsel %vm602, %v584, %v618
  %v635 = vsel %vm465, %v619, -inf
  %v636 = vsel %vm465, %v623, -inf
  %v637 = vmax.f32 %v635, %v636
  %v638 = vsel %vm465, %v627, -inf
  %v639 = vmax.f32 %v637, %v638
  %v640 = vsel %vm465, %v631, -inf
  %v641 = vmax.f32 %v639, %v640
  %v642 = vsel %vm465, %v620, -inf
  %v643 = vsel %vm465, %v624, -inf
  %v644 = vmax.f32 %v642, %v643
  %v645 = vsel %vm465, %v628, -inf
  %v646 = vmax.f32 %v644, %v645
  %v647 = vsel %vm465, %v632, -inf
  %v648 = vmax.f32 %v646, %v647
  %v649 = vsel %vm465, %v621, -inf
  %v650 = vsel %vm465, %v625, -inf
  %v651 = vmax.f32 %v649, %v650
  %v652 = vsel %vm465, %v629, -inf
  %v653 = vmax.f32 %v651, %v652
  %v654 = vsel %vm465, %v633, -inf
  %v655 = vmax.f32 %v653, %v654
  %v656 = vsel %vm465, %v622, -inf
  %v657 = vsel %vm465, %v626, -inf
  %v658 = vmax.f32 %v656, %v657
  %v659 = vsel %vm465, %v630, -inf
  %v660 = vmax.f32 %v658, %v659
  %v661 = vsel %vm465, %v634, -inf
  %v662 = vmax.f32 %v660, %v661
  %v663 = vpack.c.bf16 %v648, %v641
  %v664 = vpack.c.bf16 %v662, %v655
  %v667 = vunpack.c.l.b16 %v663
  %v668 = vunpack.c.h.b16 %v663
  %v669 = vunpack.c.l.b16 %v664
  %v670 = vunpack.c.h.b16 %v664
  %v671 = vpack.c.b16 %v667, %v667
  %v672 = vpack.c.b16 %v668, %v668
  %v673 = vpack.c.b16 %v669, %v669
  %v674 = vpack.c.b16 %v670, %v670
  %vm679 = vcmask 519168
  %680 = vst.msk [vmem:[%s7] sm:$0xf] %vm679, %v671
  %681 = vst.msk [vmem:[%s7 + $0x4] sm:$0xf] %vm679, %v672
  %682 = vst.msk [vmem:[%s7 + $0x8] sm:$0xf] %vm679, %v673
  %683 = vst.msk [vmem:[%s7 + $0xc] sm:$0xf] %vm679, %v674
  // Predicated region
  $region30: #{dgcnn_pseg_forward.11} parent=0 // pred_check
    _
  $region31: #{dgcnn_pseg_forward.11} parent=0 // pred_check_branch
    %685 = sbr.rel (0) target = $region33
  $region32: #{dgcnn_pseg_forward.11} parent=0 // pred_region
    _
  $region33: #{dgcnn_pseg_forward.11} parent=0 // pred_fallthru
    _
  // Predicated region
  $region34: #{dgcnn_pseg_forward.11} parent=0 // pred_check
    _
  $region35: #{dgcnn_pseg_forward.11} parent=0 // pred_check_branch
    %687 = sbr.rel (0) target = $region37
  $region36: #{dgcnn_pseg_forward.11} parent=0 // pred_region
    _
  $region37: #{dgcnn_pseg_forward.11} parent=0 // pred_fallthru
    _

// kernel: dgcnn_pseg_forward.10
$region0: #{dgcnn_pseg_forward.10}
  #allocation0 [shape = 'u32[]', space=smem, size = 0x4, offset = 0x4, fixed_abs, tag = 'smem constant byte address 0x4 - core index']
  #allocation1 [shape = 'u32[144,128]{1,0:T(1,128)}', space=vmem, size = 0x12000, scoped, tag = 'internal scratch']
  %s0 = inlined_call_operand.vmem [shape: f32[2,1024], index: 0, kind: input, shape index: {}]
  %s1 = inlined_call_operand.vmem [shape: bf16[1024,512], index: 1, kind: input, shape index: {}]
  %s2 = inlined_call_operand.vmem [shape: f32[1,512], index: 2, kind: input, shape index: {}]
  %s3 = inlined_call_operand.vmem [shape: bf16[512,256], index: 3, kind: input, shape index: {}]
  %s4 = inlined_call_operand.vmem [shape: f32[1,256], index: 4, kind: input, shape index: {}]
  %s5 = inlined_call_operand.vmem [shape: bf16[256,9], index: 5, kind: input, shape index: {}]
  %s6 = inlined_call_operand.vmem [shape: f32[1,9], index: 6, kind: input, shape index: {}]
  %s7 = inlined_call_operand.vmem [shape: f32[2,9], index: 7, kind: output, shape index: {}]
  %s8 = sld [smem:[#allocation0]]
  $region38: #{dgcnn_pseg_forward.10} parent=0
    _
  %s10 = ssub.s32 1, %s8
  %s11 = scalar_select 0, %s10, %s8
  // Predicated region
  $region2: #{dgcnn_pseg_forward.10} parent=0 // pred_check
    _
  $region3: #{dgcnn_pseg_forward.10} parent=0 // pred_check_branch
    %13 = sbr.rel (0) target = $region5
  $region4: #{dgcnn_pseg_forward.10} parent=0 // pred_region
    _
  $region5: #{dgcnn_pseg_forward.10} parent=0 // pred_fallthru
    _
  // Predicated region
  $region6: #{dgcnn_pseg_forward.10} parent=0 // pred_check
    _
  $region7: #{dgcnn_pseg_forward.10} parent=0 // pred_check_branch
    %15 = sbr.rel (0) target = $region9
  $region8: #{dgcnn_pseg_forward.10} parent=0 // pred_region
    _
  $region9: #{dgcnn_pseg_forward.10} parent=0 // pred_fallthru
    _
  // Predicated region
  $region10: #{dgcnn_pseg_forward.10} parent=0 // pred_check
    _
  $region11: #{dgcnn_pseg_forward.10} parent=0 // pred_check_branch
    %17 = sbr.rel (0) target = $region13
  $region12: #{dgcnn_pseg_forward.10} parent=0 // pred_region
    _
  $region13: #{dgcnn_pseg_forward.10} parent=0 // pred_fallthru
    _
  // Predicated region
  $region14: #{dgcnn_pseg_forward.10} parent=0 // pred_check
    _
  $region15: #{dgcnn_pseg_forward.10} parent=0 // pred_check_branch
    %19 = sbr.rel (0) target = $region17
  $region16: #{dgcnn_pseg_forward.10} parent=0 // pred_region
    _
  $region17: #{dgcnn_pseg_forward.10} parent=0 // pred_fallthru
    _
  // Predicated region
  $region18: #{dgcnn_pseg_forward.10} parent=0 // pred_check
    _
  $region19: #{dgcnn_pseg_forward.10} parent=0 // pred_check_branch
    %21 = sbr.rel (0) target = $region21
  $region20: #{dgcnn_pseg_forward.10} parent=0 // pred_region
    _
  $region21: #{dgcnn_pseg_forward.10} parent=0 // pred_fallthru
    _
  // Predicated region
  $region22: #{dgcnn_pseg_forward.10} parent=0 // pred_check
    _
  $region23: #{dgcnn_pseg_forward.10} parent=0 // pred_check_branch
    %23 = sbr.rel (0) target = $region25
  $region24: #{dgcnn_pseg_forward.10} parent=0 // pred_region
    _
  $region25: #{dgcnn_pseg_forward.10} parent=0 // pred_fallthru
    _
  // Predicated region
  $region26: #{dgcnn_pseg_forward.10} parent=0 // pred_check
    _
  $region27: #{dgcnn_pseg_forward.10} parent=0 // pred_check_branch
    %25 = sbr.rel (0) target = $region29
  $region28: #{dgcnn_pseg_forward.10} parent=0 // pred_region
    _
  $region29: #{dgcnn_pseg_forward.10} parent=0 // pred_fallthru
    _
  %v27 = vld [vmem:[%s0] sm:$0xff]
  %v28 = vld [vmem:[%s0 + $0x8] sm:$0xff]
  %v31 = vcombine.high %v27, %v27
  %v33 = vunpack.c.l.s4 1983009808
  %v34 = vunpack.c.0.s8 %v33
  %v35 = vlaneseq
  %v36 = vshrl.u32 %v35, 7
  %v37 = vsub.s32 %v34, %v36
  %v38 = vrot.slane %v27, %v37
  %v40 = vunpack.c.l.s4 1983009808
  %v41 = vunpack.c.0.s8 %v40
  %v42 = vlaneseq
  %v43 = vshrl.u32 %v42, 7
  %v44 = vsub.s32 %v41, %v43
  %v45 = vrot.slane %v31, %v44
  %v46 = vcombine.high %v38, %v38
  %v47 = vcombine.high %v45, %v45
  %v48 = vcombine.high %v28, %v28
  %v50 = vunpack.c.l.s4 1983009808
  %v51 = vunpack.c.0.s8 %v50
  %v52 = vlaneseq
  %v53 = vshrl.u32 %v52, 7
  %v54 = vsub.s32 %v51, %v53
  %v55 = vrot.slane %v28, %v54
  %v57 = vunpack.c.l.s4 1983009808
  %v58 = vunpack.c.0.s8 %v57
  %v59 = vlaneseq
  %v60 = vshrl.u32 %v59, 7
  %v61 = vsub.s32 %v58, %v60
  %v62 = vrot.slane %v48, %v61
  %v63 = vcombine.high %v55, %v55
  %v64 = vcombine.high %v62, %v62
  %v73 = vpack.c.bf16 %v38, %v38
  %v74 = vpack.c.bf16 %v46, %v46
  %v75 = vpack.c.bf16 %v45, %v45
  %v76 = vpack.c.bf16 %v47, %v47
  %v77 = vpack.c.bf16 %v55, %v55
  %v78 = vpack.c.bf16 %v63, %v63
  %v79 = vpack.c.bf16 %v62, %v62
  %v80 = vpack.c.bf16 %v64, %v64
  %v81 = vld [vmem:[%s1] sm:$0xff]
  %v82 = vld [vmem:[%s1 + $0x8] sm:$0xff]
  %v83 = vld [vmem:[%s1 + $0x10] sm:$0xff]
  %v84 = vld [vmem:[%s1 + $0x18] sm:$0xff]
  %v85 = vld [vmem:[%s1 + $0x20] sm:$0xff]
  %v86 = vld [vmem:[%s1 + $0x28] sm:$0xff]
  %v87 = vld [vmem:[%s1 + $0x30] sm:$0xff]
  %v88 = vld [vmem:[%s1 + $0x38] sm:$0xff]
  %v89 = vld [vmem:[%s1 + $0x40] sm:$0xff]
  %v90 = vld [vmem:[%s1 + $0x48] sm:$0xff]
  %v91 = vld [vmem:[%s1 + $0x50] sm:$0xff]
  %v92 = vld [vmem:[%s1 + $0x58] sm:$0xff]
  %v93 = vld [vmem:[%s1 + $0x60] sm:$0xff]
  %v94 = vld [vmem:[%s1 + $0x68] sm:$0xff]
  %v95 = vld [vmem:[%s1 + $0x70] sm:$0xff]
  %v96 = vld [vmem:[%s1 + $0x78] sm:$0xff]
  %v97 = vld [vmem:[%s1 + $0x80] sm:$0xff]
  %v98 = vld [vmem:[%s1 + $0x88] sm:$0xff]
  %v99 = vld [vmem:[%s1 + $0x90] sm:$0xff]
  %v100 = vld [vmem:[%s1 + $0x98] sm:$0xff]
  %v101 = vld [vmem:[%s1 + $0xa0] sm:$0xff]
  %v102 = vld [vmem:[%s1 + $0xa8] sm:$0xff]
  %v103 = vld [vmem:[%s1 + $0xb0] sm:$0xff]
  %v104 = vld [vmem:[%s1 + $0xb8] sm:$0xff]
  %v105 = vld [vmem:[%s1 + $0xc0] sm:$0xff]
  %v106 = vld [vmem:[%s1 + $0xc8] sm:$0xff]
  %v107 = vld [vmem:[%s1 + $0xd0] sm:$0xff]
  %v108 = vld [vmem:[%s1 + $0xd8] sm:$0xff]
  %v109 = vld [vmem:[%s1 + $0xe0] sm:$0xff]
  %v110 = vld [vmem:[%s1 + $0xe8] sm:$0xff]
  %v111 = vld [vmem:[%s1 + $0xf0] sm:$0xff]
  %v112 = vld [vmem:[%s1 + $0xf8] sm:$0xff]
  %v113 = vld [vmem:[%s1 + $0x100] sm:$0xff]
  %v114 = vld [vmem:[%s1 + $0x108] sm:$0xff]
  %v115 = vld [vmem:[%s1 + $0x110] sm:$0xff]
  %v116 = vld [vmem:[%s1 + $0x118] sm:$0xff]
  %v117 = vld [vmem:[%s1 + $0x120] sm:$0xff]
  %v118 = vld [vmem:[%s1 + $0x128] sm:$0xff]
  %v119 = vld [vmem:[%s1 + $0x130] sm:$0xff]
  %v120 = vld [vmem:[%s1 + $0x138] sm:$0xff]
  %v121 = vld [vmem:[%s1 + $0x140] sm:$0xff]
  %v122 = vld [vmem:[%s1 + $0x148] sm:$0xff]
  %v123 = vld [vmem:[%s1 + $0x150] sm:$0xff]
  %v124 = vld [vmem:[%s1 + $0x158] sm:$0xff]
  %v125 = vld [vmem:[%s1 + $0x160] sm:$0xff]
  %v126 = vld [vmem:[%s1 + $0x168] sm:$0xff]
  %v127 = vld [vmem:[%s1 + $0x170] sm:$0xff]
  %v128 = vld [vmem:[%s1 + $0x178] sm:$0xff]
  %v129 = vld [vmem:[%s1 + $0x180] sm:$0xff]
  %v130 = vld [vmem:[%s1 + $0x188] sm:$0xff]
  %v131 = vld [vmem:[%s1 + $0x190] sm:$0xff]
  %v132 = vld [vmem:[%s1 + $0x198] sm:$0xff]
  %v133 = vld [vmem:[%s1 + $0x1a0] sm:$0xff]
  %v134 = vld [vmem:[%s1 + $0x1a8] sm:$0xff]
  %v135 = vld [vmem:[%s1 + $0x1b0] sm:$0xff]
  %v136 = vld [vmem:[%s1 + $0x1b8] sm:$0xff]
  %v137 = vld [vmem:[%s1 + $0x1c0] sm:$0xff]
  %v138 = vld [vmem:[%s1 + $0x1c8] sm:$0xff]
  %v139 = vld [vmem:[%s1 + $0x1d0] sm:$0xff]
  %v140 = vld [vmem:[%s1 + $0x1d8] sm:$0xff]
  %v141 = vld [vmem:[%s1 + $0x1e0] sm:$0xff]
  %v142 = vld [vmem:[%s1 + $0x1e8] sm:$0xff]
  %v143 = vld [vmem:[%s1 + $0x1f0] sm:$0xff]
  %v144 = vld [vmem:[%s1 + $0x1f8] sm:$0xff]
  %v145 = vld [vmem:[%s1 + $0x200] sm:$0xff]
  %v146 = vld [vmem:[%s1 + $0x208] sm:$0xff]
  %v147 = vld [vmem:[%s1 + $0x210] sm:$0xff]
  %v148 = vld [vmem:[%s1 + $0x218] sm:$0xff]
  %v149 = vld [vmem:[%s1 + $0x220] sm:$0xff]
  %v150 = vld [vmem:[%s1 + $0x228] sm:$0xff]
  %v151 = vld [vmem:[%s1 + $0x230] sm:$0xff]
  %v152 = vld [vmem:[%s1 + $0x238] sm:$0xff]
  %v153 = vld [vmem:[%s1 + $0x240] sm:$0xff]
  %v154 = vld [vmem:[%s1 + $0x248] sm:$0xff]
  %v155 = vld [vmem:[%s1 + $0x250] sm:$0xff]
  %v156 = vld [vmem:[%s1 + $0x258] sm:$0xff]
  %v157 = vld [vmem:[%s1 + $0x260] sm:$0xff]
  %v158 = vld [vmem:[%s1 + $0x268] sm:$0xff]
  %v159 = vld [vmem:[%s1 + $0x270] sm:$0xff]
  %v160 = vld [vmem:[%s1 + $0x278] sm:$0xff]
  %v161 = vld [vmem:[%s1 + $0x280] sm:$0xff]
  %v162 = vld [vmem:[%s1 + $0x288] sm:$0xff]
  %v163 = vld [vmem:[%s1 + $0x290] sm:$0xff]
  %v164 = vld [vmem:[%s1 + $0x298] sm:$0xff]
  %v165 = vld [vmem:[%s1 + $0x2a0] sm:$0xff]
  %v166 = vld [vmem:[%s1 + $0x2a8] sm:$0xff]
  %v167 = vld [vmem:[%s1 + $0x2b0] sm:$0xff]
  %v168 = vld [vmem:[%s1 + $0x2b8] sm:$0xff]
  %v169 = vld [vmem:[%s1 + $0x2c0] sm:$0xff]
  %v170 = vld [vmem:[%s1 + $0x2c8] sm:$0xff]
  %v171 = vld [vmem:[%s1 + $0x2d0] sm:$0xff]
  %v172 = vld [vmem:[%s1 + $0x2d8] sm:$0xff]
  %v173 = vld [vmem:[%s1 + $0x2e0] sm:$0xff]
  %v174 = vld [vmem:[%s1 + $0x2e8] sm:$0xff]
  %v175 = vld [vmem:[%s1 + $0x2f0] sm:$0xff]
  %v176 = vld [vmem:[%s1 + $0x2f8] sm:$0xff]
  %v177 = vld [vmem:[%s1 + $0x300] sm:$0xff]
  %v178 = vld [vmem:[%s1 + $0x308] sm:$0xff]
  %v179 = vld [vmem:[%s1 + $0x310] sm:$0xff]
  %v180 = vld [vmem:[%s1 + $0x318] sm:$0xff]
  %v181 = vld [vmem:[%s1 + $0x320] sm:$0xff]
  %v182 = vld [vmem:[%s1 + $0x328] sm:$0xff]
  %v183 = vld [vmem:[%s1 + $0x330] sm:$0xff]
  %v184 = vld [vmem:[%s1 + $0x338] sm:$0xff]
  %v185 = vld [vmem:[%s1 + $0x340] sm:$0xff]
  %v186 = vld [vmem:[%s1 + $0x348] sm:$0xff]
  %v187 = vld [vmem:[%s1 + $0x350] sm:$0xff]
  %v188 = vld [vmem:[%s1 + $0x358] sm:$0xff]
  %v189 = vld [vmem:[%s1 + $0x360] sm:$0xff]
  %v190 = vld [vmem:[%s1 + $0x368] sm:$0xff]
  %v191 = vld [vmem:[%s1 + $0x370] sm:$0xff]
  %v192 = vld [vmem:[%s1 + $0x378] sm:$0xff]
  %v193 = vld [vmem:[%s1 + $0x380] sm:$0xff]
  %v194 = vld [vmem:[%s1 + $0x388] sm:$0xff]
  %v195 = vld [vmem:[%s1 + $0x390] sm:$0xff]
  %v196 = vld [vmem:[%s1 + $0x398] sm:$0xff]
  %v197 = vld [vmem:[%s1 + $0x3a0] sm:$0xff]
  %v198 = vld [vmem:[%s1 + $0x3a8] sm:$0xff]
  %v199 = vld [vmem:[%s1 + $0x3b0] sm:$0xff]
  %v200 = vld [vmem:[%s1 + $0x3b8] sm:$0xff]
  %v201 = vld [vmem:[%s1 + $0x3c0] sm:$0xff]
  %v202 = vld [vmem:[%s1 + $0x3c8] sm:$0xff]
  %v203 = vld [vmem:[%s1 + $0x3d0] sm:$0xff]
  %v204 = vld [vmem:[%s1 + $0x3d8] sm:$0xff]
  %v205 = vld [vmem:[%s1 + $0x3e0] sm:$0xff]
  %v206 = vld [vmem:[%s1 + $0x3e8] sm:$0xff]
  %v207 = vld [vmem:[%s1 + $0x3f0] sm:$0xff]
  %v208 = vld [vmem:[%s1 + $0x3f8] sm:$0xff]
  %v209 = vld [vmem:[%s1 + $0x400] sm:$0xff]
  %v210 = vld [vmem:[%s1 + $0x408] sm:$0xff]
  %v211 = vld [vmem:[%s1 + $0x410] sm:$0xff]
  %v212 = vld [vmem:[%s1 + $0x418] sm:$0xff]
  %v213 = vld [vmem:[%s1 + $0x420] sm:$0xff]
  %v214 = vld [vmem:[%s1 + $0x428] sm:$0xff]
  %v215 = vld [vmem:[%s1 + $0x430] sm:$0xff]
  %v216 = vld [vmem:[%s1 + $0x438] sm:$0xff]
  %v217 = vld [vmem:[%s1 + $0x440] sm:$0xff]
  %v218 = vld [vmem:[%s1 + $0x448] sm:$0xff]
  %v219 = vld [vmem:[%s1 + $0x450] sm:$0xff]
  %v220 = vld [vmem:[%s1 + $0x458] sm:$0xff]
  %v221 = vld [vmem:[%s1 + $0x460] sm:$0xff]
  %v222 = vld [vmem:[%s1 + $0x468] sm:$0xff]
  %v223 = vld [vmem:[%s1 + $0x470] sm:$0xff]
  %v224 = vld [vmem:[%s1 + $0x478] sm:$0xff]
  %v225 = vld [vmem:[%s1 + $0x480] sm:$0xff]
  %v226 = vld [vmem:[%s1 + $0x488] sm:$0xff]
  %v227 = vld [vmem:[%s1 + $0x490] sm:$0xff]
  %v228 = vld [vmem:[%s1 + $0x498] sm:$0xff]
  %v229 = vld [vmem:[%s1 + $0x4a0] sm:$0xff]
  %v230 = vld [vmem:[%s1 + $0x4a8] sm:$0xff]
  %v231 = vld [vmem:[%s1 + $0x4b0] sm:$0xff]
  %v232 = vld [vmem:[%s1 + $0x4b8] sm:$0xff]
  %v233 = vld [vmem:[%s1 + $0x4c0] sm:$0xff]
  %v234 = vld [vmem:[%s1 + $0x4c8] sm:$0xff]
  %v235 = vld [vmem:[%s1 + $0x4d0] sm:$0xff]
  %v236 = vld [vmem:[%s1 + $0x4d8] sm:$0xff]
  %v237 = vld [vmem:[%s1 + $0x4e0] sm:$0xff]
  %v238 = vld [vmem:[%s1 + $0x4e8] sm:$0xff]
  %v239 = vld [vmem:[%s1 + $0x4f0] sm:$0xff]
  %v240 = vld [vmem:[%s1 + $0x4f8] sm:$0xff]
  %v241 = vld [vmem:[%s1 + $0x500] sm:$0xff]
  %v242 = vld [vmem:[%s1 + $0x508] sm:$0xff]
  %v243 = vld [vmem:[%s1 + $0x510] sm:$0xff]
  %v244 = vld [vmem:[%s1 + $0x518] sm:$0xff]
  %v245 = vld [vmem:[%s1 + $0x520] sm:$0xff]
  %v246 = vld [vmem:[%s1 + $0x528] sm:$0xff]
  %v247 = vld [vmem:[%s1 + $0x530] sm:$0xff]
  %v248 = vld [vmem:[%s1 + $0x538] sm:$0xff]
  %v249 = vld [vmem:[%s1 + $0x540] sm:$0xff]
  %v250 = vld [vmem:[%s1 + $0x548] sm:$0xff]
  %v251 = vld [vmem:[%s1 + $0x550] sm:$0xff]
  %v252 = vld [vmem:[%s1 + $0x558] sm:$0xff]
  %v253 = vld [vmem:[%s1 + $0x560] sm:$0xff]
  %v254 = vld [vmem:[%s1 + $0x568] sm:$0xff]
  %v255 = vld [vmem:[%s1 + $0x570] sm:$0xff]
  %v256 = vld [vmem:[%s1 + $0x578] sm:$0xff]
  %v257 = vld [vmem:[%s1 + $0x580] sm:$0xff]
  %v258 = vld [vmem:[%s1 + $0x588] sm:$0xff]
  %v259 = vld [vmem:[%s1 + $0x590] sm:$0xff]
  %v260 = vld [vmem:[%s1 + $0x598] sm:$0xff]
  %v261 = vld [vmem:[%s1 + $0x5a0] sm:$0xff]
  %v262 = vld [vmem:[%s1 + $0x5a8] sm:$0xff]
  %v263 = vld [vmem:[%s1 + $0x5b0] sm:$0xff]
  %v264 = vld [vmem:[%s1 + $0x5b8] sm:$0xff]
  %v265 = vld [vmem:[%s1 + $0x5c0] sm:$0xff]
  %v266 = vld [vmem:[%s1 + $0x5c8] sm:$0xff]
  %v267 = vld [vmem:[%s1 + $0x5d0] sm:$0xff]
  %v268 = vld [vmem:[%s1 + $0x5d8] sm:$0xff]
  %v269 = vld [vmem:[%s1 + $0x5e0] sm:$0xff]
  %v270 = vld [vmem:[%s1 + $0x5e8] sm:$0xff]
  %v271 = vld [vmem:[%s1 + $0x5f0] sm:$0xff]
  %v272 = vld [vmem:[%s1 + $0x5f8] sm:$0xff]
  %v273 = vld [vmem:[%s1 + $0x600] sm:$0xff]
  %v274 = vld [vmem:[%s1 + $0x608] sm:$0xff]
  %v275 = vld [vmem:[%s1 + $0x610] sm:$0xff]
  %v276 = vld [vmem:[%s1 + $0x618] sm:$0xff]
  %v277 = vld [vmem:[%s1 + $0x620] sm:$0xff]
  %v278 = vld [vmem:[%s1 + $0x628] sm:$0xff]
  %v279 = vld [vmem:[%s1 + $0x630] sm:$0xff]
  %v280 = vld [vmem:[%s1 + $0x638] sm:$0xff]
  %v281 = vld [vmem:[%s1 + $0x640] sm:$0xff]
  %v282 = vld [vmem:[%s1 + $0x648] sm:$0xff]
  %v283 = vld [vmem:[%s1 + $0x650] sm:$0xff]
  %v284 = vld [vmem:[%s1 + $0x658] sm:$0xff]
  %v285 = vld [vmem:[%s1 + $0x660] sm:$0xff]
  %v286 = vld [vmem:[%s1 + $0x668] sm:$0xff]
  %v287 = vld [vmem:[%s1 + $0x670] sm:$0xff]
  %v288 = vld [vmem:[%s1 + $0x678] sm:$0xff]
  %v289 = vld [vmem:[%s1 + $0x680] sm:$0xff]
  %v290 = vld [vmem:[%s1 + $0x688] sm:$0xff]
  %v291 = vld [vmem:[%s1 + $0x690] sm:$0xff]
  %v292 = vld [vmem:[%s1 + $0x698] sm:$0xff]
  %v293 = vld [vmem:[%s1 + $0x6a0] sm:$0xff]
  %v294 = vld [vmem:[%s1 + $0x6a8] sm:$0xff]
  %v295 = vld [vmem:[%s1 + $0x6b0] sm:$0xff]
  %v296 = vld [vmem:[%s1 + $0x6b8] sm:$0xff]
  %v297 = vld [vmem:[%s1 + $0x6c0] sm:$0xff]
  %v298 = vld [vmem:[%s1 + $0x6c8] sm:$0xff]
  %v299 = vld [vmem:[%s1 + $0x6d0] sm:$0xff]
  %v300 = vld [vmem:[%s1 + $0x6d8] sm:$0xff]
  %v301 = vld [vmem:[%s1 + $0x6e0] sm:$0xff]
  %v302 = vld [vmem:[%s1 + $0x6e8] sm:$0xff]
  %v303 = vld [vmem:[%s1 + $0x6f0] sm:$0xff]
  %v304 = vld [vmem:[%s1 + $0x6f8] sm:$0xff]
  %v305 = vld [vmem:[%s1 + $0x700] sm:$0xff]
  %v306 = vld [vmem:[%s1 + $0x708] sm:$0xff]
  %v307 = vld [vmem:[%s1 + $0x710] sm:$0xff]
  %v308 = vld [vmem:[%s1 + $0x718] sm:$0xff]
  %v309 = vld [vmem:[%s1 + $0x720] sm:$0xff]
  %v310 = vld [vmem:[%s1 + $0x728] sm:$0xff]
  %v311 = vld [vmem:[%s1 + $0x730] sm:$0xff]
  %v312 = vld [vmem:[%s1 + $0x738] sm:$0xff]
  %v313 = vld [vmem:[%s1 + $0x740] sm:$0xff]
  %v314 = vld [vmem:[%s1 + $0x748] sm:$0xff]
  %v315 = vld [vmem:[%s1 + $0x750] sm:$0xff]
  %v316 = vld [vmem:[%s1 + $0x758] sm:$0xff]
  %v317 = vld [vmem:[%s1 + $0x760] sm:$0xff]
  %v318 = vld [vmem:[%s1 + $0x768] sm:$0xff]
  %v319 = vld [vmem:[%s1 + $0x770] sm:$0xff]
  %v320 = vld [vmem:[%s1 + $0x778] sm:$0xff]
  %v321 = vld [vmem:[%s1 + $0x780] sm:$0xff]
  %v322 = vld [vmem:[%s1 + $0x788] sm:$0xff]
  %v323 = vld [vmem:[%s1 + $0x790] sm:$0xff]
  %v324 = vld [vmem:[%s1 + $0x798] sm:$0xff]
  %v325 = vld [vmem:[%s1 + $0x7a0] sm:$0xff]
  %v326 = vld [vmem:[%s1 + $0x7a8] sm:$0xff]
  %v327 = vld [vmem:[%s1 + $0x7b0] sm:$0xff]
  %v328 = vld [vmem:[%s1 + $0x7b8] sm:$0xff]
  %v329 = vld [vmem:[%s1 + $0x7c0] sm:$0xff]
  %v330 = vld [vmem:[%s1 + $0x7c8] sm:$0xff]
  %v331 = vld [vmem:[%s1 + $0x7d0] sm:$0xff]
  %v332 = vld [vmem:[%s1 + $0x7d8] sm:$0xff]
  %v333 = vld [vmem:[%s1 + $0x7e0] sm:$0xff]
  %v334 = vld [vmem:[%s1 + $0x7e8] sm:$0xff]
  %v335 = vld [vmem:[%s1 + $0x7f0] sm:$0xff]
  %v336 = vld [vmem:[%s1 + $0x7f8] sm:$0xff]
  %v337 = vld [vmem:[%s2] sm:$0xf]
  %v339 = vlaneseq
  %v340 = vshrl.u32 %v339, 7
  %v341 = vsub.s32 0, %v340
  %v342 = vrot.slane %v337, %v341
  %v343 = vlaneseq
  %v344 = vshrl.u32 %v343, 7
  %v345 = vsub.s32 1, %v344
  %v346 = vrot.slane %v337, %v345
  %v347 = vlaneseq
  %v348 = vshrl.u32 %v347, 7
  %v349 = vsub.s32 2, %v348
  %v350 = vrot.slane %v337, %v349
  %v351 = vlaneseq
  %v352 = vshrl.u32 %v351, 7
  %v353 = vsub.s32 3, %v352
  %v354 = vrot.slane %v337, %v353
  %v615 = vunpack.c.l.b16 %v81
  %v616 = vunpack.c.h.b16 %v81
  %v617 = vunpack.c.l.b16 %v82
  %v618 = vunpack.c.h.b16 %v82
  %v619 = vunpack.c.l.b16 %v83
  %v620 = vunpack.c.h.b16 %v83
  %v621 = vunpack.c.l.b16 %v84
  %v622 = vunpack.c.h.b16 %v84
  %v623 = vunpack.c.l.b16 %v85
  %v624 = vunpack.c.h.b16 %v85
  %v625 = vunpack.c.l.b16 %v86
  %v626 = vunpack.c.h.b16 %v86
  %v627 = vunpack.c.l.b16 %v87
  %v628 = vunpack.c.h.b16 %v87
  %v629 = vunpack.c.l.b16 %v88
  %v630 = vunpack.c.h.b16 %v88
  %v631 = vunpack.c.l.b16 %v89
  %v632 = vunpack.c.h.b16 %v89
  %v633 = vunpack.c.l.b16 %v90
  %v634 = vunpack.c.h.b16 %v90
  %v635 = vunpack.c.l.b16 %v91
  %v636 = vunpack.c.h.b16 %v91
  %v637 = vunpack.c.l.b16 %v92
  %v638 = vunpack.c.h.b16 %v92
  %v639 = vunpack.c.l.b16 %v93
  %v640 = vunpack.c.h.b16 %v93
  %v641 = vunpack.c.l.b16 %v94
  %v642 = vunpack.c.h.b16 %v94
  %v643 = vunpack.c.l.b16 %v95
  %v644 = vunpack.c.h.b16 %v95
  %v645 = vunpack.c.l.b16 %v96
  %v646 = vunpack.c.h.b16 %v96
  %v647 = vunpack.c.l.b16 %v97
  %v648 = vunpack.c.h.b16 %v97
  %v649 = vunpack.c.l.b16 %v98
  %v650 = vunpack.c.h.b16 %v98
  %v651 = vunpack.c.l.b16 %v99
  %v652 = vunpack.c.h.b16 %v99
  %v653 = vunpack.c.l.b16 %v100
  %v654 = vunpack.c.h.b16 %v100
  %v655 = vunpack.c.l.b16 %v101
  %v656 = vunpack.c.h.b16 %v101
  %v657 = vunpack.c.l.b16 %v102
  %v658 = vunpack.c.h.b16 %v102
  %v659 = vunpack.c.l.b16 %v103
  %v660 = vunpack.c.h.b16 %v103
  %v661 = vunpack.c.l.b16 %v104
  %v662 = vunpack.c.h.b16 %v104
  %v663 = vunpack.c.l.b16 %v105
  %v664 = vunpack.c.h.b16 %v105
  %v665 = vunpack.c.l.b16 %v106
  %v666 = vunpack.c.h.b16 %v106
  %v667 = vunpack.c.l.b16 %v107
  %v668 = vunpack.c.h.b16 %v107
  %v669 = vunpack.c.l.b16 %v108
  %v670 = vunpack.c.h.b16 %v108
  %v671 = vunpack.c.l.b16 %v109
  %v672 = vunpack.c.h.b16 %v109
  %v673 = vunpack.c.l.b16 %v110
  %v674 = vunpack.c.h.b16 %v110
  %v675 = vunpack.c.l.b16 %v111
  %v676 = vunpack.c.h.b16 %v111
  %v677 = vunpack.c.l.b16 %v112
  %v678 = vunpack.c.h.b16 %v112
  %v679 = vunpack.c.l.b16 %v113
  %v680 = vunpack.c.h.b16 %v113
  %v681 = vunpack.c.l.b16 %v114
  %v682 = vunpack.c.h.b16 %v114
  %v683 = vunpack.c.l.b16 %v115
  %v684 = vunpack.c.h.b16 %v115
  %v685 = vunpack.c.l.b16 %v116
  %v686 = vunpack.c.h.b16 %v116
  %v687 = vunpack.c.l.b16 %v117
  %v688 = vunpack.c.h.b16 %v117
  %v689 = vunpack.c.l.b16 %v118
  %v690 = vunpack.c.h.b16 %v118
  %v691 = vunpack.c.l.b16 %v119
  %v692 = vunpack.c.h.b16 %v119
  %v693 = vunpack.c.l.b16 %v120
  %v694 = vunpack.c.h.b16 %v120
  %v695 = vunpack.c.l.b16 %v121
  %v696 = vunpack.c.h.b16 %v121
  %v697 = vunpack.c.l.b16 %v122
  %v698 = vunpack.c.h.b16 %v122
  %v699 = vunpack.c.l.b16 %v123
  %v700 = vunpack.c.h.b16 %v123
  %v701 = vunpack.c.l.b16 %v124
  %v702 = vunpack.c.h.b16 %v124
  %v703 = vunpack.c.l.b16 %v125
  %v704 = vunpack.c.h.b16 %v125
  %v705 = vunpack.c.l.b16 %v126
  %v706 = vunpack.c.h.b16 %v126
  %v707 = vunpack.c.l.b16 %v127
  %v708 = vunpack.c.h.b16 %v127
  %v709 = vunpack.c.l.b16 %v128
  %v710 = vunpack.c.h.b16 %v128
  %v711 = vunpack.c.l.b16 %v129
  %v712 = vunpack.c.h.b16 %v129
  %v713 = vunpack.c.l.b16 %v130
  %v714 = vunpack.c.h.b16 %v130
  %v715 = vunpack.c.l.b16 %v131
  %v716 = vunpack.c.h.b16 %v131
  %v717 = vunpack.c.l.b16 %v132
  %v718 = vunpack.c.h.b16 %v132
  %v719 = vunpack.c.l.b16 %v133
  %v720 = vunpack.c.h.b16 %v133
  %v721 = vunpack.c.l.b16 %v134
  %v722 = vunpack.c.h.b16 %v134
  %v723 = vunpack.c.l.b16 %v135
  %v724 = vunpack.c.h.b16 %v135
  %v725 = vunpack.c.l.b16 %v136
  %v726 = vunpack.c.h.b16 %v136
  %v727 = vunpack.c.l.b16 %v137
  %v728 = vunpack.c.h.b16 %v137
  %v729 = vunpack.c.l.b16 %v138
  %v730 = vunpack.c.h.b16 %v138
  %v731 = vunpack.c.l.b16 %v139
  %v732 = vunpack.c.h.b16 %v139
  %v733 = vunpack.c.l.b16 %v140
  %v734 = vunpack.c.h.b16 %v140
  %v735 = vunpack.c.l.b16 %v141
  %v736 = vunpack.c.h.b16 %v141
  %v737 = vunpack.c.l.b16 %v142
  %v738 = vunpack.c.h.b16 %v142
  %v739 = vunpack.c.l.b16 %v143
  %v740 = vunpack.c.h.b16 %v143
  %v741 = vunpack.c.l.b16 %v144
  %v742 = vunpack.c.h.b16 %v144
  %v743 = vunpack.c.l.b16 %v145
  %v744 = vunpack.c.h.b16 %v145
  %v745 = vunpack.c.l.b16 %v146
  %v746 = vunpack.c.h.b16 %v146
  %v747 = vunpack.c.l.b16 %v147
  %v748 = vunpack.c.h.b16 %v147
  %v749 = vunpack.c.l.b16 %v148
  %v750 = vunpack.c.h.b16 %v148
  %v751 = vunpack.c.l.b16 %v149
  %v752 = vunpack.c.h.b16 %v149
  %v753 = vunpack.c.l.b16 %v150
  %v754 = vunpack.c.h.b16 %v150
  %v755 = vunpack.c.l.b16 %v151
  %v756 = vunpack.c.h.b16 %v151
  %v757 = vunpack.c.l.b16 %v152
  %v758 = vunpack.c.h.b16 %v152
  %v759 = vunpack.c.l.b16 %v153
  %v760 = vunpack.c.h.b16 %v153
  %v761 = vunpack.c.l.b16 %v154
  %v762 = vunpack.c.h.b16 %v154
  %v763 = vunpack.c.l.b16 %v155
  %v764 = vunpack.c.h.b16 %v155
  %v765 = vunpack.c.l.b16 %v156
  %v766 = vunpack.c.h.b16 %v156
  %v767 = vunpack.c.l.b16 %v157
  %v768 = vunpack.c.h.b16 %v157
  %v769 = vunpack.c.l.b16 %v158
  %v770 = vunpack.c.h.b16 %v158
  %v771 = vunpack.c.l.b16 %v159
  %v772 = vunpack.c.h.b16 %v159
  %v773 = vunpack.c.l.b16 %v160
  %v774 = vunpack.c.h.b16 %v160
  %v775 = vunpack.c.l.b16 %v161
  %v776 = vunpack.c.h.b16 %v161
  %v777 = vunpack.c.l.b16 %v162
  %v778 = vunpack.c.h.b16 %v162
  %v779 = vunpack.c.l.b16 %v163
  %v780 = vunpack.c.h.b16 %v163
  %v781 = vunpack.c.l.b16 %v164
  %v782 = vunpack.c.h.b16 %v164
  %v783 = vunpack.c.l.b16 %v165
  %v784 = vunpack.c.h.b16 %v165
  %v785 = vunpack.c.l.b16 %v166
  %v786 = vunpack.c.h.b16 %v166
  %v787 = vunpack.c.l.b16 %v167
  %v788 = vunpack.c.h.b16 %v167
  %v789 = vunpack.c.l.b16 %v168
  %v790 = vunpack.c.h.b16 %v168
  %v791 = vunpack.c.l.b16 %v169
  %v792 = vunpack.c.h.b16 %v169
  %v793 = vunpack.c.l.b16 %v170
  %v794 = vunpack.c.h.b16 %v170
  %v795 = vunpack.c.l.b16 %v171
  %v796 = vunpack.c.h.b16 %v171
  %v797 = vunpack.c.l.b16 %v172
  %v798 = vunpack.c.h.b16 %v172
  %v799 = vunpack.c.l.b16 %v173
  %v800 = vunpack.c.h.b16 %v173
  %v801 = vunpack.c.l.b16 %v174
  %v802 = vunpack.c.h.b16 %v174
  %v803 = vunpack.c.l.b16 %v175
  %v804 = vunpack.c.h.b16 %v175
  %v805 = vunpack.c.l.b16 %v176
  %v806 = vunpack.c.h.b16 %v176
  %v807 = vunpack.c.l.b16 %v177
  %v808 = vunpack.c.h.b16 %v177
  %v809 = vunpack.c.l.b16 %v178
  %v810 = vunpack.c.h.b16 %v178
  %v811 = vunpack.c.l.b16 %v179
  %v812 = vunpack.c.h.b16 %v179
  %v813 = vunpack.c.l.b16 %v180
  %v814 = vunpack.c.h.b16 %v180
  %v815 = vunpack.c.l.b16 %v181
  %v816 = vunpack.c.h.b16 %v181
  %v817 = vunpack.c.l.b16 %v182
  %v818 = vunpack.c.h.b16 %v182
  %v819 = vunpack.c.l.b16 %v183
  %v820 = vunpack.c.h.b16 %v183
  %v821 = vunpack.c.l.b16 %v184
  %v822 = vunpack.c.h.b16 %v184
  %v823 = vunpack.c.l.b16 %v185
  %v824 = vunpack.c.h.b16 %v185
  %v825 = vunpack.c.l.b16 %v186
  %v826 = vunpack.c.h.b16 %v186
  %v827 = vunpack.c.l.b16 %v187
  %v828 = vunpack.c.h.b16 %v187
  %v829 = vunpack.c.l.b16 %v188
  %v830 = vunpack.c.h.b16 %v188
  %v831 = vunpack.c.l.b16 %v189
  %v832 = vunpack.c.h.b16 %v189
  %v833 = vunpack.c.l.b16 %v190
  %v834 = vunpack.c.h.b16 %v190
  %v835 = vunpack.c.l.b16 %v191
  %v836 = vunpack.c.h.b16 %v191
  %v837 = vunpack.c.l.b16 %v192
  %v838 = vunpack.c.h.b16 %v192
  %v839 = vunpack.c.l.b16 %v193
  %v840 = vunpack.c.h.b16 %v193
  %v841 = vunpack.c.l.b16 %v194
  %v842 = vunpack.c.h.b16 %v194
  %v843 = vunpack.c.l.b16 %v195
  %v844 = vunpack.c.h.b16 %v195
  %v845 = vunpack.c.l.b16 %v196
  %v846 = vunpack.c.h.b16 %v196
  %v847 = vunpack.c.l.b16 %v197
  %v848 = vunpack.c.h.b16 %v197
  %v849 = vunpack.c.l.b16 %v198
  %v850 = vunpack.c.h.b16 %v198
  %v851 = vunpack.c.l.b16 %v199
  %v852 = vunpack.c.h.b16 %v199
  %v853 = vunpack.c.l.b16 %v200
  %v854 = vunpack.c.h.b16 %v200
  %v855 = vunpack.c.l.b16 %v201
  %v856 = vunpack.c.h.b16 %v201
  %v857 = vunpack.c.l.b16 %v202
  %v858 = vunpack.c.h.b16 %v202
  %v859 = vunpack.c.l.b16 %v203
  %v860 = vunpack.c.h.b16 %v203
  %v861 = vunpack.c.l.b16 %v204
  %v862 = vunpack.c.h.b16 %v204
  %v863 = vunpack.c.l.b16 %v205
  %v864 = vunpack.c.h.b16 %v205
  %v865 = vunpack.c.l.b16 %v206
  %v866 = vunpack.c.h.b16 %v206
  %v867 = vunpack.c.l.b16 %v207
  %v868 = vunpack.c.h.b16 %v207
  %v869 = vunpack.c.l.b16 %v208
  %v870 = vunpack.c.h.b16 %v208
  %v871 = vunpack.c.l.b16 %v209
  %v872 = vunpack.c.h.b16 %v209
  %v873 = vunpack.c.l.b16 %v210
  %v874 = vunpack.c.h.b16 %v210
  %v875 = vunpack.c.l.b16 %v211
  %v876 = vunpack.c.h.b16 %v211
  %v877 = vunpack.c.l.b16 %v212
  %v878 = vunpack.c.h.b16 %v212
  %v879 = vunpack.c.l.b16 %v213
  %v880 = vunpack.c.h.b16 %v213
  %v881 = vunpack.c.l.b16 %v214
  %v882 = vunpack.c.h.b16 %v214
  %v883 = vunpack.c.l.b16 %v215
  %v884 = vunpack.c.h.b16 %v215
  %v885 = vunpack.c.l.b16 %v216
  %v886 = vunpack.c.h.b16 %v216
  %v887 = vunpack.c.l.b16 %v217
  %v888 = vunpack.c.h.b16 %v217
  %v889 = vunpack.c.l.b16 %v218
  %v890 = vunpack.c.h.b16 %v218
  %v891 = vunpack.c.l.b16 %v219
  %v892 = vunpack.c.h.b16 %v219
  %v893 = vunpack.c.l.b16 %v220
  %v894 = vunpack.c.h.b16 %v220
  %v895 = vunpack.c.l.b16 %v221
  %v896 = vunpack.c.h.b16 %v221
  %v897 = vunpack.c.l.b16 %v222
  %v898 = vunpack.c.h.b16 %v222
  %v899 = vunpack.c.l.b16 %v223
  %v900 = vunpack.c.h.b16 %v223
  %v901 = vunpack.c.l.b16 %v224
  %v902 = vunpack.c.h.b16 %v224
  %v903 = vunpack.c.l.b16 %v225
  %v904 = vunpack.c.h.b16 %v225
  %v905 = vunpack.c.l.b16 %v226
  %v906 = vunpack.c.h.b16 %v226
  %v907 = vunpack.c.l.b16 %v227
  %v908 = vunpack.c.h.b16 %v227
  %v909 = vunpack.c.l.b16 %v228
  %v910 = vunpack.c.h.b16 %v228
  %v911 = vunpack.c.l.b16 %v229
  %v912 = vunpack.c.h.b16 %v229
  %v913 = vunpack.c.l.b16 %v230
  %v914 = vunpack.c.h.b16 %v230
  %v915 = vunpack.c.l.b16 %v231
  %v916 = vunpack.c.h.b16 %v231
  %v917 = vunpack.c.l.b16 %v232
  %v918 = vunpack.c.h.b16 %v232
  %v919 = vunpack.c.l.b16 %v233
  %v920 = vunpack.c.h.b16 %v233
  %v921 = vunpack.c.l.b16 %v234
  %v922 = vunpack.c.h.b16 %v234
  %v923 = vunpack.c.l.b16 %v235
  %v924 = vunpack.c.h.b16 %v235
  %v925 = vunpack.c.l.b16 %v236
  %v926 = vunpack.c.h.b16 %v236
  %v927 = vunpack.c.l.b16 %v237
  %v928 = vunpack.c.h.b16 %v237
  %v929 = vunpack.c.l.b16 %v238
  %v930 = vunpack.c.h.b16 %v238
  %v931 = vunpack.c.l.b16 %v239
  %v932 = vunpack.c.h.b16 %v239
  %v933 = vunpack.c.l.b16 %v240
  %v934 = vunpack.c.h.b16 %v240
  %v935 = vunpack.c.l.b16 %v241
  %v936 = vunpack.c.h.b16 %v241
  %v937 = vunpack.c.l.b16 %v242
  %v938 = vunpack.c.h.b16 %v242
  %v939 = vunpack.c.l.b16 %v243
  %v940 = vunpack.c.h.b16 %v243
  %v941 = vunpack.c.l.b16 %v244
  %v942 = vunpack.c.h.b16 %v244
  %v943 = vunpack.c.l.b16 %v245
  %v944 = vunpack.c.h.b16 %v245
  %v945 = vunpack.c.l.b16 %v246
  %v946 = vunpack.c.h.b16 %v246
  %v947 = vunpack.c.l.b16 %v247
  %v948 = vunpack.c.h.b16 %v247
  %v949 = vunpack.c.l.b16 %v248
  %v950 = vunpack.c.h.b16 %v248
  %v951 = vunpack.c.l.b16 %v249
  %v952 = vunpack.c.h.b16 %v249
  %v953 = vunpack.c.l.b16 %v250
  %v954 = vunpack.c.h.b16 %v250
  %v955 = vunpack.c.l.b16 %v251
  %v956 = vunpack.c.h.b16 %v251
  %v957 = vunpack.c.l.b16 %v252
  %v958 = vunpack.c.h.b16 %v252
  %v959 = vunpack.c.l.b16 %v253
  %v960 = vunpack.c.h.b16 %v253
  %v961 = vunpack.c.l.b16 %v254
  %v962 = vunpack.c.h.b16 %v254
  %v963 = vunpack.c.l.b16 %v255
  %v964 = vunpack.c.h.b16 %v255
  %v965 = vunpack.c.l.b16 %v256
  %v966 = vunpack.c.h.b16 %v256
  %v967 = vunpack.c.l.b16 %v257
  %v968 = vunpack.c.h.b16 %v257
  %v969 = vunpack.c.l.b16 %v258
  %v970 = vunpack.c.h.b16 %v258
  %v971 = vunpack.c.l.b16 %v259
  %v972 = vunpack.c.h.b16 %v259
  %v973 = vunpack.c.l.b16 %v260
  %v974 = vunpack.c.h.b16 %v260
  %v975 = vunpack.c.l.b16 %v261
  %v976 = vunpack.c.h.b16 %v261
  %v977 = vunpack.c.l.b16 %v262
  %v978 = vunpack.c.h.b16 %v262
  %v979 = vunpack.c.l.b16 %v263
  %v980 = vunpack.c.h.b16 %v263
  %v981 = vunpack.c.l.b16 %v264
  %v982 = vunpack.c.h.b16 %v264
  %v983 = vunpack.c.l.b16 %v265
  %v984 = vunpack.c.h.b16 %v265
  %v985 = vunpack.c.l.b16 %v266
  %v986 = vunpack.c.h.b16 %v266
  %v987 = vunpack.c.l.b16 %v267
  %v988 = vunpack.c.h.b16 %v267
  %v989 = vunpack.c.l.b16 %v268
  %v990 = vunpack.c.h.b16 %v268
  %v991 = vunpack.c.l.b16 %v269
  %v992 = vunpack.c.h.b16 %v269
  %v993 = vunpack.c.l.b16 %v270
  %v994 = vunpack.c.h.b16 %v270
  %v995 = vunpack.c.l.b16 %v271
  %v996 = vunpack.c.h.b16 %v271
  %v997 = vunpack.c.l.b16 %v272
  %v998 = vunpack.c.h.b16 %v272
  %v999 = vunpack.c.l.b16 %v273
  %v1000 = vunpack.c.h.b16 %v273
  %v1001 = vunpack.c.l.b16 %v274
  %v1002 = vunpack.c.h.b16 %v274
  %v1003 = vunpack.c.l.b16 %v275
  %v1004 = vunpack.c.h.b16 %v275
  %v1005 = vunpack.c.l.b16 %v276
  %v1006 = vunpack.c.h.b16 %v276
  %v1007 = vunpack.c.l.b16 %v277
  %v1008 = vunpack.c.h.b16 %v277
  %v1009 = vunpack.c.l.b16 %v278
  %v1010 = vunpack.c.h.b16 %v278
  %v1011 = vunpack.c.l.b16 %v279
  %v1012 = vunpack.c.h.b16 %v279
  %v1013 = vunpack.c.l.b16 %v280
  %v1014 = vunpack.c.h.b16 %v280
  %v1015 = vunpack.c.l.b16 %v281
  %v1016 = vunpack.c.h.b16 %v281
  %v1017 = vunpack.c.l.b16 %v282
  %v1018 = vunpack.c.h.b16 %v282
  %v1019 = vunpack.c.l.b16 %v283
  %v1020 = vunpack.c.h.b16 %v283
  %v1021 = vunpack.c.l.b16 %v284
  %v1022 = vunpack.c.h.b16 %v284
  %v1023 = vunpack.c.l.b16 %v285
  %v1024 = vunpack.c.h.b16 %v285
  %v1025 = vunpack.c.l.b16 %v286
  %v1026 = vunpack.c.h.b16 %v286
  %v1027 = vunpack.c.l.b16 %v287
  %v1028 = vunpack.c.h.b16 %v287
  %v1029 = vunpack.c.l.b16 %v288
  %v1030 = vunpack.c.h.b16 %v288
  %v1031 = vunpack.c.l.b16 %v289
  %v1032 = vunpack.c.h.b16 %v289
  %v1033 = vunpack.c.l.b16 %v290
  %v1034 = vunpack.c.h.b16 %v290
  %v1035 = vunpack.c.l.b16 %v291
  %v1036 = vunpack.c.h.b16 %v291
  %v1037 = vunpack.c.l.b16 %v292
  %v1038 = vunpack.c.h.b16 %v292
  %v1039 = vunpack.c.l.b16 %v293
  %v1040 = vunpack.c.h.b16 %v293
  %v1041 = vunpack.c.l.b16 %v294
  %v1042 = vunpack.c.h.b16 %v294
  %v1043 = vunpack.c.l.b16 %v295
  %v1044 = vunpack.c.h.b16 %v295
  %v1045 = vunpack.c.l.b16 %v296
  %v1046 = vunpack.c.h.b16 %v296
  %v1047 = vunpack.c.l.b16 %v297
  %v1048 = vunpack.c.h.b16 %v297
  %v1049 = vunpack.c.l.b16 %v298
  %v1050 = vunpack.c.h.b16 %v298
  %v1051 = vunpack.c.l.b16 %v299
  %v1052 = vunpack.c.h.b16 %v299
  %v1053 = vunpack.c.l.b16 %v300
  %v1054 = vunpack.c.h.b16 %v300
  %v1055 = vunpack.c.l.b16 %v301
  %v1056 = vunpack.c.h.b16 %v301
  %v1057 = vunpack.c.l.b16 %v302
  %v1058 = vunpack.c.h.b16 %v302
  %v1059 = vunpack.c.l.b16 %v303
  %v1060 = vunpack.c.h.b16 %v303
  %v1061 = vunpack.c.l.b16 %v304
  %v1062 = vunpack.c.h.b16 %v304
  %v1063 = vunpack.c.l.b16 %v305
  %v1064 = vunpack.c.h.b16 %v305
  %v1065 = vunpack.c.l.b16 %v306
  %v1066 = vunpack.c.h.b16 %v306
  %v1067 = vunpack.c.l.b16 %v307
  %v1068 = vunpack.c.h.b16 %v307
  %v1069 = vunpack.c.l.b16 %v308
  %v1070 = vunpack.c.h.b16 %v308
  %v1071 = vunpack.c.l.b16 %v309
  %v1072 = vunpack.c.h.b16 %v309
  %v1073 = vunpack.c.l.b16 %v310
  %v1074 = vunpack.c.h.b16 %v310
  %v1075 = vunpack.c.l.b16 %v311
  %v1076 = vunpack.c.h.b16 %v311
  %v1077 = vunpack.c.l.b16 %v312
  %v1078 = vunpack.c.h.b16 %v312
  %v1079 = vunpack.c.l.b16 %v313
  %v1080 = vunpack.c.h.b16 %v313
  %v1081 = vunpack.c.l.b16 %v314
  %v1082 = vunpack.c.h.b16 %v314
  %v1083 = vunpack.c.l.b16 %v315
  %v1084 = vunpack.c.h.b16 %v315
  %v1085 = vunpack.c.l.b16 %v316
  %v1086 = vunpack.c.h.b16 %v316
  %v1087 = vunpack.c.l.b16 %v317
  %v1088 = vunpack.c.h.b16 %v317
  %v1089 = vunpack.c.l.b16 %v318
  %v1090 = vunpack.c.h.b16 %v318
  %v1091 = vunpack.c.l.b16 %v319
  %v1092 = vunpack.c.h.b16 %v319
  %v1093 = vunpack.c.l.b16 %v320
  %v1094 = vunpack.c.h.b16 %v320
  %v1095 = vunpack.c.l.b16 %v321
  %v1096 = vunpack.c.h.b16 %v321
  %v1097 = vunpack.c.l.b16 %v322
  %v1098 = vunpack.c.h.b16 %v322
  %v1099 = vunpack.c.l.b16 %v323
  %v1100 = vunpack.c.h.b16 %v323
  %v1101 = vunpack.c.l.b16 %v324
  %v1102 = vunpack.c.h.b16 %v324
  %v1103 = vunpack.c.l.b16 %v325
  %v1104 = vunpack.c.h.b16 %v325
  %v1105 = vunpack.c.l.b16 %v326
  %v1106 = vunpack.c.h.b16 %v326
  %v1107 = vunpack.c.l.b16 %v327
  %v1108 = vunpack.c.h.b16 %v327
  %v1109 = vunpack.c.l.b16 %v328
  %v1110 = vunpack.c.h.b16 %v328
  %v1111 = vunpack.c.l.b16 %v329
  %v1112 = vunpack.c.h.b16 %v329
  %v1113 = vunpack.c.l.b16 %v330
  %v1114 = vunpack.c.h.b16 %v330
  %v1115 = vunpack.c.l.b16 %v331
  %v1116 = vunpack.c.h.b16 %v331
  %v1117 = vunpack.c.l.b16 %v332
  %v1118 = vunpack.c.h.b16 %v332
  %v1119 = vunpack.c.l.b16 %v333
  %v1120 = vunpack.c.h.b16 %v333
  %v1121 = vunpack.c.l.b16 %v334
  %v1122 = vunpack.c.h.b16 %v334
  %v1123 = vunpack.c.l.b16 %v335
  %v1124 = vunpack.c.h.b16 %v335
  %v1125 = vunpack.c.l.b16 %v336
  %v1126 = vunpack.c.h.b16 %v336
  %v1127 = vpack.c.b16 %v619, %v615
  %v1128 = vpack.c.b16 %v620, %v616
  %v1129 = vpack.c.b16 %v621, %v617
  %v1130 = vpack.c.b16 %v622, %v618
  %v1131 = vpack.c.b16 %v627, %v623
  %v1132 = vpack.c.b16 %v628, %v624
  %v1133 = vpack.c.b16 %v629, %v625
  %v1134 = vpack.c.b16 %v630, %v626
  %v1135 = vpack.c.b16 %v635, %v631
  %v1136 = vpack.c.b16 %v636, %v632
  %v1137 = vpack.c.b16 %v637, %v633
  %v1138 = vpack.c.b16 %v638, %v634
  %v1139 = vpack.c.b16 %v643, %v639
  %v1140 = vpack.c.b16 %v644, %v640
  %v1141 = vpack.c.b16 %v645, %v641
  %v1142 = vpack.c.b16 %v646, %v642
  %v1143 = vpack.c.b16 %v651, %v647
  %v1144 = vpack.c.b16 %v652, %v648
  %v1145 = vpack.c.b16 %v653, %v649
  %v1146 = vpack.c.b16 %v654, %v650
  %v1147 = vpack.c.b16 %v659, %v655
  %v1148 = vpack.c.b16 %v660, %v656
  %v1149 = vpack.c.b16 %v661, %v657
  %v1150 = vpack.c.b16 %v662, %v658
  %v1151 = vpack.c.b16 %v667, %v663
  %v1152 = vpack.c.b16 %v668, %v664
  %v1153 = vpack.c.b16 %v669, %v665
  %v1154 = vpack.c.b16 %v670, %v666
  %v1155 = vpack.c.b16 %v675, %v671
  %v1156 = vpack.c.b16 %v676, %v672
  %v1157 = vpack.c.b16 %v677, %v673
  %v1158 = vpack.c.b16 %v678, %v674
  %v1159 = vpack.c.b16 %v683, %v679
  %v1160 = vpack.c.b16 %v684, %v680
  %v1161 = vpack.c.b16 %v685, %v681
  %v1162 = vpack.c.b16 %v686, %v682
  %v1163 = vpack.c.b16 %v691, %v687
  %v1164 = vpack.c.b16 %v692, %v688
  %v1165 = vpack.c.b16 %v693, %v689
  %v1166 = vpack.c.b16 %v694, %v690
  %v1167 = vpack.c.b16 %v699, %v695
  %v1168 = vpack.c.b16 %v700, %v696
  %v1169 = vpack.c.b16 %v701, %v697
  %v1170 = vpack.c.b16 %v702, %v698
  %v1171 = vpack.c.b16 %v707, %v703
  %v1172 = vpack.c.b16 %v708, %v704
  %v1173 = vpack.c.b16 %v709, %v705
  %v1174 = vpack.c.b16 %v710, %v706
  %v1175 = vpack.c.b16 %v715, %v711
  %v1176 = vpack.c.b16 %v716, %v712
  %v1177 = vpack.c.b16 %v717, %v713
  %v1178 = vpack.c.b16 %v718, %v714
  %v1179 = vpack.c.b16 %v723, %v719
  %v1180 = vpack.c.b16 %v724, %v720
  %v1181 = vpack.c.b16 %v725, %v721
  %v1182 = vpack.c.b16 %v726, %v722
  %v1183 = vpack.c.b16 %v731, %v727
  %v1184 = vpack.c.b16 %v732, %v728
  %v1185 = vpack.c.b16 %v733, %v729
  %v1186 = vpack.c.b16 %v734, %v730
  %v1187 = vpack.c.b16 %v739, %v735
  %v1188 = vpack.c.b16 %v740, %v736
  %v1189 = vpack.c.b16 %v741, %v737
  %v1190 = vpack.c.b16 %v742, %v738
  %v1191 = vpack.c.b16 %v747, %v743
  %v1192 = vpack.c.b16 %v748, %v744
  %v1193 = vpack.c.b16 %v749, %v745
  %v1194 = vpack.c.b16 %v750, %v746
  %v1195 = vpack.c.b16 %v755, %v751
  %v1196 = vpack.c.b16 %v756, %v752
  %v1197 = vpack.c.b16 %v757, %v753
  %v1198 = vpack.c.b16 %v758, %v754
  %v1199 = vpack.c.b16 %v763, %v759
  %v1200 = vpack.c.b16 %v764, %v760
  %v1201 = vpack.c.b16 %v765, %v761
  %v1202 = vpack.c.b16 %v766, %v762
  %v1203 = vpack.c.b16 %v771, %v767
  %v1204 = vpack.c.b16 %v772, %v768
  %v1205 = vpack.c.b16 %v773, %v769
  %v1206 = vpack.c.b16 %v774, %v770
  %v1207 = vpack.c.b16 %v779, %v775
  %v1208 = vpack.c.b16 %v780, %v776
  %v1209 = vpack.c.b16 %v781, %v777
  %v1210 = vpack.c.b16 %v782, %v778
  %v1211 = vpack.c.b16 %v787, %v783
  %v1212 = vpack.c.b16 %v788, %v784
  %v1213 = vpack.c.b16 %v789, %v785
  %v1214 = vpack.c.b16 %v790, %v786
  %v1215 = vpack.c.b16 %v795, %v791
  %v1216 = vpack.c.b16 %v796, %v792
  %v1217 = vpack.c.b16 %v797, %v793
  %v1218 = vpack.c.b16 %v798, %v794
  %v1219 = vpack.c.b16 %v803, %v799
  %v1220 = vpack.c.b16 %v804, %v800
  %v1221 = vpack.c.b16 %v805, %v801
  %v1222 = vpack.c.b16 %v806, %v802
  %v1223 = vpack.c.b16 %v811, %v807
  %v1224 = vpack.c.b16 %v812, %v808
  %v1225 = vpack.c.b16 %v813, %v809
  %v1226 = vpack.c.b16 %v814, %v810
  %v1227 = vpack.c.b16 %v819, %v815
  %v1228 = vpack.c.b16 %v820, %v816
  %v1229 = vpack.c.b16 %v821, %v817
  %v1230 = vpack.c.b16 %v822, %v818
  %v1231 = vpack.c.b16 %v827, %v823
  %v1232 = vpack.c.b16 %v828, %v824
  %v1233 = vpack.c.b16 %v829, %v825
  %v1234 = vpack.c.b16 %v830, %v826
  %v1235 = vpack.c.b16 %v835, %v831
  %v1236 = vpack.c.b16 %v836, %v832
  %v1237 = vpack.c.b16 %v837, %v833
  %v1238 = vpack.c.b16 %v838, %v834
  %v1239 = vpack.c.b16 %v843, %v839
  %v1240 = vpack.c.b16 %v844, %v840
  %v1241 = vpack.c.b16 %v845, %v841
  %v1242 = vpack.c.b16 %v846, %v842
  %v1243 = vpack.c.b16 %v851, %v847
  %v1244 = vpack.c.b16 %v852, %v848
  %v1245 = vpack.c.b16 %v853, %v849
  %v1246 = vpack.c.b16 %v854, %v850
  %v1247 = vpack.c.b16 %v859, %v855
  %v1248 = vpack.c.b16 %v860, %v856
  %v1249 = vpack.c.b16 %v861, %v857
  %v1250 = vpack.c.b16 %v862, %v858
  %v1251 = vpack.c.b16 %v867, %v863
  %v1252 = vpack.c.b16 %v868, %v864
  %v1253 = vpack.c.b16 %v869, %v865
  %v1254 = vpack.c.b16 %v870, %v866
  %v1255 = vpack.c.b16 %v875, %v871
  %v1256 = vpack.c.b16 %v876, %v872
  %v1257 = vpack.c.b16 %v877, %v873
  %v1258 = vpack.c.b16 %v878, %v874
  %v1259 = vpack.c.b16 %v883, %v879
  %v1260 = vpack.c.b16 %v884, %v880
  %v1261 = vpack.c.b16 %v885, %v881
  %v1262 = vpack.c.b16 %v886, %v882
  %v1263 = vpack.c.b16 %v891, %v887
  %v1264 = vpack.c.b16 %v892, %v888
  %v1265 = vpack.c.b16 %v893, %v889
  %v1266 = vpack.c.b16 %v894, %v890
  %v1267 = vpack.c.b16 %v899, %v895
  %v1268 = vpack.c.b16 %v900, %v896
  %v1269 = vpack.c.b16 %v901, %v897
  %v1270 = vpack.c.b16 %v902, %v898
  %v1271 = vpack.c.b16 %v907, %v903
  %v1272 = vpack.c.b16 %v908, %v904
  %v1273 = vpack.c.b16 %v909, %v905
  %v1274 = vpack.c.b16 %v910, %v906
  %v1275 = vpack.c.b16 %v915, %v911
  %v1276 = vpack.c.b16 %v916, %v912
  %v1277 = vpack.c.b16 %v917, %v913
  %v1278 = vpack.c.b16 %v918, %v914
  %v1279 = vpack.c.b16 %v923, %v919
  %v1280 = vpack.c.b16 %v924, %v920
  %v1281 = vpack.c.b16 %v925, %v921
  %v1282 = vpack.c.b16 %v926, %v922
  %v1283 = vpack.c.b16 %v931, %v927
  %v1284 = vpack.c.b16 %v932, %v928
  %v1285 = vpack.c.b16 %v933, %v929
  %v1286 = vpack.c.b16 %v934, %v930
  %v1287 = vpack.c.b16 %v939, %v935
  %v1288 = vpack.c.b16 %v940, %v936
  %v1289 = vpack.c.b16 %v941, %v937
  %v1290 = vpack.c.b16 %v942, %v938
  %v1291 = vpack.c.b16 %v947, %v943
  %v1292 = vpack.c.b16 %v948, %v944
  %v1293 = vpack.c.b16 %v949, %v945
  %v1294 = vpack.c.b16 %v950, %v946
  %v1295 = vpack.c.b16 %v955, %v951
  %v1296 = vpack.c.b16 %v956, %v952
  %v1297 = vpack.c.b16 %v957, %v953
  %v1298 = vpack.c.b16 %v958, %v954
  %v1299 = vpack.c.b16 %v963, %v959
  %v1300 = vpack.c.b16 %v964, %v960
  %v1301 = vpack.c.b16 %v965, %v961
  %v1302 = vpack.c.b16 %v966, %v962
  %v1303 = vpack.c.b16 %v971, %v967
  %v1304 = vpack.c.b16 %v972, %v968
  %v1305 = vpack.c.b16 %v973, %v969
  %v1306 = vpack.c.b16 %v974, %v970
  %v1307 = vpack.c.b16 %v979, %v975
  %v1308 = vpack.c.b16 %v980, %v976
  %v1309 = vpack.c.b16 %v981, %v977
  %v1310 = vpack.c.b16 %v982, %v978
  %v1311 = vpack.c.b16 %v987, %v983
  %v1312 = vpack.c.b16 %v988, %v984
  %v1313 = vpack.c.b16 %v989, %v985
  %v1314 = vpack.c.b16 %v990, %v986
  %v1315 = vpack.c.b16 %v995, %v991
  %v1316 = vpack.c.b16 %v996, %v992
  %v1317 = vpack.c.b16 %v997, %v993
  %v1318 = vpack.c.b16 %v998, %v994
  %v1319 = vpack.c.b16 %v1003, %v999
  %v1320 = vpack.c.b16 %v1004, %v1000
  %v1321 = vpack.c.b16 %v1005, %v1001
  %v1322 = vpack.c.b16 %v1006, %v1002
  %v1323 = vpack.c.b16 %v1011, %v1007
  %v1324 = vpack.c.b16 %v1012, %v1008
  %v1325 = vpack.c.b16 %v1013, %v1009
  %v1326 = vpack.c.b16 %v1014, %v1010
  %v1327 = vpack.c.b16 %v1019, %v1015
  %v1328 = vpack.c.b16 %v1020, %v1016
  %v1329 = vpack.c.b16 %v1021, %v1017
  %v1330 = vpack.c.b16 %v1022, %v1018
  %v1331 = vpack.c.b16 %v1027, %v1023
  %v1332 = vpack.c.b16 %v1028, %v1024
  %v1333 = vpack.c.b16 %v1029, %v1025
  %v1334 = vpack.c.b16 %v1030, %v1026
  %v1335 = vpack.c.b16 %v1035, %v1031
  %v1336 = vpack.c.b16 %v1036, %v1032
  %v1337 = vpack.c.b16 %v1037, %v1033
  %v1338 = vpack.c.b16 %v1038, %v1034
  %v1339 = vpack.c.b16 %v1043, %v1039
  %v1340 = vpack.c.b16 %v1044, %v1040
  %v1341 = vpack.c.b16 %v1045, %v1041
  %v1342 = vpack.c.b16 %v1046, %v1042
  %v1343 = vpack.c.b16 %v1051, %v1047
  %v1344 = vpack.c.b16 %v1052, %v1048
  %v1345 = vpack.c.b16 %v1053, %v1049
  %v1346 = vpack.c.b16 %v1054, %v1050
  %v1347 = vpack.c.b16 %v1059, %v1055
  %v1348 = vpack.c.b16 %v1060, %v1056
  %v1349 = vpack.c.b16 %v1061, %v1057
  %v1350 = vpack.c.b16 %v1062, %v1058
  %v1351 = vpack.c.b16 %v1067, %v1063
  %v1352 = vpack.c.b16 %v1068, %v1064
  %v1353 = vpack.c.b16 %v1069, %v1065
  %v1354 = vpack.c.b16 %v1070, %v1066
  %v1355 = vpack.c.b16 %v1075, %v1071
  %v1356 = vpack.c.b16 %v1076, %v1072
  %v1357 = vpack.c.b16 %v1077, %v1073
  %v1358 = vpack.c.b16 %v1078, %v1074
  %v1359 = vpack.c.b16 %v1083, %v1079
  %v1360 = vpack.c.b16 %v1084, %v1080
  %v1361 = vpack.c.b16 %v1085, %v1081
  %v1362 = vpack.c.b16 %v1086, %v1082
  %v1363 = vpack.c.b16 %v1091, %v1087
  %v1364 = vpack.c.b16 %v1092, %v1088
  %v1365 = vpack.c.b16 %v1093, %v1089
  %v1366 = vpack.c.b16 %v1094, %v1090
  %v1367 = vpack.c.b16 %v1099, %v1095
  %v1368 = vpack.c.b16 %v1100, %v1096
  %v1369 = vpack.c.b16 %v1101, %v1097
  %v1370 = vpack.c.b16 %v1102, %v1098
  %v1371 = vpack.c.b16 %v1107, %v1103
  %v1372 = vpack.c.b16 %v1108, %v1104
  %v1373 = vpack.c.b16 %v1109, %v1105
  %v1374 = vpack.c.b16 %v1110, %v1106
  %v1375 = vpack.c.b16 %v1115, %v1111
  %v1376 = vpack.c.b16 %v1116, %v1112
  %v1377 = vpack.c.b16 %v1117, %v1113
  %v1378 = vpack.c.b16 %v1118, %v1114
  %v1379 = vpack.c.b16 %v1123, %v1119
  %v1380 = vpack.c.b16 %v1124, %v1120
  %v1381 = vpack.c.b16 %v1125, %v1121
  %v1382 = vpack.c.b16 %v1126, %v1122
  %1639 = vmatprep.subr.bf16.mxu0 %v1128
  %1640 = vmatpush1.bf16.msra.mxu0 %v1127
  %1641 = vmatprep.subr.bf16.mxu0 %v1132
  %1642 = vmatpush1.bf16.msra.mxu0 %v1131
  %1643 = vmatprep.subr.bf16.mxu0 %v1136
  %1644 = vmatpush1.bf16.msra.mxu0 %v1135
  %1645 = vmatprep.subr.bf16.mxu0 %v1140
  %1646 = vmatpush1.bf16.msra.mxu0 %v1139
  %1647 = vmatprep.subr.bf16.mxu0 %v1144
  %1648 = vmatpush1.bf16.msra.mxu0 %v1143
  %1649 = vmatprep.subr.bf16.mxu0 %v1148
  %1650 = vmatpush1.bf16.msra.mxu0 %v1147
  %1651 = vmatprep.subr.bf16.mxu0 %v1152
  %1652 = vmatpush1.bf16.msra.mxu0 %v1151
  %1653 = vmatprep.subr.bf16.mxu0 %v1156
  %1654 = vmatpush1.bf16.msra.mxu0 %v1155
  %1655 = vmatprep.subr.bf16.mxu0 %v1160
  %1656 = vmatpush1.bf16.msra.mxu0 %v1159
  %1657 = vmatprep.subr.bf16.mxu0 %v1164
  %1658 = vmatpush1.bf16.msra.mxu0 %v1163
  %1659 = vmatprep.subr.bf16.mxu0 %v1168
  %1660 = vmatpush1.bf16.msra.mxu0 %v1167
  %1661 = vmatprep.subr.bf16.mxu0 %v1172
  %1662 = vmatpush1.bf16.msra.mxu0 %v1171
  %1663 = vmatprep.subr.bf16.mxu0 %v1176
  %1664 = vmatpush1.bf16.msra.mxu0 %v1175
  %1665 = vmatprep.subr.bf16.mxu0 %v1180
  %1666 = vmatpush1.bf16.msra.mxu0 %v1179
  %1667 = vmatprep.subr.bf16.mxu0 %v1184
  %1668 = vmatpush1.bf16.msra.mxu0 %v1183
  %1669 = vmatprep.subr.bf16.mxu0 %v1188
  %1670 = vmatpush1.bf16.msra.mxu0 %v1187
  %1671 = vmatprep.mubr.bf16.mxu0 %v74
  %1672 = vmatmul.mubr.bf16.gmra.mrb[0].mxu0 %v73
  %v1673 = vpop.f32.mrb[0].mxu0
  %v1674 = vadd.f32 %v342, %v1673
  %v1675 = vpop.f32.mrb[0].mxu0
  %v1676 = vadd.f32 %v346, %v1675
  %v1677 = vpop.f32.mrb[0].mxu0
  %v1678 = vpop.f32.mrb[0].mxu0
  %1679 = vdwg.mxu0
  %1680 = vmatprep.subr.bf16.mxu0 %v1192
  %1681 = vmatpush1.bf16.msra.mxu0 %v1191
  %1682 = vmatprep.subr.bf16.mxu0 %v1196
  %1683 = vmatpush1.bf16.msra.mxu0 %v1195
  %1684 = vmatprep.subr.bf16.mxu0 %v1200
  %1685 = vmatpush1.bf16.msra.mxu0 %v1199
  %1686 = vmatprep.subr.bf16.mxu0 %v1204
  %1687 = vmatpush1.bf16.msra.mxu0 %v1203
  %1688 = vmatprep.subr.bf16.mxu0 %v1208
  %1689 = vmatpush1.bf16.msra.mxu0 %v1207
  %1690 = vmatprep.subr.bf16.mxu0 %v1212
  %1691 = vmatpush1.bf16.msra.mxu0 %v1211
  %1692 = vmatprep.subr.bf16.mxu0 %v1216
  %1693 = vmatpush1.bf16.msra.mxu0 %v1215
  %1694 = vmatprep.subr.bf16.mxu0 %v1220
  %1695 = vmatpush1.bf16.msra.mxu0 %v1219
  %1696 = vmatprep.subr.bf16.mxu0 %v1224
  %1697 = vmatpush1.bf16.msra.mxu0 %v1223
  %1698 = vmatprep.subr.bf16.mxu0 %v1228
  %1699 = vmatpush1.bf16.msra.mxu0 %v1227
  %1700 = vmatprep.subr.bf16.mxu0 %v1232
  %1701 = vmatpush1.bf16.msra.mxu0 %v1231
  %1702 = vmatprep.subr.bf16.mxu0 %v1236
  %1703 = vmatpush1.bf16.msra.mxu0 %v1235
  %1704 = vmatprep.subr.bf16.mxu0 %v1240
  %1705 = vmatpush1.bf16.msra.mxu0 %v1239
  %1706 = vmatprep.subr.bf16.mxu0 %v1244
  %1707 = vmatpush1.bf16.msra.mxu0 %v1243
  %1708 = vmatprep.subr.bf16.mxu0 %v1248
  %1709 = vmatpush1.bf16.msra.mxu0 %v1247
  %1710 = vmatprep.subr.bf16.mxu0 %v1252
  %1711 = vmatpush1.bf16.msra.mxu0 %v1251
  %1712 = vmatprep.mubr.bf16.mxu0 %v76
  %1713 = vmatmul.mubr.bf16.gmra.mrb[0].mxu0 %v75
  %v1714 = vpop.f32.mrb[0].mxu0
  %v1715 = vadd.f32 %v1674, %v1714
  %v1716 = vpop.f32.mrb[0].mxu0
  %v1717 = vadd.f32 %v1676, %v1716
  %v1718 = vpop.f32.mrb[0].mxu0
  %v1719 = vpop.f32.mrb[0].mxu0
  %1720 = vdwg.mxu0
  %1721 = vmatprep.subr.bf16.mxu0 %v1256
  %1722 = vmatpush1.bf16.msra.mxu0 %v1255
  %1723 = vmatprep.subr.bf16.mxu0 %v1260
  %1724 = vmatpush1.bf16.msra.mxu0 %v1259
  %1725 = vmatprep.subr.bf16.mxu0 %v1264
  %1726 = vmatpush1.bf16.msra.mxu0 %v1263
  %1727 = vmatprep.subr.bf16.mxu0 %v1268
  %1728 = vmatpush1.bf16.msra.mxu0 %v1267
  %1729 = vmatprep.subr.bf16.mxu0 %v1272
  %1730 = vmatpush1.bf16.msra.mxu0 %v1271
  %1731 = vmatprep.subr.bf16.mxu0 %v1276
  %1732 = vmatpush1.bf16.msra.mxu0 %v1275
  %1733 = vmatprep.subr.bf16.mxu0 %v1280
  %1734 = vmatpush1.bf16.msra.mxu0 %v1279
  %1735 = vmatprep.subr.bf16.mxu0 %v1284
  %1736 = vmatpush1.bf16.msra.mxu0 %v1283
  %1737 = vmatprep.subr.bf16.mxu0 %v1288
  %1738 = vmatpush1.bf16.msra.mxu0 %v1287
  %1739 = vmatprep.subr.bf16.mxu0 %v1292
  %1740 = vmatpush1.bf16.msra.mxu0 %v1291
  %1741 = vmatprep.subr.bf16.mxu0 %v1296
  %1742 = vmatpush1.bf16.msra.mxu0 %v1295
  %1743 = vmatprep.subr.bf16.mxu0 %v1300
  %1744 = vmatpush1.bf16.msra.mxu0 %v1299
  %1745 = vmatprep.subr.bf16.mxu0 %v1304
  %1746 = vmatpush1.bf16.msra.mxu0 %v1303
  %1747 = vmatprep.subr.bf16.mxu0 %v1308
  %1748 = vmatpush1.bf16.msra.mxu0 %v1307
  %1749 = vmatprep.subr.bf16.mxu0 %v1312
  %1750 = vmatpush1.bf16.msra.mxu0 %v1311
  %1751 = vmatprep.subr.bf16.mxu0 %v1316
  %1752 = vmatpush1.bf16.msra.mxu0 %v1315
  %1753 = vmatprep.mubr.bf16.mxu0 %v78
  %1754 = vmatmul.mubr.bf16.gmra.mrb[0].mxu0 %v77
  %v1755 = vpop.f32.mrb[0].mxu0
  %v1756 = vadd.f32 %v1715, %v1755
  %v1757 = vpop.f32.mrb[0].mxu0
  %v1758 = vadd.f32 %v1717, %v1757
  %v1759 = vpop.f32.mrb[0].mxu0
  %v1760 = vpop.f32.mrb[0].mxu0
  %1761 = vdwg.mxu0
  %1762 = vmatprep.subr.bf16.mxu0 %v1320
  %1763 = vmatpush1.bf16.msra.mxu0 %v1319
  %1764 = vmatprep.subr.bf16.mxu0 %v1324
  %1765 = vmatpush1.bf16.msra.mxu0 %v1323
  %1766 = vmatprep.subr.bf16.mxu0 %v1328
  %1767 = vmatpush1.bf16.msra.mxu0 %v1327
  %1768 = vmatprep.subr.bf16.mxu0 %v1332
  %1769 = vmatpush1.bf16.msra.mxu0 %v1331
  %1770 = vmatprep.subr.bf16.mxu0 %v1336
  %1771 = vmatpush1.bf16.msra.mxu0 %v1335
  %1772 = vmatprep.subr.bf16.mxu0 %v1340
  %1773 = vmatpush1.bf16.msra.mxu0 %v1339
  %1774 = vmatprep.subr.bf16.mxu0 %v1344
  %1775 = vmatpush1.bf16.msra.mxu0 %v1343
  %1776 = vmatprep.subr.bf16.mxu0 %v1348
  %1777 = vmatpush1.bf16.msra.mxu0 %v1347
  %1778 = vmatprep.subr.bf16.mxu0 %v1352
  %1779 = vmatpush1.bf16.msra.mxu0 %v1351
  %1780 = vmatprep.subr.bf16.mxu0 %v1356
  %1781 = vmatpush1.bf16.msra.mxu0 %v1355
  %1782 = vmatprep.subr.bf16.mxu0 %v1360
  %1783 = vmatpush1.bf16.msra.mxu0 %v1359
  %1784 = vmatprep.subr.bf16.mxu0 %v1364
  %1785 = vmatpush1.bf16.msra.mxu0 %v1363
  %1786 = vmatprep.subr.bf16.mxu0 %v1368
  %1787 = vmatpush1.bf16.msra.mxu0 %v1367
  %1788 = vmatprep.subr.bf16.mxu0 %v1372
  %1789 = vmatpush1.bf16.msra.mxu0 %v1371
  %1790 = vmatprep.subr.bf16.mxu0 %v1376
  %1791 = vmatpush1.bf16.msra.mxu0 %v1375
  %1792 = vmatprep.subr.bf16.mxu0 %v1380
  %1793 = vmatpush1.bf16.msra.mxu0 %v1379
  %1794 = vmatprep.mubr.bf16.mxu0 %v80
  %1795 = vmatmul.mubr.bf16.gmra.mrb[0].mxu0 %v79
  %v1796 = vpop.f32.mrb[0].mxu0
  %v1797 = vadd.f32 %v1756, %v1796
  %v1798 = vpop.f32.mrb[0].mxu0
  %v1799 = vadd.f32 %v1758, %v1798
  %v1800 = vpop.f32.mrb[0].mxu0
  %v1801 = vpop.f32.mrb[0].mxu0
  %1802 = vdwg.mxu0
  %1803 = vmatprep.subr.bf16.mxu0 %v1130
  %1804 = vmatpush1.bf16.msra.mxu0 %v1129
  %1805 = vmatprep.subr.bf16.mxu0 %v1134
  %1806 = vmatpush1.bf16.msra.mxu0 %v1133
  %1807 = vmatprep.subr.bf16.mxu0 %v1138
  %1808 = vmatpush1.bf16.msra.mxu0 %v1137
  %1809 = vmatprep.subr.bf16.mxu0 %v1142
  %1810 = vmatpush1.bf16.msra.mxu0 %v1141
  %1811 = vmatprep.subr.bf16.mxu0 %v1146
  %1812 = vmatpush1.bf16.msra.mxu0 %v1145
  %1813 = vmatprep.subr.bf16.mxu0 %v1150
  %1814 = vmatpush1.bf16.msra.mxu0 %v1149
  %1815 = vmatprep.subr.bf16.mxu0 %v1154
  %1816 = vmatpush1.bf16.msra.mxu0 %v1153
  %1817 = vmatprep.subr.bf16.mxu0 %v1158
  %1818 = vmatpush1.bf16.msra.mxu0 %v1157
  %1819 = vmatprep.subr.bf16.mxu0 %v1162
  %1820 = vmatpush1.bf16.msra.mxu0 %v1161
  %1821 = vmatprep.subr.bf16.mxu0 %v1166
  %1822 = vmatpush1.bf16.msra.mxu0 %v1165
  %1823 = vmatprep.subr.bf16.mxu0 %v1170
  %1824 = vmatpush1.bf16.msra.mxu0 %v1169
  %1825 = vmatprep.subr.bf16.mxu0 %v1174
  %1826 = vmatpush1.bf16.msra.mxu0 %v1173
  %1827 = vmatprep.subr.bf16.mxu0 %v1178
  %1828 = vmatpush1.bf16.msra.mxu0 %v1177
  %1829 = vmatprep.subr.bf16.mxu0 %v1182
  %1830 = vmatpush1.bf16.msra.mxu0 %v1181
  %1831 = vmatprep.subr.bf16.mxu0 %v1186
  %1832 = vmatpush1.bf16.msra.mxu0 %v1185
  %1833 = vmatprep.subr.bf16.mxu0 %v1190
  %1834 = vmatpush1.bf16.msra.mxu0 %v1189
  %1835 = vmatprep.mubr.bf16.mxu0 %v74
  %1836 = vmatmul.mubr.bf16.gmra.mrb[0].mxu0 %v73
  %v1837 = vpop.f32.mrb[0].mxu0
  %v1838 = vadd.f32 %v350, %v1837
  %v1839 = vpop.f32.mrb[0].mxu0
  %v1840 = vadd.f32 %v354, %v1839
  %v1841 = vpop.f32.mrb[0].mxu0
  %v1842 = vpop.f32.mrb[0].mxu0
  %1843 = vdwg.mxu0
  %1844 = vmatprep.subr.bf16.mxu0 %v1194
  %1845 = vmatpush1.bf16.msra.mxu0 %v1193
  %1846 = vmatprep.subr.bf16.mxu0 %v1198
  %1847 = vmatpush1.bf16.msra.mxu0 %v1197
  %1848 = vmatprep.subr.bf16.mxu0 %v1202
  %1849 = vmatpush1.bf16.msra.mxu0 %v1201
  %1850 = vmatprep.subr.bf16.mxu0 %v1206
  %1851 = vmatpush1.bf16.msra.mxu0 %v1205
  %1852 = vmatprep.subr.bf16.mxu0 %v1210
  %1853 = vmatpush1.bf16.msra.mxu0 %v1209
  %1854 = vmatprep.subr.bf16.mxu0 %v1214
  %1855 = vmatpush1.bf16.msra.mxu0 %v1213
  %1856 = vmatprep.subr.bf16.mxu0 %v1218
  %1857 = vmatpush1.bf16.msra.mxu0 %v1217
  %1858 = vmatprep.subr.bf16.mxu0 %v1222
  %1859 = vmatpush1.bf16.msra.mxu0 %v1221
  %1860 = vmatprep.subr.bf16.mxu0 %v1226
  %1861 = vmatpush1.bf16.msra.mxu0 %v1225
  %1862 = vmatprep.subr.bf16.mxu0 %v1230
  %1863 = vmatpush1.bf16.msra.mxu0 %v1229
  %1864 = vmatprep.subr.bf16.mxu0 %v1234
  %1865 = vmatpush1.bf16.msra.mxu0 %v1233
  %1866 = vmatprep.subr.bf16.mxu0 %v1238
  %1867 = vmatpush1.bf16.msra.mxu0 %v1237
  %1868 = vmatprep.subr.bf16.mxu0 %v1242
  %1869 = vmatpush1.bf16.msra.mxu0 %v1241
  %1870 = vmatprep.subr.bf16.mxu0 %v1246
  %1871 = vmatpush1.bf16.msra.mxu0 %v1245
  %1872 = vmatprep.subr.bf16.mxu0 %v1250
  %1873 = vmatpush1.bf16.msra.mxu0 %v1249
  %1874 = vmatprep.subr.bf16.mxu0 %v1254
  %1875 = vmatpush1.bf16.msra.mxu0 %v1253
  %1876 = vmatprep.mubr.bf16.mxu0 %v76
  %1877 = vmatmul.mubr.bf16.gmra.mrb[0].mxu0 %v75
  %v1878 = vpop.f32.mrb[0].mxu0
  %v1879 = vadd.f32 %v1838, %v1878
  %v1880 = vpop.f32.mrb[0].mxu0
  %v1881 = vadd.f32 %v1840, %v1880
  %v1882 = vpop.f32.mrb[0].mxu0
  %v1883 = vpop.f32.mrb[0].mxu0
  %1884 = vdwg.mxu0
  %1885 = vmatprep.subr.bf16.mxu0 %v1258
  %1886 = vmatpush1.bf16.msra.mxu0 %v1257
  %1887 = vmatprep.subr.bf16.mxu0 %v1262
  %1888 = vmatpush1.bf16.msra.mxu0 %v1261
  %1889 = vmatprep.subr.bf16.mxu0 %v1266
  %1890 = vmatpush1.bf16.msra.mxu0 %v1265
  %1891 = vmatprep.subr.bf16.mxu0 %v1270
  %1892 = vmatpush1.bf16.msra.mxu0 %v1269
  %1893 = vmatprep.subr.bf16.mxu0 %v1274
  %1894 = vmatpush1.bf16.msra.mxu0 %v1273
  %1895 = vmatprep.subr.bf16.mxu0 %v1278
  %1896 = vmatpush1.bf16.msra.mxu0 %v1277
  %1897 = vmatprep.subr.bf16.mxu0 %v1282
  %1898 = vmatpush1.bf16.msra.mxu0 %v1281
  %1899 = vmatprep.subr.bf16.mxu0 %v1286
  %1900 = vmatpush1.bf16.msra.mxu0 %v1285
  %1901 = vmatprep.subr.bf16.mxu0 %v1290
  %1902 = vmatpush1.bf16.msra.mxu0 %v1289
  %1903 = vmatprep.subr.bf16.mxu0 %v1294
  %1904 = vmatpush1.bf16.msra.mxu0 %v1293
  %1905 = vmatprep.subr.bf16.mxu0 %v1298
  %1906 = vmatpush1.bf16.msra.mxu0 %v1297
  %1907 = vmatprep.subr.bf16.mxu0 %v1302
  %1908 = vmatpush1.bf16.msra.mxu0 %v1301
  %1909 = vmatprep.subr.bf16.mxu0 %v1306
  %1910 = vmatpush1.bf16.msra.mxu0 %v1305
  %1911 = vmatprep.subr.bf16.mxu0 %v1310
  %1912 = vmatpush1.bf16.msra.mxu0 %v1309
  %1913 = vmatprep.subr.bf16.mxu0 %v1314
  %1914 = vmatpush1.bf16.msra.mxu0 %v1313
  %1915 = vmatprep.subr.bf16.mxu0 %v1318
  %1916 = vmatpush1.bf16.msra.mxu0 %v1317
  %1917 = vmatprep.mubr.bf16.mxu0 %v78
  %1918 = vmatmul.mubr.bf16.gmra.mrb[0].mxu0 %v77
  %v1919 = vpop.f32.mrb[0].mxu0
  %v1920 = vadd.f32 %v1879, %v1919
  %v1921 = vpop.f32.mrb[0].mxu0
  %v1922 = vadd.f32 %v1881, %v1921
  %v1923 = vpop.f32.mrb[0].mxu0
  %v1924 = vpop.f32.mrb[0].mxu0
  %1925 = vdwg.mxu0
  %1926 = vmatprep.subr.bf16.mxu0 %v1322
  %1927 = vmatpush1.bf16.msra.mxu0 %v1321
  %1928 = vmatprep.subr.bf16.mxu0 %v1326
  %1929 = vmatpush1.bf16.msra.mxu0 %v1325
  %1930 = vmatprep.subr.bf16.mxu0 %v1330
  %1931 = vmatpush1.bf16.msra.mxu0 %v1329
  %1932 = vmatprep.subr.bf16.mxu0 %v1334
  %1933 = vmatpush1.bf16.msra.mxu0 %v1333
  %1934 = vmatprep.subr.bf16.mxu0 %v1338
  %1935 = vmatpush1.bf16.msra.mxu0 %v1337
  %1936 = vmatprep.subr.bf16.mxu0 %v1342
  %1937 = vmatpush1.bf16.msra.mxu0 %v1341
  %1938 = vmatprep.subr.bf16.mxu0 %v1346
  %1939 = vmatpush1.bf16.msra.mxu0 %v1345
  %1940 = vmatprep.subr.bf16.mxu0 %v1350
  %1941 = vmatpush1.bf16.msra.mxu0 %v1349
  %1942 = vmatprep.subr.bf16.mxu0 %v1354
  %1943 = vmatpush1.bf16.msra.mxu0 %v1353
  %1944 = vmatprep.subr.bf16.mxu0 %v1358
  %1945 = vmatpush1.bf16.msra.mxu0 %v1357
  %1946 = vmatprep.subr.bf16.mxu0 %v1362
  %1947 = vmatpush1.bf16.msra.mxu0 %v1361
  %1948 = vmatprep.subr.bf16.mxu0 %v1366
  %1949 = vmatpush1.bf16.msra.mxu0 %v1365
  %1950 = vmatprep.subr.bf16.mxu0 %v1370
  %1951 = vmatpush1.bf16.msra.mxu0 %v1369
  %1952 = vmatprep.subr.bf16.mxu0 %v1374
  %1953 = vmatpush1.bf16.msra.mxu0 %v1373
  %1954 = vmatprep.subr.bf16.mxu0 %v1378
  %1955 = vmatpush1.bf16.msra.mxu0 %v1377
  %1956 = vmatprep.subr.bf16.mxu0 %v1382
  %1957 = vmatpush1.bf16.msra.mxu0 %v1381
  %1958 = vmatprep.mubr.bf16.mxu0 %v80
  %1959 = vmatmul.mubr.bf16.gmra.mrb[0].mxu0 %v79
  %v1960 = vpop.f32.mrb[0].mxu0
  %v1961 = vadd.f32 %v1920, %v1960
  %v1962 = vpop.f32.mrb[0].mxu0
  %v1963 = vadd.f32 %v1922, %v1962
  %v1964 = vpop.f32.mrb[0].mxu0
  %v1965 = vpop.f32.mrb[0].mxu0
  %1966 = vdwg.mxu0
  %vm1967 = vcmp.ge.f32.partialorder %v1797, 0.0
  %vm1968 = vcmp.ge.f32.partialorder %v1799, 0.0
  %vm1969 = vcmp.ge.f32.partialorder %v1961, 0.0
  %vm1970 = vcmp.ge.f32.partialorder %v1963, 0.0
  %v1971 = vmul.f32 %v1797, 0.2
  %v1972 = vmul.f32 %v1799, 0.2
  %v1973 = vmul.f32 %v1961, 0.2
  %v1974 = vmul.f32 %v1963, 0.2
  %v1975 = vsel %vm1967, %v1797, %v1971
  %v1976 = vsel %vm1968, %v1799, %v1972
  %v1977 = vsel %vm1969, %v1961, %v1973
  %v1978 = vsel %vm1970, %v1963, %v1974
  %v1979 = vpack.c.bf16 %v1975, %v1975
  %v1980 = vpack.c.bf16 %v1976, %v1976
  %v1981 = vpack.c.bf16 %v1977, %v1977
  %v1982 = vpack.c.bf16 %v1978, %v1978
  %v1983 = vld [vmem:[%s3] sm:$0xff]
  %v1984 = vld [vmem:[%s3 + $0x8] sm:$0xff]
  %v1985 = vld [vmem:[%s3 + $0x10] sm:$0xff]
  %v1986 = vld [vmem:[%s3 + $0x18] sm:$0xff]
  %v1987 = vld [vmem:[%s3 + $0x20] sm:$0xff]
  %v1988 = vld [vmem:[%s3 + $0x28] sm:$0xff]
  %v1989 = vld [vmem:[%s3 + $0x30] sm:$0xff]
  %v1990 = vld [vmem:[%s3 + $0x38] sm:$0xff]
  %v1991 = vld [vmem:[%s3 + $0x40] sm:$0xff]
  %v1992 = vld [vmem:[%s3 + $0x48] sm:$0xff]
  %v1993 = vld [vmem:[%s3 + $0x50] sm:$0xff]
  %v1994 = vld [vmem:[%s3 + $0x58] sm:$0xff]
  %v1995 = vld [vmem:[%s3 + $0x60] sm:$0xff]
  %v1996 = vld [vmem:[%s3 + $0x68] sm:$0xff]
  %v1997 = vld [vmem:[%s3 + $0x70] sm:$0xff]
  %v1998 = vld [vmem:[%s3 + $0x78] sm:$0xff]
  %v1999 = vld [vmem:[%s3 + $0x80] sm:$0xff]
  %v2000 = vld [vmem:[%s3 + $0x88] sm:$0xff]
  %v2001 = vld [vmem:[%s3 + $0x90] sm:$0xff]
  %v2002 = vld [vmem:[%s3 + $0x98] sm:$0xff]
  %v2003 = vld [vmem:[%s3 + $0xa0] sm:$0xff]
  %v2004 = vld [vmem:[%s3 + $0xa8] sm:$0xff]
  %v2005 = vld [vmem:[%s3 + $0xb0] sm:$0xff]
  %v2006 = vld [vmem:[%s3 + $0xb8] sm:$0xff]
  %v2007 = vld [vmem:[%s3 + $0xc0] sm:$0xff]
  %v2008 = vld [vmem:[%s3 + $0xc8] sm:$0xff]
  %v2009 = vld [vmem:[%s3 + $0xd0] sm:$0xff]
  %v2010 = vld [vmem:[%s3 + $0xd8] sm:$0xff]
  %v2011 = vld [vmem:[%s3 + $0xe0] sm:$0xff]
  %v2012 = vld [vmem:[%s3 + $0xe8] sm:$0xff]
  %v2013 = vld [vmem:[%s3 + $0xf0] sm:$0xff]
  %v2014 = vld [vmem:[%s3 + $0xf8] sm:$0xff]
  %v2015 = vld [vmem:[%s3 + $0x100] sm:$0xff]
  %v2016 = vld [vmem:[%s3 + $0x108] sm:$0xff]
  %v2017 = vld [vmem:[%s3 + $0x110] sm:$0xff]
  %v2018 = vld [vmem:[%s3 + $0x118] sm:$0xff]
  %v2019 = vld [vmem:[%s3 + $0x120] sm:$0xff]
  %v2020 = vld [vmem:[%s3 + $0x128] sm:$0xff]
  %v2021 = vld [vmem:[%s3 + $0x130] sm:$0xff]
  %v2022 = vld [vmem:[%s3 + $0x138] sm:$0xff]
  %v2023 = vld [vmem:[%s3 + $0x140] sm:$0xff]
  %v2024 = vld [vmem:[%s3 + $0x148] sm:$0xff]
  %v2025 = vld [vmem:[%s3 + $0x150] sm:$0xff]
  %v2026 = vld [vmem:[%s3 + $0x158] sm:$0xff]
  %v2027 = vld [vmem:[%s3 + $0x160] sm:$0xff]
  %v2028 = vld [vmem:[%s3 + $0x168] sm:$0xff]
  %v2029 = vld [vmem:[%s3 + $0x170] sm:$0xff]
  %v2030 = vld [vmem:[%s3 + $0x178] sm:$0xff]
  %v2031 = vld [vmem:[%s3 + $0x180] sm:$0xff]
  %v2032 = vld [vmem:[%s3 + $0x188] sm:$0xff]
  %v2033 = vld [vmem:[%s3 + $0x190] sm:$0xff]
  %v2034 = vld [vmem:[%s3 + $0x198] sm:$0xff]
  %v2035 = vld [vmem:[%s3 + $0x1a0] sm:$0xff]
  %v2036 = vld [vmem:[%s3 + $0x1a8] sm:$0xff]
  %v2037 = vld [vmem:[%s3 + $0x1b0] sm:$0xff]
  %v2038 = vld [vmem:[%s3 + $0x1b8] sm:$0xff]
  %v2039 = vld [vmem:[%s3 + $0x1c0] sm:$0xff]
  %v2040 = vld [vmem:[%s3 + $0x1c8] sm:$0xff]
  %v2041 = vld [vmem:[%s3 + $0x1d0] sm:$0xff]
  %v2042 = vld [vmem:[%s3 + $0x1d8] sm:$0xff]
  %v2043 = vld [vmem:[%s3 + $0x1e0] sm:$0xff]
  %v2044 = vld [vmem:[%s3 + $0x1e8] sm:$0xff]
  %v2045 = vld [vmem:[%s3 + $0x1f0] sm:$0xff]
  %v2046 = vld [vmem:[%s3 + $0x1f8] sm:$0xff]
  %v2047 = vld [vmem:[%s4] sm:$0x3]
  %v2049 = vlaneseq
  %v2050 = vshrl.u32 %v2049, 7
  %v2051 = vsub.s32 0, %v2050
  %v2052 = vrot.slane %v2047, %v2051
  %v2053 = vlaneseq
  %v2054 = vshrl.u32 %v2053, 7
  %v2055 = vsub.s32 1, %v2054
  %v2056 = vrot.slane %v2047, %v2055
  %v2123 = vunpack.c.l.b16 %v1983
  %v2124 = vunpack.c.h.b16 %v1983
  %v2125 = vunpack.c.l.b16 %v1984
  %v2126 = vunpack.c.h.b16 %v1984
  %v2127 = vunpack.c.l.b16 %v1985
  %v2128 = vunpack.c.h.b16 %v1985
  %v2129 = vunpack.c.l.b16 %v1986
  %v2130 = vunpack.c.h.b16 %v1986
  %v2131 = vunpack.c.l.b16 %v1987
  %v2132 = vunpack.c.h.b16 %v1987
  %v2133 = vunpack.c.l.b16 %v1988
  %v2134 = vunpack.c.h.b16 %v1988
  %v2135 = vunpack.c.l.b16 %v1989
  %v2136 = vunpack.c.h.b16 %v1989
  %v2137 = vunpack.c.l.b16 %v1990
  %v2138 = vunpack.c.h.b16 %v1990
  %v2139 = vunpack.c.l.b16 %v1991
  %v2140 = vunpack.c.h.b16 %v1991
  %v2141 = vunpack.c.l.b16 %v1992
  %v2142 = vunpack.c.h.b16 %v1992
  %v2143 = vunpack.c.l.b16 %v1993
  %v2144 = vunpack.c.h.b16 %v1993
  %v2145 = vunpack.c.l.b16 %v1994
  %v2146 = vunpack.c.h.b16 %v1994
  %v2147 = vunpack.c.l.b16 %v1995
  %v2148 = vunpack.c.h.b16 %v1995
  %v2149 = vunpack.c.l.b16 %v1996
  %v2150 = vunpack.c.h.b16 %v1996
  %v2151 = vunpack.c.l.b16 %v1997
  %v2152 = vunpack.c.h.b16 %v1997
  %v2153 = vunpack.c.l.b16 %v1998
  %v2154 = vunpack.c.h.b16 %v1998
  %v2155 = vunpack.c.l.b16 %v1999
  %v2156 = vunpack.c.h.b16 %v1999
  %v2157 = vunpack.c.l.b16 %v2000
  %v2158 = vunpack.c.h.b16 %v2000
  %v2159 = vunpack.c.l.b16 %v2001
  %v2160 = vunpack.c.h.b16 %v2001
  %v2161 = vunpack.c.l.b16 %v2002
  %v2162 = vunpack.c.h.b16 %v2002
  %v2163 = vunpack.c.l.b16 %v2003
  %v2164 = vunpack.c.h.b16 %v2003
  %v2165 = vunpack.c.l.b16 %v2004
  %v2166 = vunpack.c.h.b16 %v2004
  %v2167 = vunpack.c.l.b16 %v2005
  %v2168 = vunpack.c.h.b16 %v2005
  %v2169 = vunpack.c.l.b16 %v2006
  %v2170 = vunpack.c.h.b16 %v2006
  %v2171 = vunpack.c.l.b16 %v2007
  %v2172 = vunpack.c.h.b16 %v2007
  %v2173 = vunpack.c.l.b16 %v2008
  %v2174 = vunpack.c.h.b16 %v2008
  %v2175 = vunpack.c.l.b16 %v2009
  %v2176 = vunpack.c.h.b16 %v2009
  %v2177 = vunpack.c.l.b16 %v2010
  %v2178 = vunpack.c.h.b16 %v2010
  %v2179 = vunpack.c.l.b16 %v2011
  %v2180 = vunpack.c.h.b16 %v2011
  %v2181 = vunpack.c.l.b16 %v2012
  %v2182 = vunpack.c.h.b16 %v2012
  %v2183 = vunpack.c.l.b16 %v2013
  %v2184 = vunpack.c.h.b16 %v2013
  %v2185 = vunpack.c.l.b16 %v2014
  %v2186 = vunpack.c.h.b16 %v2014
  %v2187 = vunpack.c.l.b16 %v2015
  %v2188 = vunpack.c.h.b16 %v2015
  %v2189 = vunpack.c.l.b16 %v2016
  %v2190 = vunpack.c.h.b16 %v2016
  %v2191 = vunpack.c.l.b16 %v2017
  %v2192 = vunpack.c.h.b16 %v2017
  %v2193 = vunpack.c.l.b16 %v2018
  %v2194 = vunpack.c.h.b16 %v2018
  %v2195 = vunpack.c.l.b16 %v2019
  %v2196 = vunpack.c.h.b16 %v2019
  %v2197 = vunpack.c.l.b16 %v2020
  %v2198 = vunpack.c.h.b16 %v2020
  %v2199 = vunpack.c.l.b16 %v2021
  %v2200 = vunpack.c.h.b16 %v2021
  %v2201 = vunpack.c.l.b16 %v2022
  %v2202 = vunpack.c.h.b16 %v2022
  %v2203 = vunpack.c.l.b16 %v2023
  %v2204 = vunpack.c.h.b16 %v2023
  %v2205 = vunpack.c.l.b16 %v2024
  %v2206 = vunpack.c.h.b16 %v2024
  %v2207 = vunpack.c.l.b16 %v2025
  %v2208 = vunpack.c.h.b16 %v2025
  %v2209 = vunpack.c.l.b16 %v2026
  %v2210 = vunpack.c.h.b16 %v2026
  %v2211 = vunpack.c.l.b16 %v2027
  %v2212 = vunpack.c.h.b16 %v2027
  %v2213 = vunpack.c.l.b16 %v2028
  %v2214 = vunpack.c.h.b16 %v2028
  %v2215 = vunpack.c.l.b16 %v2029
  %v2216 = vunpack.c.h.b16 %v2029
  %v2217 = vunpack.c.l.b16 %v2030
  %v2218 = vunpack.c.h.b16 %v2030
  %v2219 = vunpack.c.l.b16 %v2031
  %v2220 = vunpack.c.h.b16 %v2031
  %v2221 = vunpack.c.l.b16 %v2032
  %v2222 = vunpack.c.h.b16 %v2032
  %v2223 = vunpack.c.l.b16 %v2033
  %v2224 = vunpack.c.h.b16 %v2033
  %v2225 = vunpack.c.l.b16 %v2034
  %v2226 = vunpack.c.h.b16 %v2034
  %v2227 = vunpack.c.l.b16 %v2035
  %v2228 = vunpack.c.h.b16 %v2035
  %v2229 = vunpack.c.l.b16 %v2036
  %v2230 = vunpack.c.h.b16 %v2036
  %v2231 = vunpack.c.l.b16 %v2037
  %v2232 = vunpack.c.h.b16 %v2037
  %v2233 = vunpack.c.l.b16 %v2038
  %v2234 = vunpack.c.h.b16 %v2038
  %v2235 = vunpack.c.l.b16 %v2039
  %v2236 = vunpack.c.h.b16 %v2039
  %v2237 = vunpack.c.l.b16 %v2040
  %v2238 = vunpack.c.h.b16 %v2040
  %v2239 = vunpack.c.l.b16 %v2041
  %v2240 = vunpack.c.h.b16 %v2041
  %v2241 = vunpack.c.l.b16 %v2042
  %v2242 = vunpack.c.h.b16 %v2042
  %v2243 = vunpack.c.l.b16 %v2043
  %v2244 = vunpack.c.h.b16 %v2043
  %v2245 = vunpack.c.l.b16 %v2044
  %v2246 = vunpack.c.h.b16 %v2044
  %v2247 = vunpack.c.l.b16 %v2045
  %v2248 = vunpack.c.h.b16 %v2045
  %v2249 = vunpack.c.l.b16 %v2046
  %v2250 = vunpack.c.h.b16 %v2046
  %v2251 = vpack.c.b16 %v2125, %v2123
  %v2252 = vpack.c.b16 %v2126, %v2124
  %v2253 = vpack.c.b16 %v2129, %v2127
  %v2254 = vpack.c.b16 %v2130, %v2128
  %v2255 = vpack.c.b16 %v2133, %v2131
  %v2256 = vpack.c.b16 %v2134, %v2132
  %v2257 = vpack.c.b16 %v2137, %v2135
  %v2258 = vpack.c.b16 %v2138, %v2136
  %v2259 = vpack.c.b16 %v2141, %v2139
  %v2260 = vpack.c.b16 %v2142, %v2140
  %v2261 = vpack.c.b16 %v2145, %v2143
  %v2262 = vpack.c.b16 %v2146, %v2144
  %v2263 = vpack.c.b16 %v2149, %v2147
  %v2264 = vpack.c.b16 %v2150, %v2148
  %v2265 = vpack.c.b16 %v2153, %v2151
  %v2266 = vpack.c.b16 %v2154, %v2152
  %v2267 = vpack.c.b16 %v2157, %v2155
  %v2268 = vpack.c.b16 %v2158, %v2156
  %v2269 = vpack.c.b16 %v2161, %v2159
  %v2270 = vpack.c.b16 %v2162, %v2160
  %v2271 = vpack.c.b16 %v2165, %v2163
  %v2272 = vpack.c.b16 %v2166, %v2164
  %v2273 = vpack.c.b16 %v2169, %v2167
  %v2274 = vpack.c.b16 %v2170, %v2168
  %v2275 = vpack.c.b16 %v2173, %v2171
  %v2276 = vpack.c.b16 %v2174, %v2172
  %v2277 = vpack.c.b16 %v2177, %v2175
  %v2278 = vpack.c.b16 %v2178, %v2176
  %v2279 = vpack.c.b16 %v2181, %v2179
  %v2280 = vpack.c.b16 %v2182, %v2180
  %v2281 = vpack.c.b16 %v2185, %v2183
  %v2282 = vpack.c.b16 %v2186, %v2184
  %v2283 = vpack.c.b16 %v2189, %v2187
  %v2284 = vpack.c.b16 %v2190, %v2188
  %v2285 = vpack.c.b16 %v2193, %v2191
  %v2286 = vpack.c.b16 %v2194, %v2192
  %v2287 = vpack.c.b16 %v2197, %v2195
  %v2288 = vpack.c.b16 %v2198, %v2196
  %v2289 = vpack.c.b16 %v2201, %v2199
  %v2290 = vpack.c.b16 %v2202, %v2200
  %v2291 = vpack.c.b16 %v2205, %v2203
  %v2292 = vpack.c.b16 %v2206, %v2204
  %v2293 = vpack.c.b16 %v2209, %v2207
  %v2294 = vpack.c.b16 %v2210, %v2208
  %v2295 = vpack.c.b16 %v2213, %v2211
  %v2296 = vpack.c.b16 %v2214, %v2212
  %v2297 = vpack.c.b16 %v2217, %v2215
  %v2298 = vpack.c.b16 %v2218, %v2216
  %v2299 = vpack.c.b16 %v2221, %v2219
  %v2300 = vpack.c.b16 %v2222, %v2220
  %v2301 = vpack.c.b16 %v2225, %v2223
  %v2302 = vpack.c.b16 %v2226, %v2224
  %v2303 = vpack.c.b16 %v2229, %v2227
  %v2304 = vpack.c.b16 %v2230, %v2228
  %v2305 = vpack.c.b16 %v2233, %v2231
  %v2306 = vpack.c.b16 %v2234, %v2232
  %v2307 = vpack.c.b16 %v2237, %v2235
  %v2308 = vpack.c.b16 %v2238, %v2236
  %v2309 = vpack.c.b16 %v2241, %v2239
  %v2310 = vpack.c.b16 %v2242, %v2240
  %v2311 = vpack.c.b16 %v2245, %v2243
  %v2312 = vpack.c.b16 %v2246, %v2244
  %v2313 = vpack.c.b16 %v2249, %v2247
  %v2314 = vpack.c.b16 %v2250, %v2248
  %2379 = vmatprep.subr.bf16.mxu0 %v2252
  %2380 = vmatpush1.bf16.msra.mxu0 %v2251
  %2381 = vmatprep.subr.bf16.mxu0 %v2254
  %2382 = vmatpush1.bf16.msra.mxu0 %v2253
  %2383 = vmatprep.subr.bf16.mxu0 %v2256
  %2384 = vmatpush1.bf16.msra.mxu0 %v2255
  %2385 = vmatprep.subr.bf16.mxu0 %v2258
  %2386 = vmatpush1.bf16.msra.mxu0 %v2257
  %2387 = vmatprep.subr.bf16.mxu0 %v2260
  %2388 = vmatpush1.bf16.msra.mxu0 %v2259
  %2389 = vmatprep.subr.bf16.mxu0 %v2262
  %2390 = vmatpush1.bf16.msra.mxu0 %v2261
  %2391 = vmatprep.subr.bf16.mxu0 %v2264
  %2392 = vmatpush1.bf16.msra.mxu0 %v2263
  %2393 = vmatprep.subr.bf16.mxu0 %v2266
  %2394 = vmatpush1.bf16.msra.mxu0 %v2265
  %2395 = vmatprep.subr.bf16.mxu0 %v2268
  %2396 = vmatpush1.bf16.msra.mxu0 %v2267
  %2397 = vmatprep.subr.bf16.mxu0 %v2270
  %2398 = vmatpush1.bf16.msra.mxu0 %v2269
  %2399 = vmatprep.subr.bf16.mxu0 %v2272
  %2400 = vmatpush1.bf16.msra.mxu0 %v2271
  %2401 = vmatprep.subr.bf16.mxu0 %v2274
  %2402 = vmatpush1.bf16.msra.mxu0 %v2273
  %2403 = vmatprep.subr.bf16.mxu0 %v2276
  %2404 = vmatpush1.bf16.msra.mxu0 %v2275
  %2405 = vmatprep.subr.bf16.mxu0 %v2278
  %2406 = vmatpush1.bf16.msra.mxu0 %v2277
  %2407 = vmatprep.subr.bf16.mxu0 %v2280
  %2408 = vmatpush1.bf16.msra.mxu0 %v2279
  %2409 = vmatprep.subr.bf16.mxu0 %v2282
  %2410 = vmatpush1.bf16.msra.mxu0 %v2281
  %2411 = vmatprep.mubr.bf16.mxu0 %v1980
  %2412 = vmatmul.mubr.bf16.gmra.mrb[0].mxu0 %v1979
  %v2413 = vpop.f32.mrb[0].mxu0
  %v2414 = vadd.f32 %v2052, %v2413
  %v2415 = vpop.f32.mrb[0].mxu0
  %v2416 = vadd.f32 %v2056, %v2415
  %v2417 = vpop.f32.mrb[0].mxu0
  %v2418 = vpop.f32.mrb[0].mxu0
  %2419 = vdwg.mxu0
  %2420 = vmatprep.subr.bf16.mxu0 %v2284
  %2421 = vmatpush1.bf16.msra.mxu0 %v2283
  %2422 = vmatprep.subr.bf16.mxu0 %v2286
  %2423 = vmatpush1.bf16.msra.mxu0 %v2285
  %2424 = vmatprep.subr.bf16.mxu0 %v2288
  %2425 = vmatpush1.bf16.msra.mxu0 %v2287
  %2426 = vmatprep.subr.bf16.mxu0 %v2290
  %2427 = vmatpush1.bf16.msra.mxu0 %v2289
  %2428 = vmatprep.subr.bf16.mxu0 %v2292
  %2429 = vmatpush1.bf16.msra.mxu0 %v2291
  %2430 = vmatprep.subr.bf16.mxu0 %v2294
  %2431 = vmatpush1.bf16.msra.mxu0 %v2293
  %2432 = vmatprep.subr.bf16.mxu0 %v2296
  %2433 = vmatpush1.bf16.msra.mxu0 %v2295
  %2434 = vmatprep.subr.bf16.mxu0 %v2298
  %2435 = vmatpush1.bf16.msra.mxu0 %v2297
  %2436 = vmatprep.subr.bf16.mxu0 %v2300
  %2437 = vmatpush1.bf16.msra.mxu0 %v2299
  %2438 = vmatprep.subr.bf16.mxu0 %v2302
  %2439 = vmatpush1.bf16.msra.mxu0 %v2301
  %2440 = vmatprep.subr.bf16.mxu0 %v2304
  %2441 = vmatpush1.bf16.msra.mxu0 %v2303
  %2442 = vmatprep.subr.bf16.mxu0 %v2306
  %2443 = vmatpush1.bf16.msra.mxu0 %v2305
  %2444 = vmatprep.subr.bf16.mxu0 %v2308
  %2445 = vmatpush1.bf16.msra.mxu0 %v2307
  %2446 = vmatprep.subr.bf16.mxu0 %v2310
  %2447 = vmatpush1.bf16.msra.mxu0 %v2309
  %2448 = vmatprep.subr.bf16.mxu0 %v2312
  %2449 = vmatpush1.bf16.msra.mxu0 %v2311
  %2450 = vmatprep.subr.bf16.mxu0 %v2314
  %2451 = vmatpush1.bf16.msra.mxu0 %v2313
  %2452 = vmatprep.mubr.bf16.mxu0 %v1982
  %2453 = vmatmul.mubr.bf16.gmra.mrb[0].mxu0 %v1981
  %v2454 = vpop.f32.mrb[0].mxu0
  %v2455 = vadd.f32 %v2414, %v2454
  %v2456 = vpop.f32.mrb[0].mxu0
  %v2457 = vadd.f32 %v2416, %v2456
  %v2458 = vpop.f32.mrb[0].mxu0
  %v2459 = vpop.f32.mrb[0].mxu0
  %2460 = vdwg.mxu0
  %vm2461 = vcmp.ge.f32.partialorder %v2455, 0.0
  %vm2462 = vcmp.ge.f32.partialorder %v2457, 0.0
  %v2463 = vmul.f32 %v2455, 0.2
  %v2464 = vmul.f32 %v2457, 0.2
  %v2465 = vsel %vm2461, %v2455, %v2463
  %v2466 = vsel %vm2462, %v2457, %v2464
  %v2467 = vpack.c.bf16 %v2465, %v2465
  %v2468 = vpack.c.bf16 %v2466, %v2466
  %v2469 = vld [vmem:[%s5] sm:$0xf]
  %v2470 = vld [vmem:[%s5 + $0x4] sm:$0xf]
  %v2471 = vld [vmem:[%s5 + $0x8] sm:$0xf]
  %v2472 = vld [vmem:[%s5 + $0xc] sm:$0xf]
  %v2473 = vld [vmem:[%s5 + $0x10] sm:$0xf]
  %v2474 = vld [vmem:[%s5 + $0x14] sm:$0xf]
  %v2475 = vld [vmem:[%s5 + $0x18] sm:$0xf]
  %v2476 = vld [vmem:[%s5 + $0x1c] sm:$0xf]
  %v2477 = vld [vmem:[%s5 + $0x20] sm:$0xf]
  %v2478 = vld [vmem:[%s5 + $0x24] sm:$0xf]
  %v2479 = vld [vmem:[%s5 + $0x28] sm:$0xf]
  %v2480 = vld [vmem:[%s5 + $0x2c] sm:$0xf]
  %v2481 = vld [vmem:[%s5 + $0x30] sm:$0xf]
  %v2482 = vld [vmem:[%s5 + $0x34] sm:$0xf]
  %v2483 = vld [vmem:[%s5 + $0x38] sm:$0xf]
  %v2484 = vld [vmem:[%s5 + $0x3c] sm:$0xf]
  %v2485 = vld [vmem:[%s5 + $0x40] sm:$0xf]
  %v2486 = vld [vmem:[%s5 + $0x44] sm:$0xf]
  %v2487 = vld [vmem:[%s5 + $0x48] sm:$0xf]
  %v2488 = vld [vmem:[%s5 + $0x4c] sm:$0xf]
  %v2489 = vld [vmem:[%s5 + $0x50] sm:$0xf]
  %v2490 = vld [vmem:[%s5 + $0x54] sm:$0xf]
  %v2491 = vld [vmem:[%s5 + $0x58] sm:$0xf]
  %v2492 = vld [vmem:[%s5 + $0x5c] sm:$0xf]
  %v2493 = vld [vmem:[%s5 + $0x60] sm:$0xf]
  %v2494 = vld [vmem:[%s5 + $0x64] sm:$0xf]
  %v2495 = vld [vmem:[%s5 + $0x68] sm:$0xf]
  %v2496 = vld [vmem:[%s5 + $0x6c] sm:$0xf]
  %v2497 = vld [vmem:[%s5 + $0x70] sm:$0xf]
  %v2498 = vld [vmem:[%s5 + $0x74] sm:$0xf]
  %v2499 = vld [vmem:[%s5 + $0x78] sm:$0xf]
  %v2500 = vld [vmem:[%s5 + $0x7c] sm:$0xf]
  %v2501 = vld [vmem:[%s6] sm:$0x1]
  %v2503 = vlaneseq
  %v2504 = vshrl.u32 %v2503, 7
  %v2505 = vsub.s32 0, %v2504
  %v2506 = vrot.slane %v2501, %v2505
  %v2540 = vunpack.c.l.b16 %v2469
  %v2541 = vunpack.c.l.b16 %v2470
  %v2542 = vunpack.c.l.b16 %v2471
  %v2543 = vunpack.c.l.b16 %v2472
  %v2544 = vunpack.c.l.b16 %v2473
  %v2545 = vunpack.c.l.b16 %v2474
  %v2546 = vunpack.c.l.b16 %v2475
  %v2547 = vunpack.c.l.b16 %v2476
  %v2548 = vunpack.c.l.b16 %v2477
  %v2549 = vunpack.c.l.b16 %v2478
  %v2550 = vunpack.c.l.b16 %v2479
  %v2551 = vunpack.c.l.b16 %v2480
  %v2552 = vunpack.c.l.b16 %v2481
  %v2553 = vunpack.c.l.b16 %v2482
  %v2554 = vunpack.c.l.b16 %v2483
  %v2555 = vunpack.c.l.b16 %v2484
  %v2556 = vunpack.c.l.b16 %v2485
  %v2557 = vunpack.c.l.b16 %v2486
  %v2558 = vunpack.c.l.b16 %v2487
  %v2559 = vunpack.c.l.b16 %v2488
  %v2560 = vunpack.c.l.b16 %v2489
  %v2561 = vunpack.c.l.b16 %v2490
  %v2562 = vunpack.c.l.b16 %v2491
  %v2563 = vunpack.c.l.b16 %v2492
  %v2564 = vunpack.c.l.b16 %v2493
  %v2565 = vunpack.c.l.b16 %v2494
  %v2566 = vunpack.c.l.b16 %v2495
  %v2567 = vunpack.c.l.b16 %v2496
  %v2568 = vunpack.c.l.b16 %v2497
  %v2569 = vunpack.c.l.b16 %v2498
  %v2570 = vunpack.c.l.b16 %v2499
  %v2571 = vunpack.c.l.b16 %v2500
  %v2572 = vpack.c.b16 %v2541, %v2540
  %v2573 = vpack.c.b16 %v2543, %v2542
  %v2574 = vpack.c.b16 %v2545, %v2544
  %v2575 = vpack.c.b16 %v2547, %v2546
  %v2576 = vpack.c.b16 %v2549, %v2548
  %v2577 = vpack.c.b16 %v2551, %v2550
  %v2578 = vpack.c.b16 %v2553, %v2552
  %v2579 = vpack.c.b16 %v2555, %v2554
  %v2580 = vpack.c.b16 %v2557, %v2556
  %v2581 = vpack.c.b16 %v2559, %v2558
  %v2582 = vpack.c.b16 %v2561, %v2560
  %v2583 = vpack.c.b16 %v2563, %v2562
  %v2584 = vpack.c.b16 %v2565, %v2564
  %v2585 = vpack.c.b16 %v2567, %v2566
  %v2586 = vpack.c.b16 %v2569, %v2568
  %v2587 = vpack.c.b16 %v2571, %v2570
  %2604 = vmatprep.subr.bf16.mxu0 0
  %2605 = vmatpush1.bf16.msra.mxu0 %v2572
  %2606 = vmatprep.subr.bf16.mxu0 0
  %2607 = vmatpush1.bf16.msra.mxu0 %v2573
  %2608 = vmatprep.subr.bf16.mxu0 0
  %2609 = vmatpush1.bf16.msra.mxu0 %v2574
  %2610 = vmatprep.subr.bf16.mxu0 0
  %2611 = vmatpush1.bf16.msra.mxu0 %v2575
  %2612 = vmatprep.subr.bf16.mxu0 0
  %2613 = vmatpush1.bf16.msra.mxu0 %v2576
  %2614 = vmatprep.subr.bf16.mxu0 0
  %2615 = vmatpush1.bf16.msra.mxu0 %v2577
  %2616 = vmatprep.subr.bf16.mxu0 0
  %2617 = vmatpush1.bf16.msra.mxu0 %v2578
  %2618 = vmatprep.subr.bf16.mxu0 0
  %2619 = vmatpush1.bf16.msra.mxu0 %v2579
  %2620 = vmatprep.subr.bf16.mxu0 0
  %2621 = vmatpush1.bf16.msra.mxu0 %v2580
  %2622 = vmatprep.subr.bf16.mxu0 0
  %2623 = vmatpush1.bf16.msra.mxu0 %v2581
  %2624 = vmatprep.subr.bf16.mxu0 0
  %2625 = vmatpush1.bf16.msra.mxu0 %v2582
  %2626 = vmatprep.subr.bf16.mxu0 0
  %2627 = vmatpush1.bf16.msra.mxu0 %v2583
  %2628 = vmatprep.subr.bf16.mxu0 0
  %2629 = vmatpush1.bf16.msra.mxu0 %v2584
  %2630 = vmatprep.subr.bf16.mxu0 0
  %2631 = vmatpush1.bf16.msra.mxu0 %v2585
  %2632 = vmatprep.subr.bf16.mxu0 0
  %2633 = vmatpush1.bf16.msra.mxu0 %v2586
  %2634 = vmatprep.subr.bf16.mxu0 0
  %2635 = vmatpush1.bf16.msra.mxu0 %v2587
  %2636 = vmatprep.mubr.bf16.mxu0 %v2468
  %2637 = vmatmul.mubr.bf16.gmra.mrb[0].mxu0 %v2467
  %v2638 = vpop.f32.mrb[0].mxu0
  %v2639 = vadd.f32 %v2506, %v2638
  %v2640 = vpop.f32.mrb[0].mxu0
  %v2641 = vpop.f32.mrb[0].mxu0
  %v2642 = vpop.f32.mrb[0].mxu0
  %2643 = vdwg.mxu0
  %vm2644 = vcmask 66560
  %2645 = vst.msk [vmem:[%s7] sm:$0x3] %vm2644, %v2639
  // Predicated region
  $region30: #{dgcnn_pseg_forward.10} parent=0 // pred_check
    _
  $region31: #{dgcnn_pseg_forward.10} parent=0 // pred_check_branch
    %2647 = sbr.rel (0) target = $region33
  $region32: #{dgcnn_pseg_forward.10} parent=0 // pred_region
    _
  $region33: #{dgcnn_pseg_forward.10} parent=0 // pred_fallthru
    _
  // Predicated region
  $region34: #{dgcnn_pseg_forward.10} parent=0 // pred_check
    _
  $region35: #{dgcnn_pseg_forward.10} parent=0 // pred_check_branch
    %2649 = sbr.rel (0) target = $region37
  $region36: #{dgcnn_pseg_forward.10} parent=0 // pred_region
    _
  $region37: #{dgcnn_pseg_forward.10} parent=0 // pred_fallthru
    _

// kernel: dgcnn_pseg_forward.13
$region0: #{dgcnn_pseg_forward.13}
  #allocation0 [shape = 'u32[]', space=smem, size = 0x4, offset = 0x4, fixed_abs, tag = 'smem constant byte address 0x4 - core index']
  #allocation1 [shape = 'u32[144,128]{1,0:T(1,128)}', space=vmem, size = 0x12000, scoped, tag = 'internal scratch']
  %s0 = inlined_call_operand.vmem [shape: bf16[4,32,64], index: 0, kind: input, shape index: {}]
  %s1 = inlined_call_operand.vmem [shape: bf16[32,64], index: 1, kind: input, shape index: {}]
  %s2 = inlined_call_operand.vmem [shape: bf16[64,64], index: 2, kind: input, shape index: {}]
  %s3 = inlined_call_operand.vmem [shape: bf16[64,64], index: 3, kind: input, shape index: {}]
  %s4 = inlined_call_operand.vmem [shape: f32[1,64], index: 4, kind: input, shape index: {}]
  %s5 = inlined_call_operand.vmem [shape: bf16[32,64], index: 5, kind: output, shape index: {}]
  %s6 = sld [smem:[#allocation0]]
  $region30: #{dgcnn_pseg_forward.13} parent=0
    _
  %s8 = ssub.s32 1, %s6
  %s9 = scalar_select 0, %s8, %s6
  // Predicated region
  $region2: #{dgcnn_pseg_forward.13} parent=0 // pred_check
    _
  $region3: #{dgcnn_pseg_forward.13} parent=0 // pred_check_branch
    %11 = sbr.rel (0) target = $region5
  $region4: #{dgcnn_pseg_forward.13} parent=0 // pred_region
    _
  $region5: #{dgcnn_pseg_forward.13} parent=0 // pred_fallthru
    _
  // Predicated region
  $region6: #{dgcnn_pseg_forward.13} parent=0 // pred_check
    _
  $region7: #{dgcnn_pseg_forward.13} parent=0 // pred_check_branch
    %13 = sbr.rel (0) target = $region9
  $region8: #{dgcnn_pseg_forward.13} parent=0 // pred_region
    _
  $region9: #{dgcnn_pseg_forward.13} parent=0 // pred_fallthru
    _
  // Predicated region
  $region10: #{dgcnn_pseg_forward.13} parent=0 // pred_check
    _
  $region11: #{dgcnn_pseg_forward.13} parent=0 // pred_check_branch
    %15 = sbr.rel (0) target = $region13
  $region12: #{dgcnn_pseg_forward.13} parent=0 // pred_region
    _
  $region13: #{dgcnn_pseg_forward.13} parent=0 // pred_fallthru
    _
  // Predicated region
  $region14: #{dgcnn_pseg_forward.13} parent=0 // pred_check
    _
  $region15: #{dgcnn_pseg_forward.13} parent=0 // pred_check_branch
    %17 = sbr.rel (0) target = $region17
  $region16: #{dgcnn_pseg_forward.13} parent=0 // pred_region
    _
  $region17: #{dgcnn_pseg_forward.13} parent=0 // pred_fallthru
    _
  // Predicated region
  $region18: #{dgcnn_pseg_forward.13} parent=0 // pred_check
    _
  $region19: #{dgcnn_pseg_forward.13} parent=0 // pred_check_branch
    %19 = sbr.rel (0) target = $region21
  $region20: #{dgcnn_pseg_forward.13} parent=0 // pred_region
    _
  $region21: #{dgcnn_pseg_forward.13} parent=0 // pred_fallthru
    _
  %v21 = vld [vmem:[%s1] sm:$0xf]
  %v22 = vld [vmem:[%s1 + $0x4] sm:$0xf]
  %v23 = vld [vmem:[%s1 + $0x8] sm:$0xf]
  %v24 = vld [vmem:[%s1 + $0xc] sm:$0xf]
  %v25 = vld [vmem:[%s3] sm:$0xf]
  %v26 = vld [vmem:[%s3 + $0x4] sm:$0xf]
  %v27 = vld [vmem:[%s3 + $0x8] sm:$0xf]
  %v28 = vld [vmem:[%s3 + $0xc] sm:$0xf]
  %v29 = vld [vmem:[%s3 + $0x10] sm:$0xf]
  %v30 = vld [vmem:[%s3 + $0x14] sm:$0xf]
  %v31 = vld [vmem:[%s3 + $0x18] sm:$0xf]
  %v32 = vld [vmem:[%s3 + $0x1c] sm:$0xf]
  %v33 = vld [vmem:[%s4] sm:$0x1]
  %v35 = vlaneseq
  %v36 = vshrl.u32 %v35, 7
  %v37 = vsub.s32 0, %v36
  %v38 = vrot.slane %v33, %v37
  %v44 = vunpack.c.l.b16 %v21
  %v45 = vunpack.c.l.b16 %v22
  %v46 = vunpack.c.l.b16 %v23
  %v47 = vunpack.c.l.b16 %v24
  %v48 = vpack.c.b16 %v45, %v44
  %v49 = vpack.c.b16 %v47, %v46
  %v58 = vunpack.c.l.b16 %v25
  %v59 = vunpack.c.l.b16 %v26
  %v60 = vunpack.c.l.b16 %v27
  %v61 = vunpack.c.l.b16 %v28
  %v62 = vunpack.c.l.b16 %v29
  %v63 = vunpack.c.l.b16 %v30
  %v64 = vunpack.c.l.b16 %v31
  %v65 = vunpack.c.l.b16 %v32
  %v66 = vpack.c.b16 %v59, %v58
  %v67 = vpack.c.b16 %v61, %v60
  %v68 = vpack.c.b16 %v63, %v62
  %v69 = vpack.c.b16 %v65, %v64
  %vm74 = vcmask 523264
  %v76 = vsel %vm74, %v48, 0
  %v79 = vsel %vm74, %v49, 0
  %81 = vmatprep.subr.bf16.mxu0 0
  %82 = vmatpush1.bf16.msra.mxu0 %v66
  %83 = vmatprep.subr.bf16.mxu0 0
  %84 = vmatpush1.bf16.msra.mxu0 %v67
  %85 = vmatprep.subr.bf16.mxu0 0
  %86 = vmatpush1.bf16.msra.mxu0 %v68
  %87 = vmatprep.subr.bf16.mxu0 0
  %88 = vmatpush1.bf16.msra.mxu0 %v69
  %89 = vmatprep.subr.bf16.mxu0 0
  %90 = vmatpush1.bf16.msra.mxu0 0
  %91 = vmatprep.subr.bf16.mxu0 0
  %92 = vmatpush1.bf16.msra.mxu0 0
  %93 = vmatprep.subr.bf16.mxu0 0
  %94 = vmatpush1.bf16.msra.mxu0 0
  %95 = vmatprep.subr.bf16.mxu0 0
  %96 = vmatpush1.bf16.msra.mxu0 0
  %97 = vmatprep.subr.bf16.mxu0 0
  %98 = vmatpush1.bf16.msra.mxu0 0
  %99 = vmatprep.subr.bf16.mxu0 0
  %100 = vmatpush1.bf16.msra.mxu0 0
  %101 = vmatprep.subr.bf16.mxu0 0
  %102 = vmatpush1.bf16.msra.mxu0 0
  %103 = vmatprep.subr.bf16.mxu0 0
  %104 = vmatpush1.bf16.msra.mxu0 0
  %105 = vmatprep.subr.bf16.mxu0 0
  %106 = vmatpush1.bf16.msra.mxu0 0
  %107 = vmatprep.subr.bf16.mxu0 0
  %108 = vmatpush1.bf16.msra.mxu0 0
  %109 = vmatprep.subr.bf16.mxu0 0
  %110 = vmatpush1.bf16.msra.mxu0 0
  %111 = vmatprep.subr.bf16.mxu0 0
  %112 = vmatpush1.bf16.msra.mxu0 0
  %113 = vmatprep.mubr.bf16.mxu0 0
  %114 = vmatmul.mubr.bf16.gmra.mrb[0].mxu0 %v76
  %v115 = vpop.f32.mrb[0].mxu0
  %v116 = vadd.f32 %v38, %v115
  %v117 = vpop.f32.mrb[0].mxu0
  %v118 = vpop.f32.mrb[0].mxu0
  %v119 = vadd.f32 %v38, %v118
  %v120 = vpop.f32.mrb[0].mxu0
  %121 = vmatprep.mubr.bf16.mxu0 0
  %122 = vmatmul.mubr.bf16.gmra.mrb[0].mxu0 %v79
  %v123 = vpop.f32.mrb[0].mxu0
  %v124 = vadd.f32 %v38, %v123
  %v125 = vpop.f32.mrb[0].mxu0
  %v126 = vpop.f32.mrb[0].mxu0
  %v127 = vadd.f32 %v38, %v126
  %v128 = vpop.f32.mrb[0].mxu0
  %129 = vdwg.mxu0
  %v130 = vld [vmem:[%s0] sm:$0xf]
  %v131 = vld [vmem:[%s0 + $0x4] sm:$0xf]
  %v132 = vld [vmem:[%s0 + $0x8] sm:$0xf]
  %v133 = vld [vmem:[%s0 + $0xc] sm:$0xf]
  %v134 = vld [vmem:[%s0 + $0x10] sm:$0xf]
  %v135 = vld [vmem:[%s0 + $0x14] sm:$0xf]
  %v136 = vld [vmem:[%s0 + $0x18] sm:$0xf]
  %v137 = vld [vmem:[%s0 + $0x1c] sm:$0xf]
  %v138 = vld [vmem:[%s0 + $0x20] sm:$0xf]
  %v139 = vld [vmem:[%s0 + $0x24] sm:$0xf]
  %v140 = vld [vmem:[%s0 + $0x28] sm:$0xf]
  %v141 = vld [vmem:[%s0 + $0x2c] sm:$0xf]
  %v142 = vld [vmem:[%s0 + $0x30] sm:$0xf]
  %v143 = vld [vmem:[%s0 + $0x34] sm:$0xf]
  %v144 = vld [vmem:[%s0 + $0x38] sm:$0xf]
  %v145 = vld [vmem:[%s0 + $0x3c] sm:$0xf]
  %v146 = vld [vmem:[%s2] sm:$0xf]
  %v147 = vld [vmem:[%s2 + $0x4] sm:$0xf]
  %v148 = vld [vmem:[%s2 + $0x8] sm:$0xf]
  %v149 = vld [vmem:[%s2 + $0xc] sm:$0xf]
  %v150 = vld [vmem:[%s2 + $0x10] sm:$0xf]
  %v151 = vld [vmem:[%s2 + $0x14] sm:$0xf]
  %v152 = vld [vmem:[%s2 + $0x18] sm:$0xf]
  %v153 = vld [vmem:[%s2 + $0x1c] sm:$0xf]
  %v170 = vunpack.c.l.b16 %v130
  %v171 = vunpack.c.l.b16 %v131
  %v172 = vunpack.c.l.b16 %v132
  %v173 = vunpack.c.l.b16 %v133
  %v174 = vunpack.c.l.b16 %v134
  %v175 = vunpack.c.l.b16 %v135
  %v176 = vunpack.c.l.b16 %v136
  %v177 = vunpack.c.l.b16 %v137
  %v178 = vunpack.c.l.b16 %v138
  %v179 = vunpack.c.l.b16 %v139
  %v180 = vunpack.c.l.b16 %v140
  %v181 = vunpack.c.l.b16 %v141
  %v182 = vunpack.c.l.b16 %v142
  %v183 = vunpack.c.l.b16 %v143
  %v184 = vunpack.c.l.b16 %v144
  %v185 = vunpack.c.l.b16 %v145
  %v186 = vpack.c.b16 %v171, %v170
  %v187 = vpack.c.b16 %v173, %v172
  %v188 = vpack.c.b16 %v175, %v174
  %v189 = vpack.c.b16 %v177, %v176
  %v190 = vpack.c.b16 %v179, %v178
  %v191 = vpack.c.b16 %v181, %v180
  %v192 = vpack.c.b16 %v183, %v182
  %v193 = vpack.c.b16 %v185, %v184
  %v202 = vunpack.c.l.b16 %v146
  %v203 = vunpack.c.l.b16 %v147
  %v204 = vunpack.c.l.b16 %v148
  %v205 = vunpack.c.l.b16 %v149
  %v206 = vunpack.c.l.b16 %v150
  %v207 = vunpack.c.l.b16 %v151
  %v208 = vunpack.c.l.b16 %v152
  %v209 = vunpack.c.l.b16 %v153
  %v210 = vpack.c.b16 %v203, %v202
  %v211 = vpack.c.b16 %v205, %v204
  %v212 = vpack.c.b16 %v207, %v206
  %v213 = vpack.c.b16 %v209, %v208
  %v219 = vsel %vm74, %v186, 0
  %v222 = vsel %vm74, %v187, 0
  %v225 = vsel %vm74, %v188, 0
  %v228 = vsel %vm74, %v189, 0
  %v231 = vsel %vm74, %v190, 0
  %v234 = vsel %vm74, %v191, 0
  %v237 = vsel %vm74, %v192, 0
  %v240 = vsel %vm74, %v193, 0
  %242 = vmatprep.subr.bf16.mxu0 0
  %243 = vmatpush1.bf16.msra.mxu0 %v210
  %244 = vmatprep.subr.bf16.mxu0 0
  %245 = vmatpush1.bf16.msra.mxu0 %v211
  %246 = vmatprep.subr.bf16.mxu0 0
  %247 = vmatpush1.bf16.msra.mxu0 %v212
  %248 = vmatprep.subr.bf16.mxu0 0
  %249 = vmatpush1.bf16.msra.mxu0 %v213
  %250 = vmatprep.subr.bf16.mxu0 0
  %251 = vmatpush1.bf16.msra.mxu0 0
  %252 = vmatprep.subr.bf16.mxu0 0
  %253 = vmatpush1.bf16.msra.mxu0 0
  %254 = vmatprep.subr.bf16.mxu0 0
  %255 = vmatpush1.bf16.msra.mxu0 0
  %256 = vmatprep.subr.bf16.mxu0 0
  %257 = vmatpush1.bf16.msra.mxu0 0
  %258 = vmatprep.subr.bf16.mxu0 0
  %259 = vmatpush1.bf16.msra.mxu0 0
  %260 = vmatprep.subr.bf16.mxu0 0
  %261 = vmatpush1.bf16.msra.mxu0 0
  %262 = vmatprep.subr.bf16.mxu0 0
  %263 = vmatpush1.bf16.msra.mxu0 0
  %264 = vmatprep.subr.bf16.mxu0 0
  %265 = vmatpush1.bf16.msra.mxu0 0
  %266 = vmatprep.subr.bf16.mxu0 0
  %267 = vmatpush1.bf16.msra.mxu0 0
  %268 = vmatprep.subr.bf16.mxu0 0
  %269 = vmatpush1.bf16.msra.mxu0 0
  %270 = vmatprep.subr.bf16.mxu0 0
  %271 = vmatpush1.bf16.msra.mxu0 0
  %272 = vmatprep.subr.bf16.mxu0 0
  %273 = vmatpush1.bf16.msra.mxu0 0
  %274 = vmatprep.mubr.bf16.mxu0 0
  %275 = vmatmul.mubr.bf16.gmra.mrb[0].mxu0 %v219
  %v276 = vpop.f32.mrb[0].mxu0
  %v277 = vadd.f32 0.0, %v276
  %v278 = vpop.f32.mrb[0].mxu0
  %v279 = vpop.f32.mrb[0].mxu0
  %v280 = vadd.f32 0.0, %v279
  %v281 = vpop.f32.mrb[0].mxu0
  %282 = vmatprep.mubr.bf16.mxu0 0
  %283 = vmatmul.mubr.bf16.gmra.mrb[0].mxu0 %v222
  %v284 = vpop.f32.mrb[0].mxu0
  %v285 = vadd.f32 0.0, %v284
  %v286 = vpop.f32.mrb[0].mxu0
  %v287 = vpop.f32.mrb[0].mxu0
  %v288 = vadd.f32 0.0, %v287
  %v289 = vpop.f32.mrb[0].mxu0
  %290 = vmatprep.mubr.bf16.mxu0 0
  %291 = vmatmul.mubr.bf16.gmra.mrb[0].mxu0 %v225
  %v292 = vpop.f32.mrb[0].mxu0
  %v293 = vadd.f32 0.0, %v292
  %v294 = vpop.f32.mrb[0].mxu0
  %v295 = vpop.f32.mrb[0].mxu0
  %v296 = vadd.f32 0.0, %v295
  %v297 = vpop.f32.mrb[0].mxu0
  %298 = vmatprep.mubr.bf16.mxu0 0
  %299 = vmatmul.mubr.bf16.gmra.mrb[0].mxu0 %v228
  %v300 = vpop.f32.mrb[0].mxu0
  %v301 = vadd.f32 0.0, %v300
  %v302 = vpop.f32.mrb[0].mxu0
  %v303 = vpop.f32.mrb[0].mxu0
  %v304 = vadd.f32 0.0, %v303
  %v305 = vpop.f32.mrb[0].mxu0
  %306 = vmatprep.mubr.bf16.mxu0 0
  %307 = vmatmul.mubr.bf16.gmra.mrb[0].mxu0 %v231
  %v308 = vpop.f32.mrb[0].mxu0
  %v309 = vadd.f32 0.0, %v308
  %v310 = vpop.f32.mrb[0].mxu0
  %v311 = vpop.f32.mrb[0].mxu0
  %v312 = vadd.f32 0.0, %v311
  %v313 = vpop.f32.mrb[0].mxu0
  %314 = vmatprep.mubr.bf16.mxu0 0
  %315 = vmatmul.mubr.bf16.gmra.mrb[0].mxu0 %v234
  %v316 = vpop.f32.mrb[0].mxu0
  %v317 = vadd.f32 0.0, %v316
  %v318 = vpop.f32.mrb[0].mxu0
  %v319 = vpop.f32.mrb[0].mxu0
  %v320 = vadd.f32 0.0, %v319
  %v321 = vpop.f32.mrb[0].mxu0
  %322 = vmatprep.mubr.bf16.mxu0 0
  %323 = vmatmul.mubr.bf16.gmra.mrb[0].mxu0 %v237
  %v324 = vpop.f32.mrb[0].mxu0
  %v325 = vadd.f32 0.0, %v324
  %v326 = vpop.f32.mrb[0].mxu0
  %v327 = vpop.f32.mrb[0].mxu0
  %v328 = vadd.f32 0.0, %v327
  %v329 = vpop.f32.mrb[0].mxu0
  %330 = vmatprep.mubr.bf16.mxu0 0
  %331 = vmatmul.mubr.bf16.gmra.mrb[0].mxu0 %v240
  %v332 = vpop.f32.mrb[0].mxu0
  %v333 = vadd.f32 0.0, %v332
  %v334 = vpop.f32.mrb[0].mxu0
  %v335 = vpop.f32.mrb[0].mxu0
  %v336 = vadd.f32 0.0, %v335
  %v337 = vpop.f32.mrb[0].mxu0
  %338 = vdwg.mxu0
  %v339 = vadd.f32 %v277, %v116
  %v340 = vadd.f32 %v280, %v119
  %v341 = vadd.f32 %v285, %v124
  %v342 = vadd.f32 %v288, %v127
  %v343 = vadd.f32 %v293, %v116
  %v344 = vadd.f32 %v296, %v119
  %v345 = vadd.f32 %v301, %v124
  %v346 = vadd.f32 %v304, %v127
  %v347 = vadd.f32 %v309, %v116
  %v348 = vadd.f32 %v312, %v119
  %v349 = vadd.f32 %v317, %v124
  %v350 = vadd.f32 %v320, %v127
  %v351 = vadd.f32 %v325, %v116
  %v352 = vadd.f32 %v328, %v119
  %v353 = vadd.f32 %v333, %v124
  %v354 = vadd.f32 %v336, %v127
  %vm355 = vcmp.ge.f32.partialorder %v339, 0.0
  %vm356 = vcmp.ge.f32.partialorder %v340, 0.0
  %vm357 = vcmp.ge.f32.partialorder %v341, 0.0
  %vm358 = vcmp.ge.f32.partialorder %v342, 0.0
  %vm359 = vcmp.ge.f32.partialorder %v343, 0.0
  %vm360 = vcmp.ge.f32.partialorder %v344, 0.0
  %vm361 = vcmp.ge.f32.partialorder %v345, 0.0
  %vm362 = vcmp.ge.f32.partialorder %v346, 0.0
  %vm363 = vcmp.ge.f32.partialorder %v347, 0.0
  %vm364 = vcmp.ge.f32.partialorder %v348, 0.0
  %vm365 = vcmp.ge.f32.partialorder %v349, 0.0
  %vm366 = vcmp.ge.f32.partialorder %v350, 0.0
  %vm367 = vcmp.ge.f32.partialorder %v351, 0.0
  %vm368 = vcmp.ge.f32.partialorder %v352, 0.0
  %vm369 = vcmp.ge.f32.partialorder %v353, 0.0
  %vm370 = vcmp.ge.f32.partialorder %v354, 0.0
  %v371 = vmul.f32 %v339, 0.2
  %v372 = vmul.f32 %v340, 0.2
  %v373 = vmul.f32 %v341, 0.2
  %v374 = vmul.f32 %v342, 0.2
  %v375 = vmul.f32 %v343, 0.2
  %v376 = vmul.f32 %v344, 0.2
  %v377 = vmul.f32 %v345, 0.2
  %v378 = vmul.f32 %v346, 0.2
  %v379 = vmul.f32 %v347, 0.2
  %v380 = vmul.f32 %v348, 0.2
  %v381 = vmul.f32 %v349, 0.2
  %v382 = vmul.f32 %v350, 0.2
  %v383 = vmul.f32 %v351, 0.2
  %v384 = vmul.f32 %v352, 0.2
  %v385 = vmul.f32 %v353, 0.2
  %v386 = vmul.f32 %v354, 0.2
  %v387 = vsel %vm355, %v339, %v371
  %v388 = vsel %vm356, %v340, %v372
  %v389 = vsel %vm357, %v341, %v373
  %v390 = vsel %vm358, %v342, %v374
  %v391 = vsel %vm359, %v343, %v375
  %v392 = vsel %vm360, %v344, %v376
  %v393 = vsel %vm361, %v345, %v377
  %v394 = vsel %vm362, %v346, %v378
  %v395 = vsel %vm363, %v347, %v379
  %v396 = vsel %vm364, %v348, %v380
  %v397 = vsel %vm365, %v349, %v381
  %v398 = vsel %vm366, %v350, %v382
  %v399 = vsel %vm367, %v351, %v383
  %v400 = vsel %vm368, %v352, %v384
  %v401 = vsel %vm369, %v353, %v385
  %v402 = vsel %vm370, %v354, %v386
  %v403 = vsel %vm74, %v387, -inf
  %v404 = vsel %vm74, %v391, -inf
  %v405 = vmax.f32 %v403, %v404
  %v406 = vsel %vm74, %v395, -inf
  %v407 = vmax.f32 %v405, %v406
  %v408 = vsel %vm74, %v399, -inf
  %v409 = vmax.f32 %v407, %v408
  %v410 = vsel %vm74, %v388, -inf
  %v411 = vsel %vm74, %v392, -inf
  %v412 = vmax.f32 %v410, %v411
  %v413 = vsel %vm74, %v396, -inf
  %v414 = vmax.f32 %v412, %v413
  %v415 = vsel %vm74, %v400, -inf
  %v416 = vmax.f32 %v414, %v415
  %v417 = vsel %vm74, %v389, -inf
  %v418 = vsel %vm74, %v393, -inf
  %v419 = vmax.f32 %v417, %v418
  %v420 = vsel %vm74, %v397, -inf
  %v421 = vmax.f32 %v419, %v420
  %v422 = vsel %vm74, %v401, -inf
  %v423 = vmax.f32 %v421, %v422
  %v424 = vsel %vm74, %v390, -inf
  %v425 = vsel %vm74, %v394, -inf
  %v426 = vmax.f32 %v424, %v425
  %v427 = vsel %vm74, %v398, -inf
  %v428 = vmax.f32 %v426, %v427
  %v429 = vsel %vm74, %v402, -inf
  %v430 = vmax.f32 %v428, %v429
  %v431 = vpack.c.bf16 %v416, %v409
  %v432 = vpack.c.bf16 %v430, %v423
  %v435 = vunpack.c.l.b16 %v431
  %v436 = vunpack.c.h.b16 %v431
  %v437 = vunpack.c.l.b16 %v432
  %v438 = vunpack.c.h.b16 %v432
  %v439 = vpack.c.b16 %v435, %v435
  %v440 = vpack.c.b16 %v436, %v436
  %v441 = vpack.c.b16 %v437, %v437
  %v442 = vpack.c.b16 %v438, %v438
  %vm447 = vcmask 519168
  %448 = vst.msk [vmem:[%s5] sm:$0xf] %vm447, %v439
  %449 = vst.msk [vmem:[%s5 + $0x4] sm:$0xf] %vm447, %v440
  %450 = vst.msk [vmem:[%s5 + $0x8] sm:$0xf] %vm447, %v441
  %451 = vst.msk [vmem:[%s5 + $0xc] sm:$0xf] %vm447, %v442
  // Predicated region
  $region22: #{dgcnn_pseg_forward.13} parent=0 // pred_check
    _
  $region23: #{dgcnn_pseg_forward.13} parent=0 // pred_check_branch
    %453 = sbr.rel (0) target = $region25
  $region24: #{dgcnn_pseg_forward.13} parent=0 // pred_region
    _
  $region25: #{dgcnn_pseg_forward.13} parent=0 // pred_fallthru
    _
  // Predicated region
  $region26: #{dgcnn_pseg_forward.13} parent=0 // pred_check
    _
  $region27: #{dgcnn_pseg_forward.13} parent=0 // pred_check_branch
    %455 = sbr.rel (0) target = $region29
  $region28: #{dgcnn_pseg_forward.13} parent=0 // pred_region
    _
  $region29: #{dgcnn_pseg_forward.13} parent=0 // pred_fallthru
    _

// kernel: dgcnn_pseg_forward.14
$region0: #{dgcnn_pseg_forward.14}
  #allocation0 [shape = 'u32[]', space=smem, size = 0x4, offset = 0x4, fixed_abs, tag = 'smem constant byte address 0x4 - core index']
  #allocation1 [shape = 'u32[144,128]{1,0:T(1,128)}', space=vmem, size = 0x12000, scoped, tag = 'internal scratch']
  %s0 = inlined_call_operand.vmem [shape: bf16[2,16,64], index: 0, kind: input, shape index: {}]
  %s1 = inlined_call_operand.vmem [shape: bf16[64,1024], index: 1, kind: input, shape index: {}]
  %s2 = inlined_call_operand.vmem [shape: bf16[2,16,64], index: 2, kind: input, shape index: {}]
  %s3 = inlined_call_operand.vmem [shape: bf16[64,1024], index: 3, kind: input, shape index: {}]
  %s4 = inlined_call_operand.vmem [shape: bf16[2,16,64], index: 4, kind: input, shape index: {}]
  %s5 = inlined_call_operand.vmem [shape: bf16[64,1024], index: 5, kind: input, shape index: {}]
  %s6 = inlined_call_operand.vmem [shape: f32[1,1024], index: 6, kind: input, shape index: {}]
  %s7 = inlined_call_operand.vmem [shape: f32[2,1,1024], index: 7, kind: output, shape index: {}]
  %s8 = sld [smem:[#allocation0]]
  $region69: #{dgcnn_pseg_forward.14} parent=0
    _
  %s10 = ssub.s32 1, %s8
  %s11 = scalar_select 0, %s10, %s8
  loop: start=0, step=1, limit=4
  $region2: #{dgcnn_pseg_forward.14} parent=0 // loop_pre_header
    _
  $region3: #{dgcnn_pseg_forward.14} parent=0 // loop_header
    %s13 = sphi 0, %s17
    %p14 = scmp.ge.s32.totalorder %s13, 4
    %s20 = sphi 0, %s32
    %s21 = sphi 0, %s28
    %s22 = sphi 0, %s20
    %s23 = sphi 0, %s21
    %s24 = sphi 0, %s22
    %s25 = sphi 0, %s23
    %s37 = sphi 0, %s39
    %s40 = sphi 0, %s37
    %s41 = sphi 0, %s40
    %s57 = sphi 0, %s41
    %s61 = sphi 0, %s61
    %s63 = sphi 0, %s61
    %s64 = sphi 0, %s63
    %s78 = sphi 0, %s64
    %s86 = sphi 0, %s88
    %s89 = sphi 0, %s86
    %s90 = sphi 0, %s89
    %s106 = sphi 0, %s90
    %s110 = sphi 0, %s110
    %s112 = sphi 0, %s110
    %s113 = sphi 0, %s112
    %s127 = sphi 0, %s113
    %s135 = sphi 0, %s137
    %s138 = sphi 0, %s135
    %s139 = sphi 0, %s138
    %s155 = sphi 0, %s139
    %s159 = sphi 0, %s159
    %s161 = sphi 0, %s159
    %s162 = sphi 0, %s161
    %s176 = sphi 0, %s162
    %s180 = sphi 0, %s180
    %s182 = sphi 0, %s180
    %s183 = sphi 0, %s182
    %s197 = sphi 0, %s183
    %s203 = sphi 0, %s205
    %s206 = sphi 0, %s203
    %s207 = sphi 0, %s206
    %s223 = sphi 0, %s207
  $region4: #{dgcnn_pseg_forward.14} parent=0 // loop_header_branch
    %16 = sbr.rel (%p14) target = $region8
  $region5: #{dgcnn_pseg_forward.14} parent=0 // loop_body
    %s18 = ssub.s32 %s13, 1
    %s19 = ssub.s32 %s13, 2
    %s26 = sadd.s32 1, %s21
    %p27 = scmp.ge.s32.totalorder %s26, 1
    %s28 = scalar_select %p27, 0, %s26
    %s29 = sadd.s32 1, %s20
    %s30 = scalar_select %p27, %s29, %s20
    %p31 = scmp.ge.s32.totalorder %s30, 2
    %s32 = scalar_select %p31, 0, %s30
    %s33 = ssub.s32 %s20, %s32
    %s34 = ssub.s32 %s21, %s28
    %s35 = sor.u32 %s33, %s34
    %p36 = scmp.eq.s32.totalorder %s35, 0
    %s38 = sadd.s32 %s37, 1
    %s39 = scalar_select %p36, %s37, %s38
    %p42 = pneg %p36
    %p43 = scmp.eq.s32.totalorder %s13, 1
    %p44 = por %p42, %p43
    %p45 = scmp.ne.s32.totalorder %s37, %s40
    %p46 = scmp.eq.s32.totalorder %s13, 0
    %p47 = por %p45, %p46
    %p48 = scmp.ne.s32.totalorder %s37, %s40
    %p49 = scmp.eq.s32.totalorder %s18, 1
    %p50 = por %p48, %p49
    %p51 = scmp.ne.s32.totalorder %s40, %s41
    %p52 = scmp.eq.s32.totalorder %s18, 0
    %p53 = por %p51, %p52
    %p54 = scmp.ne.s32.totalorder %s40, %s41
    %p55 = scmp.eq.s32.totalorder %s19, 1
    %p56 = por %p54, %p55
    %p58 = scmp.ne.s32.totalorder %s41, %s57
    %p59 = scmp.eq.s32.totalorder %s19, 0
    %p60 = por %p58, %p59
    %s62 = sadd.s32 %s61, 1
    %p65 = scmp.eq.s32.totalorder %s13, 1
    %p66 = scmp.ne.s32.totalorder %s61, %s63
    %p67 = scmp.eq.s32.totalorder %s13, 0
    %p68 = por %p66, %p67
    %p69 = scmp.ne.s32.totalorder %s61, %s63
    %p70 = scmp.eq.s32.totalorder %s18, 1
    %p71 = por %p69, %p70
    %p72 = scmp.ne.s32.totalorder %s63, %s64
    %p73 = scmp.eq.s32.totalorder %s18, 0
    %p74 = por %p72, %p73
    %p75 = scmp.ne.s32.totalorder %s63, %s64
    %p76 = scmp.eq.s32.totalorder %s19, 1
    %p77 = por %p75, %p76
    %p79 = scmp.ne.s32.totalorder %s64, %s78
    %p80 = scmp.eq.s32.totalorder %s19, 0
    %p81 = por %p79, %p80
    %s82 = ssub.s32 %s20, %s32
    %s83 = ssub.s32 %s21, %s28
    %s84 = sor.u32 %s82, %s83
    %p85 = scmp.eq.s32.totalorder %s84, 0
    %s87 = sadd.s32 %s86, 1
    %s88 = scalar_select %p85, %s86, %s87
    %p91 = pneg %p85
    %p92 = scmp.eq.s32.totalorder %s13, 1
    %p93 = por %p91, %p92
    %p94 = scmp.ne.s32.totalorder %s86, %s89
    %p95 = scmp.eq.s32.totalorder %s13, 0
    %p96 = por %p94, %p95
    %p97 = scmp.ne.s32.totalorder %s86, %s89
    %p98 = scmp.eq.s32.totalorder %s18, 1
    %p99 = por %p97, %p98
    %p100 = scmp.ne.s32.totalorder %s89, %s90
    %p101 = scmp.eq.s32.totalorder %s18, 0
    %p102 = por %p100, %p101
    %p103 = scmp.ne.s32.totalorder %s89, %s90
    %p104 = scmp.eq.s32.totalorder %s19, 1
    %p105 = por %p103, %p104
    %p107 = scmp.ne.s32.totalorder %s90, %s106
    %p108 = scmp.eq.s32.totalorder %s19, 0
    %p109 = por %p107, %p108
    %s111 = sadd.s32 %s110, 1
    %p114 = scmp.eq.s32.totalorder %s13, 1
    %p115 = scmp.ne.s32.totalorder %s110, %s112
    %p116 = scmp.eq.s32.totalorder %s13, 0
    %p117 = por %p115, %p116
    %p118 = scmp.ne.s32.totalorder %s110, %s112
    %p119 = scmp.eq.s32.totalorder %s18, 1
    %p120 = por %p118, %p119
    %p121 = scmp.ne.s32.totalorder %s112, %s113
    %p122 = scmp.eq.s32.totalorder %s18, 0
    %p123 = por %p121, %p122
    %p124 = scmp.ne.s32.totalorder %s112, %s113
    %p125 = scmp.eq.s32.totalorder %s19, 1
    %p126 = por %p124, %p125
    %p128 = scmp.ne.s32.totalorder %s113, %s127
    %p129 = scmp.eq.s32.totalorder %s19, 0
    %p130 = por %p128, %p129
    %s131 = ssub.s32 %s20, %s32
    %s132 = ssub.s32 %s21, %s28
    %s133 = sor.u32 %s131, %s132
    %p134 = scmp.eq.s32.totalorder %s133, 0
    %s136 = sadd.s32 %s135, 1
    %s137 = scalar_select %p134, %s135, %s136
    %p140 = pneg %p134
    %p141 = scmp.eq.s32.totalorder %s13, 1
    %p142 = por %p140, %p141
    %p143 = scmp.ne.s32.totalorder %s135, %s138
    %p144 = scmp.eq.s32.totalorder %s13, 0
    %p145 = por %p143, %p144
    %p146 = scmp.ne.s32.totalorder %s135, %s138
    %p147 = scmp.eq.s32.totalorder %s18, 1
    %p148 = por %p146, %p147
    %p149 = scmp.ne.s32.totalorder %s138, %s139
    %p150 = scmp.eq.s32.totalorder %s18, 0
    %p151 = por %p149, %p150
    %p152 = scmp.ne.s32.totalorder %s138, %s139
    %p153 = scmp.eq.s32.totalorder %s19, 1
    %p154 = por %p152, %p153
    %p156 = scmp.ne.s32.totalorder %s139, %s155
    %p157 = scmp.eq.s32.totalorder %s19, 0
    %p158 = por %p156, %p157
    %s160 = sadd.s32 %s159, 1
    %p163 = scmp.eq.s32.totalorder %s13, 1
    %p164 = scmp.ne.s32.totalorder %s159, %s161
    %p165 = scmp.eq.s32.totalorder %s13, 0
    %p166 = por %p164, %p165
    %p167 = scmp.ne.s32.totalorder %s159, %s161
    %p168 = scmp.eq.s32.totalorder %s18, 1
    %p169 = por %p167, %p168
    %p170 = scmp.ne.s32.totalorder %s161, %s162
    %p171 = scmp.eq.s32.totalorder %s18, 0
    %p172 = por %p170, %p171
    %p173 = scmp.ne.s32.totalorder %s161, %s162
    %p174 = scmp.eq.s32.totalorder %s19, 1
    %p175 = por %p173, %p174
    %p177 = scmp.ne.s32.totalorder %s162, %s176
    %p178 = scmp.eq.s32.totalorder %s19, 0
    %p179 = por %p177, %p178
    %s181 = sadd.s32 %s180, 1
    %p184 = scmp.eq.s32.totalorder %s13, 1
    %p185 = scmp.ne.s32.totalorder %s180, %s182
    %p186 = scmp.eq.s32.totalorder %s13, 0
    %p187 = por %p185, %p186
    %p188 = scmp.ne.s32.totalorder %s180, %s182
    %p189 = scmp.eq.s32.totalorder %s18, 1
    %p190 = por %p188, %p189
    %p191 = scmp.ne.s32.totalorder %s182, %s183
    %p192 = scmp.eq.s32.totalorder %s18, 0
    %p193 = por %p191, %p192
    %p194 = scmp.ne.s32.totalorder %s182, %s183
    %p195 = scmp.eq.s32.totalorder %s19, 1
    %p196 = por %p194, %p195
    %p198 = scmp.ne.s32.totalorder %s183, %s197
    %p199 = scmp.eq.s32.totalorder %s19, 0
    %p200 = por %p198, %p199
    %s201 = ssub.s32 %s20, %s32
    %p202 = scmp.eq.s32.totalorder %s201, 0
    %s204 = sadd.s32 %s203, 1
    %s205 = scalar_select %p202, %s203, %s204
    %p208 = pneg %p202
    %p209 = scmp.eq.s32.totalorder %s13, 1
    %p210 = por %p208, %p209
    %p211 = scmp.ne.s32.totalorder %s203, %s206
    %p212 = scmp.eq.s32.totalorder %s13, 0
    %p213 = por %p211, %p212
    %p214 = scmp.ne.s32.totalorder %s203, %s206
    %p215 = scmp.eq.s32.totalorder %s18, 1
    %p216 = por %p214, %p215
    %p217 = scmp.ne.s32.totalorder %s206, %s207
    %p218 = scmp.eq.s32.totalorder %s18, 0
    %p219 = por %p217, %p218
    %p220 = scmp.ne.s32.totalorder %s206, %s207
    %p221 = scmp.eq.s32.totalorder %s19, 1
    %p222 = por %p220, %p221
    %p224 = scmp.ne.s32.totalorder %s207, %s223
    %p225 = scmp.eq.s32.totalorder %s19, 0
    %p226 = por %p224, %p225
    %p227 = scmp.le.s32.totalorder 1, %s13
    %p228 = scmp.lt.s32.totalorder %s13, 3
    %p229 = pnand %p227, %p228
    %p230 = pneg %p229
    // Predicated region
    $region9: #{dgcnn_pseg_forward.14} parent=5 // pred_check
      _
    $region10: #{dgcnn_pseg_forward.14} parent=5 // pred_check_branch
      %232 = sbr.rel (%p229) target = $region12
    $region11: #{dgcnn_pseg_forward.14} parent=5 // pred_region
      %s233 = ssub.s32 %s13, 1
      // Predicated region
      $region13: #{dgcnn_pseg_forward.14} parent=11 // pred_check
        %p234 = pneg %p74
      $region14: #{dgcnn_pseg_forward.14} parent=11 // pred_check_branch
        %236 = sbr.rel (%p234) target = $region16
      $region15: #{dgcnn_pseg_forward.14} parent=11 // pred_region
        _
      $region16: #{dgcnn_pseg_forward.14} parent=11 // pred_fallthru
        _
      // Predicated region
      $region17: #{dgcnn_pseg_forward.14} parent=11 // pred_check
        %p237 = pneg %p123
      $region18: #{dgcnn_pseg_forward.14} parent=11 // pred_check_branch
        %239 = sbr.rel (%p237) target = $region20
      $region19: #{dgcnn_pseg_forward.14} parent=11 // pred_region
        _
      $region20: #{dgcnn_pseg_forward.14} parent=11 // pred_fallthru
        _
      // Predicated region
      $region21: #{dgcnn_pseg_forward.14} parent=11 // pred_check
        %p240 = pneg %p172
      $region22: #{dgcnn_pseg_forward.14} parent=11 // pred_check_branch
        %242 = sbr.rel (%p240) target = $region24
      $region23: #{dgcnn_pseg_forward.14} parent=11 // pred_region
        _
      $region24: #{dgcnn_pseg_forward.14} parent=11 // pred_fallthru
        _
      // Predicated region
      $region25: #{dgcnn_pseg_forward.14} parent=11 // pred_check
        %p243 = pneg %p193
      $region26: #{dgcnn_pseg_forward.14} parent=11 // pred_check_branch
        %245 = sbr.rel (%p243) target = $region28
      $region27: #{dgcnn_pseg_forward.14} parent=11 // pred_region
        _
      $region28: #{dgcnn_pseg_forward.14} parent=11 // pred_fallthru
        _
    $region12: #{dgcnn_pseg_forward.14} parent=5 // pred_fallthru
      _
    %p246 = scmp.lt.s32.totalorder %s13, 2
    // Predicated region
    $region29: #{dgcnn_pseg_forward.14} parent=5 // pred_check
      %p247 = pneg %p246
    $region30: #{dgcnn_pseg_forward.14} parent=5 // pred_check_branch
      %249 = sbr.rel (%p247) target = $region32
    $region31: #{dgcnn_pseg_forward.14} parent=5 // pred_region
      // Predicated region
      $region33: #{dgcnn_pseg_forward.14} parent=31 // pred_check
        %p250 = pneg %p47
      $region34: #{dgcnn_pseg_forward.14} parent=31 // pred_check_branch
        %252 = sbr.rel (%p250) target = $region36
      $region35: #{dgcnn_pseg_forward.14} parent=31 // pred_region
        %s253 = smul.u32 2, %s21
        %p254 = scmp.lt.s32.totalorder %s20, 1
        %s255 = scalar_select %p254, %s20, 1
        %p256 = scmp.lt.s32.totalorder %s253, 1
        %s257 = scalar_select %p256, %s253, 1
        %s258 = smul.addr %s255, 2
        %s259 = sadd.s32 %s257, %s258
        %s260 = smul.addr %s259, 4
        %s261 = scalar_lea.vmem %s0, %s260
        %s262 = smul.u32 2, %s21
      $region36: #{dgcnn_pseg_forward.14} parent=31 // pred_fallthru
        _
      // Predicated region
      $region37: #{dgcnn_pseg_forward.14} parent=31 // pred_check
        %p263 = pneg %p96
      $region38: #{dgcnn_pseg_forward.14} parent=31 // pred_check_branch
        %265 = sbr.rel (%p263) target = $region40
      $region39: #{dgcnn_pseg_forward.14} parent=31 // pred_region
        %s266 = smul.u32 2, %s21
        %p267 = scmp.lt.s32.totalorder %s20, 1
        %s268 = scalar_select %p267, %s20, 1
        %p269 = scmp.lt.s32.totalorder %s266, 1
        %s270 = scalar_select %p269, %s266, 1
        %s271 = smul.addr %s268, 2
        %s272 = sadd.s32 %s270, %s271
        %s273 = smul.addr %s272, 4
        %s274 = scalar_lea.vmem %s2, %s273
        %s275 = smul.u32 2, %s21
      $region40: #{dgcnn_pseg_forward.14} parent=31 // pred_fallthru
        _
      // Predicated region
      $region41: #{dgcnn_pseg_forward.14} parent=31 // pred_check
        %p276 = pneg %p145
      $region42: #{dgcnn_pseg_forward.14} parent=31 // pred_check_branch
        %278 = sbr.rel (%p276) target = $region44
      $region43: #{dgcnn_pseg_forward.14} parent=31 // pred_region
        %s279 = smul.u32 2, %s21
        %p280 = scmp.lt.s32.totalorder %s20, 1
        %s281 = scalar_select %p280, %s20, 1
        %p282 = scmp.lt.s32.totalorder %s279, 1
        %s283 = scalar_select %p282, %s279, 1
        %s284 = smul.addr %s281, 2
        %s285 = sadd.s32 %s283, %s284
        %s286 = smul.addr %s285, 4
        %s287 = scalar_lea.vmem %s4, %s286
        %s288 = smul.u32 2, %s21
      $region44: #{dgcnn_pseg_forward.14} parent=31 // pred_fallthru
        _
    $region32: #{dgcnn_pseg_forward.14} parent=5 // pred_fallthru
      _
    %p289 = scmp.le.s32.totalorder 1, %s13
    %p290 = scmp.lt.s32.totalorder %s13, 3
    %p291 = pnand %p289, %p290
    %p292 = pneg %p291
    // Predicated region
    $region45: #{dgcnn_pseg_forward.14} parent=5 // pred_check
      _
    $region46: #{dgcnn_pseg_forward.14} parent=5 // pred_check_branch
      %294 = sbr.rel (%p291) target = $region48
    $region47: #{dgcnn_pseg_forward.14} parent=5 // pred_region
      %s295 = ssub.s32 %s13, 1
      %s296 = smul.u32 2, %s23
      %p297 = scmp.lt.s32.totalorder %s22, 1
      %s298 = scalar_select %p297, %s22, 1
      %p299 = scmp.lt.s32.totalorder %s296, 1
      %s300 = scalar_select %p299, %s296, 1
      %s301 = smul.addr %s298, 2
      %s302 = sadd.s32 %s300, %s301
      %s303 = smul.addr %s302, 4
      %s304 = scalar_lea.vmem %s0, %s303
      %p305 = pneg %p53
      %p306 = pneg %p50
      %p307 = pneg %p74
      %p308 = pneg %p71
      %s309 = smul.u32 2, %s23
      %p310 = scmp.lt.s32.totalorder %s22, 1
      %s311 = scalar_select %p310, %s22, 1
      %p312 = scmp.lt.s32.totalorder %s309, 1
      %s313 = scalar_select %p312, %s309, 1
      %s314 = smul.addr %s311, 2
      %s315 = sadd.s32 %s313, %s314
      %s316 = smul.addr %s315, 4
      %s317 = scalar_lea.vmem %s2, %s316
      %p318 = pneg %p102
      %p319 = pneg %p99
      %p320 = pneg %p123
      %p321 = pneg %p120
      %s322 = smul.u32 2, %s23
      %p323 = scmp.lt.s32.totalorder %s22, 1
      %s324 = scalar_select %p323, %s22, 1
      %p325 = scmp.lt.s32.totalorder %s322, 1
      %s326 = scalar_select %p325, %s322, 1
      %s327 = smul.addr %s324, 2
      %s328 = sadd.s32 %s326, %s327
      %s329 = smul.addr %s328, 4
      %s330 = scalar_lea.vmem %s4, %s329
      %p331 = pneg %p151
      %p332 = pneg %p148
      %p333 = pneg %p172
      %p334 = pneg %p169
      %p335 = pneg %p193
      %p336 = pneg %p190
      %p337 = pneg %p219
      %p338 = pneg %p216
      %p339 = scmp.lt.s32.totalorder %s22, 1
      %s340 = scalar_select %p339, %s22, 1
      %s341 = smul.addr %s340, 8
      %s342 = scalar_lea.vmem %s7, %s341
      %s343 = smul.u32 2, %s23
      %p344 = scmp.lt.s32.totalorder %s22, 1
      %s345 = scalar_select %p344, %s22, 1
      %p346 = scmp.lt.s32.totalorder %s343, 1
      %s347 = scalar_select %p346, %s343, 1
      %s348 = smul.addr %s345, 2
      %s349 = sadd.s32 %s347, %s348
      %s350 = smul.addr %s349, 4
      %s351 = scalar_lea.vmem %s0, %s350
      %s352 = smul.u32 2, %s23
      %s353 = smul.u32 2, %s23
      %p354 = scmp.lt.s32.totalorder %s22, 1
      %s355 = scalar_select %p354, %s22, 1
      %p356 = scmp.lt.s32.totalorder %s353, 1
      %s357 = scalar_select %p356, %s353, 1
      %s358 = smul.addr %s355, 2
      %s359 = sadd.s32 %s357, %s358
      %s360 = smul.addr %s359, 4
      %s361 = scalar_lea.vmem %s2, %s360
      %s362 = smul.u32 2, %s23
      %s363 = smul.u32 2, %s23
      %p364 = scmp.lt.s32.totalorder %s22, 1
      %s365 = scalar_select %p364, %s22, 1
      %p366 = scmp.lt.s32.totalorder %s363, 1
      %s367 = scalar_select %p366, %s363, 1
      %s368 = smul.addr %s365, 2
      %s369 = sadd.s32 %s367, %s368
      %s370 = smul.addr %s369, 4
      %s371 = scalar_lea.vmem %s4, %s370
      %s372 = smul.u32 2, %s23
      %p373 = scmp.lt.s32.totalorder %s22, 1
      %s374 = scalar_select %p373, %s22, 1
      %s375 = smul.addr %s374, 8
      %s376 = scalar_lea.vmem %s7, %s375
      %v378 = vld [vmem:[%s351] sm:$0xf]
      %v379 = vld [vmem:[%s351 + $0x4] sm:$0xf]
      %v380 = vld [vmem:[%s1] sm:$0xff]
      %v381 = vld [vmem:[%s1 + $0x8] sm:$0xff]
      %v382 = vld [vmem:[%s1 + $0x10] sm:$0xff]
      %v383 = vld [vmem:[%s1 + $0x18] sm:$0xff]
      %v384 = vld [vmem:[%s1 + $0x20] sm:$0xff]
      %v385 = vld [vmem:[%s1 + $0x28] sm:$0xff]
      %v386 = vld [vmem:[%s1 + $0x30] sm:$0xff]
      %v387 = vld [vmem:[%s1 + $0x38] sm:$0xff]
      %v388 = vld [vmem:[%s1 + $0x40] sm:$0xff]
      %v389 = vld [vmem:[%s1 + $0x48] sm:$0xff]
      %v390 = vld [vmem:[%s1 + $0x50] sm:$0xff]
      %v391 = vld [vmem:[%s1 + $0x58] sm:$0xff]
      %v392 = vld [vmem:[%s1 + $0x60] sm:$0xff]
      %v393 = vld [vmem:[%s1 + $0x68] sm:$0xff]
      %v394 = vld [vmem:[%s1 + $0x70] sm:$0xff]
      %v395 = vld [vmem:[%s1 + $0x78] sm:$0xff]
      %v396 = vld [vmem:[%s1 + $0x80] sm:$0xff]
      %v397 = vld [vmem:[%s1 + $0x88] sm:$0xff]
      %v398 = vld [vmem:[%s1 + $0x90] sm:$0xff]
      %v399 = vld [vmem:[%s1 + $0x98] sm:$0xff]
      %v400 = vld [vmem:[%s1 + $0xa0] sm:$0xff]
      %v401 = vld [vmem:[%s1 + $0xa8] sm:$0xff]
      %v402 = vld [vmem:[%s1 + $0xb0] sm:$0xff]
      %v403 = vld [vmem:[%s1 + $0xb8] sm:$0xff]
      %v404 = vld [vmem:[%s1 + $0xc0] sm:$0xff]
      %v405 = vld [vmem:[%s1 + $0xc8] sm:$0xff]
      %v406 = vld [vmem:[%s1 + $0xd0] sm:$0xff]
      %v407 = vld [vmem:[%s1 + $0xd8] sm:$0xff]
      %v408 = vld [vmem:[%s1 + $0xe0] sm:$0xff]
      %v409 = vld [vmem:[%s1 + $0xe8] sm:$0xff]
      %v410 = vld [vmem:[%s1 + $0xf0] sm:$0xff]
      %v411 = vld [vmem:[%s1 + $0xf8] sm:$0xff]
      %v412 = vld [vmem:[%s361] sm:$0xf]
      %v413 = vld [vmem:[%s361 + $0x4] sm:$0xf]
      %v414 = vld [vmem:[%s3] sm:$0xff]
      %v415 = vld [vmem:[%s3 + $0x8] sm:$0xff]
      %v416 = vld [vmem:[%s3 + $0x10] sm:$0xff]
      %v417 = vld [vmem:[%s3 + $0x18] sm:$0xff]
      %v418 = vld [vmem:[%s3 + $0x20] sm:$0xff]
      %v419 = vld [vmem:[%s3 + $0x28] sm:$0xff]
      %v420 = vld [vmem:[%s3 + $0x30] sm:$0xff]
      %v421 = vld [vmem:[%s3 + $0x38] sm:$0xff]
      %v422 = vld [vmem:[%s3 + $0x40] sm:$0xff]
      %v423 = vld [vmem:[%s3 + $0x48] sm:$0xff]
      %v424 = vld [vmem:[%s3 + $0x50] sm:$0xff]
      %v425 = vld [vmem:[%s3 + $0x58] sm:$0xff]
      %v426 = vld [vmem:[%s3 + $0x60] sm:$0xff]
      %v427 = vld [vmem:[%s3 + $0x68] sm:$0xff]
      %v428 = vld [vmem:[%s3 + $0x70] sm:$0xff]
      %v429 = vld [vmem:[%s3 + $0x78] sm:$0xff]
      %v430 = vld [vmem:[%s3 + $0x80] sm:$0xff]
      %v431 = vld [vmem:[%s3 + $0x88] sm:$0xff]
      %v432 = vld [vmem:[%s3 + $0x90] sm:$0xff]
      %v433 = vld [vmem:[%s3 + $0x98] sm:$0xff]
      %v434 = vld [vmem:[%s3 + $0xa0] sm:$0xff]
      %v435 = vld [vmem:[%s3 + $0xa8] sm:$0xff]
      %v436 = vld [vmem:[%s3 + $0xb0] sm:$0xff]
      %v437 = vld [vmem:[%s3 + $0xb8] sm:$0xff]
      %v438 = vld [vmem:[%s3 + $0xc0] sm:$0xff]
      %v439 = vld [vmem:[%s3 + $0xc8] sm:$0xff]
      %v440 = vld [vmem:[%s3 + $0xd0] sm:$0xff]
      %v441 = vld [vmem:[%s3 + $0xd8] sm:$0xff]
      %v442 = vld [vmem:[%s3 + $0xe0] sm:$0xff]
      %v443 = vld [vmem:[%s3 + $0xe8] sm:$0xff]
      %v444 = vld [vmem:[%s3 + $0xf0] sm:$0xff]
      %v445 = vld [vmem:[%s3 + $0xf8] sm:$0xff]
      %v448 = vunpack.c.l.b16 %v412
      %v449 = vunpack.c.l.b16 %v413
      %v450 = vpack.c.b16 %v449, %v448
      %v483 = vunpack.c.l.b16 %v414
      %v484 = vunpack.c.h.b16 %v414
      %v485 = vunpack.c.l.b16 %v415
      %v486 = vunpack.c.h.b16 %v415
      %v487 = vunpack.c.l.b16 %v416
      %v488 = vunpack.c.h.b16 %v416
      %v489 = vunpack.c.l.b16 %v417
      %v490 = vunpack.c.h.b16 %v417
      %v491 = vunpack.c.l.b16 %v418
      %v492 = vunpack.c.h.b16 %v418
      %v493 = vunpack.c.l.b16 %v419
      %v494 = vunpack.c.h.b16 %v419
      %v495 = vunpack.c.l.b16 %v420
      %v496 = vunpack.c.h.b16 %v420
      %v497 = vunpack.c.l.b16 %v421
      %v498 = vunpack.c.h.b16 %v421
      %v499 = vunpack.c.l.b16 %v422
      %v500 = vunpack.c.h.b16 %v422
      %v501 = vunpack.c.l.b16 %v423
      %v502 = vunpack.c.h.b16 %v423
      %v503 = vunpack.c.l.b16 %v424
      %v504 = vunpack.c.h.b16 %v424
      %v505 = vunpack.c.l.b16 %v425
      %v506 = vunpack.c.h.b16 %v425
      %v507 = vunpack.c.l.b16 %v426
      %v508 = vunpack.c.h.b16 %v426
      %v509 = vunpack.c.l.b16 %v427
      %v510 = vunpack.c.h.b16 %v427
      %v511 = vunpack.c.l.b16 %v428
      %v512 = vunpack.c.h.b16 %v428
      %v513 = vunpack.c.l.b16 %v429
      %v514 = vunpack.c.h.b16 %v429
      %v515 = vunpack.c.l.b16 %v430
      %v516 = vunpack.c.h.b16 %v430
      %v517 = vunpack.c.l.b16 %v431
      %v518 = vunpack.c.h.b16 %v431
      %v519 = vunpack.c.l.b16 %v432
      %v520 = vunpack.c.h.b16 %v432
      %v521 = vunpack.c.l.b16 %v433
      %v522 = vunpack.c.h.b16 %v433
      %v523 = vunpack.c.l.b16 %v434
      %v524 = vunpack.c.h.b16 %v434
      %v525 = vunpack.c.l.b16 %v435
      %v526 = vunpack.c.h.b16 %v435
      %v527 = vunpack.c.l.b16 %v436
      %v528 = vunpack.c.h.b16 %v436
      %v529 = vunpack.c.l.b16 %v437
      %v530 = vunpack.c.h.b16 %v437
      %v531 = vunpack.c.l.b16 %v438
      %v532 = vunpack.c.h.b16 %v438
      %v533 = vunpack.c.l.b16 %v439
      %v534 = vunpack.c.h.b16 %v439
      %v535 = vunpack.c.l.b16 %v440
      %v536 = vunpack.c.h.b16 %v440
      %v537 = vunpack.c.l.b16 %v441
      %v538 = vunpack.c.h.b16 %v441
      %v539 = vunpack.c.l.b16 %v442
      %v540 = vunpack.c.h.b16 %v442
      %v541 = vunpack.c.l.b16 %v443
      %v542 = vunpack.c.h.b16 %v443
      %v543 = vunpack.c.l.b16 %v444
      %v544 = vunpack.c.h.b16 %v444
      %v545 = vunpack.c.l.b16 %v445
      %v546 = vunpack.c.h.b16 %v445
      %v547 = vpack.c.b16 %v491, %v483
      %v548 = vpack.c.b16 %v492, %v484
      %v549 = vpack.c.b16 %v493, %v485
      %v550 = vpack.c.b16 %v494, %v486
      %v551 = vpack.c.b16 %v495, %v487
      %v552 = vpack.c.b16 %v496, %v488
      %v553 = vpack.c.b16 %v497, %v489
      %v554 = vpack.c.b16 %v498, %v490
      %v555 = vpack.c.b16 %v507, %v499
      %v556 = vpack.c.b16 %v508, %v500
      %v557 = vpack.c.b16 %v509, %v501
      %v558 = vpack.c.b16 %v510, %v502
      %v559 = vpack.c.b16 %v511, %v503
      %v560 = vpack.c.b16 %v512, %v504
      %v561 = vpack.c.b16 %v513, %v505
      %v562 = vpack.c.b16 %v514, %v506
      %v563 = vpack.c.b16 %v523, %v515
      %v564 = vpack.c.b16 %v524, %v516
      %v565 = vpack.c.b16 %v525, %v517
      %v566 = vpack.c.b16 %v526, %v518
      %v567 = vpack.c.b16 %v527, %v519
      %v568 = vpack.c.b16 %v528, %v520
      %v569 = vpack.c.b16 %v529, %v521
      %v570 = vpack.c.b16 %v530, %v522
      %v571 = vpack.c.b16 %v539, %v531
      %v572 = vpack.c.b16 %v540, %v532
      %v573 = vpack.c.b16 %v541, %v533
      %v574 = vpack.c.b16 %v542, %v534
      %v575 = vpack.c.b16 %v543, %v535
      %v576 = vpack.c.b16 %v544, %v536
      %v577 = vpack.c.b16 %v545, %v537
      %v578 = vpack.c.b16 %v546, %v538
      %vm611 = vcmask 523264
      %v613 = vsel %vm611, %v450, 0
      %615 = vmatprep.subr.bf16.mxu0 %v548
      %616 = vmatpush1.bf16.msra.mxu0 %v547
      %617 = vmatprep.subr.bf16.mxu0 %v556
      %618 = vmatpush1.bf16.msra.mxu0 %v555
      %619 = vmatprep.subr.bf16.mxu0 %v564
      %620 = vmatpush1.bf16.msra.mxu0 %v563
      %621 = vmatprep.subr.bf16.mxu0 %v572
      %622 = vmatpush1.bf16.msra.mxu0 %v571
      %623 = vmatprep.subr.bf16.mxu0 0
      %624 = vmatpush1.bf16.msra.mxu0 0
      %625 = vmatprep.subr.bf16.mxu0 0
      %626 = vmatpush1.bf16.msra.mxu0 0
      %627 = vmatprep.subr.bf16.mxu0 0
      %628 = vmatpush1.bf16.msra.mxu0 0
      %629 = vmatprep.subr.bf16.mxu0 0
      %630 = vmatpush1.bf16.msra.mxu0 0
      %631 = vmatprep.subr.bf16.mxu0 0
      %632 = vmatpush1.bf16.msra.mxu0 0
      %633 = vmatprep.subr.bf16.mxu0 0
      %634 = vmatpush1.bf16.msra.mxu0 0
      %635 = vmatprep.subr.bf16.mxu0 0
      %636 = vmatpush1.bf16.msra.mxu0 0
      %637 = vmatprep.subr.bf16.mxu0 0
      %638 = vmatpush1.bf16.msra.mxu0 0
      %639 = vmatprep.subr.bf16.mxu0 0
      %640 = vmatpush1.bf16.msra.mxu0 0
      %641 = vmatprep.subr.bf16.mxu0 0
      %642 = vmatpush1.bf16.msra.mxu0 0
      %643 = vmatprep.subr.bf16.mxu0 0
      %644 = vmatpush1.bf16.msra.mxu0 0
      %645 = vmatprep.subr.bf16.mxu0 0
      %646 = vmatpush1.bf16.msra.mxu0 0
      %647 = vmatprep.mubr.bf16.mxu0 0
      %648 = vmatmul.mubr.bf16.gmra.mrb[0].mxu0 %v613
      %v649 = vpop.f32.mrb[0].mxu0
      %v650 = vadd.f32 0.0, %v649
      %v651 = vpop.f32.mrb[0].mxu0
      %v652 = vadd.f32 0.0, %v651
      %v653 = vpop.f32.mrb[0].mxu0
      %v654 = vadd.f32 0.0, %v653
      %v655 = vpop.f32.mrb[0].mxu0
      %v656 = vadd.f32 0.0, %v655
      %657 = vdwg.mxu0
      %658 = vmatprep.subr.bf16.mxu0 %v550
      %659 = vmatpush1.bf16.msra.mxu0 %v549
      %660 = vmatprep.subr.bf16.mxu0 %v558
      %661 = vmatpush1.bf16.msra.mxu0 %v557
      %662 = vmatprep.subr.bf16.mxu0 %v566
      %663 = vmatpush1.bf16.msra.mxu0 %v565
      %664 = vmatprep.subr.bf16.mxu0 %v574
      %665 = vmatpush1.bf16.msra.mxu0 %v573
      %666 = vmatprep.subr.bf16.mxu0 0
      %667 = vmatpush1.bf16.msra.mxu0 0
      %668 = vmatprep.subr.bf16.mxu0 0
      %669 = vmatpush1.bf16.msra.mxu0 0
      %670 = vmatprep.subr.bf16.mxu0 0
      %671 = vmatpush1.bf16.msra.mxu0 0
      %672 = vmatprep.subr.bf16.mxu0 0
      %673 = vmatpush1.bf16.msra.mxu0 0
      %674 = vmatprep.subr.bf16.mxu0 0
      %675 = vmatpush1.bf16.msra.mxu0 0
      %676 = vmatprep.subr.bf16.mxu0 0
      %677 = vmatpush1.bf16.msra.mxu0 0
      %678 = vmatprep.subr.bf16.mxu0 0
      %679 = vmatpush1.bf16.msra.mxu0 0
      %680 = vmatprep.subr.bf16.mxu0 0
      %681 = vmatpush1.bf16.msra.mxu0 0
      %682 = vmatprep.subr.bf16.mxu0 0
      %683 = vmatpush1.bf16.msra.mxu0 0
      %684 = vmatprep.subr.bf16.mxu0 0
      %685 = vmatpush1.bf16.msra.mxu0 0
      %686 = vmatprep.subr.bf16.mxu0 0
      %687 = vmatpush1.bf16.msra.mxu0 0
      %688 = vmatprep.subr.bf16.mxu0 0
      %689 = vmatpush1.bf16.msra.mxu0 0
      %690 = vmatprep.mubr.bf16.mxu0 0
      %691 = vmatmul.mubr.bf16.gmra.mrb[0].mxu0 %v613
      %v692 = vpop.f32.mrb[0].mxu0
      %v693 = vadd.f32 0.0, %v692
      %v694 = vpop.f32.mrb[0].mxu0
      %v695 = vadd.f32 0.0, %v694
      %v696 = vpop.f32.mrb[0].mxu0
      %v697 = vadd.f32 0.0, %v696
      %v698 = vpop.f32.mrb[0].mxu0
      %v699 = vadd.f32 0.0, %v698
      %700 = vdwg.mxu0
      %701 = vmatprep.subr.bf16.mxu0 %v552
      %702 = vmatpush1.bf16.msra.mxu0 %v551
      %703 = vmatprep.subr.bf16.mxu0 %v560
      %704 = vmatpush1.bf16.msra.mxu0 %v559
      %705 = vmatprep.subr.bf16.mxu0 %v568
      %706 = vmatpush1.bf16.msra.mxu0 %v567
      %707 = vmatprep.subr.bf16.mxu0 %v576
      %708 = vmatpush1.bf16.msra.mxu0 %v575
      %709 = vmatprep.subr.bf16.mxu0 0
      %710 = vmatpush1.bf16.msra.mxu0 0
      %711 = vmatprep.subr.bf16.mxu0 0
      %712 = vmatpush1.bf16.msra.mxu0 0
      %713 = vmatprep.subr.bf16.mxu0 0
      %714 = vmatpush1.bf16.msra.mxu0 0
      %715 = vmatprep.subr.bf16.mxu0 0
      %716 = vmatpush1.bf16.msra.mxu0 0
      %717 = vmatprep.subr.bf16.mxu0 0
      %718 = vmatpush1.bf16.msra.mxu0 0
      %719 = vmatprep.subr.bf16.mxu0 0
      %720 = vmatpush1.bf16.msra.mxu0 0
      %721 = vmatprep.subr.bf16.mxu0 0
      %722 = vmatpush1.bf16.msra.mxu0 0
      %723 = vmatprep.subr.bf16.mxu0 0
      %724 = vmatpush1.bf16.msra.mxu0 0
      %725 = vmatprep.subr.bf16.mxu0 0
      %726 = vmatpush1.bf16.msra.mxu0 0
      %727 = vmatprep.subr.bf16.mxu0 0
      %728 = vmatpush1.bf16.msra.mxu0 0
      %729 = vmatprep.subr.bf16.mxu0 0
      %730 = vmatpush1.bf16.msra.mxu0 0
      %731 = vmatprep.subr.bf16.mxu0 0
      %732 = vmatpush1.bf16.msra.mxu0 0
      %733 = vmatprep.mubr.bf16.mxu0 0
      %734 = vmatmul.mubr.bf16.gmra.mrb[0].mxu0 %v613
      %v735 = vpop.f32.mrb[0].mxu0
      %v736 = vadd.f32 0.0, %v735
      %v737 = vpop.f32.mrb[0].mxu0
      %v738 = vadd.f32 0.0, %v737
      %v739 = vpop.f32.mrb[0].mxu0
      %v740 = vadd.f32 0.0, %v739
      %v741 = vpop.f32.mrb[0].mxu0
      %v742 = vadd.f32 0.0, %v741
      %743 = vdwg.mxu0
      %744 = vmatprep.subr.bf16.mxu0 %v554
      %745 = vmatpush1.bf16.msra.mxu0 %v553
      %746 = vmatprep.subr.bf16.mxu0 %v562
      %747 = vmatpush1.bf16.msra.mxu0 %v561
      %748 = vmatprep.subr.bf16.mxu0 %v570
      %749 = vmatpush1.bf16.msra.mxu0 %v569
      %750 = vmatprep.subr.bf16.mxu0 %v578
      %751 = vmatpush1.bf16.msra.mxu0 %v577
      %752 = vmatprep.subr.bf16.mxu0 0
      %753 = vmatpush1.bf16.msra.mxu0 0
      %754 = vmatprep.subr.bf16.mxu0 0
      %755 = vmatpush1.bf16.msra.mxu0 0
      %756 = vmatprep.subr.bf16.mxu0 0
      %757 = vmatpush1.bf16.msra.mxu0 0
      %758 = vmatprep.subr.bf16.mxu0 0
      %759 = vmatpush1.bf16.msra.mxu0 0
      %760 = vmatprep.subr.bf16.mxu0 0
      %761 = vmatpush1.bf16.msra.mxu0 0
      %762 = vmatprep.subr.bf16.mxu0 0
      %763 = vmatpush1.bf16.msra.mxu0 0
      %764 = vmatprep.subr.bf16.mxu0 0
      %765 = vmatpush1.bf16.msra.mxu0 0
      %766 = vmatprep.subr.bf16.mxu0 0
      %767 = vmatpush1.bf16.msra.mxu0 0
      %768 = vmatprep.subr.bf16.mxu0 0
      %769 = vmatpush1.bf16.msra.mxu0 0
      %770 = vmatprep.subr.bf16.mxu0 0
      %771 = vmatpush1.bf16.msra.mxu0 0
      %772 = vmatprep.subr.bf16.mxu0 0
      %773 = vmatpush1.bf16.msra.mxu0 0
      %774 = vmatprep.subr.bf16.mxu0 0
      %775 = vmatpush1.bf16.msra.mxu0 0
      %776 = vmatprep.mubr.bf16.mxu0 0
      %777 = vmatmul.mubr.bf16.gmra.mrb[0].mxu0 %v613
      %v778 = vpop.f32.mrb[0].mxu0
      %v779 = vadd.f32 0.0, %v778
      %v780 = vpop.f32.mrb[0].mxu0
      %v781 = vadd.f32 0.0, %v780
      %v782 = vpop.f32.mrb[0].mxu0
      %v783 = vadd.f32 0.0, %v782
      %v784 = vpop.f32.mrb[0].mxu0
      %v785 = vadd.f32 0.0, %v784
      %786 = vdwg.mxu0
      %v789 = vunpack.c.l.b16 %v378
      %v790 = vunpack.c.l.b16 %v379
      %v791 = vpack.c.b16 %v790, %v789
      %v824 = vunpack.c.l.b16 %v380
      %v825 = vunpack.c.h.b16 %v380
      %v826 = vunpack.c.l.b16 %v381
      %v827 = vunpack.c.h.b16 %v381
      %v828 = vunpack.c.l.b16 %v382
      %v829 = vunpack.c.h.b16 %v382
      %v830 = vunpack.c.l.b16 %v383
      %v831 = vunpack.c.h.b16 %v383
      %v832 = vunpack.c.l.b16 %v384
      %v833 = vunpack.c.h.b16 %v384
      %v834 = vunpack.c.l.b16 %v385
      %v835 = vunpack.c.h.b16 %v385
      %v836 = vunpack.c.l.b16 %v386
      %v837 = vunpack.c.h.b16 %v386
      %v838 = vunpack.c.l.b16 %v387
      %v839 = vunpack.c.h.b16 %v387
      %v840 = vunpack.c.l.b16 %v388
      %v841 = vunpack.c.h.b16 %v388
      %v842 = vunpack.c.l.b16 %v389
      %v843 = vunpack.c.h.b16 %v389
      %v844 = vunpack.c.l.b16 %v390
      %v845 = vunpack.c.h.b16 %v390
      %v846 = vunpack.c.l.b16 %v391
      %v847 = vunpack.c.h.b16 %v391
      %v848 = vunpack.c.l.b16 %v392
      %v849 = vunpack.c.h.b16 %v392
      %v850 = vunpack.c.l.b16 %v393
      %v851 = vunpack.c.h.b16 %v393
      %v852 = vunpack.c.l.b16 %v394
      %v853 = vunpack.c.h.b16 %v394
      %v854 = vunpack.c.l.b16 %v395
      %v855 = vunpack.c.h.b16 %v395
      %v856 = vunpack.c.l.b16 %v396
      %v857 = vunpack.c.h.b16 %v396
      %v858 = vunpack.c.l.b16 %v397
      %v859 = vunpack.c.h.b16 %v397
      %v860 = vunpack.c.l.b16 %v398
      %v861 = vunpack.c.h.b16 %v398
      %v862 = vunpack.c.l.b16 %v399
      %v863 = vunpack.c.h.b16 %v399
      %v864 = vunpack.c.l.b16 %v400
      %v865 = vunpack.c.h.b16 %v400
      %v866 = vunpack.c.l.b16 %v401
      %v867 = vunpack.c.h.b16 %v401
      %v868 = vunpack.c.l.b16 %v402
      %v869 = vunpack.c.h.b16 %v402
      %v870 = vunpack.c.l.b16 %v403
      %v871 = vunpack.c.h.b16 %v403
      %v872 = vunpack.c.l.b16 %v404
      %v873 = vunpack.c.h.b16 %v404
      %v874 = vunpack.c.l.b16 %v405
      %v875 = vunpack.c.h.b16 %v405
      %v876 = vunpack.c.l.b16 %v406
      %v877 = vunpack.c.h.b16 %v406
      %v878 = vunpack.c.l.b16 %v407
      %v879 = vunpack.c.h.b16 %v407
      %v880 = vunpack.c.l.b16 %v408
      %v881 = vunpack.c.h.b16 %v408
      %v882 = vunpack.c.l.b16 %v409
      %v883 = vunpack.c.h.b16 %v409
      %v884 = vunpack.c.l.b16 %v410
      %v885 = vunpack.c.h.b16 %v410
      %v886 = vunpack.c.l.b16 %v411
      %v887 = vunpack.c.h.b16 %v411
      %v888 = vpack.c.b16 %v832, %v824
      %v889 = vpack.c.b16 %v833, %v825
      %v890 = vpack.c.b16 %v834, %v826
      %v891 = vpack.c.b16 %v835, %v827
      %v892 = vpack.c.b16 %v836, %v828
      %v893 = vpack.c.b16 %v837, %v829
      %v894 = vpack.c.b16 %v838, %v830
      %v895 = vpack.c.b16 %v839, %v831
      %v896 = vpack.c.b16 %v848, %v840
      %v897 = vpack.c.b16 %v849, %v841
      %v898 = vpack.c.b16 %v850, %v842
      %v899 = vpack.c.b16 %v851, %v843
      %v900 = vpack.c.b16 %v852, %v844
      %v901 = vpack.c.b16 %v853, %v845
      %v902 = vpack.c.b16 %v854, %v846
      %v903 = vpack.c.b16 %v855, %v847
      %v904 = vpack.c.b16 %v864, %v856
      %v905 = vpack.c.b16 %v865, %v857
      %v906 = vpack.c.b16 %v866, %v858
      %v907 = vpack.c.b16 %v867, %v859
      %v908 = vpack.c.b16 %v868, %v860
      %v909 = vpack.c.b16 %v869, %v861
      %v910 = vpack.c.b16 %v870, %v862
      %v911 = vpack.c.b16 %v871, %v863
      %v912 = vpack.c.b16 %v880, %v872
      %v913 = vpack.c.b16 %v881, %v873
      %v914 = vpack.c.b16 %v882, %v874
      %v915 = vpack.c.b16 %v883, %v875
      %v916 = vpack.c.b16 %v884, %v876
      %v917 = vpack.c.b16 %v885, %v877
      %v918 = vpack.c.b16 %v886, %v878
      %v919 = vpack.c.b16 %v887, %v879
      %v953 = vsel %vm611, %v791, 0
      %955 = vmatprep.subr.bf16.mxu0 %v889
      %956 = vmatpush1.bf16.msra.mxu0 %v888
      %957 = vmatprep.subr.bf16.mxu0 %v897
      %958 = vmatpush1.bf16.msra.mxu0 %v896
      %959 = vmatprep.subr.bf16.mxu0 %v905
      %960 = vmatpush1.bf16.msra.mxu0 %v904
      %961 = vmatprep.subr.bf16.mxu0 %v913
      %962 = vmatpush1.bf16.msra.mxu0 %v912
      %963 = vmatprep.subr.bf16.mxu0 0
      %964 = vmatpush1.bf16.msra.mxu0 0
      %965 = vmatprep.subr.bf16.mxu0 0
      %966 = vmatpush1.bf16.msra.mxu0 0
      %967 = vmatprep.subr.bf16.mxu0 0
      %968 = vmatpush1.bf16.msra.mxu0 0
      %969 = vmatprep.subr.bf16.mxu0 0
      %970 = vmatpush1.bf16.msra.mxu0 0
      %971 = vmatprep.subr.bf16.mxu0 0
      %972 = vmatpush1.bf16.msra.mxu0 0
      %973 = vmatprep.subr.bf16.mxu0 0
      %974 = vmatpush1.bf16.msra.mxu0 0
      %975 = vmatprep.subr.bf16.mxu0 0
      %976 = vmatpush1.bf16.msra.mxu0 0
      %977 = vmatprep.subr.bf16.mxu0 0
      %978 = vmatpush1.bf16.msra.mxu0 0
      %979 = vmatprep.subr.bf16.mxu0 0
      %980 = vmatpush1.bf16.msra.mxu0 0
      %981 = vmatprep.subr.bf16.mxu0 0
      %982 = vmatpush1.bf16.msra.mxu0 0
      %983 = vmatprep.subr.bf16.mxu0 0
      %984 = vmatpush1.bf16.msra.mxu0 0
      %985 = vmatprep.subr.bf16.mxu0 0
      %986 = vmatpush1.bf16.msra.mxu0 0
      %987 = vmatprep.mubr.bf16.mxu0 0
      %988 = vmatmul.mubr.bf16.gmra.mrb[0].mxu0 %v953
      %v989 = vpop.f32.mrb[0].mxu0
      %v990 = vadd.f32 %v650, %v989
      %v991 = vpop.f32.mrb[0].mxu0
      %v992 = vadd.f32 %v652, %v991
      %v993 = vpop.f32.mrb[0].mxu0
      %v994 = vadd.f32 %v654, %v993
      %v995 = vpop.f32.mrb[0].mxu0
      %v996 = vadd.f32 %v656, %v995
      %997 = vdwg.mxu0
      %998 = vmatprep.subr.bf16.mxu0 %v891
      %999 = vmatpush1.bf16.msra.mxu0 %v890
      %1000 = vmatprep.subr.bf16.mxu0 %v899
      %1001 = vmatpush1.bf16.msra.mxu0 %v898
      %1002 = vmatprep.subr.bf16.mxu0 %v907
      %1003 = vmatpush1.bf16.msra.mxu0 %v906
      %1004 = vmatprep.subr.bf16.mxu0 %v915
      %1005 = vmatpush1.bf16.msra.mxu0 %v914
      %1006 = vmatprep.subr.bf16.mxu0 0
      %1007 = vmatpush1.bf16.msra.mxu0 0
      %1008 = vmatprep.subr.bf16.mxu0 0
      %1009 = vmatpush1.bf16.msra.mxu0 0
      %1010 = vmatprep.subr.bf16.mxu0 0
      %1011 = vmatpush1.bf16.msra.mxu0 0
      %1012 = vmatprep.subr.bf16.mxu0 0
      %1013 = vmatpush1.bf16.msra.mxu0 0
      %1014 = vmatprep.subr.bf16.mxu0 0
      %1015 = vmatpush1.bf16.msra.mxu0 0
      %1016 = vmatprep.subr.bf16.mxu0 0
      %1017 = vmatpush1.bf16.msra.mxu0 0
      %1018 = vmatprep.subr.bf16.mxu0 0
      %1019 = vmatpush1.bf16.msra.mxu0 0
      %1020 = vmatprep.subr.bf16.mxu0 0
      %1021 = vmatpush1.bf16.msra.mxu0 0
      %1022 = vmatprep.subr.bf16.mxu0 0
      %1023 = vmatpush1.bf16.msra.mxu0 0
      %1024 = vmatprep.subr.bf16.mxu0 0
      %1025 = vmatpush1.bf16.msra.mxu0 0
      %1026 = vmatprep.subr.bf16.mxu0 0
      %1027 = vmatpush1.bf16.msra.mxu0 0
      %1028 = vmatprep.subr.bf16.mxu0 0
      %1029 = vmatpush1.bf16.msra.mxu0 0
      %1030 = vmatprep.mubr.bf16.mxu0 0
      %1031 = vmatmul.mubr.bf16.gmra.mrb[0].mxu0 %v953
      %v1032 = vpop.f32.mrb[0].mxu0
      %v1033 = vadd.f32 %v693, %v1032
      %v1034 = vpop.f32.mrb[0].mxu0
      %v1035 = vadd.f32 %v695, %v1034
      %v1036 = vpop.f32.mrb[0].mxu0
      %v1037 = vadd.f32 %v697, %v1036
      %v1038 = vpop.f32.mrb[0].mxu0
      %v1039 = vadd.f32 %v699, %v1038
      %1040 = vdwg.mxu0
      %1041 = vmatprep.subr.bf16.mxu0 %v893
      %1042 = vmatpush1.bf16.msra.mxu0 %v892
      %1043 = vmatprep.subr.bf16.mxu0 %v901
      %1044 = vmatpush1.bf16.msra.mxu0 %v900
      %1045 = vmatprep.subr.bf16.mxu0 %v909
      %1046 = vmatpush1.bf16.msra.mxu0 %v908
      %1047 = vmatprep.subr.bf16.mxu0 %v917
      %1048 = vmatpush1.bf16.msra.mxu0 %v916
      %1049 = vmatprep.subr.bf16.mxu0 0
      %1050 = vmatpush1.bf16.msra.mxu0 0
      %1051 = vmatprep.subr.bf16.mxu0 0
      %1052 = vmatpush1.bf16.msra.mxu0 0
      %1053 = vmatprep.subr.bf16.mxu0 0
      %1054 = vmatpush1.bf16.msra.mxu0 0
      %1055 = vmatprep.subr.bf16.mxu0 0
      %1056 = vmatpush1.bf16.msra.mxu0 0
      %1057 = vmatprep.subr.bf16.mxu0 0
      %1058 = vmatpush1.bf16.msra.mxu0 0
      %1059 = vmatprep.subr.bf16.mxu0 0
      %1060 = vmatpush1.bf16.msra.mxu0 0
      %1061 = vmatprep.subr.bf16.mxu0 0
      %1062 = vmatpush1.bf16.msra.mxu0 0
      %1063 = vmatprep.subr.bf16.mxu0 0
      %1064 = vmatpush1.bf16.msra.mxu0 0
      %1065 = vmatprep.subr.bf16.mxu0 0
      %1066 = vmatpush1.bf16.msra.mxu0 0
      %1067 = vmatprep.subr.bf16.mxu0 0
      %1068 = vmatpush1.bf16.msra.mxu0 0
      %1069 = vmatprep.subr.bf16.mxu0 0
      %1070 = vmatpush1.bf16.msra.mxu0 0
      %1071 = vmatprep.subr.bf16.mxu0 0
      %1072 = vmatpush1.bf16.msra.mxu0 0
      %1073 = vmatprep.mubr.bf16.mxu0 0
      %1074 = vmatmul.mubr.bf16.gmra.mrb[0].mxu0 %v953
      %v1075 = vpop.f32.mrb[0].mxu0
      %v1076 = vadd.f32 %v736, %v1075
      %v1077 = vpop.f32.mrb[0].mxu0
      %v1078 = vadd.f32 %v738, %v1077
      %v1079 = vpop.f32.mrb[0].mxu0
      %v1080 = vadd.f32 %v740, %v1079
      %v1081 = vpop.f32.mrb[0].mxu0
      %v1082 = vadd.f32 %v742, %v1081
      %1083 = vdwg.mxu0
      %1084 = vmatprep.subr.bf16.mxu0 %v895
      %1085 = vmatpush1.bf16.msra.mxu0 %v894
      %1086 = vmatprep.subr.bf16.mxu0 %v903
      %1087 = vmatpush1.bf16.msra.mxu0 %v902
      %1088 = vmatprep.subr.bf16.mxu0 %v911
      %1089 = vmatpush1.bf16.msra.mxu0 %v910
      %1090 = vmatprep.subr.bf16.mxu0 %v919
      %1091 = vmatpush1.bf16.msra.mxu0 %v918
      %1092 = vmatprep.subr.bf16.mxu0 0
      %1093 = vmatpush1.bf16.msra.mxu0 0
      %1094 = vmatprep.subr.bf16.mxu0 0
      %1095 = vmatpush1.bf16.msra.mxu0 0
      %1096 = vmatprep.subr.bf16.mxu0 0
      %1097 = vmatpush1.bf16.msra.mxu0 0
      %1098 = vmatprep.subr.bf16.mxu0 0
      %1099 = vmatpush1.bf16.msra.mxu0 0
      %1100 = vmatprep.subr.bf16.mxu0 0
      %1101 = vmatpush1.bf16.msra.mxu0 0
      %1102 = vmatprep.subr.bf16.mxu0 0
      %1103 = vmatpush1.bf16.msra.mxu0 0
      %1104 = vmatprep.subr.bf16.mxu0 0
      %1105 = vmatpush1.bf16.msra.mxu0 0
      %1106 = vmatprep.subr.bf16.mxu0 0
      %1107 = vmatpush1.bf16.msra.mxu0 0
      %1108 = vmatprep.subr.bf16.mxu0 0
      %1109 = vmatpush1.bf16.msra.mxu0 0
      %1110 = vmatprep.subr.bf16.mxu0 0
      %1111 = vmatpush1.bf16.msra.mxu0 0
      %1112 = vmatprep.subr.bf16.mxu0 0
      %1113 = vmatpush1.bf16.msra.mxu0 0
      %1114 = vmatprep.subr.bf16.mxu0 0
      %1115 = vmatpush1.bf16.msra.mxu0 0
      %1116 = vmatprep.mubr.bf16.mxu0 0
      %1117 = vmatmul.mubr.bf16.gmra.mrb[0].mxu0 %v953
      %v1118 = vpop.f32.mrb[0].mxu0
      %v1119 = vadd.f32 %v779, %v1118
      %v1120 = vpop.f32.mrb[0].mxu0
      %v1121 = vadd.f32 %v781, %v1120
      %v1122 = vpop.f32.mrb[0].mxu0
      %v1123 = vadd.f32 %v783, %v1122
      %v1124 = vpop.f32.mrb[0].mxu0
      %v1125 = vadd.f32 %v785, %v1124
      %1126 = vdwg.mxu0
      %v1127 = vld [vmem:[%s371] sm:$0xf]
      %v1128 = vld [vmem:[%s371 + $0x4] sm:$0xf]
      %v1129 = vld [vmem:[%s5] sm:$0xff]
      %v1130 = vld [vmem:[%s5 + $0x8] sm:$0xff]
      %v1131 = vld [vmem:[%s5 + $0x10] sm:$0xff]
      %v1132 = vld [vmem:[%s5 + $0x18] sm:$0xff]
      %v1133 = vld [vmem:[%s5 + $0x20] sm:$0xff]
      %v1134 = vld [vmem:[%s5 + $0x28] sm:$0xff]
      %v1135 = vld [vmem:[%s5 + $0x30] sm:$0xff]
      %v1136 = vld [vmem:[%s5 + $0x38] sm:$0xff]
      %v1137 = vld [vmem:[%s5 + $0x40] sm:$0xff]
      %v1138 = vld [vmem:[%s5 + $0x48] sm:$0xff]
      %v1139 = vld [vmem:[%s5 + $0x50] sm:$0xff]
      %v1140 = vld [vmem:[%s5 + $0x58] sm:$0xff]
      %v1141 = vld [vmem:[%s5 + $0x60] sm:$0xff]
      %v1142 = vld [vmem:[%s5 + $0x68] sm:$0xff]
      %v1143 = vld [vmem:[%s5 + $0x70] sm:$0xff]
      %v1144 = vld [vmem:[%s5 + $0x78] sm:$0xff]
      %v1145 = vld [vmem:[%s5 + $0x80] sm:$0xff]
      %v1146 = vld [vmem:[%s5 + $0x88] sm:$0xff]
      %v1147 = vld [vmem:[%s5 + $0x90] sm:$0xff]
      %v1148 = vld [vmem:[%s5 + $0x98] sm:$0xff]
      %v1149 = vld [vmem:[%s5 + $0xa0] sm:$0xff]
      %v1150 = vld [vmem:[%s5 + $0xa8] sm:$0xff]
      %v1151 = vld [vmem:[%s5 + $0xb0] sm:$0xff]
      %v1152 = vld [vmem:[%s5 + $0xb8] sm:$0xff]
      %v1153 = vld [vmem:[%s5 + $0xc0] sm:$0xff]
      %v1154 = vld [vmem:[%s5 + $0xc8] sm:$0xff]
      %v1155 = vld [vmem:[%s5 + $0xd0] sm:$0xff]
      %v1156 = vld [vmem:[%s5 + $0xd8] sm:$0xff]
      %v1157 = vld [vmem:[%s5 + $0xe0] sm:$0xff]
      %v1158 = vld [vmem:[%s5 + $0xe8] sm:$0xff]
      %v1159 = vld [vmem:[%s5 + $0xf0] sm:$0xff]
      %v1160 = vld [vmem:[%s5 + $0xf8] sm:$0xff]
      %v1163 = vunpack.c.l.b16 %v1127
      %v1164 = vunpack.c.l.b16 %v1128
      %v1165 = vpack.c.b16 %v1164, %v1163
      %v1198 = vunpack.c.l.b16 %v1129
      %v1199 = vunpack.c.h.b16 %v1129
      %v1200 = vunpack.c.l.b16 %v1130
      %v1201 = vunpack.c.h.b16 %v1130
      %v1202 = vunpack.c.l.b16 %v1131
      %v1203 = vunpack.c.h.b16 %v1131
      %v1204 = vunpack.c.l.b16 %v1132
      %v1205 = vunpack.c.h.b16 %v1132
      %v1206 = vunpack.c.l.b16 %v1133
      %v1207 = vunpack.c.h.b16 %v1133
      %v1208 = vunpack.c.l.b16 %v1134
      %v1209 = vunpack.c.h.b16 %v1134
      %v1210 = vunpack.c.l.b16 %v1135
      %v1211 = vunpack.c.h.b16 %v1135
      %v1212 = vunpack.c.l.b16 %v1136
      %v1213 = vunpack.c.h.b16 %v1136
      %v1214 = vunpack.c.l.b16 %v1137
      %v1215 = vunpack.c.h.b16 %v1137
      %v1216 = vunpack.c.l.b16 %v1138
      %v1217 = vunpack.c.h.b16 %v1138
      %v1218 = vunpack.c.l.b16 %v1139
      %v1219 = vunpack.c.h.b16 %v1139
      %v1220 = vunpack.c.l.b16 %v1140
      %v1221 = vunpack.c.h.b16 %v1140
      %v1222 = vunpack.c.l.b16 %v1141
      %v1223 = vunpack.c.h.b16 %v1141
      %v1224 = vunpack.c.l.b16 %v1142
      %v1225 = vunpack.c.h.b16 %v1142
      %v1226 = vunpack.c.l.b16 %v1143
      %v1227 = vunpack.c.h.b16 %v1143
      %v1228 = vunpack.c.l.b16 %v1144
      %v1229 = vunpack.c.h.b16 %v1144
      %v1230 = vunpack.c.l.b16 %v1145
      %v1231 = vunpack.c.h.b16 %v1145
      %v1232 = vunpack.c.l.b16 %v1146
      %v1233 = vunpack.c.h.b16 %v1146
      %v1234 = vunpack.c.l.b16 %v1147
      %v1235 = vunpack.c.h.b16 %v1147
      %v1236 = vunpack.c.l.b16 %v1148
      %v1237 = vunpack.c.h.b16 %v1148
      %v1238 = vunpack.c.l.b16 %v1149
      %v1239 = vunpack.c.h.b16 %v1149
      %v1240 = vunpack.c.l.b16 %v1150
      %v1241 = vunpack.c.h.b16 %v1150
      %v1242 = vunpack.c.l.b16 %v1151
      %v1243 = vunpack.c.h.b16 %v1151
      %v1244 = vunpack.c.l.b16 %v1152
      %v1245 = vunpack.c.h.b16 %v1152
      %v1246 = vunpack.c.l.b16 %v1153
      %v1247 = vunpack.c.h.b16 %v1153
      %v1248 = vunpack.c.l.b16 %v1154
      %v1249 = vunpack.c.h.b16 %v1154
      %v1250 = vunpack.c.l.b16 %v1155
      %v1251 = vunpack.c.h.b16 %v1155
      %v1252 = vunpack.c.l.b16 %v1156
      %v1253 = vunpack.c.h.b16 %v1156
      %v1254 = vunpack.c.l.b16 %v1157
      %v1255 = vunpack.c.h.b16 %v1157
      %v1256 = vunpack.c.l.b16 %v1158
      %v1257 = vunpack.c.h.b16 %v1158
      %v1258 = vunpack.c.l.b16 %v1159
      %v1259 = vunpack.c.h.b16 %v1159
      %v1260 = vunpack.c.l.b16 %v1160
      %v1261 = vunpack.c.h.b16 %v1160
      %v1262 = vpack.c.b16 %v1206, %v1198
      %v1263 = vpack.c.b16 %v1207, %v1199
      %v1264 = vpack.c.b16 %v1208, %v1200
      %v1265 = vpack.c.b16 %v1209, %v1201
      %v1266 = vpack.c.b16 %v1210, %v1202
      %v1267 = vpack.c.b16 %v1211, %v1203
      %v1268 = vpack.c.b16 %v1212, %v1204
      %v1269 = vpack.c.b16 %v1213, %v1205
      %v1270 = vpack.c.b16 %v1222, %v1214
      %v1271 = vpack.c.b16 %v1223, %v1215
      %v1272 = vpack.c.b16 %v1224, %v1216
      %v1273 = vpack.c.b16 %v1225, %v1217
      %v1274 = vpack.c.b16 %v1226, %v1218
      %v1275 = vpack.c.b16 %v1227, %v1219
      %v1276 = vpack.c.b16 %v1228, %v1220
      %v1277 = vpack.c.b16 %v1229, %v1221
      %v1278 = vpack.c.b16 %v1238, %v1230
      %v1279 = vpack.c.b16 %v1239, %v1231
      %v1280 = vpack.c.b16 %v1240, %v1232
      %v1281 = vpack.c.b16 %v1241, %v1233
      %v1282 = vpack.c.b16 %v1242, %v1234
      %v1283 = vpack.c.b16 %v1243, %v1235
      %v1284 = vpack.c.b16 %v1244, %v1236
      %v1285 = vpack.c.b16 %v1245, %v1237
      %v1286 = vpack.c.b16 %v1254, %v1246
      %v1287 = vpack.c.b16 %v1255, %v1247
      %v1288 = vpack.c.b16 %v1256, %v1248
      %v1289 = vpack.c.b16 %v1257, %v1249
      %v1290 = vpack.c.b16 %v1258, %v1250
      %v1291 = vpack.c.b16 %v1259, %v1251
      %v1292 = vpack.c.b16 %v1260, %v1252
      %v1293 = vpack.c.b16 %v1261, %v1253
      %v1327 = vsel %vm611, %v1165, 0
      %1329 = vmatprep.subr.bf16.mxu0 %v1263
      %1330 = vmatpush1.bf16.msra.mxu0 %v1262
      %1331 = vmatprep.subr.bf16.mxu0 %v1271
      %1332 = vmatpush1.bf16.msra.mxu0 %v1270
      %1333 = vmatprep.subr.bf16.mxu0 %v1279
      %1334 = vmatpush1.bf16.msra.mxu0 %v1278
      %1335 = vmatprep.subr.bf16.mxu0 %v1287
      %1336 = vmatpush1.bf16.msra.mxu0 %v1286
      %1337 = vmatprep.subr.bf16.mxu0 0
      %1338 = vmatpush1.bf16.msra.mxu0 0
      %1339 = vmatprep.subr.bf16.mxu0 0
      %1340 = vmatpush1.bf16.msra.mxu0 0
      %1341 = vmatprep.subr.bf16.mxu0 0
      %1342 = vmatpush1.bf16.msra.mxu0 0
      %1343 = vmatprep.subr.bf16.mxu0 0
      %1344 = vmatpush1.bf16.msra.mxu0 0
      %1345 = vmatprep.subr.bf16.mxu0 0
      %1346 = vmatpush1.bf16.msra.mxu0 0
      %1347 = vmatprep.subr.bf16.mxu0 0
      %1348 = vmatpush1.bf16.msra.mxu0 0
      %1349 = vmatprep.subr.bf16.mxu0 0
      %1350 = vmatpush1.bf16.msra.mxu0 0
      %1351 = vmatprep.subr.bf16.mxu0 0
      %1352 = vmatpush1.bf16.msra.mxu0 0
      %1353 = vmatprep.subr.bf16.mxu0 0
      %1354 = vmatpush1.bf16.msra.mxu0 0
      %1355 = vmatprep.subr.bf16.mxu0 0
      %1356 = vmatpush1.bf16.msra.mxu0 0
      %1357 = vmatprep.subr.bf16.mxu0 0
      %1358 = vmatpush1.bf16.msra.mxu0 0
      %1359 = vmatprep.subr.bf16.mxu0 0
      %1360 = vmatpush1.bf16.msra.mxu0 0
      %1361 = vmatprep.mubr.bf16.mxu0 0
      %1362 = vmatmul.mubr.bf16.gmra.mrb[0].mxu0 %v1327
      %v1363 = vpop.f32.mrb[0].mxu0
      %v1364 = vadd.f32 0.0, %v1363
      %v1365 = vpop.f32.mrb[0].mxu0
      %v1366 = vadd.f32 0.0, %v1365
      %v1367 = vpop.f32.mrb[0].mxu0
      %v1368 = vadd.f32 0.0, %v1367
      %v1369 = vpop.f32.mrb[0].mxu0
      %v1370 = vadd.f32 0.0, %v1369
      %1371 = vdwg.mxu0
      %1372 = vmatprep.subr.bf16.mxu0 %v1265
      %1373 = vmatpush1.bf16.msra.mxu0 %v1264
      %1374 = vmatprep.subr.bf16.mxu0 %v1273
      %1375 = vmatpush1.bf16.msra.mxu0 %v1272
      %1376 = vmatprep.subr.bf16.mxu0 %v1281
      %1377 = vmatpush1.bf16.msra.mxu0 %v1280
      %1378 = vmatprep.subr.bf16.mxu0 %v1289
      %1379 = vmatpush1.bf16.msra.mxu0 %v1288
      %1380 = vmatprep.subr.bf16.mxu0 0
      %1381 = vmatpush1.bf16.msra.mxu0 0
      %1382 = vmatprep.subr.bf16.mxu0 0
      %1383 = vmatpush1.bf16.msra.mxu0 0
      %1384 = vmatprep.subr.bf16.mxu0 0
      %1385 = vmatpush1.bf16.msra.mxu0 0
      %1386 = vmatprep.subr.bf16.mxu0 0
      %1387 = vmatpush1.bf16.msra.mxu0 0
      %1388 = vmatprep.subr.bf16.mxu0 0
      %1389 = vmatpush1.bf16.msra.mxu0 0
      %1390 = vmatprep.subr.bf16.mxu0 0
      %1391 = vmatpush1.bf16.msra.mxu0 0
      %1392 = vmatprep.subr.bf16.mxu0 0
      %1393 = vmatpush1.bf16.msra.mxu0 0
      %1394 = vmatprep.subr.bf16.mxu0 0
      %1395 = vmatpush1.bf16.msra.mxu0 0
      %1396 = vmatprep.subr.bf16.mxu0 0
      %1397 = vmatpush1.bf16.msra.mxu0 0
      %1398 = vmatprep.subr.bf16.mxu0 0
      %1399 = vmatpush1.bf16.msra.mxu0 0
      %1400 = vmatprep.subr.bf16.mxu0 0
      %1401 = vmatpush1.bf16.msra.mxu0 0
      %1402 = vmatprep.subr.bf16.mxu0 0
      %1403 = vmatpush1.bf16.msra.mxu0 0
      %1404 = vmatprep.mubr.bf16.mxu0 0
      %1405 = vmatmul.mubr.bf16.gmra.mrb[0].mxu0 %v1327
      %v1406 = vpop.f32.mrb[0].mxu0
      %v1407 = vadd.f32 0.0, %v1406
      %v1408 = vpop.f32.mrb[0].mxu0
      %v1409 = vadd.f32 0.0, %v1408
      %v1410 = vpop.f32.mrb[0].mxu0
      %v1411 = vadd.f32 0.0, %v1410
      %v1412 = vpop.f32.mrb[0].mxu0
      %v1413 = vadd.f32 0.0, %v1412
      %1414 = vdwg.mxu0
      %1415 = vmatprep.subr.bf16.mxu0 %v1267
      %1416 = vmatpush1.bf16.msra.mxu0 %v1266
      %1417 = vmatprep.subr.bf16.mxu0 %v1275
      %1418 = vmatpush1.bf16.msra.mxu0 %v1274
      %1419 = vmatprep.subr.bf16.mxu0 %v1283
      %1420 = vmatpush1.bf16.msra.mxu0 %v1282
      %1421 = vmatprep.subr.bf16.mxu0 %v1291
      %1422 = vmatpush1.bf16.msra.mxu0 %v1290
      %1423 = vmatprep.subr.bf16.mxu0 0
      %1424 = vmatpush1.bf16.msra.mxu0 0
      %1425 = vmatprep.subr.bf16.mxu0 0
      %1426 = vmatpush1.bf16.msra.mxu0 0
      %1427 = vmatprep.subr.bf16.mxu0 0
      %1428 = vmatpush1.bf16.msra.mxu0 0
      %1429 = vmatprep.subr.bf16.mxu0 0
      %1430 = vmatpush1.bf16.msra.mxu0 0
      %1431 = vmatprep.subr.bf16.mxu0 0
      %1432 = vmatpush1.bf16.msra.mxu0 0
      %1433 = vmatprep.subr.bf16.mxu0 0
      %1434 = vmatpush1.bf16.msra.mxu0 0
      %1435 = vmatprep.subr.bf16.mxu0 0
      %1436 = vmatpush1.bf16.msra.mxu0 0
      %1437 = vmatprep.subr.bf16.mxu0 0
      %1438 = vmatpush1.bf16.msra.mxu0 0
      %1439 = vmatprep.subr.bf16.mxu0 0
      %1440 = vmatpush1.bf16.msra.mxu0 0
      %1441 = vmatprep.subr.bf16.mxu0 0
      %1442 = vmatpush1.bf16.msra.mxu0 0
      %1443 = vmatprep.subr.bf16.mxu0 0
      %1444 = vmatpush1.bf16.msra.mxu0 0
      %1445 = vmatprep.subr.bf16.mxu0 0
      %1446 = vmatpush1.bf16.msra.mxu0 0
      %1447 = vmatprep.mubr.bf16.mxu0 0
      %1448 = vmatmul.mubr.bf16.gmra.mrb[0].mxu0 %v1327
      %v1449 = vpop.f32.mrb[0].mxu0
      %v1450 = vadd.f32 0.0, %v1449
      %v1451 = vpop.f32.mrb[0].mxu0
      %v1452 = vadd.f32 0.0, %v1451
      %v1453 = vpop.f32.mrb[0].mxu0
      %v1454 = vadd.f32 0.0, %v1453
      %v1455 = vpop.f32.mrb[0].mxu0
      %v1456 = vadd.f32 0.0, %v1455
      %1457 = vdwg.mxu0
      %1458 = vmatprep.subr.bf16.mxu0 %v1269
      %1459 = vmatpush1.bf16.msra.mxu0 %v1268
      %1460 = vmatprep.subr.bf16.mxu0 %v1277
      %1461 = vmatpush1.bf16.msra.mxu0 %v1276
      %1462 = vmatprep.subr.bf16.mxu0 %v1285
      %1463 = vmatpush1.bf16.msra.mxu0 %v1284
      %1464 = vmatprep.subr.bf16.mxu0 %v1293
      %1465 = vmatpush1.bf16.msra.mxu0 %v1292
      %1466 = vmatprep.subr.bf16.mxu0 0
      %1467 = vmatpush1.bf16.msra.mxu0 0
      %1468 = vmatprep.subr.bf16.mxu0 0
      %1469 = vmatpush1.bf16.msra.mxu0 0
      %1470 = vmatprep.subr.bf16.mxu0 0
      %1471 = vmatpush1.bf16.msra.mxu0 0
      %1472 = vmatprep.subr.bf16.mxu0 0
      %1473 = vmatpush1.bf16.msra.mxu0 0
      %1474 = vmatprep.subr.bf16.mxu0 0
      %1475 = vmatpush1.bf16.msra.mxu0 0
      %1476 = vmatprep.subr.bf16.mxu0 0
      %1477 = vmatpush1.bf16.msra.mxu0 0
      %1478 = vmatprep.subr.bf16.mxu0 0
      %1479 = vmatpush1.bf16.msra.mxu0 0
      %1480 = vmatprep.subr.bf16.mxu0 0
      %1481 = vmatpush1.bf16.msra.mxu0 0
      %1482 = vmatprep.subr.bf16.mxu0 0
      %1483 = vmatpush1.bf16.msra.mxu0 0
      %1484 = vmatprep.subr.bf16.mxu0 0
      %1485 = vmatpush1.bf16.msra.mxu0 0
      %1486 = vmatprep.subr.bf16.mxu0 0
      %1487 = vmatpush1.bf16.msra.mxu0 0
      %1488 = vmatprep.subr.bf16.mxu0 0
      %1489 = vmatpush1.bf16.msra.mxu0 0
      %1490 = vmatprep.mubr.bf16.mxu0 0
      %1491 = vmatmul.mubr.bf16.gmra.mrb[0].mxu0 %v1327
      %v1492 = vpop.f32.mrb[0].mxu0
      %v1493 = vadd.f32 0.0, %v1492
      %v1494 = vpop.f32.mrb[0].mxu0
      %v1495 = vadd.f32 0.0, %v1494
      %v1496 = vpop.f32.mrb[0].mxu0
      %v1497 = vadd.f32 0.0, %v1496
      %v1498 = vpop.f32.mrb[0].mxu0
      %v1499 = vadd.f32 0.0, %v1498
      %1500 = vdwg.mxu0
      %v1501 = vadd.f32 %v990, %v1364
      %v1502 = vadd.f32 %v992, %v1366
      %v1503 = vadd.f32 %v1033, %v1407
      %v1504 = vadd.f32 %v1035, %v1409
      %v1505 = vadd.f32 %v1076, %v1450
      %v1506 = vadd.f32 %v1078, %v1452
      %v1507 = vadd.f32 %v1119, %v1493
      %v1508 = vadd.f32 %v1121, %v1495
      %v1509 = vadd.f32 %v994, %v1368
      %v1510 = vadd.f32 %v996, %v1370
      %v1511 = vadd.f32 %v1037, %v1411
      %v1512 = vadd.f32 %v1039, %v1413
      %v1513 = vadd.f32 %v1080, %v1454
      %v1514 = vadd.f32 %v1082, %v1456
      %v1515 = vadd.f32 %v1123, %v1497
      %v1516 = vadd.f32 %v1125, %v1499
      %v1517 = vld [vmem:[%s6] sm:$0xff]
      %v1519 = vlaneseq
      %v1520 = vshrl.u32 %v1519, 7
      %v1521 = vsub.s32 0, %v1520
      %v1522 = vrot.slane %v1517, %v1521
      %v1523 = vlaneseq
      %v1524 = vshrl.u32 %v1523, 7
      %v1525 = vsub.s32 1, %v1524
      %v1526 = vrot.slane %v1517, %v1525
      %v1527 = vlaneseq
      %v1528 = vshrl.u32 %v1527, 7
      %v1529 = vsub.s32 2, %v1528
      %v1530 = vrot.slane %v1517, %v1529
      %v1531 = vlaneseq
      %v1532 = vshrl.u32 %v1531, 7
      %v1533 = vsub.s32 3, %v1532
      %v1534 = vrot.slane %v1517, %v1533
      %v1535 = vlaneseq
      %v1536 = vshrl.u32 %v1535, 7
      %v1537 = vsub.s32 4, %v1536
      %v1538 = vrot.slane %v1517, %v1537
      %v1539 = vlaneseq
      %v1540 = vshrl.u32 %v1539, 7
      %v1541 = vsub.s32 5, %v1540
      %v1542 = vrot.slane %v1517, %v1541
      %v1543 = vlaneseq
      %v1544 = vshrl.u32 %v1543, 7
      %v1545 = vsub.s32 6, %v1544
      %v1546 = vrot.slane %v1517, %v1545
      %v1547 = vlaneseq
      %v1548 = vshrl.u32 %v1547, 7
      %v1549 = vsub.s32 7, %v1548
      %v1550 = vrot.slane %v1517, %v1549
      %v1559 = vadd.f32 %v1501, %v1522
      %v1560 = vadd.f32 %v1502, %v1526
      %v1561 = vadd.f32 %v1503, %v1530
      %v1562 = vadd.f32 %v1504, %v1534
      %v1563 = vadd.f32 %v1505, %v1538
      %v1564 = vadd.f32 %v1506, %v1542
      %v1565 = vadd.f32 %v1507, %v1546
      %v1566 = vadd.f32 %v1508, %v1550
      %v1567 = vadd.f32 %v1509, %v1522
      %v1568 = vadd.f32 %v1510, %v1526
      %v1569 = vadd.f32 %v1511, %v1530
      %v1570 = vadd.f32 %v1512, %v1534
      %v1571 = vadd.f32 %v1513, %v1538
      %v1572 = vadd.f32 %v1514, %v1542
      %v1573 = vadd.f32 %v1515, %v1546
      %v1574 = vadd.f32 %v1516, %v1550
      %vm1575 = vcmp.ge.f32.partialorder %v1559, 0.0
      %vm1576 = vcmp.ge.f32.partialorder %v1560, 0.0
      %vm1577 = vcmp.ge.f32.partialorder %v1561, 0.0
      %vm1578 = vcmp.ge.f32.partialorder %v1562, 0.0
      %vm1579 = vcmp.ge.f32.partialorder %v1563, 0.0
      %vm1580 = vcmp.ge.f32.partialorder %v1564, 0.0
      %vm1581 = vcmp.ge.f32.partialorder %v1565, 0.0
      %vm1582 = vcmp.ge.f32.partialorder %v1566, 0.0
      %vm1583 = vcmp.ge.f32.partialorder %v1567, 0.0
      %vm1584 = vcmp.ge.f32.partialorder %v1568, 0.0
      %vm1585 = vcmp.ge.f32.partialorder %v1569, 0.0
      %vm1586 = vcmp.ge.f32.partialorder %v1570, 0.0
      %vm1587 = vcmp.ge.f32.partialorder %v1571, 0.0
      %vm1588 = vcmp.ge.f32.partialorder %v1572, 0.0
      %vm1589 = vcmp.ge.f32.partialorder %v1573, 0.0
      %vm1590 = vcmp.ge.f32.partialorder %v1574, 0.0
      %v1591 = vmul.f32 %v1559, 0.2
      %v1592 = vmul.f32 %v1560, 0.2
      %v1593 = vmul.f32 %v1561, 0.2
      %v1594 = vmul.f32 %v1562, 0.2
      %v1595 = vmul.f32 %v1563, 0.2
      %v1596 = vmul.f32 %v1564, 0.2
      %v1597 = vmul.f32 %v1565, 0.2
      %v1598 = vmul.f32 %v1566, 0.2
      %v1599 = vmul.f32 %v1567, 0.2
      %v1600 = vmul.f32 %v1568, 0.2
      %v1601 = vmul.f32 %v1569, 0.2
      %v1602 = vmul.f32 %v1570, 0.2
      %v1603 = vmul.f32 %v1571, 0.2
      %v1604 = vmul.f32 %v1572, 0.2
      %v1605 = vmul.f32 %v1573, 0.2
      %v1606 = vmul.f32 %v1574, 0.2
      %v1607 = vsel %vm1575, %v1559, %v1591
      %v1608 = vsel %vm1576, %v1560, %v1592
      %v1609 = vsel %vm1577, %v1561, %v1593
      %v1610 = vsel %vm1578, %v1562, %v1594
      %v1611 = vsel %vm1579, %v1563, %v1595
      %v1612 = vsel %vm1580, %v1564, %v1596
      %v1613 = vsel %vm1581, %v1565, %v1597
      %v1614 = vsel %vm1582, %v1566, %v1598
      %v1615 = vsel %vm1583, %v1567, %v1599
      %v1616 = vsel %vm1584, %v1568, %v1600
      %v1617 = vsel %vm1585, %v1569, %v1601
      %v1618 = vsel %vm1586, %v1570, %v1602
      %v1619 = vsel %vm1587, %v1571, %v1603
      %v1620 = vsel %vm1588, %v1572, %v1604
      %v1621 = vsel %vm1589, %v1573, %v1605
      %v1622 = vsel %vm1590, %v1574, %v1606
      %v1623 = vmax.f32 %v1607, %v1615
      %v1624 = vrot.slane %v1623, 4
      %v1625 = vmax.f32 %v1623, %v1624
      %v1626 = vrot.slane %v1625, 2
      %v1627 = vmax.f32 %v1625, %v1626
      %v1628 = vrot.slane %v1627, 1
      %v1629 = vmax.f32 %v1627, %v1628
      %v1630 = vmax.f32 %v1608, %v1616
      %v1631 = vrot.slane %v1630, 4
      %v1632 = vmax.f32 %v1630, %v1631
      %v1633 = vrot.slane %v1632, 2
      %v1634 = vmax.f32 %v1632, %v1633
      %v1635 = vrot.slane %v1634, 1
      %v1636 = vmax.f32 %v1634, %v1635
      %v1637 = vmax.f32 %v1609, %v1617
      %v1638 = vrot.slane %v1637, 4
      %v1639 = vmax.f32 %v1637, %v1638
      %v1640 = vrot.slane %v1639, 2
      %v1641 = vmax.f32 %v1639, %v1640
      %v1642 = vrot.slane %v1641, 1
      %v1643 = vmax.f32 %v1641, %v1642
      %v1644 = vmax.f32 %v1610, %v1618
      %v1645 = vrot.slane %v1644, 4
      %v1646 = vmax.f32 %v1644, %v1645
      %v1647 = vrot.slane %v1646, 2
      %v1648 = vmax.f32 %v1646, %v1647
      %v1649 = vrot.slane %v1648, 1
      %v1650 = vmax.f32 %v1648, %v1649
      %v1651 = vmax.f32 %v1611, %v1619
      %v1652 = vrot.slane %v1651, 4
      %v1653 = vmax.f32 %v1651, %v1652
      %v1654 = vrot.slane %v1653, 2
      %v1655 = vmax.f32 %v1653, %v1654
      %v1656 = vrot.slane %v1655, 1
      %v1657 = vmax.f32 %v1655, %v1656
      %v1658 = vmax.f32 %v1612, %v1620
      %v1659 = vrot.slane %v1658, 4
      %v1660 = vmax.f32 %v1658, %v1659
      %v1661 = vrot.slane %v1660, 2
      %v1662 = vmax.f32 %v1660, %v1661
      %v1663 = vrot.slane %v1662, 1
      %v1664 = vmax.f32 %v1662, %v1663
      %v1665 = vmax.f32 %v1613, %v1621
      %v1666 = vrot.slane %v1665, 4
      %v1667 = vmax.f32 %v1665, %v1666
      %v1668 = vrot.slane %v1667, 2
      %v1669 = vmax.f32 %v1667, %v1668
      %v1670 = vrot.slane %v1669, 1
      %v1671 = vmax.f32 %v1669, %v1670
      %v1672 = vmax.f32 %v1614, %v1622
      %v1673 = vrot.slane %v1672, 4
      %v1674 = vmax.f32 %v1672, %v1673
      %v1675 = vrot.slane %v1674, 2
      %v1676 = vmax.f32 %v1674, %v1675
      %v1677 = vrot.slane %v1676, 1
      %v1678 = vmax.f32 %v1676, %v1677
      %p1679 = scmp.eq.s32.totalorder %s23, 0
      // Predicated region
      $region49: #{dgcnn_pseg_forward.14} parent=47 // pred_check
        %p1680 = pneg %p1679
      $region50: #{dgcnn_pseg_forward.14} parent=47 // pred_check_branch
        %1682 = sbr.rel (%p1680) target = $region52
      $region51: #{dgcnn_pseg_forward.14} parent=47 // pred_region
        %v1691 = vcombine.low %v1629, %v1636
        %v1692 = vcombine.low %v1643, %v1650
        %v1693 = vcombine.low %v1657, %v1664
        %v1694 = vcombine.low %v1671, %v1678
        %v1696 = vunpack.c.l.s4 1966171168
        %v1697 = vunpack.c.0.s8 %v1696
        %v1698 = vlaneseq
        %v1699 = vshrl.u32 %v1698, 7
        %v1700 = vsub.s32 %v1697, %v1699
        %v1701 = vrot.slane %v1691, %v1700
        %v1703 = vunpack.c.l.s4 1966171168
        %v1704 = vunpack.c.0.s8 %v1703
        %v1705 = vlaneseq
        %v1706 = vshrl.u32 %v1705, 7
        %v1707 = vsub.s32 %v1704, %v1706
        %v1708 = vrot.slane %v1692, %v1707
        %v1710 = vunpack.c.l.s4 1966171168
        %v1711 = vunpack.c.0.s8 %v1710
        %v1712 = vlaneseq
        %v1713 = vshrl.u32 %v1712, 7
        %v1714 = vsub.s32 %v1711, %v1713
        %v1715 = vrot.slane %v1693, %v1714
        %v1717 = vunpack.c.l.s4 1966171168
        %v1718 = vunpack.c.0.s8 %v1717
        %v1719 = vlaneseq
        %v1720 = vshrl.u32 %v1719, 7
        %v1721 = vsub.s32 %v1718, %v1720
        %v1722 = vrot.slane %v1694, %v1721
        %v1723 = vcombine.low %v1701, %v1708
        %v1724 = vcombine.low %v1715, %v1722
        %v1726 = vunpack.c.l.s4 1966171168
        %v1727 = vunpack.c.0.s8 %v1726
        %v1728 = vlaneseq
        %v1729 = vshrl.u32 %v1728, 7
        %v1730 = vsub.s32 %v1727, %v1729
        %v1731 = vrot.slane %v1723, %v1730
        %v1733 = vunpack.c.l.s4 1966171168
        %v1734 = vunpack.c.0.s8 %v1733
        %v1735 = vlaneseq
        %v1736 = vshrl.u32 %v1735, 7
        %v1737 = vsub.s32 %v1734, %v1736
        %v1738 = vrot.slane %v1724, %v1737
        %v1739 = vcombine.low %v1731, %v1738
        %1741 = vst [vmem:[%s376] sm:$0xff] %v1739
      $region52: #{dgcnn_pseg_forward.14} parent=47 // pred_fallthru
        _
      %p1742 = scmp.ne.s32.totalorder %s23, 0
      // Predicated region
      $region53: #{dgcnn_pseg_forward.14} parent=47 // pred_check
        %p1743 = pneg %p1742
      $region54: #{dgcnn_pseg_forward.14} parent=47 // pred_check_branch
        %1745 = sbr.rel (%p1743) target = $region56
      $region55: #{dgcnn_pseg_forward.14} parent=47 // pred_region
        %v1746 = vld [vmem:[%s376] sm:$0xff]
        %v1755 = vcombine.low %v1629, %v1636
        %v1756 = vcombine.low %v1643, %v1650
        %v1757 = vcombine.low %v1657, %v1664
        %v1758 = vcombine.low %v1671, %v1678
        %v1760 = vunpack.c.l.s4 1966171168
        %v1761 = vunpack.c.0.s8 %v1760
        %v1762 = vlaneseq
        %v1763 = vshrl.u32 %v1762, 7
        %v1764 = vsub.s32 %v1761, %v1763
        %v1765 = vrot.slane %v1755, %v1764
        %v1767 = vunpack.c.l.s4 1966171168
        %v1768 = vunpack.c.0.s8 %v1767
        %v1769 = vlaneseq
        %v1770 = vshrl.u32 %v1769, 7
        %v1771 = vsub.s32 %v1768, %v1770
        %v1772 = vrot.slane %v1756, %v1771
        %v1774 = vunpack.c.l.s4 1966171168
        %v1775 = vunpack.c.0.s8 %v1774
        %v1776 = vlaneseq
        %v1777 = vshrl.u32 %v1776, 7
        %v1778 = vsub.s32 %v1775, %v1777
        %v1779 = vrot.slane %v1757, %v1778
        %v1781 = vunpack.c.l.s4 1966171168
        %v1782 = vunpack.c.0.s8 %v1781
        %v1783 = vlaneseq
        %v1784 = vshrl.u32 %v1783, 7
        %v1785 = vsub.s32 %v1782, %v1784
        %v1786 = vrot.slane %v1758, %v1785
        %v1787 = vcombine.low %v1765, %v1772
        %v1788 = vcombine.low %v1779, %v1786
        %v1790 = vunpack.c.l.s4 1966171168
        %v1791 = vunpack.c.0.s8 %v1790
        %v1792 = vlaneseq
        %v1793 = vshrl.u32 %v1792, 7
        %v1794 = vsub.s32 %v1791, %v1793
        %v1795 = vrot.slane %v1787, %v1794
        %v1797 = vunpack.c.l.s4 1966171168
        %v1798 = vunpack.c.0.s8 %v1797
        %v1799 = vlaneseq
        %v1800 = vshrl.u32 %v1799, 7
        %v1801 = vsub.s32 %v1798, %v1800
        %v1802 = vrot.slane %v1788, %v1801
        %v1803 = vcombine.low %v1795, %v1802
        %v1805 = vmax.f32 %v1746, %v1803
        %1806 = vst [vmem:[%s376] sm:$0xff] %v1805
      $region56: #{dgcnn_pseg_forward.14} parent=47 // pred_fallthru
        _
      %p1807 = scmp.lt.s32.totalorder %s22, 1
      %s1808 = scalar_select %p1807, %s22, 1
      %s1809 = smul.addr %s1808, 8
      %s1810 = scalar_lea.vmem %s7, %s1809
      // Predicated region
      $region57: #{dgcnn_pseg_forward.14} parent=47 // pred_check
        %p1811 = pneg %p216
      $region58: #{dgcnn_pseg_forward.14} parent=47 // pred_check_branch
        %1813 = sbr.rel (%p1811) target = $region60
      $region59: #{dgcnn_pseg_forward.14} parent=47 // pred_region
        _
      $region60: #{dgcnn_pseg_forward.14} parent=47 // pred_fallthru
        _
    $region48: #{dgcnn_pseg_forward.14} parent=5 // pred_fallthru
      _
    %p1814 = scmp.le.s32.totalorder 2, %s13
    // Predicated region
    $region61: #{dgcnn_pseg_forward.14} parent=5 // pred_check
      %p1815 = pneg %p1814
    $region62: #{dgcnn_pseg_forward.14} parent=5 // pred_check_branch
      %1817 = sbr.rel (%p1815) target = $region64
    $region63: #{dgcnn_pseg_forward.14} parent=5 // pred_region
      %s1818 = ssub.s32 %s13, 2
      // Predicated region
      $region65: #{dgcnn_pseg_forward.14} parent=63 // pred_check
        %p1819 = pneg %p222
      $region66: #{dgcnn_pseg_forward.14} parent=63 // pred_check_branch
        %1821 = sbr.rel (%p1819) target = $region68
      $region67: #{dgcnn_pseg_forward.14} parent=63 // pred_region
        %p1822 = scmp.lt.s32.totalorder %s24, 1
        %s1823 = scalar_select %p1822, %s24, 1
        %s1824 = smul.addr %s1823, 8
        %s1825 = scalar_lea.vmem %s7, %s1824
      $region68: #{dgcnn_pseg_forward.14} parent=63 // pred_fallthru
        _
    $region64: #{dgcnn_pseg_forward.14} parent=5 // pred_fallthru
      _
  $region6: #{dgcnn_pseg_forward.14} parent=0 // loop_footer
    %s17 = sadd.s32 1, %s13
  $region7: #{dgcnn_pseg_forward.14} parent=0 // loop_footer_branch
    %12 = sbr.rel target = $region3
  $region8: #{dgcnn_pseg_forward.14} parent=0 // loop_exit
    _

// kernel: dgcnn_pseg_forward.15
$region0: #{dgcnn_pseg_forward.15}
  #allocation0 [shape = 'u32[]', space=smem, size = 0x4, offset = 0x4, fixed_abs, tag = 'smem constant byte address 0x4 - core index']
  #allocation1 [shape = 'u32[144,128]{1,0:T(1,128)}', space=vmem, size = 0x12000, scoped, tag = 'internal scratch']
  %s0 = inlined_call_operand.vmem [shape: f32[2,1,1088], index: 0, kind: input, shape index: {}]
  %s1 = inlined_call_operand.vmem [shape: bf16[2,16,64], index: 1, kind: input, shape index: {}]
  %s2 = inlined_call_operand.vmem [shape: bf16[2,16,64], index: 2, kind: input, shape index: {}]
  %s3 = inlined_call_operand.vmem [shape: bf16[2,16,64], index: 3, kind: input, shape index: {}]
  %s4 = inlined_call_operand.vmem [shape: bf16[1088,256], index: 4, kind: input, shape index: {}]
  %s5 = inlined_call_operand.vmem [shape: bf16[64,256], index: 5, kind: input, shape index: {}]
  %s6 = inlined_call_operand.vmem [shape: bf16[64,256], index: 6, kind: input, shape index: {}]
  %s7 = inlined_call_operand.vmem [shape: bf16[64,256], index: 7, kind: input, shape index: {}]
  %s8 = inlined_call_operand.vmem [shape: f32[1,256], index: 8, kind: input, shape index: {}]
  %s9 = inlined_call_operand.vmem [shape: bf16[256,256], index: 9, kind: input, shape index: {}]
  %s10 = inlined_call_operand.vmem [shape: f32[1,256], index: 10, kind: input, shape index: {}]
  %s11 = inlined_call_operand.vmem [shape: bf16[256,128], index: 11, kind: input, shape index: {}]
  %s12 = inlined_call_operand.vmem [shape: f32[1,128], index: 12, kind: input, shape index: {}]
  %s13 = inlined_call_operand.vmem [shape: bf16[128,128], index: 13, kind: input, shape index: {}]
  %s14 = inlined_call_operand.vmem [shape: f32[1,128], index: 14, kind: input, shape index: {}]
  %s15 = inlined_call_operand.vmem [shape: f32[2,16,128], index: 15, kind: output, shape index: {}]
  %s16 = sld [smem:[#allocation0]]
  $region93: #{dgcnn_pseg_forward.15} parent=0
    _
  %s18 = ssub.s32 1, %s16
  %s19 = scalar_select 0, %s18, %s16
  loop: start=0, step=1, limit=4
  $region2: #{dgcnn_pseg_forward.15} parent=0 // loop_pre_header
    _
  $region3: #{dgcnn_pseg_forward.15} parent=0 // loop_header
    %s21 = sphi 0, %s25
    %p22 = scmp.ge.s32.totalorder %s21, 4
    %s28 = sphi 0, %s40
    %s29 = sphi 0, %s36
    %s30 = sphi 0, %s28
    %s31 = sphi 0, %s29
    %s32 = sphi 0, %s30
    %s33 = sphi 0, %s31
    %s43 = sphi 0, %s45
    %s46 = sphi 0, %s43
    %s47 = sphi 0, %s46
    %s63 = sphi 0, %s47
    %s71 = sphi 0, %s73
    %s74 = sphi 0, %s71
    %s75 = sphi 0, %s74
    %s91 = sphi 0, %s75
    %s99 = sphi 0, %s101
    %s102 = sphi 0, %s99
    %s103 = sphi 0, %s102
    %s119 = sphi 0, %s103
    %s127 = sphi 0, %s129
    %s130 = sphi 0, %s127
    %s131 = sphi 0, %s130
    %s147 = sphi 0, %s131
    %s151 = sphi 0, %s151
    %s153 = sphi 0, %s151
    %s154 = sphi 0, %s153
    %s168 = sphi 0, %s154
    %s172 = sphi 0, %s172
    %s174 = sphi 0, %s172
    %s175 = sphi 0, %s174
    %s189 = sphi 0, %s175
    %s193 = sphi 0, %s193
    %s195 = sphi 0, %s193
    %s196 = sphi 0, %s195
    %s210 = sphi 0, %s196
    %s214 = sphi 0, %s214
    %s216 = sphi 0, %s214
    %s217 = sphi 0, %s216
    %s231 = sphi 0, %s217
    %s235 = sphi 0, %s235
    %s237 = sphi 0, %s235
    %s238 = sphi 0, %s237
    %s252 = sphi 0, %s238
    %s256 = sphi 0, %s256
    %s258 = sphi 0, %s256
    %s259 = sphi 0, %s258
    %s273 = sphi 0, %s259
    %s277 = sphi 0, %s277
    %s279 = sphi 0, %s277
    %s280 = sphi 0, %s279
    %s294 = sphi 0, %s280
    %s298 = sphi 0, %s298
    %s300 = sphi 0, %s298
    %s301 = sphi 0, %s300
    %s315 = sphi 0, %s301
    %s319 = sphi 0, %s319
    %s321 = sphi 0, %s319
    %s322 = sphi 0, %s321
    %s336 = sphi 0, %s322
    %s340 = sphi 0, %s340
    %s342 = sphi 0, %s340
    %s343 = sphi 0, %s342
    %s357 = sphi 0, %s343
    %s361 = sphi 0, %s361
    %s363 = sphi 0, %s361
    %s364 = sphi 0, %s363
    %s378 = sphi 0, %s364
    %s386 = sphi 0, %s388
    %s389 = sphi 0, %s386
    %s390 = sphi 0, %s389
    %s406 = sphi 0, %s390
  $region4: #{dgcnn_pseg_forward.15} parent=0 // loop_header_branch
    %24 = sbr.rel (%p22) target = $region8
  $region5: #{dgcnn_pseg_forward.15} parent=0 // loop_body
    %s26 = ssub.s32 %s21, 1
    %s27 = ssub.s32 %s21, 2
    %s34 = sadd.s32 1, %s29
    %p35 = scmp.ge.s32.totalorder %s34, 1
    %s36 = scalar_select %p35, 0, %s34
    %s37 = sadd.s32 1, %s28
    %s38 = scalar_select %p35, %s37, %s28
    %p39 = scmp.ge.s32.totalorder %s38, 2
    %s40 = scalar_select %p39, 0, %s38
    %s41 = ssub.s32 %s28, %s40
    %p42 = scmp.eq.s32.totalorder %s41, 0
    %s44 = sadd.s32 %s43, 1
    %s45 = scalar_select %p42, %s43, %s44
    %p48 = pneg %p42
    %p49 = scmp.eq.s32.totalorder %s21, 1
    %p50 = por %p48, %p49
    %p51 = scmp.ne.s32.totalorder %s43, %s46
    %p52 = scmp.eq.s32.totalorder %s21, 0
    %p53 = por %p51, %p52
    %p54 = scmp.ne.s32.totalorder %s43, %s46
    %p55 = scmp.eq.s32.totalorder %s26, 1
    %p56 = por %p54, %p55
    %p57 = scmp.ne.s32.totalorder %s46, %s47
    %p58 = scmp.eq.s32.totalorder %s26, 0
    %p59 = por %p57, %p58
    %p60 = scmp.ne.s32.totalorder %s46, %s47
    %p61 = scmp.eq.s32.totalorder %s27, 1
    %p62 = por %p60, %p61
    %p64 = scmp.ne.s32.totalorder %s47, %s63
    %p65 = scmp.eq.s32.totalorder %s27, 0
    %p66 = por %p64, %p65
    %s67 = ssub.s32 %s28, %s40
    %s68 = ssub.s32 %s29, %s36
    %s69 = sor.u32 %s67, %s68
    %p70 = scmp.eq.s32.totalorder %s69, 0
    %s72 = sadd.s32 %s71, 1
    %s73 = scalar_select %p70, %s71, %s72
    %p76 = pneg %p70
    %p77 = scmp.eq.s32.totalorder %s21, 1
    %p78 = por %p76, %p77
    %p79 = scmp.ne.s32.totalorder %s71, %s74
    %p80 = scmp.eq.s32.totalorder %s21, 0
    %p81 = por %p79, %p80
    %p82 = scmp.ne.s32.totalorder %s71, %s74
    %p83 = scmp.eq.s32.totalorder %s26, 1
    %p84 = por %p82, %p83
    %p85 = scmp.ne.s32.totalorder %s74, %s75
    %p86 = scmp.eq.s32.totalorder %s26, 0
    %p87 = por %p85, %p86
    %p88 = scmp.ne.s32.totalorder %s74, %s75
    %p89 = scmp.eq.s32.totalorder %s27, 1
    %p90 = por %p88, %p89
    %p92 = scmp.ne.s32.totalorder %s75, %s91
    %p93 = scmp.eq.s32.totalorder %s27, 0
    %p94 = por %p92, %p93
    %s95 = ssub.s32 %s28, %s40
    %s96 = ssub.s32 %s29, %s36
    %s97 = sor.u32 %s95, %s96
    %p98 = scmp.eq.s32.totalorder %s97, 0
    %s100 = sadd.s32 %s99, 1
    %s101 = scalar_select %p98, %s99, %s100
    %p104 = pneg %p98
    %p105 = scmp.eq.s32.totalorder %s21, 1
    %p106 = por %p104, %p105
    %p107 = scmp.ne.s32.totalorder %s99, %s102
    %p108 = scmp.eq.s32.totalorder %s21, 0
    %p109 = por %p107, %p108
    %p110 = scmp.ne.s32.totalorder %s99, %s102
    %p111 = scmp.eq.s32.totalorder %s26, 1
    %p112 = por %p110, %p111
    %p113 = scmp.ne.s32.totalorder %s102, %s103
    %p114 = scmp.eq.s32.totalorder %s26, 0
    %p115 = por %p113, %p114
    %p116 = scmp.ne.s32.totalorder %s102, %s103
    %p117 = scmp.eq.s32.totalorder %s27, 1
    %p118 = por %p116, %p117
    %p120 = scmp.ne.s32.totalorder %s103, %s119
    %p121 = scmp.eq.s32.totalorder %s27, 0
    %p122 = por %p120, %p121
    %s123 = ssub.s32 %s28, %s40
    %s124 = ssub.s32 %s29, %s36
    %s125 = sor.u32 %s123, %s124
    %p126 = scmp.eq.s32.totalorder %s125, 0
    %s128 = sadd.s32 %s127, 1
    %s129 = scalar_select %p126, %s127, %s128
    %p132 = pneg %p126
    %p133 = scmp.eq.s32.totalorder %s21, 1
    %p134 = por %p132, %p133
    %p135 = scmp.ne.s32.totalorder %s127, %s130
    %p136 = scmp.eq.s32.totalorder %s21, 0
    %p137 = por %p135, %p136
    %p138 = scmp.ne.s32.totalorder %s127, %s130
    %p139 = scmp.eq.s32.totalorder %s26, 1
    %p140 = por %p138, %p139
    %p141 = scmp.ne.s32.totalorder %s130, %s131
    %p142 = scmp.eq.s32.totalorder %s26, 0
    %p143 = por %p141, %p142
    %p144 = scmp.ne.s32.totalorder %s130, %s131
    %p145 = scmp.eq.s32.totalorder %s27, 1
    %p146 = por %p144, %p145
    %p148 = scmp.ne.s32.totalorder %s131, %s147
    %p149 = scmp.eq.s32.totalorder %s27, 0
    %p150 = por %p148, %p149
    %s152 = sadd.s32 %s151, 1
    %p155 = scmp.eq.s32.totalorder %s21, 1
    %p156 = scmp.ne.s32.totalorder %s151, %s153
    %p157 = scmp.eq.s32.totalorder %s21, 0
    %p158 = por %p156, %p157
    %p159 = scmp.ne.s32.totalorder %s151, %s153
    %p160 = scmp.eq.s32.totalorder %s26, 1
    %p161 = por %p159, %p160
    %p162 = scmp.ne.s32.totalorder %s153, %s154
    %p163 = scmp.eq.s32.totalorder %s26, 0
    %p164 = por %p162, %p163
    %p165 = scmp.ne.s32.totalorder %s153, %s154
    %p166 = scmp.eq.s32.totalorder %s27, 1
    %p167 = por %p165, %p166
    %p169 = scmp.ne.s32.totalorder %s154, %s168
    %p170 = scmp.eq.s32.totalorder %s27, 0
    %p171 = por %p169, %p170
    %s173 = sadd.s32 %s172, 1
    %p176 = scmp.eq.s32.totalorder %s21, 1
    %p177 = scmp.ne.s32.totalorder %s172, %s174
    %p178 = scmp.eq.s32.totalorder %s21, 0
    %p179 = por %p177, %p178
    %p180 = scmp.ne.s32.totalorder %s172, %s174
    %p181 = scmp.eq.s32.totalorder %s26, 1
    %p182 = por %p180, %p181
    %p183 = scmp.ne.s32.totalorder %s174, %s175
    %p184 = scmp.eq.s32.totalorder %s26, 0
    %p185 = por %p183, %p184
    %p186 = scmp.ne.s32.totalorder %s174, %s175
    %p187 = scmp.eq.s32.totalorder %s27, 1
    %p188 = por %p186, %p187
    %p190 = scmp.ne.s32.totalorder %s175, %s189
    %p191 = scmp.eq.s32.totalorder %s27, 0
    %p192 = por %p190, %p191
    %s194 = sadd.s32 %s193, 1
    %p197 = scmp.eq.s32.totalorder %s21, 1
    %p198 = scmp.ne.s32.totalorder %s193, %s195
    %p199 = scmp.eq.s32.totalorder %s21, 0
    %p200 = por %p198, %p199
    %p201 = scmp.ne.s32.totalorder %s193, %s195
    %p202 = scmp.eq.s32.totalorder %s26, 1
    %p203 = por %p201, %p202
    %p204 = scmp.ne.s32.totalorder %s195, %s196
    %p205 = scmp.eq.s32.totalorder %s26, 0
    %p206 = por %p204, %p205
    %p207 = scmp.ne.s32.totalorder %s195, %s196
    %p208 = scmp.eq.s32.totalorder %s27, 1
    %p209 = por %p207, %p208
    %p211 = scmp.ne.s32.totalorder %s196, %s210
    %p212 = scmp.eq.s32.totalorder %s27, 0
    %p213 = por %p211, %p212
    %s215 = sadd.s32 %s214, 1
    %p218 = scmp.eq.s32.totalorder %s21, 1
    %p219 = scmp.ne.s32.totalorder %s214, %s216
    %p220 = scmp.eq.s32.totalorder %s21, 0
    %p221 = por %p219, %p220
    %p222 = scmp.ne.s32.totalorder %s214, %s216
    %p223 = scmp.eq.s32.totalorder %s26, 1
    %p224 = por %p222, %p223
    %p225 = scmp.ne.s32.totalorder %s216, %s217
    %p226 = scmp.eq.s32.totalorder %s26, 0
    %p227 = por %p225, %p226
    %p228 = scmp.ne.s32.totalorder %s216, %s217
    %p229 = scmp.eq.s32.totalorder %s27, 1
    %p230 = por %p228, %p229
    %p232 = scmp.ne.s32.totalorder %s217, %s231
    %p233 = scmp.eq.s32.totalorder %s27, 0
    %p234 = por %p232, %p233
    %s236 = sadd.s32 %s235, 1
    %p239 = scmp.eq.s32.totalorder %s21, 1
    %p240 = scmp.ne.s32.totalorder %s235, %s237
    %p241 = scmp.eq.s32.totalorder %s21, 0
    %p242 = por %p240, %p241
    %p243 = scmp.ne.s32.totalorder %s235, %s237
    %p244 = scmp.eq.s32.totalorder %s26, 1
    %p245 = por %p243, %p244
    %p246 = scmp.ne.s32.totalorder %s237, %s238
    %p247 = scmp.eq.s32.totalorder %s26, 0
    %p248 = por %p246, %p247
    %p249 = scmp.ne.s32.totalorder %s237, %s238
    %p250 = scmp.eq.s32.totalorder %s27, 1
    %p251 = por %p249, %p250
    %p253 = scmp.ne.s32.totalorder %s238, %s252
    %p254 = scmp.eq.s32.totalorder %s27, 0
    %p255 = por %p253, %p254
    %s257 = sadd.s32 %s256, 1
    %p260 = scmp.eq.s32.totalorder %s21, 1
    %p261 = scmp.ne.s32.totalorder %s256, %s258
    %p262 = scmp.eq.s32.totalorder %s21, 0
    %p263 = por %p261, %p262
    %p264 = scmp.ne.s32.totalorder %s256, %s258
    %p265 = scmp.eq.s32.totalorder %s26, 1
    %p266 = por %p264, %p265
    %p267 = scmp.ne.s32.totalorder %s258, %s259
    %p268 = scmp.eq.s32.totalorder %s26, 0
    %p269 = por %p267, %p268
    %p270 = scmp.ne.s32.totalorder %s258, %s259
    %p271 = scmp.eq.s32.totalorder %s27, 1
    %p272 = por %p270, %p271
    %p274 = scmp.ne.s32.totalorder %s259, %s273
    %p275 = scmp.eq.s32.totalorder %s27, 0
    %p276 = por %p274, %p275
    %s278 = sadd.s32 %s277, 1
    %p281 = scmp.eq.s32.totalorder %s21, 1
    %p282 = scmp.ne.s32.totalorder %s277, %s279
    %p283 = scmp.eq.s32.totalorder %s21, 0
    %p284 = por %p282, %p283
    %p285 = scmp.ne.s32.totalorder %s277, %s279
    %p286 = scmp.eq.s32.totalorder %s26, 1
    %p287 = por %p285, %p286
    %p288 = scmp.ne.s32.totalorder %s279, %s280
    %p289 = scmp.eq.s32.totalorder %s26, 0
    %p290 = por %p288, %p289
    %p291 = scmp.ne.s32.totalorder %s279, %s280
    %p292 = scmp.eq.s32.totalorder %s27, 1
    %p293 = por %p291, %p292
    %p295 = scmp.ne.s32.totalorder %s280, %s294
    %p296 = scmp.eq.s32.totalorder %s27, 0
    %p297 = por %p295, %p296
    %s299 = sadd.s32 %s298, 1
    %p302 = scmp.eq.s32.totalorder %s21, 1
    %p303 = scmp.ne.s32.totalorder %s298, %s300
    %p304 = scmp.eq.s32.totalorder %s21, 0
    %p305 = por %p303, %p304
    %p306 = scmp.ne.s32.totalorder %s298, %s300
    %p307 = scmp.eq.s32.totalorder %s26, 1
    %p308 = por %p306, %p307
    %p309 = scmp.ne.s32.totalorder %s300, %s301
    %p310 = scmp.eq.s32.totalorder %s26, 0
    %p311 = por %p309, %p310
    %p312 = scmp.ne.s32.totalorder %s300, %s301
    %p313 = scmp.eq.s32.totalorder %s27, 1
    %p314 = por %p312, %p313
    %p316 = scmp.ne.s32.totalorder %s301, %s315
    %p317 = scmp.eq.s32.totalorder %s27, 0
    %p318 = por %p316, %p317
    %s320 = sadd.s32 %s319, 1
    %p323 = scmp.eq.s32.totalorder %s21, 1
    %p324 = scmp.ne.s32.totalorder %s319, %s321
    %p325 = scmp.eq.s32.totalorder %s21, 0
    %p326 = por %p324, %p325
    %p327 = scmp.ne.s32.totalorder %s319, %s321
    %p328 = scmp.eq.s32.totalorder %s26, 1
    %p329 = por %p327, %p328
    %p330 = scmp.ne.s32.totalorder %s321, %s322
    %p331 = scmp.eq.s32.totalorder %s26, 0
    %p332 = por %p330, %p331
    %p333 = scmp.ne.s32.totalorder %s321, %s322
    %p334 = scmp.eq.s32.totalorder %s27, 1
    %p335 = por %p333, %p334
    %p337 = scmp.ne.s32.totalorder %s322, %s336
    %p338 = scmp.eq.s32.totalorder %s27, 0
    %p339 = por %p337, %p338
    %s341 = sadd.s32 %s340, 1
    %p344 = scmp.eq.s32.totalorder %s21, 1
    %p345 = scmp.ne.s32.totalorder %s340, %s342
    %p346 = scmp.eq.s32.totalorder %s21, 0
    %p347 = por %p345, %p346
    %p348 = scmp.ne.s32.totalorder %s340, %s342
    %p349 = scmp.eq.s32.totalorder %s26, 1
    %p350 = por %p348, %p349
    %p351 = scmp.ne.s32.totalorder %s342, %s343
    %p352 = scmp.eq.s32.totalorder %s26, 0
    %p353 = por %p351, %p352
    %p354 = scmp.ne.s32.totalorder %s342, %s343
    %p355 = scmp.eq.s32.totalorder %s27, 1
    %p356 = por %p354, %p355
    %p358 = scmp.ne.s32.totalorder %s343, %s357
    %p359 = scmp.eq.s32.totalorder %s27, 0
    %p360 = por %p358, %p359
    %s362 = sadd.s32 %s361, 1
    %p365 = scmp.eq.s32.totalorder %s21, 1
    %p366 = scmp.ne.s32.totalorder %s361, %s363
    %p367 = scmp.eq.s32.totalorder %s21, 0
    %p368 = por %p366, %p367
    %p369 = scmp.ne.s32.totalorder %s361, %s363
    %p370 = scmp.eq.s32.totalorder %s26, 1
    %p371 = por %p369, %p370
    %p372 = scmp.ne.s32.totalorder %s363, %s364
    %p373 = scmp.eq.s32.totalorder %s26, 0
    %p374 = por %p372, %p373
    %p375 = scmp.ne.s32.totalorder %s363, %s364
    %p376 = scmp.eq.s32.totalorder %s27, 1
    %p377 = por %p375, %p376
    %p379 = scmp.ne.s32.totalorder %s364, %s378
    %p380 = scmp.eq.s32.totalorder %s27, 0
    %p381 = por %p379, %p380
    %s382 = ssub.s32 %s28, %s40
    %s383 = ssub.s32 %s29, %s36
    %s384 = sor.u32 %s382, %s383
    %p385 = scmp.eq.s32.totalorder %s384, 0
    %s387 = sadd.s32 %s386, 1
    %s388 = scalar_select %p385, %s386, %s387
    %p391 = pneg %p385
    %p392 = scmp.eq.s32.totalorder %s21, 1
    %p393 = por %p391, %p392
    %p394 = scmp.ne.s32.totalorder %s386, %s389
    %p395 = scmp.eq.s32.totalorder %s21, 0
    %p396 = por %p394, %p395
    %p397 = scmp.ne.s32.totalorder %s386, %s389
    %p398 = scmp.eq.s32.totalorder %s26, 1
    %p399 = por %p397, %p398
    %p400 = scmp.ne.s32.totalorder %s389, %s390
    %p401 = scmp.eq.s32.totalorder %s26, 0
    %p402 = por %p400, %p401
    %p403 = scmp.ne.s32.totalorder %s389, %s390
    %p404 = scmp.eq.s32.totalorder %s27, 1
    %p405 = por %p403, %p404
    %p407 = scmp.ne.s32.totalorder %s390, %s406
    %p408 = scmp.eq.s32.totalorder %s27, 0
    %p409 = por %p407, %p408
    %p410 = scmp.le.s32.totalorder 1, %s21
    %p411 = scmp.lt.s32.totalorder %s21, 3
    %p412 = pnand %p410, %p411
    %p413 = pneg %p412
    // Predicated region
    $region9: #{dgcnn_pseg_forward.15} parent=5 // pred_check
      _
    $region10: #{dgcnn_pseg_forward.15} parent=5 // pred_check_branch
      %415 = sbr.rel (%p412) target = $region12
    $region11: #{dgcnn_pseg_forward.15} parent=5 // pred_region
      %s416 = ssub.s32 %s21, 1
      // Predicated region
      $region13: #{dgcnn_pseg_forward.15} parent=11 // pred_check
        %p417 = pneg %p164
      $region14: #{dgcnn_pseg_forward.15} parent=11 // pred_check_branch
        %419 = sbr.rel (%p417) target = $region16
      $region15: #{dgcnn_pseg_forward.15} parent=11 // pred_region
        _
      $region16: #{dgcnn_pseg_forward.15} parent=11 // pred_fallthru
        _
      // Predicated region
      $region17: #{dgcnn_pseg_forward.15} parent=11 // pred_check
        %p420 = pneg %p185
      $region18: #{dgcnn_pseg_forward.15} parent=11 // pred_check_branch
        %422 = sbr.rel (%p420) target = $region20
      $region19: #{dgcnn_pseg_forward.15} parent=11 // pred_region
        _
      $region20: #{dgcnn_pseg_forward.15} parent=11 // pred_fallthru
        _
      // Predicated region
      $region21: #{dgcnn_pseg_forward.15} parent=11 // pred_check
        %p423 = pneg %p206
      $region22: #{dgcnn_pseg_forward.15} parent=11 // pred_check_branch
        %425 = sbr.rel (%p423) target = $region24
      $region23: #{dgcnn_pseg_forward.15} parent=11 // pred_region
        _
      $region24: #{dgcnn_pseg_forward.15} parent=11 // pred_fallthru
        _
      // Predicated region
      $region25: #{dgcnn_pseg_forward.15} parent=11 // pred_check
        %p426 = pneg %p227
      $region26: #{dgcnn_pseg_forward.15} parent=11 // pred_check_branch
        %428 = sbr.rel (%p426) target = $region28
      $region27: #{dgcnn_pseg_forward.15} parent=11 // pred_region
        _
      $region28: #{dgcnn_pseg_forward.15} parent=11 // pred_fallthru
        _
      // Predicated region
      $region29: #{dgcnn_pseg_forward.15} parent=11 // pred_check
        %p429 = pneg %p248
      $region30: #{dgcnn_pseg_forward.15} parent=11 // pred_check_branch
        %431 = sbr.rel (%p429) target = $region32
      $region31: #{dgcnn_pseg_forward.15} parent=11 // pred_region
        _
      $region32: #{dgcnn_pseg_forward.15} parent=11 // pred_fallthru
        _
      // Predicated region
      $region33: #{dgcnn_pseg_forward.15} parent=11 // pred_check
        %p432 = pneg %p269
      $region34: #{dgcnn_pseg_forward.15} parent=11 // pred_check_branch
        %434 = sbr.rel (%p432) target = $region36
      $region35: #{dgcnn_pseg_forward.15} parent=11 // pred_region
        _
      $region36: #{dgcnn_pseg_forward.15} parent=11 // pred_fallthru
        _
      // Predicated region
      $region37: #{dgcnn_pseg_forward.15} parent=11 // pred_check
        %p435 = pneg %p290
      $region38: #{dgcnn_pseg_forward.15} parent=11 // pred_check_branch
        %437 = sbr.rel (%p435) target = $region40
      $region39: #{dgcnn_pseg_forward.15} parent=11 // pred_region
        _
      $region40: #{dgcnn_pseg_forward.15} parent=11 // pred_fallthru
        _
      // Predicated region
      $region41: #{dgcnn_pseg_forward.15} parent=11 // pred_check
        %p438 = pneg %p311
      $region42: #{dgcnn_pseg_forward.15} parent=11 // pred_check_branch
        %440 = sbr.rel (%p438) target = $region44
      $region43: #{dgcnn_pseg_forward.15} parent=11 // pred_region
        _
      $region44: #{dgcnn_pseg_forward.15} parent=11 // pred_fallthru
        _
      // Predicated region
      $region45: #{dgcnn_pseg_forward.15} parent=11 // pred_check
        %p441 = pneg %p332
      $region46: #{dgcnn_pseg_forward.15} parent=11 // pred_check_branch
        %443 = sbr.rel (%p441) target = $region48
      $region47: #{dgcnn_pseg_forward.15} parent=11 // pred_region
        _
      $region48: #{dgcnn_pseg_forward.15} parent=11 // pred_fallthru
        _
      // Predicated region
      $region49: #{dgcnn_pseg_forward.15} parent=11 // pred_check
        %p444 = pneg %p353
      $region50: #{dgcnn_pseg_forward.15} parent=11 // pred_check_branch
        %446 = sbr.rel (%p444) target = $region52
      $region51: #{dgcnn_pseg_forward.15} parent=11 // pred_region
        _
      $region52: #{dgcnn_pseg_forward.15} parent=11 // pred_fallthru
        _
      // Predicated region
      $region53: #{dgcnn_pseg_forward.15} parent=11 // pred_check
        %p447 = pneg %p374
      $region54: #{dgcnn_pseg_forward.15} parent=11 // pred_check_branch
        %449 = sbr.rel (%p447) target = $region56
      $region55: #{dgcnn_pseg_forward.15} parent=11 // pred_region
        _
      $region56: #{dgcnn_pseg_forward.15} parent=11 // pred_fallthru
        _
    $region12: #{dgcnn_pseg_forward.15} parent=5 // pred_fallthru
      _
    %p450 = scmp.lt.s32.totalorder %s21, 2
    // Predicated region
    $region57: #{dgcnn_pseg_forward.15} parent=5 // pred_check
      %p451 = pneg %p450
    $region58: #{dgcnn_pseg_forward.15} parent=5 // pred_check_branch
      %453 = sbr.rel (%p451) target = $region60
    $region59: #{dgcnn_pseg_forward.15} parent=5 // pred_region
      // Predicated region
      $region61: #{dgcnn_pseg_forward.15} parent=59 // pred_check
        %p454 = pneg %p53
      $region62: #{dgcnn_pseg_forward.15} parent=59 // pred_check_branch
        %456 = sbr.rel (%p454) target = $region64
      $region63: #{dgcnn_pseg_forward.15} parent=59 // pred_region
        %p457 = scmp.lt.s32.totalorder %s28, 1
        %s458 = scalar_select %p457, %s28, 1
        %s459 = smul.addr %s458, 9
        %s460 = scalar_lea.vmem %s0, %s459
      $region64: #{dgcnn_pseg_forward.15} parent=59 // pred_fallthru
        _
      // Predicated region
      $region65: #{dgcnn_pseg_forward.15} parent=59 // pred_check
        %p461 = pneg %p81
      $region66: #{dgcnn_pseg_forward.15} parent=59 // pred_check_branch
        %463 = sbr.rel (%p461) target = $region68
      $region67: #{dgcnn_pseg_forward.15} parent=59 // pred_region
        %s464 = smul.u32 2, %s29
        %p465 = scmp.lt.s32.totalorder %s28, 1
        %s466 = scalar_select %p465, %s28, 1
        %p467 = scmp.lt.s32.totalorder %s464, 1
        %s468 = scalar_select %p467, %s464, 1
        %s469 = smul.addr %s466, 2
        %s470 = sadd.s32 %s468, %s469
        %s471 = smul.addr %s470, 4
        %s472 = scalar_lea.vmem %s1, %s471
        %s473 = smul.u32 2, %s29
      $region68: #{dgcnn_pseg_forward.15} parent=59 // pred_fallthru
        _
      // Predicated region
      $region69: #{dgcnn_pseg_forward.15} parent=59 // pred_check
        %p474 = pneg %p109
      $region70: #{dgcnn_pseg_forward.15} parent=59 // pred_check_branch
        %476 = sbr.rel (%p474) target = $region72
      $region71: #{dgcnn_pseg_forward.15} parent=59 // pred_region
        %s477 = smul.u32 2, %s29
        %p478 = scmp.lt.s32.totalorder %s28, 1
        %s479 = scalar_select %p478, %s28, 1
        %p480 = scmp.lt.s32.totalorder %s477, 1
        %s481 = scalar_select %p480, %s477, 1
        %s482 = smul.addr %s479, 2
        %s483 = sadd.s32 %s481, %s482
        %s484 = smul.addr %s483, 4
        %s485 = scalar_lea.vmem %s2, %s484
        %s486 = smul.u32 2, %s29
      $region72: #{dgcnn_pseg_forward.15} parent=59 // pred_fallthru
        _
      // Predicated region
      $region73: #{dgcnn_pseg_forward.15} parent=59 // pred_check
        %p487 = pneg %p137
      $region74: #{dgcnn_pseg_forward.15} parent=59 // pred_check_branch
        %489 = sbr.rel (%p487) target = $region76
      $region75: #{dgcnn_pseg_forward.15} parent=59 // pred_region
        %s490 = smul.u32 2, %s29
        %p491 = scmp.lt.s32.totalorder %s28, 1
        %s492 = scalar_select %p491, %s28, 1
        %p493 = scmp.lt.s32.totalorder %s490, 1
        %s494 = scalar_select %p493, %s490, 1
        %s495 = smul.addr %s492, 2
        %s496 = sadd.s32 %s494, %s495
        %s497 = smul.addr %s496, 4
        %s498 = scalar_lea.vmem %s3, %s497
        %s499 = smul.u32 2, %s29
      $region76: #{dgcnn_pseg_forward.15} parent=59 // pred_fallthru
        _
    $region60: #{dgcnn_pseg_forward.15} parent=5 // pred_fallthru
      _
    %p500 = scmp.le.s32.totalorder 1, %s21
    %p501 = scmp.lt.s32.totalorder %s21, 3
    %p502 = pnand %p500, %p501
    %p503 = pneg %p502
    // Predicated region
    $region77: #{dgcnn_pseg_forward.15} parent=5 // pred_check
      _
    $region78: #{dgcnn_pseg_forward.15} parent=5 // pred_check_branch
      %505 = sbr.rel (%p502) target = $region80
    $region79: #{dgcnn_pseg_forward.15} parent=5 // pred_region
      %s506 = ssub.s32 %s21, 1
      %p507 = scmp.lt.s32.totalorder %s30, 1
      %s508 = scalar_select %p507, %s30, 1
      %s509 = smul.addr %s508, 9
      %s510 = scalar_lea.vmem %s0, %s509
      %p511 = pneg %p59
      %p512 = pneg %p56
      %s513 = smul.u32 2, %s31
      %p514 = scmp.lt.s32.totalorder %s30, 1
      %s515 = scalar_select %p514, %s30, 1
      %p516 = scmp.lt.s32.totalorder %s513, 1
      %s517 = scalar_select %p516, %s513, 1
      %s518 = smul.addr %s515, 2
      %s519 = sadd.s32 %s517, %s518
      %s520 = smul.addr %s519, 4
      %s521 = scalar_lea.vmem %s1, %s520
      %p522 = pneg %p87
      %p523 = pneg %p84
      %s524 = smul.u32 2, %s31
      %p525 = scmp.lt.s32.totalorder %s30, 1
      %s526 = scalar_select %p525, %s30, 1
      %p527 = scmp.lt.s32.totalorder %s524, 1
      %s528 = scalar_select %p527, %s524, 1
      %s529 = smul.addr %s526, 2
      %s530 = sadd.s32 %s528, %s529
      %s531 = smul.addr %s530, 4
      %s532 = scalar_lea.vmem %s2, %s531
      %p533 = pneg %p115
      %p534 = pneg %p112
      %s535 = smul.u32 2, %s31
      %p536 = scmp.lt.s32.totalorder %s30, 1
      %s537 = scalar_select %p536, %s30, 1
      %p538 = scmp.lt.s32.totalorder %s535, 1
      %s539 = scalar_select %p538, %s535, 1
      %s540 = smul.addr %s537, 2
      %s541 = sadd.s32 %s539, %s540
      %s542 = smul.addr %s541, 4
      %s543 = scalar_lea.vmem %s3, %s542
      %p544 = pneg %p143
      %p545 = pneg %p140
      %p546 = pneg %p164
      %p547 = pneg %p161
      %p548 = pneg %p185
      %p549 = pneg %p182
      %p550 = pneg %p206
      %p551 = pneg %p203
      %p552 = pneg %p227
      %p553 = pneg %p224
      %p554 = pneg %p248
      %p555 = pneg %p245
      %p556 = pneg %p269
      %p557 = pneg %p266
      %p558 = pneg %p290
      %p559 = pneg %p287
      %p560 = pneg %p311
      %p561 = pneg %p308
      %p562 = pneg %p332
      %p563 = pneg %p329
      %p564 = pneg %p353
      %p565 = pneg %p350
      %p566 = pneg %p374
      %p567 = pneg %p371
      %p568 = pneg %p402
      %p569 = pneg %p399
      %s570 = smul.u32 2, %s31
      %p571 = scmp.lt.s32.totalorder %s30, 1
      %s572 = scalar_select %p571, %s30, 1
      %p573 = scmp.lt.s32.totalorder %s570, 1
      %s574 = scalar_select %p573, %s570, 1
      %s575 = smul.addr %s572, 2
      %s576 = sadd.s32 %s574, %s575
      %s577 = smul.addr %s576, 8
      %s578 = scalar_lea.vmem %s15, %s577
      %p579 = scmp.lt.s32.totalorder %s30, 1
      %s580 = scalar_select %p579, %s30, 1
      %s581 = smul.addr %s580, 9
      %s582 = scalar_lea.vmem %s0, %s581
      %s583 = smul.u32 2, %s31
      %p584 = scmp.lt.s32.totalorder %s30, 1
      %s585 = scalar_select %p584, %s30, 1
      %p586 = scmp.lt.s32.totalorder %s583, 1
      %s587 = scalar_select %p586, %s583, 1
      %s588 = smul.addr %s585, 2
      %s589 = sadd.s32 %s587, %s588
      %s590 = smul.addr %s589, 4
      %s591 = scalar_lea.vmem %s1, %s590
      %s592 = smul.u32 2, %s31
      %s593 = smul.u32 2, %s31
      %p594 = scmp.lt.s32.totalorder %s30, 1
      %s595 = scalar_select %p594, %s30, 1
      %p596 = scmp.lt.s32.totalorder %s593, 1
      %s597 = scalar_select %p596, %s593, 1
      %s598 = smul.addr %s595, 2
      %s599 = sadd.s32 %s597, %s598
      %s600 = smul.addr %s599, 4
      %s601 = scalar_lea.vmem %s2, %s600
      %s602 = smul.u32 2, %s31
      %s603 = smul.u32 2, %s31
      %p604 = scmp.lt.s32.totalorder %s30, 1
      %s605 = scalar_select %p604, %s30, 1
      %p606 = scmp.lt.s32.totalorder %s603, 1
      %s607 = scalar_select %p606, %s603, 1
      %s608 = smul.addr %s605, 2
      %s609 = sadd.s32 %s607, %s608
      %s610 = smul.addr %s609, 4
      %s611 = scalar_lea.vmem %s3, %s610
      %s612 = smul.u32 2, %s31
      %s613 = smul.u32 2, %s31
      %p614 = scmp.lt.s32.totalorder %s30, 1
      %s615 = scalar_select %p614, %s30, 1
      %p616 = scmp.lt.s32.totalorder %s613, 1
      %s617 = scalar_select %p616, %s613, 1
      %s618 = smul.addr %s615, 2
      %s619 = sadd.s32 %s617, %s618
      %s620 = smul.addr %s619, 8
      %s621 = scalar_lea.vmem %s15, %s620
      %s622 = smul.u32 2, %s31
      %v624 = vld [vmem:[%s582] sm:$0xff]
      %v625 = vld [vmem:[%s582 + $0x8] sm:$0x1]
      %v628 = vlaneseq
      %v629 = vshrl.u32 %v628, 7
      %v630 = vsub.s32 0, %v629
      %v631 = vrot.slane %v624, %v630
      %v632 = vlaneseq
      %v633 = vshrl.u32 %v632, 7
      %v634 = vsub.s32 1, %v633
      %v635 = vrot.slane %v624, %v634
      %v636 = vlaneseq
      %v637 = vshrl.u32 %v636, 7
      %v638 = vsub.s32 2, %v637
      %v639 = vrot.slane %v624, %v638
      %v640 = vlaneseq
      %v641 = vshrl.u32 %v640, 7
      %v642 = vsub.s32 3, %v641
      %v643 = vrot.slane %v624, %v642
      %v644 = vlaneseq
      %v645 = vshrl.u32 %v644, 7
      %v646 = vsub.s32 4, %v645
      %v647 = vrot.slane %v624, %v646
      %v648 = vlaneseq
      %v649 = vshrl.u32 %v648, 7
      %v650 = vsub.s32 5, %v649
      %v651 = vrot.slane %v624, %v650
      %v652 = vlaneseq
      %v653 = vshrl.u32 %v652, 7
      %v654 = vsub.s32 6, %v653
      %v655 = vrot.slane %v624, %v654
      %v656 = vlaneseq
      %v657 = vshrl.u32 %v656, 7
      %v658 = vsub.s32 7, %v657
      %v659 = vrot.slane %v624, %v658
      %v660 = vlaneseq
      %v661 = vshrl.u32 %v660, 7
      %v662 = vsub.s32 0, %v661
      %v663 = vrot.slane %v625, %v662
      %v673 = vpack.c.bf16 %v631, %v631
      %v674 = vpack.c.bf16 %v635, %v635
      %v675 = vpack.c.bf16 %v639, %v639
      %v676 = vpack.c.bf16 %v643, %v643
      %v677 = vpack.c.bf16 %v647, %v647
      %v678 = vpack.c.bf16 %v651, %v651
      %v679 = vpack.c.bf16 %v655, %v655
      %v680 = vpack.c.bf16 %v659, %v659
      %v681 = vpack.c.bf16 %v663, %v663
      %v682 = vld [vmem:[%s4] sm:$0xff]
      %v683 = vld [vmem:[%s4 + $0x8] sm:$0xff]
      %v684 = vld [vmem:[%s4 + $0x10] sm:$0xff]
      %v685 = vld [vmem:[%s4 + $0x18] sm:$0xff]
      %v686 = vld [vmem:[%s4 + $0x20] sm:$0xff]
      %v687 = vld [vmem:[%s4 + $0x28] sm:$0xff]
      %v688 = vld [vmem:[%s4 + $0x30] sm:$0xff]
      %v689 = vld [vmem:[%s4 + $0x38] sm:$0xff]
      %v690 = vld [vmem:[%s4 + $0x40] sm:$0xff]
      %v691 = vld [vmem:[%s4 + $0x48] sm:$0xff]
      %v692 = vld [vmem:[%s4 + $0x50] sm:$0xff]
      %v693 = vld [vmem:[%s4 + $0x58] sm:$0xff]
      %v694 = vld [vmem:[%s4 + $0x60] sm:$0xff]
      %v695 = vld [vmem:[%s4 + $0x68] sm:$0xff]
      %v696 = vld [vmem:[%s4 + $0x70] sm:$0xff]
      %v697 = vld [vmem:[%s4 + $0x78] sm:$0xff]
      %v698 = vld [vmem:[%s4 + $0x80] sm:$0xff]
      %v699 = vld [vmem:[%s4 + $0x88] sm:$0xff]
      %v700 = vld [vmem:[%s4 + $0x90] sm:$0xff]
      %v701 = vld [vmem:[%s4 + $0x98] sm:$0xff]
      %v702 = vld [vmem:[%s4 + $0xa0] sm:$0xff]
      %v703 = vld [vmem:[%s4 + $0xa8] sm:$0xff]
      %v704 = vld [vmem:[%s4 + $0xb0] sm:$0xff]
      %v705 = vld [vmem:[%s4 + $0xb8] sm:$0xff]
      %v706 = vld [vmem:[%s4 + $0xc0] sm:$0xff]
      %v707 = vld [vmem:[%s4 + $0xc8] sm:$0xff]
      %v708 = vld [vmem:[%s4 + $0xd0] sm:$0xff]
      %v709 = vld [vmem:[%s4 + $0xd8] sm:$0xff]
      %v710 = vld [vmem:[%s4 + $0xe0] sm:$0xff]
      %v711 = vld [vmem:[%s4 + $0xe8] sm:$0xff]
      %v712 = vld [vmem:[%s4 + $0xf0] sm:$0xff]
      %v713 = vld [vmem:[%s4 + $0xf8] sm:$0xff]
      %v714 = vld [vmem:[%s4 + $0x100] sm:$0xff]
      %v715 = vld [vmem:[%s4 + $0x108] sm:$0xff]
      %v716 = vld [vmem:[%s4 + $0x110] sm:$0xff]
      %v717 = vld [vmem:[%s4 + $0x118] sm:$0xff]
      %v718 = vld [vmem:[%s4 + $0x120] sm:$0xff]
      %v719 = vld [vmem:[%s4 + $0x128] sm:$0xff]
      %v720 = vld [vmem:[%s4 + $0x130] sm:$0xff]
      %v721 = vld [vmem:[%s4 + $0x138] sm:$0xff]
      %v722 = vld [vmem:[%s4 + $0x140] sm:$0xff]
      %v723 = vld [vmem:[%s4 + $0x148] sm:$0xff]
      %v724 = vld [vmem:[%s4 + $0x150] sm:$0xff]
      %v725 = vld [vmem:[%s4 + $0x158] sm:$0xff]
      %v726 = vld [vmem:[%s4 + $0x160] sm:$0xff]
      %v727 = vld [vmem:[%s4 + $0x168] sm:$0xff]
      %v728 = vld [vmem:[%s4 + $0x170] sm:$0xff]
      %v729 = vld [vmem:[%s4 + $0x178] sm:$0xff]
      %v730 = vld [vmem:[%s4 + $0x180] sm:$0xff]
      %v731 = vld [vmem:[%s4 + $0x188] sm:$0xff]
      %v732 = vld [vmem:[%s4 + $0x190] sm:$0xff]
      %v733 = vld [vmem:[%s4 + $0x198] sm:$0xff]
      %v734 = vld [vmem:[%s4 + $0x1a0] sm:$0xff]
      %v735 = vld [vmem:[%s4 + $0x1a8] sm:$0xff]
      %v736 = vld [vmem:[%s4 + $0x1b0] sm:$0xff]
      %v737 = vld [vmem:[%s4 + $0x1b8] sm:$0xff]
      %v738 = vld [vmem:[%s4 + $0x1c0] sm:$0xff]
      %v739 = vld [vmem:[%s4 + $0x1c8] sm:$0xff]
      %v740 = vld [vmem:[%s4 + $0x1d0] sm:$0xff]
      %v741 = vld [vmem:[%s4 + $0x1d8] sm:$0xff]
      %v742 = vld [vmem:[%s4 + $0x1e0] sm:$0xff]
      %v743 = vld [vmem:[%s4 + $0x1e8] sm:$0xff]
      %v744 = vld [vmem:[%s4 + $0x1f0] sm:$0xff]
      %v745 = vld [vmem:[%s4 + $0x1f8] sm:$0xff]
      %v746 = vld [vmem:[%s4 + $0x200] sm:$0xff]
      %v747 = vld [vmem:[%s4 + $0x208] sm:$0xff]
      %v748 = vld [vmem:[%s4 + $0x210] sm:$0xff]
      %v749 = vld [vmem:[%s4 + $0x218] sm:$0xff]
      %v750 = vld [vmem:[%s4 + $0x220] sm:$0xff]
      %v751 = vld [vmem:[%s4 + $0x228] sm:$0xff]
      %v752 = vld [vmem:[%s4 + $0x230] sm:$0xff]
      %v753 = vld [vmem:[%s4 + $0x238] sm:$0xff]
      %v754 = vld [vmem:[%s4 + $0x240] sm:$0xff]
      %v755 = vld [vmem:[%s4 + $0x248] sm:$0xff]
      %v756 = vld [vmem:[%s4 + $0x250] sm:$0xff]
      %v757 = vld [vmem:[%s4 + $0x258] sm:$0xff]
      %v758 = vld [vmem:[%s4 + $0x260] sm:$0xff]
      %v759 = vld [vmem:[%s4 + $0x268] sm:$0xff]
      %v760 = vld [vmem:[%s4 + $0x270] sm:$0xff]
      %v761 = vld [vmem:[%s4 + $0x278] sm:$0xff]
      %v762 = vld [vmem:[%s4 + $0x280] sm:$0xff]
      %v763 = vld [vmem:[%s4 + $0x288] sm:$0xff]
      %v764 = vld [vmem:[%s4 + $0x290] sm:$0xff]
      %v765 = vld [vmem:[%s4 + $0x298] sm:$0xff]
      %v766 = vld [vmem:[%s4 + $0x2a0] sm:$0xff]
      %v767 = vld [vmem:[%s4 + $0x2a8] sm:$0xff]
      %v768 = vld [vmem:[%s4 + $0x2b0] sm:$0xff]
      %v769 = vld [vmem:[%s4 + $0x2b8] sm:$0xff]
      %v770 = vld [vmem:[%s4 + $0x2c0] sm:$0xff]
      %v771 = vld [vmem:[%s4 + $0x2c8] sm:$0xff]
      %v772 = vld [vmem:[%s4 + $0x2d0] sm:$0xff]
      %v773 = vld [vmem:[%s4 + $0x2d8] sm:$0xff]
      %v774 = vld [vmem:[%s4 + $0x2e0] sm:$0xff]
      %v775 = vld [vmem:[%s4 + $0x2e8] sm:$0xff]
      %v776 = vld [vmem:[%s4 + $0x2f0] sm:$0xff]
      %v777 = vld [vmem:[%s4 + $0x2f8] sm:$0xff]
      %v778 = vld [vmem:[%s4 + $0x300] sm:$0xff]
      %v779 = vld [vmem:[%s4 + $0x308] sm:$0xff]
      %v780 = vld [vmem:[%s4 + $0x310] sm:$0xff]
      %v781 = vld [vmem:[%s4 + $0x318] sm:$0xff]
      %v782 = vld [vmem:[%s4 + $0x320] sm:$0xff]
      %v783 = vld [vmem:[%s4 + $0x328] sm:$0xff]
      %v784 = vld [vmem:[%s4 + $0x330] sm:$0xff]
      %v785 = vld [vmem:[%s4 + $0x338] sm:$0xff]
      %v786 = vld [vmem:[%s4 + $0x340] sm:$0xff]
      %v787 = vld [vmem:[%s4 + $0x348] sm:$0xff]
      %v788 = vld [vmem:[%s4 + $0x350] sm:$0xff]
      %v789 = vld [vmem:[%s4 + $0x358] sm:$0xff]
      %v790 = vld [vmem:[%s4 + $0x360] sm:$0xff]
      %v791 = vld [vmem:[%s4 + $0x368] sm:$0xff]
      %v792 = vld [vmem:[%s4 + $0x370] sm:$0xff]
      %v793 = vld [vmem:[%s4 + $0x378] sm:$0xff]
      %v794 = vld [vmem:[%s4 + $0x380] sm:$0xff]
      %v795 = vld [vmem:[%s4 + $0x388] sm:$0xff]
      %v796 = vld [vmem:[%s4 + $0x390] sm:$0xff]
      %v797 = vld [vmem:[%s4 + $0x398] sm:$0xff]
      %v798 = vld [vmem:[%s4 + $0x3a0] sm:$0xff]
      %v799 = vld [vmem:[%s4 + $0x3a8] sm:$0xff]
      %v800 = vld [vmem:[%s4 + $0x3b0] sm:$0xff]
      %v801 = vld [vmem:[%s4 + $0x3b8] sm:$0xff]
      %v802 = vld [vmem:[%s4 + $0x3c0] sm:$0xff]
      %v803 = vld [vmem:[%s4 + $0x3c8] sm:$0xff]
      %v804 = vld [vmem:[%s4 + $0x3d0] sm:$0xff]
      %v805 = vld [vmem:[%s4 + $0x3d8] sm:$0xff]
      %v806 = vld [vmem:[%s4 + $0x3e0] sm:$0xff]
      %v807 = vld [vmem:[%s4 + $0x3e8] sm:$0xff]
      %v808 = vld [vmem:[%s4 + $0x3f0] sm:$0xff]
      %v809 = vld [vmem:[%s4 + $0x3f8] sm:$0xff]
      %v810 = vld [vmem:[%s4 + $0x400] sm:$0xff]
      %v811 = vld [vmem:[%s4 + $0x408] sm:$0xff]
      %v812 = vld [vmem:[%s4 + $0x410] sm:$0xff]
      %v813 = vld [vmem:[%s4 + $0x418] sm:$0xff]
      %v814 = vld [vmem:[%s4 + $0x420] sm:$0xff]
      %v815 = vld [vmem:[%s4 + $0x428] sm:$0xff]
      %v816 = vld [vmem:[%s4 + $0x430] sm:$0xff]
      %v817 = vld [vmem:[%s4 + $0x438] sm:$0xff]
      %v818 = vld [vmem:[%s8] sm:$0x3]
      %v955 = vunpack.c.l.b16 %v682
      %v956 = vunpack.c.h.b16 %v682
      %v957 = vunpack.c.l.b16 %v683
      %v958 = vunpack.c.h.b16 %v683
      %v959 = vunpack.c.l.b16 %v684
      %v960 = vunpack.c.h.b16 %v684
      %v961 = vunpack.c.l.b16 %v685
      %v962 = vunpack.c.h.b16 %v685
      %v963 = vunpack.c.l.b16 %v686
      %v964 = vunpack.c.h.b16 %v686
      %v965 = vunpack.c.l.b16 %v687
      %v966 = vunpack.c.h.b16 %v687
      %v967 = vunpack.c.l.b16 %v688
      %v968 = vunpack.c.h.b16 %v688
      %v969 = vunpack.c.l.b16 %v689
      %v970 = vunpack.c.h.b16 %v689
      %v971 = vunpack.c.l.b16 %v690
      %v972 = vunpack.c.h.b16 %v690
      %v973 = vunpack.c.l.b16 %v691
      %v974 = vunpack.c.h.b16 %v691
      %v975 = vunpack.c.l.b16 %v692
      %v976 = vunpack.c.h.b16 %v692
      %v977 = vunpack.c.l.b16 %v693
      %v978 = vunpack.c.h.b16 %v693
      %v979 = vunpack.c.l.b16 %v694
      %v980 = vunpack.c.h.b16 %v694
      %v981 = vunpack.c.l.b16 %v695
      %v982 = vunpack.c.h.b16 %v695
      %v983 = vunpack.c.l.b16 %v696
      %v984 = vunpack.c.h.b16 %v696
      %v985 = vunpack.c.l.b16 %v697
      %v986 = vunpack.c.h.b16 %v697
      %v987 = vunpack.c.l.b16 %v698
      %v988 = vunpack.c.h.b16 %v698
      %v989 = vunpack.c.l.b16 %v699
      %v990 = vunpack.c.h.b16 %v699
      %v991 = vunpack.c.l.b16 %v700
      %v992 = vunpack.c.h.b16 %v700
      %v993 = vunpack.c.l.b16 %v701
      %v994 = vunpack.c.h.b16 %v701
      %v995 = vunpack.c.l.b16 %v702
      %v996 = vunpack.c.h.b16 %v702
      %v997 = vunpack.c.l.b16 %v703
      %v998 = vunpack.c.h.b16 %v703
      %v999 = vunpack.c.l.b16 %v704
      %v1000 = vunpack.c.h.b16 %v704
      %v1001 = vunpack.c.l.b16 %v705
      %v1002 = vunpack.c.h.b16 %v705
      %v1003 = vunpack.c.l.b16 %v706
      %v1004 = vunpack.c.h.b16 %v706
      %v1005 = vunpack.c.l.b16 %v707
      %v1006 = vunpack.c.h.b16 %v707
      %v1007 = vunpack.c.l.b16 %v708
      %v1008 = vunpack.c.h.b16 %v708
      %v1009 = vunpack.c.l.b16 %v709
      %v1010 = vunpack.c.h.b16 %v709
      %v1011 = vunpack.c.l.b16 %v710
      %v1012 = vunpack.c.h.b16 %v710
      %v1013 = vunpack.c.l.b16 %v711
      %v1014 = vunpack.c.h.b16 %v711
      %v1015 = vunpack.c.l.b16 %v712
      %v1016 = vunpack.c.h.b16 %v712
      %v1017 = vunpack.c.l.b16 %v713
      %v1018 = vunpack.c.h.b16 %v713
      %v1019 = vunpack.c.l.b16 %v714
      %v1020 = vunpack.c.h.b16 %v714
      %v1021 = vunpack.c.l.b16 %v715
      %v1022 = vunpack.c.h.b16 %v715
      %v1023 = vunpack.c.l.b16 %v716
      %v1024 = vunpack.c.h.b16 %v716
      %v1025 = vunpack.c.l.b16 %v717
      %v1026 = vunpack.c.h.b16 %v717
      %v1027 = vunpack.c.l.b16 %v718
      %v1028 = vunpack.c.h.b16 %v718
      %v1029 = vunpack.c.l.b16 %v719
      %v1030 = vunpack.c.h.b16 %v719
      %v1031 = vunpack.c.l.b16 %v720
      %v1032 = vunpack.c.h.b16 %v720
      %v1033 = vunpack.c.l.b16 %v721
      %v1034 = vunpack.c.h.b16 %v721
      %v1035 = vunpack.c.l.b16 %v722
      %v1036 = vunpack.c.h.b16 %v722
      %v1037 = vunpack.c.l.b16 %v723
      %v1038 = vunpack.c.h.b16 %v723
      %v1039 = vunpack.c.l.b16 %v724
      %v1040 = vunpack.c.h.b16 %v724
      %v1041 = vunpack.c.l.b16 %v725
      %v1042 = vunpack.c.h.b16 %v725
      %v1043 = vunpack.c.l.b16 %v726
      %v1044 = vunpack.c.h.b16 %v726
      %v1045 = vunpack.c.l.b16 %v727
      %v1046 = vunpack.c.h.b16 %v727
      %v1047 = vunpack.c.l.b16 %v728
      %v1048 = vunpack.c.h.b16 %v728
      %v1049 = vunpack.c.l.b16 %v729
      %v1050 = vunpack.c.h.b16 %v729
      %v1051 = vunpack.c.l.b16 %v730
      %v1052 = vunpack.c.h.b16 %v730
      %v1053 = vunpack.c.l.b16 %v731
      %v1054 = vunpack.c.h.b16 %v731
      %v1055 = vunpack.c.l.b16 %v732
      %v1056 = vunpack.c.h.b16 %v732
      %v1057 = vunpack.c.l.b16 %v733
      %v1058 = vunpack.c.h.b16 %v733
      %v1059 = vunpack.c.l.b16 %v734
      %v1060 = vunpack.c.h.b16 %v734
      %v1061 = vunpack.c.l.b16 %v735
      %v1062 = vunpack.c.h.b16 %v735
      %v1063 = vunpack.c.l.b16 %v736
      %v1064 = vunpack.c.h.b16 %v736
      %v1065 = vunpack.c.l.b16 %v737
      %v1066 = vunpack.c.h.b16 %v737
      %v1067 = vunpack.c.l.b16 %v738
      %v1068 = vunpack.c.h.b16 %v738
      %v1069 = vunpack.c.l.b16 %v739
      %v1070 = vunpack.c.h.b16 %v739
      %v1071 = vunpack.c.l.b16 %v740
      %v1072 = vunpack.c.h.b16 %v740
      %v1073 = vunpack.c.l.b16 %v741
      %v1074 = vunpack.c.h.b16 %v741
      %v1075 = vunpack.c.l.b16 %v742
      %v1076 = vunpack.c.h.b16 %v742
      %v1077 = vunpack.c.l.b16 %v743
      %v1078 = vunpack.c.h.b16 %v743
      %v1079 = vunpack.c.l.b16 %v744
      %v1080 = vunpack.c.h.b16 %v744
      %v1081 = vunpack.c.l.b16 %v745
      %v1082 = vunpack.c.h.b16 %v745
      %v1083 = vunpack.c.l.b16 %v746
      %v1084 = vunpack.c.h.b16 %v746
      %v1085 = vunpack.c.l.b16 %v747
      %v1086 = vunpack.c.h.b16 %v747
      %v1087 = vunpack.c.l.b16 %v748
      %v1088 = vunpack.c.h.b16 %v748
      %v1089 = vunpack.c.l.b16 %v749
      %v1090 = vunpack.c.h.b16 %v749
      %v1091 = vunpack.c.l.b16 %v750
      %v1092 = vunpack.c.h.b16 %v750
      %v1093 = vunpack.c.l.b16 %v751
      %v1094 = vunpack.c.h.b16 %v751
      %v1095 = vunpack.c.l.b16 %v752
      %v1096 = vunpack.c.h.b16 %v752
      %v1097 = vunpack.c.l.b16 %v753
      %v1098 = vunpack.c.h.b16 %v753
      %v1099 = vunpack.c.l.b16 %v754
      %v1100 = vunpack.c.h.b16 %v754
      %v1101 = vunpack.c.l.b16 %v755
      %v1102 = vunpack.c.h.b16 %v755
      %v1103 = vunpack.c.l.b16 %v756
      %v1104 = vunpack.c.h.b16 %v756
      %v1105 = vunpack.c.l.b16 %v757
      %v1106 = vunpack.c.h.b16 %v757
      %v1107 = vunpack.c.l.b16 %v758
      %v1108 = vunpack.c.h.b16 %v758
      %v1109 = vunpack.c.l.b16 %v759
      %v1110 = vunpack.c.h.b16 %v759
      %v1111 = vunpack.c.l.b16 %v760
      %v1112 = vunpack.c.h.b16 %v760
      %v1113 = vunpack.c.l.b16 %v761
      %v1114 = vunpack.c.h.b16 %v761
      %v1115 = vunpack.c.l.b16 %v762
      %v1116 = vunpack.c.h.b16 %v762
      %v1117 = vunpack.c.l.b16 %v763
      %v1118 = vunpack.c.h.b16 %v763
      %v1119 = vunpack.c.l.b16 %v764
      %v1120 = vunpack.c.h.b16 %v764
      %v1121 = vunpack.c.l.b16 %v765
      %v1122 = vunpack.c.h.b16 %v765
      %v1123 = vunpack.c.l.b16 %v766
      %v1124 = vunpack.c.h.b16 %v766
      %v1125 = vunpack.c.l.b16 %v767
      %v1126 = vunpack.c.h.b16 %v767
      %v1127 = vunpack.c.l.b16 %v768
      %v1128 = vunpack.c.h.b16 %v768
      %v1129 = vunpack.c.l.b16 %v769
      %v1130 = vunpack.c.h.b16 %v769
      %v1131 = vunpack.c.l.b16 %v770
      %v1132 = vunpack.c.h.b16 %v770
      %v1133 = vunpack.c.l.b16 %v771
      %v1134 = vunpack.c.h.b16 %v771
      %v1135 = vunpack.c.l.b16 %v772
      %v1136 = vunpack.c.h.b16 %v772
      %v1137 = vunpack.c.l.b16 %v773
      %v1138 = vunpack.c.h.b16 %v773
      %v1139 = vunpack.c.l.b16 %v774
      %v1140 = vunpack.c.h.b16 %v774
      %v1141 = vunpack.c.l.b16 %v775
      %v1142 = vunpack.c.h.b16 %v775
      %v1143 = vunpack.c.l.b16 %v776
      %v1144 = vunpack.c.h.b16 %v776
      %v1145 = vunpack.c.l.b16 %v777
      %v1146 = vunpack.c.h.b16 %v777
      %v1147 = vunpack.c.l.b16 %v778
      %v1148 = vunpack.c.h.b16 %v778
      %v1149 = vunpack.c.l.b16 %v779
      %v1150 = vunpack.c.h.b16 %v779
      %v1151 = vunpack.c.l.b16 %v780
      %v1152 = vunpack.c.h.b16 %v780
      %v1153 = vunpack.c.l.b16 %v781
      %v1154 = vunpack.c.h.b16 %v781
      %v1155 = vunpack.c.l.b16 %v782
      %v1156 = vunpack.c.h.b16 %v782
      %v1157 = vunpack.c.l.b16 %v783
      %v1158 = vunpack.c.h.b16 %v783
      %v1159 = vunpack.c.l.b16 %v784
      %v1160 = vunpack.c.h.b16 %v784
      %v1161 = vunpack.c.l.b16 %v785
      %v1162 = vunpack.c.h.b16 %v785
      %v1163 = vunpack.c.l.b16 %v786
      %v1164 = vunpack.c.h.b16 %v786
      %v1165 = vunpack.c.l.b16 %v787
      %v1166 = vunpack.c.h.b16 %v787
      %v1167 = vunpack.c.l.b16 %v788
      %v1168 = vunpack.c.h.b16 %v788
      %v1169 = vunpack.c.l.b16 %v789
      %v1170 = vunpack.c.h.b16 %v789
      %v1171 = vunpack.c.l.b16 %v790
      %v1172 = vunpack.c.h.b16 %v790
      %v1173 = vunpack.c.l.b16 %v791
      %v1174 = vunpack.c.h.b16 %v791
      %v1175 = vunpack.c.l.b16 %v792
      %v1176 = vunpack.c.h.b16 %v792
      %v1177 = vunpack.c.l.b16 %v793
      %v1178 = vunpack.c.h.b16 %v793
      %v1179 = vunpack.c.l.b16 %v794
      %v1180 = vunpack.c.h.b16 %v794
      %v1181 = vunpack.c.l.b16 %v795
      %v1182 = vunpack.c.h.b16 %v795
      %v1183 = vunpack.c.l.b16 %v796
      %v1184 = vunpack.c.h.b16 %v796
      %v1185 = vunpack.c.l.b16 %v797
      %v1186 = vunpack.c.h.b16 %v797
      %v1187 = vunpack.c.l.b16 %v798
      %v1188 = vunpack.c.h.b16 %v798
      %v1189 = vunpack.c.l.b16 %v799
      %v1190 = vunpack.c.h.b16 %v799
      %v1191 = vunpack.c.l.b16 %v800
      %v1192 = vunpack.c.h.b16 %v800
      %v1193 = vunpack.c.l.b16 %v801
      %v1194 = vunpack.c.h.b16 %v801
      %v1195 = vunpack.c.l.b16 %v802
      %v1196 = vunpack.c.h.b16 %v802
      %v1197 = vunpack.c.l.b16 %v803
      %v1198 = vunpack.c.h.b16 %v803
      %v1199 = vunpack.c.l.b16 %v804
      %v1200 = vunpack.c.h.b16 %v804
      %v1201 = vunpack.c.l.b16 %v805
      %v1202 = vunpack.c.h.b16 %v805
      %v1203 = vunpack.c.l.b16 %v806
      %v1204 = vunpack.c.h.b16 %v806
      %v1205 = vunpack.c.l.b16 %v807
      %v1206 = vunpack.c.h.b16 %v807
      %v1207 = vunpack.c.l.b16 %v808
      %v1208 = vunpack.c.h.b16 %v808
      %v1209 = vunpack.c.l.b16 %v809
      %v1210 = vunpack.c.h.b16 %v809
      %v1211 = vunpack.c.l.b16 %v810
      %v1212 = vunpack.c.h.b16 %v810
      %v1213 = vunpack.c.l.b16 %v811
      %v1214 = vunpack.c.h.b16 %v811
      %v1215 = vunpack.c.l.b16 %v812
      %v1216 = vunpack.c.h.b16 %v812
      %v1217 = vunpack.c.l.b16 %v813
      %v1218 = vunpack.c.h.b16 %v813
      %v1219 = vunpack.c.l.b16 %v814
      %v1220 = vunpack.c.h.b16 %v814
      %v1221 = vunpack.c.l.b16 %v815
      %v1222 = vunpack.c.h.b16 %v815
      %v1223 = vunpack.c.l.b16 %v816
      %v1224 = vunpack.c.h.b16 %v816
      %v1225 = vunpack.c.l.b16 %v817
      %v1226 = vunpack.c.h.b16 %v817
      %v1227 = vpack.c.b16 %v957, %v955
      %v1228 = vpack.c.b16 %v958, %v956
      %v1229 = vpack.c.b16 %v961, %v959
      %v1230 = vpack.c.b16 %v962, %v960
      %v1231 = vpack.c.b16 %v965, %v963
      %v1232 = vpack.c.b16 %v966, %v964
      %v1233 = vpack.c.b16 %v969, %v967
      %v1234 = vpack.c.b16 %v970, %v968
      %v1235 = vpack.c.b16 %v973, %v971
      %v1236 = vpack.c.b16 %v974, %v972
      %v1237 = vpack.c.b16 %v977, %v975
      %v1238 = vpack.c.b16 %v978, %v976
      %v1239 = vpack.c.b16 %v981, %v979
      %v1240 = vpack.c.b16 %v982, %v980
      %v1241 = vpack.c.b16 %v985, %v983
      %v1242 = vpack.c.b16 %v986, %v984
      %v1243 = vpack.c.b16 %v989, %v987
      %v1244 = vpack.c.b16 %v990, %v988
      %v1245 = vpack.c.b16 %v993, %v991
      %v1246 = vpack.c.b16 %v994, %v992
      %v1247 = vpack.c.b16 %v997, %v995
      %v1248 = vpack.c.b16 %v998, %v996
      %v1249 = vpack.c.b16 %v1001, %v999
      %v1250 = vpack.c.b16 %v1002, %v1000
      %v1251 = vpack.c.b16 %v1005, %v1003
      %v1252 = vpack.c.b16 %v1006, %v1004
      %v1253 = vpack.c.b16 %v1009, %v1007
      %v1254 = vpack.c.b16 %v1010, %v1008
      %v1255 = vpack.c.b16 %v1013, %v1011
      %v1256 = vpack.c.b16 %v1014, %v1012
      %v1257 = vpack.c.b16 %v1017, %v1015
      %v1258 = vpack.c.b16 %v1018, %v1016
      %v1259 = vpack.c.b16 %v1021, %v1019
      %v1260 = vpack.c.b16 %v1022, %v1020
      %v1261 = vpack.c.b16 %v1025, %v1023
      %v1262 = vpack.c.b16 %v1026, %v1024
      %v1263 = vpack.c.b16 %v1029, %v1027
      %v1264 = vpack.c.b16 %v1030, %v1028
      %v1265 = vpack.c.b16 %v1033, %v1031
      %v1266 = vpack.c.b16 %v1034, %v1032
      %v1267 = vpack.c.b16 %v1037, %v1035
      %v1268 = vpack.c.b16 %v1038, %v1036
      %v1269 = vpack.c.b16 %v1041, %v1039
      %v1270 = vpack.c.b16 %v1042, %v1040
      %v1271 = vpack.c.b16 %v1045, %v1043
      %v1272 = vpack.c.b16 %v1046, %v1044
      %v1273 = vpack.c.b16 %v1049, %v1047
      %v1274 = vpack.c.b16 %v1050, %v1048
      %v1275 = vpack.c.b16 %v1053, %v1051
      %v1276 = vpack.c.b16 %v1054, %v1052
      %v1277 = vpack.c.b16 %v1057, %v1055
      %v1278 = vpack.c.b16 %v1058, %v1056
      %v1279 = vpack.c.b16 %v1061, %v1059
      %v1280 = vpack.c.b16 %v1062, %v1060
      %v1281 = vpack.c.b16 %v1065, %v1063
      %v1282 = vpack.c.b16 %v1066, %v1064
      %v1283 = vpack.c.b16 %v1069, %v1067
      %v1284 = vpack.c.b16 %v1070, %v1068
      %v1285 = vpack.c.b16 %v1073, %v1071
      %v1286 = vpack.c.b16 %v1074, %v1072
      %v1287 = vpack.c.b16 %v1077, %v1075
      %v1288 = vpack.c.b16 %v1078, %v1076
      %v1289 = vpack.c.b16 %v1081, %v1079
      %v1290 = vpack.c.b16 %v1082, %v1080
      %v1291 = vpack.c.b16 %v1085, %v1083
      %v1292 = vpack.c.b16 %v1086, %v1084
      %v1293 = vpack.c.b16 %v1089, %v1087
      %v1294 = vpack.c.b16 %v1090, %v1088
      %v1295 = vpack.c.b16 %v1093, %v1091
      %v1296 = vpack.c.b16 %v1094, %v1092
      %v1297 = vpack.c.b16 %v1097, %v1095
      %v1298 = vpack.c.b16 %v1098, %v1096
      %v1299 = vpack.c.b16 %v1101, %v1099
      %v1300 = vpack.c.b16 %v1102, %v1100
      %v1301 = vpack.c.b16 %v1105, %v1103
      %v1302 = vpack.c.b16 %v1106, %v1104
      %v1303 = vpack.c.b16 %v1109, %v1107
      %v1304 = vpack.c.b16 %v1110, %v1108
      %v1305 = vpack.c.b16 %v1113, %v1111
      %v1306 = vpack.c.b16 %v1114, %v1112
      %v1307 = vpack.c.b16 %v1117, %v1115
      %v1308 = vpack.c.b16 %v1118, %v1116
      %v1309 = vpack.c.b16 %v1121, %v1119
      %v1310 = vpack.c.b16 %v1122, %v1120
      %v1311 = vpack.c.b16 %v1125, %v1123
      %v1312 = vpack.c.b16 %v1126, %v1124
      %v1313 = vpack.c.b16 %v1129, %v1127
      %v1314 = vpack.c.b16 %v1130, %v1128
      %v1315 = vpack.c.b16 %v1133, %v1131
      %v1316 = vpack.c.b16 %v1134, %v1132
      %v1317 = vpack.c.b16 %v1137, %v1135
      %v1318 = vpack.c.b16 %v1138, %v1136
      %v1319 = vpack.c.b16 %v1141, %v1139
      %v1320 = vpack.c.b16 %v1142, %v1140
      %v1321 = vpack.c.b16 %v1145, %v1143
      %v1322 = vpack.c.b16 %v1146, %v1144
      %v1323 = vpack.c.b16 %v1149, %v1147
      %v1324 = vpack.c.b16 %v1150, %v1148
      %v1325 = vpack.c.b16 %v1153, %v1151
      %v1326 = vpack.c.b16 %v1154, %v1152
      %v1327 = vpack.c.b16 %v1157, %v1155
      %v1328 = vpack.c.b16 %v1158, %v1156
      %v1329 = vpack.c.b16 %v1161, %v1159
      %v1330 = vpack.c.b16 %v1162, %v1160
      %v1331 = vpack.c.b16 %v1165, %v1163
      %v1332 = vpack.c.b16 %v1166, %v1164
      %v1333 = vpack.c.b16 %v1169, %v1167
      %v1334 = vpack.c.b16 %v1170, %v1168
      %v1335 = vpack.c.b16 %v1173, %v1171
      %v1336 = vpack.c.b16 %v1174, %v1172
      %v1337 = vpack.c.b16 %v1177, %v1175
      %v1338 = vpack.c.b16 %v1178, %v1176
      %v1339 = vpack.c.b16 %v1181, %v1179
      %v1340 = vpack.c.b16 %v1182, %v1180
      %v1341 = vpack.c.b16 %v1185, %v1183
      %v1342 = vpack.c.b16 %v1186, %v1184
      %v1343 = vpack.c.b16 %v1189, %v1187
      %v1344 = vpack.c.b16 %v1190, %v1188
      %v1345 = vpack.c.b16 %v1193, %v1191
      %v1346 = vpack.c.b16 %v1194, %v1192
      %v1347 = vpack.c.b16 %v1197, %v1195
      %v1348 = vpack.c.b16 %v1198, %v1196
      %v1349 = vpack.c.b16 %v1201, %v1199
      %v1350 = vpack.c.b16 %v1202, %v1200
      %v1351 = vpack.c.b16 %v1205, %v1203
      %v1352 = vpack.c.b16 %v1206, %v1204
      %v1353 = vpack.c.b16 %v1209, %v1207
      %v1354 = vpack.c.b16 %v1210, %v1208
      %v1355 = vpack.c.b16 %v1213, %v1211
      %v1356 = vpack.c.b16 %v1214, %v1212
      %v1357 = vpack.c.b16 %v1217, %v1215
      %v1358 = vpack.c.b16 %v1218, %v1216
      %v1359 = vpack.c.b16 %v1221, %v1219
      %v1360 = vpack.c.b16 %v1222, %v1220
      %v1361 = vpack.c.b16 %v1225, %v1223
      %v1362 = vpack.c.b16 %v1226, %v1224
      %v1500 = vlaneseq
      %v1501 = vshrl.u32 %v1500, 7
      %v1502 = vsub.s32 0, %v1501
      %v1503 = vrot.slane %v818, %v1502
      %v1504 = vlaneseq
      %v1505 = vshrl.u32 %v1504, 7
      %v1506 = vsub.s32 1, %v1505
      %v1507 = vrot.slane %v818, %v1506
      %vm1510 = vcmask 523264
      %v1512 = vsel %vm1510, %v681, 0
      %1514 = vmatprep.subr.bf16.mxu0 %v1228
      %1515 = vmatpush1.bf16.msra.mxu0 %v1227
      %1516 = vmatprep.subr.bf16.mxu0 %v1230
      %1517 = vmatpush1.bf16.msra.mxu0 %v1229
      %1518 = vmatprep.subr.bf16.mxu0 %v1232
      %1519 = vmatpush1.bf16.msra.mxu0 %v1231
      %1520 = vmatprep.subr.bf16.mxu0 %v1234
      %1521 = vmatpush1.bf16.msra.mxu0 %v1233
      %1522 = vmatprep.subr.bf16.mxu0 %v1236
      %1523 = vmatpush1.bf16.msra.mxu0 %v1235
      %1524 = vmatprep.subr.bf16.mxu0 %v1238
      %1525 = vmatpush1.bf16.msra.mxu0 %v1237
      %1526 = vmatprep.subr.bf16.mxu0 %v1240
      %1527 = vmatpush1.bf16.msra.mxu0 %v1239
      %1528 = vmatprep.subr.bf16.mxu0 %v1242
      %1529 = vmatpush1.bf16.msra.mxu0 %v1241
      %1530 = vmatprep.subr.bf16.mxu0 %v1244
      %1531 = vmatpush1.bf16.msra.mxu0 %v1243
      %1532 = vmatprep.subr.bf16.mxu0 %v1246
      %1533 = vmatpush1.bf16.msra.mxu0 %v1245
      %1534 = vmatprep.subr.bf16.mxu0 %v1248
      %1535 = vmatpush1.bf16.msra.mxu0 %v1247
      %1536 = vmatprep.subr.bf16.mxu0 %v1250
      %1537 = vmatpush1.bf16.msra.mxu0 %v1249
      %1538 = vmatprep.subr.bf16.mxu0 %v1252
      %1539 = vmatpush1.bf16.msra.mxu0 %v1251
      %1540 = vmatprep.subr.bf16.mxu0 %v1254
      %1541 = vmatpush1.bf16.msra.mxu0 %v1253
      %1542 = vmatprep.subr.bf16.mxu0 %v1256
      %1543 = vmatpush1.bf16.msra.mxu0 %v1255
      %1544 = vmatprep.subr.bf16.mxu0 %v1258
      %1545 = vmatpush1.bf16.msra.mxu0 %v1257
      %1546 = vmatprep.mubr.bf16.mxu0 %v674
      %1547 = vmatmul.mubr.bf16.gmra.mrb[0].mxu0 %v673
      %v1548 = vpop.f32.mrb[0].mxu0
      %v1549 = vadd.f32 %v1503, %v1548
      %v1550 = vpop.f32.mrb[0].mxu0
      %v1551 = vadd.f32 %v1507, %v1550
      %v1552 = vpop.f32.mrb[0].mxu0
      %v1553 = vpop.f32.mrb[0].mxu0
      %1554 = vdwg.mxu0
      %1555 = vmatprep.subr.bf16.mxu0 %v1260
      %1556 = vmatpush1.bf16.msra.mxu0 %v1259
      %1557 = vmatprep.subr.bf16.mxu0 %v1262
      %1558 = vmatpush1.bf16.msra.mxu0 %v1261
      %1559 = vmatprep.subr.bf16.mxu0 %v1264
      %1560 = vmatpush1.bf16.msra.mxu0 %v1263
      %1561 = vmatprep.subr.bf16.mxu0 %v1266
      %1562 = vmatpush1.bf16.msra.mxu0 %v1265
      %1563 = vmatprep.subr.bf16.mxu0 %v1268
      %1564 = vmatpush1.bf16.msra.mxu0 %v1267
      %1565 = vmatprep.subr.bf16.mxu0 %v1270
      %1566 = vmatpush1.bf16.msra.mxu0 %v1269
      %1567 = vmatprep.subr.bf16.mxu0 %v1272
      %1568 = vmatpush1.bf16.msra.mxu0 %v1271
      %1569 = vmatprep.subr.bf16.mxu0 %v1274
      %1570 = vmatpush1.bf16.msra.mxu0 %v1273
      %1571 = vmatprep.subr.bf16.mxu0 %v1276
      %1572 = vmatpush1.bf16.msra.mxu0 %v1275
      %1573 = vmatprep.subr.bf16.mxu0 %v1278
      %1574 = vmatpush1.bf16.msra.mxu0 %v1277
      %1575 = vmatprep.subr.bf16.mxu0 %v1280
      %1576 = vmatpush1.bf16.msra.mxu0 %v1279
      %1577 = vmatprep.subr.bf16.mxu0 %v1282
      %1578 = vmatpush1.bf16.msra.mxu0 %v1281
      %1579 = vmatprep.subr.bf16.mxu0 %v1284
      %1580 = vmatpush1.bf16.msra.mxu0 %v1283
      %1581 = vmatprep.subr.bf16.mxu0 %v1286
      %1582 = vmatpush1.bf16.msra.mxu0 %v1285
      %1583 = vmatprep.subr.bf16.mxu0 %v1288
      %1584 = vmatpush1.bf16.msra.mxu0 %v1287
      %1585 = vmatprep.subr.bf16.mxu0 %v1290
      %1586 = vmatpush1.bf16.msra.mxu0 %v1289
      %1587 = vmatprep.mubr.bf16.mxu0 %v676
      %1588 = vmatmul.mubr.bf16.gmra.mrb[0].mxu0 %v675
      %v1589 = vpop.f32.mrb[0].mxu0
      %v1590 = vadd.f32 %v1549, %v1589
      %v1591 = vpop.f32.mrb[0].mxu0
      %v1592 = vadd.f32 %v1551, %v1591
      %v1593 = vpop.f32.mrb[0].mxu0
      %v1594 = vpop.f32.mrb[0].mxu0
      %1595 = vdwg.mxu0
      %1596 = vmatprep.subr.bf16.mxu0 %v1292
      %1597 = vmatpush1.bf16.msra.mxu0 %v1291
      %1598 = vmatprep.subr.bf16.mxu0 %v1294
      %1599 = vmatpush1.bf16.msra.mxu0 %v1293
      %1600 = vmatprep.subr.bf16.mxu0 %v1296
      %1601 = vmatpush1.bf16.msra.mxu0 %v1295
      %1602 = vmatprep.subr.bf16.mxu0 %v1298
      %1603 = vmatpush1.bf16.msra.mxu0 %v1297
      %1604 = vmatprep.subr.bf16.mxu0 %v1300
      %1605 = vmatpush1.bf16.msra.mxu0 %v1299
      %1606 = vmatprep.subr.bf16.mxu0 %v1302
      %1607 = vmatpush1.bf16.msra.mxu0 %v1301
      %1608 = vmatprep.subr.bf16.mxu0 %v1304
      %1609 = vmatpush1.bf16.msra.mxu0 %v1303
      %1610 = vmatprep.subr.bf16.mxu0 %v1306
      %1611 = vmatpush1.bf16.msra.mxu0 %v1305
      %1612 = vmatprep.subr.bf16.mxu0 %v1308
      %1613 = vmatpush1.bf16.msra.mxu0 %v1307
      %1614 = vmatprep.subr.bf16.mxu0 %v1310
      %1615 = vmatpush1.bf16.msra.mxu0 %v1309
      %1616 = vmatprep.subr.bf16.mxu0 %v1312
      %1617 = vmatpush1.bf16.msra.mxu0 %v1311
      %1618 = vmatprep.subr.bf16.mxu0 %v1314
      %1619 = vmatpush1.bf16.msra.mxu0 %v1313
      %1620 = vmatprep.subr.bf16.mxu0 %v1316
      %1621 = vmatpush1.bf16.msra.mxu0 %v1315
      %1622 = vmatprep.subr.bf16.mxu0 %v1318
      %1623 = vmatpush1.bf16.msra.mxu0 %v1317
      %1624 = vmatprep.subr.bf16.mxu0 %v1320
      %1625 = vmatpush1.bf16.msra.mxu0 %v1319
      %1626 = vmatprep.subr.bf16.mxu0 %v1322
      %1627 = vmatpush1.bf16.msra.mxu0 %v1321
      %1628 = vmatprep.mubr.bf16.mxu0 %v678
      %1629 = vmatmul.mubr.bf16.gmra.mrb[0].mxu0 %v677
      %v1630 = vpop.f32.mrb[0].mxu0
      %v1631 = vadd.f32 %v1590, %v1630
      %v1632 = vpop.f32.mrb[0].mxu0
      %v1633 = vadd.f32 %v1592, %v1632
      %v1634 = vpop.f32.mrb[0].mxu0
      %v1635 = vpop.f32.mrb[0].mxu0
      %1636 = vdwg.mxu0
      %1637 = vmatprep.subr.bf16.mxu0 %v1324
      %1638 = vmatpush1.bf16.msra.mxu0 %v1323
      %1639 = vmatprep.subr.bf16.mxu0 %v1326
      %1640 = vmatpush1.bf16.msra.mxu0 %v1325
      %1641 = vmatprep.subr.bf16.mxu0 %v1328
      %1642 = vmatpush1.bf16.msra.mxu0 %v1327
      %1643 = vmatprep.subr.bf16.mxu0 %v1330
      %1644 = vmatpush1.bf16.msra.mxu0 %v1329
      %1645 = vmatprep.subr.bf16.mxu0 %v1332
      %1646 = vmatpush1.bf16.msra.mxu0 %v1331
      %1647 = vmatprep.subr.bf16.mxu0 %v1334
      %1648 = vmatpush1.bf16.msra.mxu0 %v1333
      %1649 = vmatprep.subr.bf16.mxu0 %v1336
      %1650 = vmatpush1.bf16.msra.mxu0 %v1335
      %1651 = vmatprep.subr.bf16.mxu0 %v1338
      %1652 = vmatpush1.bf16.msra.mxu0 %v1337
      %1653 = vmatprep.subr.bf16.mxu0 %v1340
      %1654 = vmatpush1.bf16.msra.mxu0 %v1339
      %1655 = vmatprep.subr.bf16.mxu0 %v1342
      %1656 = vmatpush1.bf16.msra.mxu0 %v1341
      %1657 = vmatprep.subr.bf16.mxu0 %v1344
      %1658 = vmatpush1.bf16.msra.mxu0 %v1343
      %1659 = vmatprep.subr.bf16.mxu0 %v1346
      %1660 = vmatpush1.bf16.msra.mxu0 %v1345
      %1661 = vmatprep.subr.bf16.mxu0 %v1348
      %1662 = vmatpush1.bf16.msra.mxu0 %v1347
      %1663 = vmatprep.subr.bf16.mxu0 %v1350
      %1664 = vmatpush1.bf16.msra.mxu0 %v1349
      %1665 = vmatprep.subr.bf16.mxu0 %v1352
      %1666 = vmatpush1.bf16.msra.mxu0 %v1351
      %1667 = vmatprep.subr.bf16.mxu0 %v1354
      %1668 = vmatpush1.bf16.msra.mxu0 %v1353
      %1669 = vmatprep.mubr.bf16.mxu0 %v680
      %1670 = vmatmul.mubr.bf16.gmra.mrb[0].mxu0 %v679
      %v1671 = vpop.f32.mrb[0].mxu0
      %v1672 = vadd.f32 %v1631, %v1671
      %v1673 = vpop.f32.mrb[0].mxu0
      %v1674 = vadd.f32 %v1633, %v1673
      %v1675 = vpop.f32.mrb[0].mxu0
      %v1676 = vpop.f32.mrb[0].mxu0
      %1677 = vdwg.mxu0
      %1678 = vmatprep.subr.bf16.mxu0 %v1356
      %1679 = vmatpush1.bf16.msra.mxu0 %v1355
      %1680 = vmatprep.subr.bf16.mxu0 %v1358
      %1681 = vmatpush1.bf16.msra.mxu0 %v1357
      %1682 = vmatprep.subr.bf16.mxu0 %v1360
      %1683 = vmatpush1.bf16.msra.mxu0 %v1359
      %1684 = vmatprep.subr.bf16.mxu0 %v1362
      %1685 = vmatpush1.bf16.msra.mxu0 %v1361
      %1686 = vmatprep.subr.bf16.mxu0 0
      %1687 = vmatpush1.bf16.msra.mxu0 0
      %1688 = vmatprep.subr.bf16.mxu0 0
      %1689 = vmatpush1.bf16.msra.mxu0 0
      %1690 = vmatprep.subr.bf16.mxu0 0
      %1691 = vmatpush1.bf16.msra.mxu0 0
      %1692 = vmatprep.subr.bf16.mxu0 0
      %1693 = vmatpush1.bf16.msra.mxu0 0
      %1694 = vmatprep.subr.bf16.mxu0 0
      %1695 = vmatpush1.bf16.msra.mxu0 0
      %1696 = vmatprep.subr.bf16.mxu0 0
      %1697 = vmatpush1.bf16.msra.mxu0 0
      %1698 = vmatprep.subr.bf16.mxu0 0
      %1699 = vmatpush1.bf16.msra.mxu0 0
      %1700 = vmatprep.subr.bf16.mxu0 0
      %1701 = vmatpush1.bf16.msra.mxu0 0
      %1702 = vmatprep.subr.bf16.mxu0 0
      %1703 = vmatpush1.bf16.msra.mxu0 0
      %1704 = vmatprep.subr.bf16.mxu0 0
      %1705 = vmatpush1.bf16.msra.mxu0 0
      %1706 = vmatprep.subr.bf16.mxu0 0
      %1707 = vmatpush1.bf16.msra.mxu0 0
      %1708 = vmatprep.subr.bf16.mxu0 0
      %1709 = vmatpush1.bf16.msra.mxu0 0
      %1710 = vmatprep.mubr.bf16.mxu0 0
      %1711 = vmatmul.mubr.bf16.gmra.mrb[0].mxu0 %v1512
      %v1712 = vpop.f32.mrb[0].mxu0
      %v1713 = vadd.f32 %v1672, %v1712
      %v1714 = vpop.f32.mrb[0].mxu0
      %v1715 = vadd.f32 %v1674, %v1714
      %v1716 = vpop.f32.mrb[0].mxu0
      %v1717 = vpop.f32.mrb[0].mxu0
      %1718 = vdwg.mxu0
      %v1719 = vld [vmem:[%s591] sm:$0xf]
      %v1720 = vld [vmem:[%s591 + $0x4] sm:$0xf]
      %v1721 = vld [vmem:[%s5] sm:$0xff]
      %v1722 = vld [vmem:[%s5 + $0x8] sm:$0xff]
      %v1723 = vld [vmem:[%s5 + $0x10] sm:$0xff]
      %v1724 = vld [vmem:[%s5 + $0x18] sm:$0xff]
      %v1725 = vld [vmem:[%s5 + $0x20] sm:$0xff]
      %v1726 = vld [vmem:[%s5 + $0x28] sm:$0xff]
      %v1727 = vld [vmem:[%s5 + $0x30] sm:$0xff]
      %v1728 = vld [vmem:[%s5 + $0x38] sm:$0xff]
      %v1729 = vld [vmem:[%s601] sm:$0xf]
      %v1730 = vld [vmem:[%s601 + $0x4] sm:$0xf]
      %v1731 = vld [vmem:[%s6] sm:$0xff]
      %v1732 = vld [vmem:[%s6 + $0x8] sm:$0xff]
      %v1733 = vld [vmem:[%s6 + $0x10] sm:$0xff]
      %v1734 = vld [vmem:[%s6 + $0x18] sm:$0xff]
      %v1735 = vld [vmem:[%s6 + $0x20] sm:$0xff]
      %v1736 = vld [vmem:[%s6 + $0x28] sm:$0xff]
      %v1737 = vld [vmem:[%s6 + $0x30] sm:$0xff]
      %v1738 = vld [vmem:[%s6 + $0x38] sm:$0xff]
      %v1741 = vunpack.c.l.b16 %v1729
      %v1742 = vunpack.c.l.b16 %v1730
      %v1743 = vpack.c.b16 %v1742, %v1741
      %v1752 = vunpack.c.l.b16 %v1731
      %v1753 = vunpack.c.h.b16 %v1731
      %v1754 = vunpack.c.l.b16 %v1732
      %v1755 = vunpack.c.h.b16 %v1732
      %v1756 = vunpack.c.l.b16 %v1733
      %v1757 = vunpack.c.h.b16 %v1733
      %v1758 = vunpack.c.l.b16 %v1734
      %v1759 = vunpack.c.h.b16 %v1734
      %v1760 = vunpack.c.l.b16 %v1735
      %v1761 = vunpack.c.h.b16 %v1735
      %v1762 = vunpack.c.l.b16 %v1736
      %v1763 = vunpack.c.h.b16 %v1736
      %v1764 = vunpack.c.l.b16 %v1737
      %v1765 = vunpack.c.h.b16 %v1737
      %v1766 = vunpack.c.l.b16 %v1738
      %v1767 = vunpack.c.h.b16 %v1738
      %v1768 = vpack.c.b16 %v1754, %v1752
      %v1769 = vpack.c.b16 %v1755, %v1753
      %v1770 = vpack.c.b16 %v1758, %v1756
      %v1771 = vpack.c.b16 %v1759, %v1757
      %v1772 = vpack.c.b16 %v1762, %v1760
      %v1773 = vpack.c.b16 %v1763, %v1761
      %v1774 = vpack.c.b16 %v1766, %v1764
      %v1775 = vpack.c.b16 %v1767, %v1765
      %v1785 = vsel %vm1510, %v1743, 0
      %1787 = vmatprep.subr.bf16.mxu0 %v1769
      %1788 = vmatpush1.bf16.msra.mxu0 %v1768
      %1789 = vmatprep.subr.bf16.mxu0 %v1771
      %1790 = vmatpush1.bf16.msra.mxu0 %v1770
      %1791 = vmatprep.subr.bf16.mxu0 %v1773
      %1792 = vmatpush1.bf16.msra.mxu0 %v1772
      %1793 = vmatprep.subr.bf16.mxu0 %v1775
      %1794 = vmatpush1.bf16.msra.mxu0 %v1774
      %1795 = vmatprep.subr.bf16.mxu0 0
      %1796 = vmatpush1.bf16.msra.mxu0 0
      %1797 = vmatprep.subr.bf16.mxu0 0
      %1798 = vmatpush1.bf16.msra.mxu0 0
      %1799 = vmatprep.subr.bf16.mxu0 0
      %1800 = vmatpush1.bf16.msra.mxu0 0
      %1801 = vmatprep.subr.bf16.mxu0 0
      %1802 = vmatpush1.bf16.msra.mxu0 0
      %1803 = vmatprep.subr.bf16.mxu0 0
      %1804 = vmatpush1.bf16.msra.mxu0 0
      %1805 = vmatprep.subr.bf16.mxu0 0
      %1806 = vmatpush1.bf16.msra.mxu0 0
      %1807 = vmatprep.subr.bf16.mxu0 0
      %1808 = vmatpush1.bf16.msra.mxu0 0
      %1809 = vmatprep.subr.bf16.mxu0 0
      %1810 = vmatpush1.bf16.msra.mxu0 0
      %1811 = vmatprep.subr.bf16.mxu0 0
      %1812 = vmatpush1.bf16.msra.mxu0 0
      %1813 = vmatprep.subr.bf16.mxu0 0
      %1814 = vmatpush1.bf16.msra.mxu0 0
      %1815 = vmatprep.subr.bf16.mxu0 0
      %1816 = vmatpush1.bf16.msra.mxu0 0
      %1817 = vmatprep.subr.bf16.mxu0 0
      %1818 = vmatpush1.bf16.msra.mxu0 0
      %1819 = vmatprep.mubr.bf16.mxu0 0
      %1820 = vmatmul.mubr.bf16.gmra.mrb[0].mxu0 %v1785
      %v1821 = vpop.f32.mrb[0].mxu0
      %v1822 = vadd.f32 0.0, %v1821
      %v1823 = vpop.f32.mrb[0].mxu0
      %v1824 = vadd.f32 0.0, %v1823
      %v1825 = vpop.f32.mrb[0].mxu0
      %v1826 = vadd.f32 0.0, %v1825
      %v1827 = vpop.f32.mrb[0].mxu0
      %v1828 = vadd.f32 0.0, %v1827
      %1829 = vdwg.mxu0
      %v1832 = vunpack.c.l.b16 %v1719
      %v1833 = vunpack.c.l.b16 %v1720
      %v1834 = vpack.c.b16 %v1833, %v1832
      %v1843 = vunpack.c.l.b16 %v1721
      %v1844 = vunpack.c.h.b16 %v1721
      %v1845 = vunpack.c.l.b16 %v1722
      %v1846 = vunpack.c.h.b16 %v1722
      %v1847 = vunpack.c.l.b16 %v1723
      %v1848 = vunpack.c.h.b16 %v1723
      %v1849 = vunpack.c.l.b16 %v1724
      %v1850 = vunpack.c.h.b16 %v1724
      %v1851 = vunpack.c.l.b16 %v1725
      %v1852 = vunpack.c.h.b16 %v1725
      %v1853 = vunpack.c.l.b16 %v1726
      %v1854 = vunpack.c.h.b16 %v1726
      %v1855 = vunpack.c.l.b16 %v1727
      %v1856 = vunpack.c.h.b16 %v1727
      %v1857 = vunpack.c.l.b16 %v1728
      %v1858 = vunpack.c.h.b16 %v1728
      %v1859 = vpack.c.b16 %v1845, %v1843
      %v1860 = vpack.c.b16 %v1846, %v1844
      %v1861 = vpack.c.b16 %v1849, %v1847
      %v1862 = vpack.c.b16 %v1850, %v1848
      %v1863 = vpack.c.b16 %v1853, %v1851
      %v1864 = vpack.c.b16 %v1854, %v1852
      %v1865 = vpack.c.b16 %v1857, %v1855
      %v1866 = vpack.c.b16 %v1858, %v1856
      %v1876 = vsel %vm1510, %v1834, 0
      %1878 = vmatprep.subr.bf16.mxu0 %v1860
      %1879 = vmatpush1.bf16.msra.mxu0 %v1859
      %1880 = vmatprep.subr.bf16.mxu0 %v1862
      %1881 = vmatpush1.bf16.msra.mxu0 %v1861
      %1882 = vmatprep.subr.bf16.mxu0 %v1864
      %1883 = vmatpush1.bf16.msra.mxu0 %v1863
      %1884 = vmatprep.subr.bf16.mxu0 %v1866
      %1885 = vmatpush1.bf16.msra.mxu0 %v1865
      %1886 = vmatprep.subr.bf16.mxu0 0
      %1887 = vmatpush1.bf16.msra.mxu0 0
      %1888 = vmatprep.subr.bf16.mxu0 0
      %1889 = vmatpush1.bf16.msra.mxu0 0
      %1890 = vmatprep.subr.bf16.mxu0 0
      %1891 = vmatpush1.bf16.msra.mxu0 0
      %1892 = vmatprep.subr.bf16.mxu0 0
      %1893 = vmatpush1.bf16.msra.mxu0 0
      %1894 = vmatprep.subr.bf16.mxu0 0
      %1895 = vmatpush1.bf16.msra.mxu0 0
      %1896 = vmatprep.subr.bf16.mxu0 0
      %1897 = vmatpush1.bf16.msra.mxu0 0
      %1898 = vmatprep.subr.bf16.mxu0 0
      %1899 = vmatpush1.bf16.msra.mxu0 0
      %1900 = vmatprep.subr.bf16.mxu0 0
      %1901 = vmatpush1.bf16.msra.mxu0 0
      %1902 = vmatprep.subr.bf16.mxu0 0
      %1903 = vmatpush1.bf16.msra.mxu0 0
      %1904 = vmatprep.subr.bf16.mxu0 0
      %1905 = vmatpush1.bf16.msra.mxu0 0
      %1906 = vmatprep.subr.bf16.mxu0 0
      %1907 = vmatpush1.bf16.msra.mxu0 0
      %1908 = vmatprep.subr.bf16.mxu0 0
      %1909 = vmatpush1.bf16.msra.mxu0 0
      %1910 = vmatprep.mubr.bf16.mxu0 0
      %1911 = vmatmul.mubr.bf16.gmra.mrb[0].mxu0 %v1876
      %v1912 = vpop.f32.mrb[0].mxu0
      %v1913 = vadd.f32 %v1822, %v1912
      %v1914 = vpop.f32.mrb[0].mxu0
      %v1915 = vadd.f32 %v1824, %v1914
      %v1916 = vpop.f32.mrb[0].mxu0
      %v1917 = vadd.f32 %v1826, %v1916
      %v1918 = vpop.f32.mrb[0].mxu0
      %v1919 = vadd.f32 %v1828, %v1918
      %1920 = vdwg.mxu0
      %v1921 = vld [vmem:[%s611] sm:$0xf]
      %v1922 = vld [vmem:[%s611 + $0x4] sm:$0xf]
      %v1923 = vld [vmem:[%s7] sm:$0xff]
      %v1924 = vld [vmem:[%s7 + $0x8] sm:$0xff]
      %v1925 = vld [vmem:[%s7 + $0x10] sm:$0xff]
      %v1926 = vld [vmem:[%s7 + $0x18] sm:$0xff]
      %v1927 = vld [vmem:[%s7 + $0x20] sm:$0xff]
      %v1928 = vld [vmem:[%s7 + $0x28] sm:$0xff]
      %v1929 = vld [vmem:[%s7 + $0x30] sm:$0xff]
      %v1930 = vld [vmem:[%s7 + $0x38] sm:$0xff]
      %v1933 = vunpack.c.l.b16 %v1921
      %v1934 = vunpack.c.l.b16 %v1922
      %v1935 = vpack.c.b16 %v1934, %v1933
      %v1944 = vunpack.c.l.b16 %v1923
      %v1945 = vunpack.c.h.b16 %v1923
      %v1946 = vunpack.c.l.b16 %v1924
      %v1947 = vunpack.c.h.b16 %v1924
      %v1948 = vunpack.c.l.b16 %v1925
      %v1949 = vunpack.c.h.b16 %v1925
      %v1950 = vunpack.c.l.b16 %v1926
      %v1951 = vunpack.c.h.b16 %v1926
      %v1952 = vunpack.c.l.b16 %v1927
      %v1953 = vunpack.c.h.b16 %v1927
      %v1954 = vunpack.c.l.b16 %v1928
      %v1955 = vunpack.c.h.b16 %v1928
      %v1956 = vunpack.c.l.b16 %v1929
      %v1957 = vunpack.c.h.b16 %v1929
      %v1958 = vunpack.c.l.b16 %v1930
      %v1959 = vunpack.c.h.b16 %v1930
      %v1960 = vpack.c.b16 %v1946, %v1944
      %v1961 = vpack.c.b16 %v1947, %v1945
      %v1962 = vpack.c.b16 %v1950, %v1948
      %v1963 = vpack.c.b16 %v1951, %v1949
      %v1964 = vpack.c.b16 %v1954, %v1952
      %v1965 = vpack.c.b16 %v1955, %v1953
      %v1966 = vpack.c.b16 %v1958, %v1956
      %v1967 = vpack.c.b16 %v1959, %v1957
      %v1977 = vsel %vm1510, %v1935, 0
      %1979 = vmatprep.subr.bf16.mxu0 %v1961
      %1980 = vmatpush1.bf16.msra.mxu0 %v1960
      %1981 = vmatprep.subr.bf16.mxu0 %v1963
      %1982 = vmatpush1.bf16.msra.mxu0 %v1962
      %1983 = vmatprep.subr.bf16.mxu0 %v1965
      %1984 = vmatpush1.bf16.msra.mxu0 %v1964
      %1985 = vmatprep.subr.bf16.mxu0 %v1967
      %1986 = vmatpush1.bf16.msra.mxu0 %v1966
      %1987 = vmatprep.subr.bf16.mxu0 0
      %1988 = vmatpush1.bf16.msra.mxu0 0
      %1989 = vmatprep.subr.bf16.mxu0 0
      %1990 = vmatpush1.bf16.msra.mxu0 0
      %1991 = vmatprep.subr.bf16.mxu0 0
      %1992 = vmatpush1.bf16.msra.mxu0 0
      %1993 = vmatprep.subr.bf16.mxu0 0
      %1994 = vmatpush1.bf16.msra.mxu0 0
      %1995 = vmatprep.subr.bf16.mxu0 0
      %1996 = vmatpush1.bf16.msra.mxu0 0
      %1997 = vmatprep.subr.bf16.mxu0 0
      %1998 = vmatpush1.bf16.msra.mxu0 0
      %1999 = vmatprep.subr.bf16.mxu0 0
      %2000 = vmatpush1.bf16.msra.mxu0 0
      %2001 = vmatprep.subr.bf16.mxu0 0
      %2002 = vmatpush1.bf16.msra.mxu0 0
      %2003 = vmatprep.subr.bf16.mxu0 0
      %2004 = vmatpush1.bf16.msra.mxu0 0
      %2005 = vmatprep.subr.bf16.mxu0 0
      %2006 = vmatpush1.bf16.msra.mxu0 0
      %2007 = vmatprep.subr.bf16.mxu0 0
      %2008 = vmatpush1.bf16.msra.mxu0 0
      %2009 = vmatprep.subr.bf16.mxu0 0
      %2010 = vmatpush1.bf16.msra.mxu0 0
      %2011 = vmatprep.mubr.bf16.mxu0 0
      %2012 = vmatmul.mubr.bf16.gmra.mrb[0].mxu0 %v1977
      %v2013 = vpop.f32.mrb[0].mxu0
      %v2014 = vadd.f32 0.0, %v2013
      %v2015 = vpop.f32.mrb[0].mxu0
      %v2016 = vadd.f32 0.0, %v2015
      %v2017 = vpop.f32.mrb[0].mxu0
      %v2018 = vadd.f32 0.0, %v2017
      %v2019 = vpop.f32.mrb[0].mxu0
      %v2020 = vadd.f32 0.0, %v2019
      %2021 = vdwg.mxu0
      %v2022 = vadd.f32 %v1913, %v2014
      %v2023 = vadd.f32 %v1915, %v2016
      %v2024 = vadd.f32 %v1917, %v2018
      %v2025 = vadd.f32 %v1919, %v2020
      %v2026 = vlaneseq
      %v2027 = vshrl.u32 %v2026, 7
      %v2028 = vsub.s32 0, %v2027
      %v2029 = vrot.slane %v1713, %v2028
      %v2030 = vlaneseq
      %v2031 = vshrl.u32 %v2030, 7
      %v2032 = vsub.s32 0, %v2031
      %v2033 = vrot.slane %v1715, %v2032
      %v2034 = vadd.f32 %v2022, %v2029
      %v2035 = vadd.f32 %v2023, %v2033
      %v2036 = vadd.f32 %v2024, %v2029
      %v2037 = vadd.f32 %v2025, %v2033
      %vm2038 = vcmp.ge.f32.partialorder %v2034, 0.0
      %vm2039 = vcmp.ge.f32.partialorder %v2035, 0.0
      %vm2040 = vcmp.ge.f32.partialorder %v2036, 0.0
      %vm2041 = vcmp.ge.f32.partialorder %v2037, 0.0
      %v2042 = vmul.f32 %v2034, 0.2
      %v2043 = vmul.f32 %v2035, 0.2
      %v2044 = vmul.f32 %v2036, 0.2
      %v2045 = vmul.f32 %v2037, 0.2
      %v2046 = vsel %vm2038, %v2034, %v2042
      %v2047 = vsel %vm2039, %v2035, %v2043
      %v2048 = vsel %vm2040, %v2036, %v2044
      %v2049 = vsel %vm2041, %v2037, %v2045
      %v2050 = vpack.c.bf16 %v2048, %v2046
      %v2051 = vpack.c.bf16 %v2049, %v2047
      %v2052 = vld [vmem:[%s9] sm:$0xff]
      %v2053 = vld [vmem:[%s9 + $0x8] sm:$0xff]
      %v2054 = vld [vmem:[%s9 + $0x10] sm:$0xff]
      %v2055 = vld [vmem:[%s9 + $0x18] sm:$0xff]
      %v2056 = vld [vmem:[%s9 + $0x20] sm:$0xff]
      %v2057 = vld [vmem:[%s9 + $0x28] sm:$0xff]
      %v2058 = vld [vmem:[%s9 + $0x30] sm:$0xff]
      %v2059 = vld [vmem:[%s9 + $0x38] sm:$0xff]
      %v2060 = vld [vmem:[%s9 + $0x40] sm:$0xff]
      %v2061 = vld [vmem:[%s9 + $0x48] sm:$0xff]
      %v2062 = vld [vmem:[%s9 + $0x50] sm:$0xff]
      %v2063 = vld [vmem:[%s9 + $0x58] sm:$0xff]
      %v2064 = vld [vmem:[%s9 + $0x60] sm:$0xff]
      %v2065 = vld [vmem:[%s9 + $0x68] sm:$0xff]
      %v2066 = vld [vmem:[%s9 + $0x70] sm:$0xff]
      %v2067 = vld [vmem:[%s9 + $0x78] sm:$0xff]
      %v2068 = vld [vmem:[%s9 + $0x80] sm:$0xff]
      %v2069 = vld [vmem:[%s9 + $0x88] sm:$0xff]
      %v2070 = vld [vmem:[%s9 + $0x90] sm:$0xff]
      %v2071 = vld [vmem:[%s9 + $0x98] sm:$0xff]
      %v2072 = vld [vmem:[%s9 + $0xa0] sm:$0xff]
      %v2073 = vld [vmem:[%s9 + $0xa8] sm:$0xff]
      %v2074 = vld [vmem:[%s9 + $0xb0] sm:$0xff]
      %v2075 = vld [vmem:[%s9 + $0xb8] sm:$0xff]
      %v2076 = vld [vmem:[%s9 + $0xc0] sm:$0xff]
      %v2077 = vld [vmem:[%s9 + $0xc8] sm:$0xff]
      %v2078 = vld [vmem:[%s9 + $0xd0] sm:$0xff]
      %v2079 = vld [vmem:[%s9 + $0xd8] sm:$0xff]
      %v2080 = vld [vmem:[%s9 + $0xe0] sm:$0xff]
      %v2081 = vld [vmem:[%s9 + $0xe8] sm:$0xff]
      %v2082 = vld [vmem:[%s9 + $0xf0] sm:$0xff]
      %v2083 = vld [vmem:[%s9 + $0xf8] sm:$0xff]
      %v2084 = vld [vmem:[%s10] sm:$0x3]
      %v2086 = vlaneseq
      %v2087 = vshrl.u32 %v2086, 7
      %v2088 = vsub.s32 0, %v2087
      %v2089 = vrot.slane %v2084, %v2088
      %v2090 = vlaneseq
      %v2091 = vshrl.u32 %v2090, 7
      %v2092 = vsub.s32 1, %v2091
      %v2093 = vrot.slane %v2084, %v2092
      %v2128 = vunpack.c.l.b16 %v2052
      %v2129 = vunpack.c.h.b16 %v2052
      %v2130 = vunpack.c.l.b16 %v2053
      %v2131 = vunpack.c.h.b16 %v2053
      %v2132 = vunpack.c.l.b16 %v2054
      %v2133 = vunpack.c.h.b16 %v2054
      %v2134 = vunpack.c.l.b16 %v2055
      %v2135 = vunpack.c.h.b16 %v2055
      %v2136 = vunpack.c.l.b16 %v2056
      %v2137 = vunpack.c.h.b16 %v2056
      %v2138 = vunpack.c.l.b16 %v2057
      %v2139 = vunpack.c.h.b16 %v2057
      %v2140 = vunpack.c.l.b16 %v2058
      %v2141 = vunpack.c.h.b16 %v2058
      %v2142 = vunpack.c.l.b16 %v2059
      %v2143 = vunpack.c.h.b16 %v2059
      %v2144 = vunpack.c.l.b16 %v2060
      %v2145 = vunpack.c.h.b16 %v2060
      %v2146 = vunpack.c.l.b16 %v2061
      %v2147 = vunpack.c.h.b16 %v2061
      %v2148 = vunpack.c.l.b16 %v2062
      %v2149 = vunpack.c.h.b16 %v2062
      %v2150 = vunpack.c.l.b16 %v2063
      %v2151 = vunpack.c.h.b16 %v2063
      %v2152 = vunpack.c.l.b16 %v2064
      %v2153 = vunpack.c.h.b16 %v2064
      %v2154 = vunpack.c.l.b16 %v2065
      %v2155 = vunpack.c.h.b16 %v2065
      %v2156 = vunpack.c.l.b16 %v2066
      %v2157 = vunpack.c.h.b16 %v2066
      %v2158 = vunpack.c.l.b16 %v2067
      %v2159 = vunpack.c.h.b16 %v2067
      %v2160 = vunpack.c.l.b16 %v2068
      %v2161 = vunpack.c.h.b16 %v2068
      %v2162 = vunpack.c.l.b16 %v2069
      %v2163 = vunpack.c.h.b16 %v2069
      %v2164 = vunpack.c.l.b16 %v2070
      %v2165 = vunpack.c.h.b16 %v2070
      %v2166 = vunpack.c.l.b16 %v2071
      %v2167 = vunpack.c.h.b16 %v2071
      %v2168 = vunpack.c.l.b16 %v2072
      %v2169 = vunpack.c.h.b16 %v2072
      %v2170 = vunpack.c.l.b16 %v2073
      %v2171 = vunpack.c.h.b16 %v2073
      %v2172 = vunpack.c.l.b16 %v2074
      %v2173 = vunpack.c.h.b16 %v2074
      %v2174 = vunpack.c.l.b16 %v2075
      %v2175 = vunpack.c.h.b16 %v2075
      %v2176 = vunpack.c.l.b16 %v2076
      %v2177 = vunpack.c.h.b16 %v2076
      %v2178 = vunpack.c.l.b16 %v2077
      %v2179 = vunpack.c.h.b16 %v2077
      %v2180 = vunpack.c.l.b16 %v2078
      %v2181 = vunpack.c.h.b16 %v2078
      %v2182 = vunpack.c.l.b16 %v2079
      %v2183 = vunpack.c.h.b16 %v2079
      %v2184 = vunpack.c.l.b16 %v2080
      %v2185 = vunpack.c.h.b16 %v2080
      %v2186 = vunpack.c.l.b16 %v2081
      %v2187 = vunpack.c.h.b16 %v2081
      %v2188 = vunpack.c.l.b16 %v2082
      %v2189 = vunpack.c.h.b16 %v2082
      %v2190 = vunpack.c.l.b16 %v2083
      %v2191 = vunpack.c.h.b16 %v2083
      %v2192 = vpack.c.b16 %v2130, %v2128
      %v2193 = vpack.c.b16 %v2131, %v2129
      %v2194 = vpack.c.b16 %v2134, %v2132
      %v2195 = vpack.c.b16 %v2135, %v2133
      %v2196 = vpack.c.b16 %v2138, %v2136
      %v2197 = vpack.c.b16 %v2139, %v2137
      %v2198 = vpack.c.b16 %v2142, %v2140
      %v2199 = vpack.c.b16 %v2143, %v2141
      %v2200 = vpack.c.b16 %v2146, %v2144
      %v2201 = vpack.c.b16 %v2147, %v2145
      %v2202 = vpack.c.b16 %v2150, %v2148
      %v2203 = vpack.c.b16 %v2151, %v2149
      %v2204 = vpack.c.b16 %v2154, %v2152
      %v2205 = vpack.c.b16 %v2155, %v2153
      %v2206 = vpack.c.b16 %v2158, %v2156
      %v2207 = vpack.c.b16 %v2159, %v2157
      %v2208 = vpack.c.b16 %v2162, %v2160
      %v2209 = vpack.c.b16 %v2163, %v2161
      %v2210 = vpack.c.b16 %v2166, %v2164
      %v2211 = vpack.c.b16 %v2167, %v2165
      %v2212 = vpack.c.b16 %v2170, %v2168
      %v2213 = vpack.c.b16 %v2171, %v2169
      %v2214 = vpack.c.b16 %v2174, %v2172
      %v2215 = vpack.c.b16 %v2175, %v2173
      %v2216 = vpack.c.b16 %v2178, %v2176
      %v2217 = vpack.c.b16 %v2179, %v2177
      %v2218 = vpack.c.b16 %v2182, %v2180
      %v2219 = vpack.c.b16 %v2183, %v2181
      %v2220 = vpack.c.b16 %v2186, %v2184
      %v2221 = vpack.c.b16 %v2187, %v2185
      %v2222 = vpack.c.b16 %v2190, %v2188
      %v2223 = vpack.c.b16 %v2191, %v2189
      %2256 = vmatprep.subr.bf16.mxu0 %v2193
      %2257 = vmatpush1.bf16.msra.mxu0 %v2192
      %2258 = vmatprep.subr.bf16.mxu0 %v2195
      %2259 = vmatpush1.bf16.msra.mxu0 %v2194
      %2260 = vmatprep.subr.bf16.mxu0 %v2197
      %2261 = vmatpush1.bf16.msra.mxu0 %v2196
      %2262 = vmatprep.subr.bf16.mxu0 %v2199
      %2263 = vmatpush1.bf16.msra.mxu0 %v2198
      %2264 = vmatprep.subr.bf16.mxu0 %v2201
      %2265 = vmatpush1.bf16.msra.mxu0 %v2200
      %2266 = vmatprep.subr.bf16.mxu0 %v2203
      %2267 = vmatpush1.bf16.msra.mxu0 %v2202
      %2268 = vmatprep.subr.bf16.mxu0 %v2205
      %2269 = vmatpush1.bf16.msra.mxu0 %v2204
      %2270 = vmatprep.subr.bf16.mxu0 %v2207
      %2271 = vmatpush1.bf16.msra.mxu0 %v2206
      %2272 = vmatprep.subr.bf16.mxu0 %v2209
      %2273 = vmatpush1.bf16.msra.mxu0 %v2208
      %2274 = vmatprep.subr.bf16.mxu0 %v2211
      %2275 = vmatpush1.bf16.msra.mxu0 %v2210
      %2276 = vmatprep.subr.bf16.mxu0 %v2213
      %2277 = vmatpush1.bf16.msra.mxu0 %v2212
      %2278 = vmatprep.subr.bf16.mxu0 %v2215
      %2279 = vmatpush1.bf16.msra.mxu0 %v2214
      %2280 = vmatprep.subr.bf16.mxu0 %v2217
      %2281 = vmatpush1.bf16.msra.mxu0 %v2216
      %2282 = vmatprep.subr.bf16.mxu0 %v2219
      %2283 = vmatpush1.bf16.msra.mxu0 %v2218
      %2284 = vmatprep.subr.bf16.mxu0 %v2221
      %2285 = vmatpush1.bf16.msra.mxu0 %v2220
      %2286 = vmatprep.subr.bf16.mxu0 %v2223
      %2287 = vmatpush1.bf16.msra.mxu0 %v2222
      %2288 = vmatprep.mubr.bf16.mxu0 %v2051
      %2289 = vmatmul.mubr.bf16.gmra.mrb[0].mxu0 %v2050
      %v2290 = vpop.f32.mrb[0].mxu0
      %v2291 = vadd.f32 %v2089, %v2290
      %v2292 = vpop.f32.mrb[0].mxu0
      %v2293 = vadd.f32 %v2093, %v2292
      %v2294 = vpop.f32.mrb[0].mxu0
      %v2295 = vadd.f32 %v2089, %v2294
      %v2296 = vpop.f32.mrb[0].mxu0
      %v2297 = vadd.f32 %v2093, %v2296
      %2298 = vdwg.mxu0
      %vm2299 = vcmp.ge.f32.partialorder %v2291, 0.0
      %vm2300 = vcmp.ge.f32.partialorder %v2293, 0.0
      %vm2301 = vcmp.ge.f32.partialorder %v2295, 0.0
      %vm2302 = vcmp.ge.f32.partialorder %v2297, 0.0
      %v2303 = vmul.f32 %v2291, 0.2
      %v2304 = vmul.f32 %v2293, 0.2
      %v2305 = vmul.f32 %v2295, 0.2
      %v2306 = vmul.f32 %v2297, 0.2
      %v2307 = vsel %vm2299, %v2291, %v2303
      %v2308 = vsel %vm2300, %v2293, %v2304
      %v2309 = vsel %vm2301, %v2295, %v2305
      %v2310 = vsel %vm2302, %v2297, %v2306
      %v2311 = vpack.c.bf16 %v2309, %v2307
      %v2312 = vpack.c.bf16 %v2310, %v2308
      %v2313 = vld [vmem:[%s11] sm:$0xf]
      %v2314 = vld [vmem:[%s11 + $0x4] sm:$0xf]
      %v2315 = vld [vmem:[%s11 + $0x8] sm:$0xf]
      %v2316 = vld [vmem:[%s11 + $0xc] sm:$0xf]
      %v2317 = vld [vmem:[%s11 + $0x10] sm:$0xf]
      %v2318 = vld [vmem:[%s11 + $0x14] sm:$0xf]
      %v2319 = vld [vmem:[%s11 + $0x18] sm:$0xf]
      %v2320 = vld [vmem:[%s11 + $0x1c] sm:$0xf]
      %v2321 = vld [vmem:[%s11 + $0x20] sm:$0xf]
      %v2322 = vld [vmem:[%s11 + $0x24] sm:$0xf]
      %v2323 = vld [vmem:[%s11 + $0x28] sm:$0xf]
      %v2324 = vld [vmem:[%s11 + $0x2c] sm:$0xf]
      %v2325 = vld [vmem:[%s11 + $0x30] sm:$0xf]
      %v2326 = vld [vmem:[%s11 + $0x34] sm:$0xf]
      %v2327 = vld [vmem:[%s11 + $0x38] sm:$0xf]
      %v2328 = vld [vmem:[%s11 + $0x3c] sm:$0xf]
      %v2329 = vld [vmem:[%s11 + $0x40] sm:$0xf]
      %v2330 = vld [vmem:[%s11 + $0x44] sm:$0xf]
      %v2331 = vld [vmem:[%s11 + $0x48] sm:$0xf]
      %v2332 = vld [vmem:[%s11 + $0x4c] sm:$0xf]
      %v2333 = vld [vmem:[%s11 + $0x50] sm:$0xf]
      %v2334 = vld [vmem:[%s11 + $0x54] sm:$0xf]
      %v2335 = vld [vmem:[%s11 + $0x58] sm:$0xf]
      %v2336 = vld [vmem:[%s11 + $0x5c] sm:$0xf]
      %v2337 = vld [vmem:[%s11 + $0x60] sm:$0xf]
      %v2338 = vld [vmem:[%s11 + $0x64] sm:$0xf]
      %v2339 = vld [vmem:[%s11 + $0x68] sm:$0xf]
      %v2340 = vld [vmem:[%s11 + $0x6c] sm:$0xf]
      %v2341 = vld [vmem:[%s11 + $0x70] sm:$0xf]
      %v2342 = vld [vmem:[%s11 + $0x74] sm:$0xf]
      %v2343 = vld [vmem:[%s11 + $0x78] sm:$0xf]
      %v2344 = vld [vmem:[%s11 + $0x7c] sm:$0xf]
      %v2345 = vld [vmem:[%s12] sm:$0x1]
      %v2347 = vlaneseq
      %v2348 = vshrl.u32 %v2347, 7
      %v2349 = vsub.s32 0, %v2348
      %v2350 = vrot.slane %v2345, %v2349
      %v2384 = vunpack.c.l.b16 %v2313
      %v2385 = vunpack.c.l.b16 %v2314
      %v2386 = vunpack.c.l.b16 %v2315
      %v2387 = vunpack.c.l.b16 %v2316
      %v2388 = vunpack.c.l.b16 %v2317
      %v2389 = vunpack.c.l.b16 %v2318
      %v2390 = vunpack.c.l.b16 %v2319
      %v2391 = vunpack.c.l.b16 %v2320
      %v2392 = vunpack.c.l.b16 %v2321
      %v2393 = vunpack.c.l.b16 %v2322
      %v2394 = vunpack.c.l.b16 %v2323
      %v2395 = vunpack.c.l.b16 %v2324
      %v2396 = vunpack.c.l.b16 %v2325
      %v2397 = vunpack.c.l.b16 %v2326
      %v2398 = vunpack.c.l.b16 %v2327
      %v2399 = vunpack.c.l.b16 %v2328
      %v2400 = vunpack.c.l.b16 %v2329
      %v2401 = vunpack.c.l.b16 %v2330
      %v2402 = vunpack.c.l.b16 %v2331
      %v2403 = vunpack.c.l.b16 %v2332
      %v2404 = vunpack.c.l.b16 %v2333
      %v2405 = vunpack.c.l.b16 %v2334
      %v2406 = vunpack.c.l.b16 %v2335
      %v2407 = vunpack.c.l.b16 %v2336
      %v2408 = vunpack.c.l.b16 %v2337
      %v2409 = vunpack.c.l.b16 %v2338
      %v2410 = vunpack.c.l.b16 %v2339
      %v2411 = vunpack.c.l.b16 %v2340
      %v2412 = vunpack.c.l.b16 %v2341
      %v2413 = vunpack.c.l.b16 %v2342
      %v2414 = vunpack.c.l.b16 %v2343
      %v2415 = vunpack.c.l.b16 %v2344
      %v2416 = vpack.c.b16 %v2385, %v2384
      %v2417 = vpack.c.b16 %v2387, %v2386
      %v2418 = vpack.c.b16 %v2389, %v2388
      %v2419 = vpack.c.b16 %v2391, %v2390
      %v2420 = vpack.c.b16 %v2393, %v2392
      %v2421 = vpack.c.b16 %v2395, %v2394
      %v2422 = vpack.c.b16 %v2397, %v2396
      %v2423 = vpack.c.b16 %v2399, %v2398
      %v2424 = vpack.c.b16 %v2401, %v2400
      %v2425 = vpack.c.b16 %v2403, %v2402
      %v2426 = vpack.c.b16 %v2405, %v2404
      %v2427 = vpack.c.b16 %v2407, %v2406
      %v2428 = vpack.c.b16 %v2409, %v2408
      %v2429 = vpack.c.b16 %v2411, %v2410
      %v2430 = vpack.c.b16 %v2413, %v2412
      %v2431 = vpack.c.b16 %v2415, %v2414
      %2448 = vmatprep.subr.bf16.mxu0 0
      %2449 = vmatpush1.bf16.msra.mxu0 %v2416
      %2450 = vmatprep.subr.bf16.mxu0 0
      %2451 = vmatpush1.bf16.msra.mxu0 %v2417
      %2452 = vmatprep.subr.bf16.mxu0 0
      %2453 = vmatpush1.bf16.msra.mxu0 %v2418
      %2454 = vmatprep.subr.bf16.mxu0 0
      %2455 = vmatpush1.bf16.msra.mxu0 %v2419
      %2456 = vmatprep.subr.bf16.mxu0 0
      %2457 = vmatpush1.bf16.msra.mxu0 %v2420
      %2458 = vmatprep.subr.bf16.mxu0 0
      %2459 = vmatpush1.bf16.msra.mxu0 %v2421
      %2460 = vmatprep.subr.bf16.mxu0 0
      %2461 = vmatpush1.bf16.msra.mxu0 %v2422
      %2462 = vmatprep.subr.bf16.mxu0 0
      %2463 = vmatpush1.bf16.msra.mxu0 %v2423
      %2464 = vmatprep.subr.bf16.mxu0 0
      %2465 = vmatpush1.bf16.msra.mxu0 %v2424
      %2466 = vmatprep.subr.bf16.mxu0 0
      %2467 = vmatpush1.bf16.msra.mxu0 %v2425
      %2468 = vmatprep.subr.bf16.mxu0 0
      %2469 = vmatpush1.bf16.msra.mxu0 %v2426
      %2470 = vmatprep.subr.bf16.mxu0 0
      %2471 = vmatpush1.bf16.msra.mxu0 %v2427
      %2472 = vmatprep.subr.bf16.mxu0 0
      %2473 = vmatpush1.bf16.msra.mxu0 %v2428
      %2474 = vmatprep.subr.bf16.mxu0 0
      %2475 = vmatpush1.bf16.msra.mxu0 %v2429
      %2476 = vmatprep.subr.bf16.mxu0 0
      %2477 = vmatpush1.bf16.msra.mxu0 %v2430
      %2478 = vmatprep.subr.bf16.mxu0 0
      %2479 = vmatpush1.bf16.msra.mxu0 %v2431
      %2480 = vmatprep.mubr.bf16.mxu0 %v2312
      %2481 = vmatmul.mubr.bf16.gmra.mrb[0].mxu0 %v2311
      %v2482 = vpop.f32.mrb[0].mxu0
      %v2483 = vadd.f32 %v2350, %v2482
      %v2484 = vpop.f32.mrb[0].mxu0
      %v2485 = vpop.f32.mrb[0].mxu0
      %v2486 = vadd.f32 %v2350, %v2485
      %v2487 = vpop.f32.mrb[0].mxu0
      %2488 = vdwg.mxu0
      %vm2489 = vcmp.ge.f32.partialorder %v2483, 0.0
      %vm2490 = vcmp.ge.f32.partialorder %v2486, 0.0
      %v2491 = vmul.f32 %v2483, 0.2
      %v2492 = vmul.f32 %v2486, 0.2
      %v2493 = vsel %vm2489, %v2483, %v2491
      %v2494 = vsel %vm2490, %v2486, %v2492
      %v2495 = vpack.c.bf16 %v2494, %v2493
      %v2496 = vld [vmem:[%s13] sm:$0xf]
      %v2497 = vld [vmem:[%s13 + $0x4] sm:$0xf]
      %v2498 = vld [vmem:[%s13 + $0x8] sm:$0xf]
      %v2499 = vld [vmem:[%s13 + $0xc] sm:$0xf]
      %v2500 = vld [vmem:[%s13 + $0x10] sm:$0xf]
      %v2501 = vld [vmem:[%s13 + $0x14] sm:$0xf]
      %v2502 = vld [vmem:[%s13 + $0x18] sm:$0xf]
      %v2503 = vld [vmem:[%s13 + $0x1c] sm:$0xf]
      %v2504 = vld [vmem:[%s13 + $0x20] sm:$0xf]
      %v2505 = vld [vmem:[%s13 + $0x24] sm:$0xf]
      %v2506 = vld [vmem:[%s13 + $0x28] sm:$0xf]
      %v2507 = vld [vmem:[%s13 + $0x2c] sm:$0xf]
      %v2508 = vld [vmem:[%s13 + $0x30] sm:$0xf]
      %v2509 = vld [vmem:[%s13 + $0x34] sm:$0xf]
      %v2510 = vld [vmem:[%s13 + $0x38] sm:$0xf]
      %v2511 = vld [vmem:[%s13 + $0x3c] sm:$0xf]
      %v2512 = vld [vmem:[%s14] sm:$0x1]
      %v2514 = vlaneseq
      %v2515 = vshrl.u32 %v2514, 7
      %v2516 = vsub.s32 0, %v2515
      %v2517 = vrot.slane %v2512, %v2516
      %v2535 = vunpack.c.l.b16 %v2496
      %v2536 = vunpack.c.l.b16 %v2497
      %v2537 = vunpack.c.l.b16 %v2498
      %v2538 = vunpack.c.l.b16 %v2499
      %v2539 = vunpack.c.l.b16 %v2500
      %v2540 = vunpack.c.l.b16 %v2501
      %v2541 = vunpack.c.l.b16 %v2502
      %v2542 = vunpack.c.l.b16 %v2503
      %v2543 = vunpack.c.l.b16 %v2504
      %v2544 = vunpack.c.l.b16 %v2505
      %v2545 = vunpack.c.l.b16 %v2506
      %v2546 = vunpack.c.l.b16 %v2507
      %v2547 = vunpack.c.l.b16 %v2508
      %v2548 = vunpack.c.l.b16 %v2509
      %v2549 = vunpack.c.l.b16 %v2510
      %v2550 = vunpack.c.l.b16 %v2511
      %v2551 = vpack.c.b16 %v2536, %v2535
      %v2552 = vpack.c.b16 %v2538, %v2537
      %v2553 = vpack.c.b16 %v2540, %v2539
      %v2554 = vpack.c.b16 %v2542, %v2541
      %v2555 = vpack.c.b16 %v2544, %v2543
      %v2556 = vpack.c.b16 %v2546, %v2545
      %v2557 = vpack.c.b16 %v2548, %v2547
      %v2558 = vpack.c.b16 %v2550, %v2549
      %2567 = vmatprep.subr.bf16.mxu0 0
      %2568 = vmatpush1.bf16.msra.mxu0 %v2551
      %2569 = vmatprep.subr.bf16.mxu0 0
      %2570 = vmatpush1.bf16.msra.mxu0 %v2552
      %2571 = vmatprep.subr.bf16.mxu0 0
      %2572 = vmatpush1.bf16.msra.mxu0 %v2553
      %2573 = vmatprep.subr.bf16.mxu0 0
      %2574 = vmatpush1.bf16.msra.mxu0 %v2554
      %2575 = vmatprep.subr.bf16.mxu0 0
      %2576 = vmatpush1.bf16.msra.mxu0 %v2555
      %2577 = vmatprep.subr.bf16.mxu0 0
      %2578 = vmatpush1.bf16.msra.mxu0 %v2556
      %2579 = vmatprep.subr.bf16.mxu0 0
      %2580 = vmatpush1.bf16.msra.mxu0 %v2557
      %2581 = vmatprep.subr.bf16.mxu0 0
      %2582 = vmatpush1.bf16.msra.mxu0 %v2558
      %2583 = vmatprep.subr.bf16.mxu0 0
      %2584 = vmatpush1.bf16.msra.mxu0 0
      %2585 = vmatprep.subr.bf16.mxu0 0
      %2586 = vmatpush1.bf16.msra.mxu0 0
      %2587 = vmatprep.subr.bf16.mxu0 0
      %2588 = vmatpush1.bf16.msra.mxu0 0
      %2589 = vmatprep.subr.bf16.mxu0 0
      %2590 = vmatpush1.bf16.msra.mxu0 0
      %2591 = vmatprep.subr.bf16.mxu0 0
      %2592 = vmatpush1.bf16.msra.mxu0 0
      %2593 = vmatprep.subr.bf16.mxu0 0
      %2594 = vmatpush1.bf16.msra.mxu0 0
      %2595 = vmatprep.subr.bf16.mxu0 0
      %2596 = vmatpush1.bf16.msra.mxu0 0
      %2597 = vmatprep.subr.bf16.mxu0 0
      %2598 = vmatpush1.bf16.msra.mxu0 0
      %2599 = vmatprep.mubr.bf16.mxu0 0
      %2600 = vmatmul.mubr.bf16.gmra.mrb[0].mxu0 %v2495
      %v2601 = vpop.f32.mrb[0].mxu0
      %v2602 = vadd.f32 %v2517, %v2601
      %v2603 = vpop.f32.mrb[0].mxu0
      %v2604 = vpop.f32.mrb[0].mxu0
      %v2605 = vadd.f32 %v2517, %v2604
      %v2606 = vpop.f32.mrb[0].mxu0
      %2607 = vdwg.mxu0
      %2608 = vst [vmem:[%s621] sm:$0xff] %v2602
      %2609 = vst [vmem:[%s621 + $0x8] sm:$0xff] %v2605
      %s2610 = smul.u32 2, %s31
      %p2611 = scmp.lt.s32.totalorder %s30, 1
      %s2612 = scalar_select %p2611, %s30, 1
      %p2613 = scmp.lt.s32.totalorder %s2610, 1
      %s2614 = scalar_select %p2613, %s2610, 1
      %s2615 = smul.addr %s2612, 2
      %s2616 = sadd.s32 %s2614, %s2615
      %s2617 = smul.addr %s2616, 8
      %s2618 = scalar_lea.vmem %s15, %s2617
      // Predicated region
      $region81: #{dgcnn_pseg_forward.15} parent=79 // pred_check
        %p2619 = pneg %p399
      $region82: #{dgcnn_pseg_forward.15} parent=79 // pred_check_branch
        %2621 = sbr.rel (%p2619) target = $region84
      $region83: #{dgcnn_pseg_forward.15} parent=79 // pred_region
        %s2622 = smul.u32 2, %s31
      $region84: #{dgcnn_pseg_forward.15} parent=79 // pred_fallthru
        _
    $region80: #{dgcnn_pseg_forward.15} parent=5 // pred_fallthru
      _
    %p2623 = scmp.le.s32.totalorder 2, %s21
    // Predicated region
    $region85: #{dgcnn_pseg_forward.15} parent=5 // pred_check
      %p2624 = pneg %p2623
    $region86: #{dgcnn_pseg_forward.15} parent=5 // pred_check_branch
      %2626 = sbr.rel (%p2624) target = $region88
    $region87: #{dgcnn_pseg_forward.15} parent=5 // pred_region
      %s2627 = ssub.s32 %s21, 2
      // Predicated region
      $region89: #{dgcnn_pseg_forward.15} parent=87 // pred_check
        %p2628 = pneg %p405
      $region90: #{dgcnn_pseg_forward.15} parent=87 // pred_check_branch
        %2630 = sbr.rel (%p2628) target = $region92
      $region91: #{dgcnn_pseg_forward.15} parent=87 // pred_region
        %s2631 = smul.u32 2, %s33
        %p2632 = scmp.lt.s32.totalorder %s32, 1
        %s2633 = scalar_select %p2632, %s32, 1
        %p2634 = scmp.lt.s32.totalorder %s2631, 1
        %s2635 = scalar_select %p2634, %s2631, 1
        %s2636 = smul.addr %s2633, 2
        %s2637 = sadd.s32 %s2635, %s2636
        %s2638 = smul.addr %s2637, 8
        %s2639 = scalar_lea.vmem %s15, %s2638
      $region92: #{dgcnn_pseg_forward.15} parent=87 // pred_fallthru
        _
    $region88: #{dgcnn_pseg_forward.15} parent=5 // pred_fallthru
      _
  $region6: #{dgcnn_pseg_forward.15} parent=0 // loop_footer
    %s25 = sadd.s32 1, %s21
  $region7: #{dgcnn_pseg_forward.15} parent=0 // loop_footer_branch
    %20 = sbr.rel target = $region3
  $region8: #{dgcnn_pseg_forward.15} parent=0 // loop_exit
    _

</llo_original>
